<compile_context>
chip_gen: v7x
topology: tpu7x:2x2x1
jax: 0.10.0
libtpu: 0.0.40
codegen_flags: <defaults>
</compile_context>

<pallas_src>
import jax
import jax.numpy as jnp
from jax.experimental import pallas as pl
from jax.experimental.pallas import tpu as pltpu

_EPS = 1e-5


def _round_up(x, m):
    return (x + m - 1) // m * m


def _row_tiling(rows, max_tile):
    """Pad row count to a multiple of 8 (or of max_tile) and pick the tile."""
    rp = _round_up(max(rows, 8), 8)
    if rp <= max_tile:
        return rp, rp
    rp = _round_up(rp, max_tile)
    return rp, max_tile


# ----------------------------------------------------------------------------
# Pallas kernels (single-pass GEMM chains, BN folded into scale/shift)
# ----------------------------------------------------------------------------
def _fc_kernel(x_ref, w1_ref, s1_ref, t1_ref, w2_ref, s2_ref, t2_ref, o_ref):
    # h = relu(BN1d(x @ W1 + b1))          (bias folded into t1)
    h = jnp.dot(x_ref[...], w1_ref[...], preferred_element_type=jnp.float32)
    h = jnp.maximum(h * s1_ref[...] + t1_ref[...], 0.0)
    # z = relu(BN2d_32(h @ W2 + b2))       (bias/BN folded; columns already
    #                                       permuted to pixel-major order)
    z = jnp.dot(h.astype(jnp.bfloat16), w2_ref[...],
                preferred_element_type=jnp.float32)
    z = jnp.maximum(z * s2_ref[...] + t2_ref[...], 0.0)
    o_ref[...] = z.astype(o_ref.dtype)


def _head_kernel(a_ref, w1_ref, s1_ref, t1_ref, w2_ref, s2_ref, t2_ref,
                 w3_ref, s3_ref, t3_ref, o_ref):
    # rows = (batch * 7 * 7) pixels, columns = channels (padded to 128 lanes).
    h = jnp.dot(a_ref[...], w1_ref[...], preferred_element_type=jnp.float32)
    h = jnp.maximum(h * s1_ref[...] + t1_ref[...], 0.0)          # conv1+BN+ReLU
    h = jnp.dot(h.astype(jnp.bfloat16), w2_ref[...],
                preferred_element_type=jnp.float32)
    h = jnp.maximum(h * s2_ref[...] + t2_ref[...], 0.0)          # conv2+BN+ReLU
    h = jnp.dot(h.astype(jnp.bfloat16), w3_ref[...],
                preferred_element_type=jnp.float32)
    o_ref[...] = (h * s3_ref[...] + t3_ref[...]).astype(o_ref.dtype)  # conv3


_COMPILER_PARAMS = pltpu.CompilerParams(
    dimension_semantics=("parallel",),
    vmem_limit_bytes=32 * 1024 * 1024,
)


def _fc_block(x_p, prep, tm):
    mp = x_p.shape[0]
    k1, n1 = prep["w1"].shape          # (128, 1024)
    k2, n2 = prep["w2"].shape          # (1024, 1664)
    return pl.pallas_call(
        _fc_kernel,
        out_shape=jax.ShapeDtypeStruct((mp, n2), jnp.bfloat16),
        grid_spec=pltpu.PrefetchScalarGridSpec(
            num_scalar_prefetch=0,
            grid=(mp // tm,),
            in_specs=[
                pl.BlockSpec((tm, k1), lambda i: (i, 0)),
                pl.BlockSpec((k1, n1), lambda i: (0, 0)),
                pl.BlockSpec((1, n1), lambda i: (0, 0)),
                pl.BlockSpec((1, n1), lambda i: (0, 0)),
                pl.BlockSpec((k2, n2), lambda i: (0, 0)),
                pl.BlockSpec((1, n2), lambda i: (0, 0)),
                pl.BlockSpec((1, n2), lambda i: (0, 0)),
            ],
            out_specs=pl.BlockSpec((tm, n2), lambda i: (i, 0)),
        ),
        compiler_params=_COMPILER_PARAMS,
    )(x_p, prep["w1"], prep["s1"], prep["t1"],
      prep["w2"], prep["s2"], prep["t2"])


def _head_block(a_p, prep, tr):
    rp = a_p.shape[0]
    c = 128                            # padded channel width everywhere
    return pl.pallas_call(
        _head_kernel,
        out_shape=jax.ShapeDtypeStruct((rp, c), jnp.float32),
        grid_spec=pltpu.PrefetchScalarGridSpec(
            num_scalar_prefetch=0,
            grid=(rp // tr,),
            in_specs=[
                pl.BlockSpec((tr, c), lambda i: (i, 0)),
                pl.BlockSpec((c, c), lambda i: (0, 0)),
                pl.BlockSpec((1, c), lambda i: (0, 0)),
                pl.BlockSpec((1, c), lambda i: (0, 0)),
                pl.BlockSpec((c, c), lambda i: (0, 0)),
                pl.BlockSpec((1, c), lambda i: (0, 0)),
                pl.BlockSpec((1, c), lambda i: (0, 0)),
                pl.BlockSpec((c, c), lambda i: (0, 0)),
                pl.BlockSpec((1, c), lambda i: (0, 0)),
                pl.BlockSpec((1, c), lambda i: (0, 0)),
            ],
            out_specs=pl.BlockSpec((tr, c), lambda i: (i, 0)),
        ),
        compiler_params=_COMPILER_PARAMS,
    )(a_p, prep["cw1"], prep["cs1"], prep["ct1"],
      prep["cw2"], prep["cs2"], prep["ct2"],
      prep["cw3"], prep["cs3"], prep["ct3"])


# ----------------------------------------------------------------------------
# One-time parameter re-layout (outside jit): (K,N) transposes, BN folding,
# pixel-major column permutation for fc2, bf16 cast, lane padding.
# ----------------------------------------------------------------------------
def prepare_params(p):
    def fold(gamma, beta, mean, var, bias):
        s = gamma / jnp.sqrt(var + _EPS)
        t = beta + (bias - mean) * s
        return s, t

    def pad2(a, rows, cols):
        return jnp.pad(a, ((0, rows - a.shape[0]), (0, cols - a.shape[1])))

    prep = {}

    # fc1: Linear(128,1024) + BN1d(1024)  (+ReLU fused in kernel)
    s1, t1 = fold(p["bn1_g"], p["bn1_b"], p["bn1_m"], p["bn1_v"], p["fc1_b"])
    prep["w1"] = p["fc1_w"].T.astype(jnp.bfloat16)               # (128, 1024)
    prep["s1"] = s1.reshape(1, -1).astype(jnp.float32)
    prep["t1"] = t1.reshape(1, -1).astype(jnp.float32)

    # fc2: Linear(1024,1568); output viewed as (32,7,7) then BN2d(32)+ReLU.
    # Permute columns from k = c*49 + p to j = p*32 + c so the activation
    # leaves the kernel already in pixel-major, channels-last row order.
    j = jnp.arange(32 * 49)
    perm = (j % 32) * 49 + (j // 32)
    s_a = p["bna_g"] / jnp.sqrt(p["bna_v"] + _EPS)
    s2 = jnp.tile(s_a, 49)
    t2 = jnp.tile(p["bna_b"], 49) + (p["fc2_b"][perm] - jnp.tile(p["bna_m"], 49)) * s2
    n2p = _round_up(32 * 49, 128)                                 # 1664
    w2 = p["fc2_w"].T[:, perm]                                    # (1024, 1568)
    prep["w2"] = pad2(w2, 1024, n2p).astype(jnp.bfloat16)
    prep["s2"] = pad2(s2.reshape(1, -1), 1, n2p).astype(jnp.float32)
    prep["t2"] = pad2(t2.reshape(1, -1), 1, n2p).astype(jnp.float32)

    # Conv head (all 1x1 convs == per-pixel GEMMs); channels padded to 128
    # lanes with zeros (padded outputs stay exactly zero through the chain).
    cs1, ct1 = fold(p["bnb_g"], p["bnb_b"], p["bnb_m"], p["bnb_v"], p["cv1_b"])
    prep["cw1"] = pad2(p["cv1_w"][:, :, 0, 0].T, 128, 128).astype(jnp.bfloat16)
    prep["cs1"] = pad2(cs1.reshape(1, -1), 1, 128).astype(jnp.float32)
    prep["ct1"] = pad2(ct1.reshape(1, -1), 1, 128).astype(jnp.float32)

    cs2, ct2 = fold(p["bnc_g"], p["bnc_b"], p["bnc_m"], p["bnc_v"], p["cv2_b"])
    prep["cw2"] = pad2(p["cv2_w"][:, :, 0, 0].T, 128, 128).astype(jnp.bfloat16)
    prep["cs2"] = pad2(cs2.reshape(1, -1), 1, 128).astype(jnp.float32)
    prep["ct2"] = pad2(ct2.reshape(1, -1), 1, 128).astype(jnp.float32)

    prep["cw3"] = pad2(p["cv3_w"][:, :, 0, 0].T, 128, 128).astype(jnp.bfloat16)
    prep["cs3"] = pad2(jnp.ones((1, 3), jnp.float32), 1, 128)
    prep["ct3"] = pad2(p["cv3_b"].reshape(1, -1), 1, 128).astype(jnp.float32)
    return prep


# ----------------------------------------------------------------------------
# Forward (jitted hot path: 2 pallas_calls + tiny reshape/upsample glue)
# ----------------------------------------------------------------------------
def pallas_forward(x, prep):
    n = x.shape[0]
    mp, tm = _row_tiling(n, 128)
    x_p = jnp.pad(x, ((0, mp - n), (0, 0))).astype(jnp.bfloat16)

    z = _fc_block(x_p, prep, tm)                                   # (mp, 1664) bf16

    # pixel-major rows: (n*49, 32) channels-last activations at 7x7 resolution
    rows = n * 49
    a = z[:n, : 32 * 49].reshape(rows, 32)
    rp, tr = _row_tiling(rows, 512)
    a_p = jnp.pad(a, ((0, rp - rows), (0, 128 - 32)))

    o = _head_block(a_p, prep, tr)                                 # (rp, 128) f32

    img = o[:rows, :3].reshape(n, 7, 7, 3).transpose(0, 3, 1, 2)   # (n, 3, 7, 7)
    # 1x1 convs / BN / ReLU commute with nearest upsampling -> one x4 upsample
    img = jnp.repeat(jnp.repeat(img, 4, axis=2), 4, axis=3)        # (n, 3, 28, 28)
    return img


# ----------------------------------------------------------------------------
# Pure-JAX reference (literal op order of the PyTorch module, eval mode)
# ----------------------------------------------------------------------------
def ref_forward(x, p):
    def bn2d(y, g, b, m, v):
        inv = (g / jnp.sqrt(v + _EPS))[None, :, None, None]
        return (y - m[None, :, None, None]) * inv + b[None, :, None, None]

    h = x @ p["fc1_w"].T + p["fc1_b"]
    h = (h - p["bn1_m"]) / jnp.sqrt(p["bn1_v"] + _EPS) * p["bn1_g"] + p["bn1_b"]
    h = jnp.maximum(h, 0.0)
    z = h @ p["fc2_w"].T + p["fc2_b"]
    y = z.reshape(-1, 32, 7, 7)
    y = jnp.maximum(bn2d(y, p["bna_g"], p["bna_b"], p["bna_m"], p["bna_v"]), 0.0)
    y = jnp.repeat(jnp.repeat(y, 2, axis=2), 2, axis=3)                       # 14x14
    y = jnp.einsum("nchw,oc->nohw", y, p["cv1_w"][:, :, 0, 0]) \
        + p["cv1_b"][None, :, None, None]
    y = jnp.maximum(bn2d(y, p["bnb_g"], p["bnb_b"], p["bnb_m"], p["bnb_v"]), 0.0)
    y = jnp.repeat(jnp.repeat(y, 2, axis=2), 2, axis=3)                       # 28x28
    y = jnp.einsum("nchw,oc->nohw", y, p["cv2_w"][:, :, 0, 0]) \
        + p["cv2_b"][None, :, None, None]
    y = jnp.maximum(bn2d(y, p["bnc_g"], p["bnc_b"], p["bnc_m"], p["bnc_v"]), 0.0)
    y = jnp.einsum("nchw,oc->nohw", y, p["cv3_w"][:, :, 0, 0]) \
        + p["cv3_b"][None, :, None, None]
    return y


# ----------------------------------------------------------------------------
def init_params(key):
    def uinit(k, shape, fan_in):
        bound = 1.0 / float(fan_in) ** 0.5
        return jax.random.uniform(k, shape, jnp.float32, -bound, bound)

    def bn(k, n):
        kg, kb, km, kv = jax.random.split(k, 4)
        return (jax.random.uniform(kg, (n,), jnp.float32, 0.5, 1.5),
                jax.random.uniform(kb, (n,), jnp.float32, -0.5, 0.5),
                jax.random.uniform(km, (n,), jnp.float32, -0.5, 0.5),
                jax.random.uniform(kv, (n,), jnp.float32, 0.5, 1.5))

    ks = jax.random.split(key, 14)
    p = {}
    p["fc1_w"] = uinit(ks[0], (1024, 128), 128)
    p["fc1_b"] = uinit(ks[1], (1024,), 128)
    p["bn1_g"], p["bn1_b"], p["bn1_m"], p["bn1_v"] = bn(ks[2], 1024)
    p["fc2_w"] = uinit(ks[3], (1568, 1024), 1024)
    p["fc2_b"] = uinit(ks[4], (1568,), 1024)
    p["bna_g"], p["bna_b"], p["bna_m"], p["bna_v"] = bn(ks[5], 32)
    p["cv1_w"] = uinit(ks[6], (64, 32, 1, 1), 32)
    p["cv1_b"] = uinit(ks[7], (64,), 32)
    p["bnb_g"], p["bnb_b"], p["bnb_m"], p["bnb_v"] = bn(ks[8], 64)
    p["cv2_w"] = uinit(ks[9], (64, 64, 1, 1), 64)
    p["cv2_b"] = uinit(ks[10], (64,), 64)
    p["bnc_g"], p["bnc_b"], p["bnc_m"], p["bnc_v"] = bn(ks[11], 64)
    p["cv3_w"] = uinit(ks[12], (3, 64, 1, 1), 64)
    p["cv3_b"] = uinit(ks[13], (3,), 64)
    return p


if __name__ == "__main__":
    key = jax.random.PRNGKey(0)
    pkey, xkey = jax.random.split(key)
    params = init_params(pkey)
    prep = prepare_params(params)          # one-time weight re-layout (not jitted)

    batch = 2
    x = jax.random.normal(xkey, (batch, 128), jnp.float32)

    out = jax.jit(pallas_forward)(x, prep)
    jax.block_until_ready(out)
    assert out.shape == (batch, 3, 28, 28), out.shape

    ref = jax.jit(ref_forward)(x, params)
    jax.block_until_ready(ref)

    rel = float(jnp.max(jnp.abs(out - ref)) / (jnp.max(jnp.abs(ref)) + 1e-6))
    assert rel < 3e-2, rel                 # bf16 weight/activation streaming

    print("KERNEL_OK")
</pallas_src>

<mosaic_0001>
module attributes {stable_mosaic.version = 11 : i64} {
  func.func @_fc_kernel(%arg0: i32, %arg1: memref<8x128xbf16, #tpu.memory_space<vmem>>, %arg2: memref<128x1024xbf16, #tpu.memory_space<vmem>>, %arg3: memref<1x1024xf32, #tpu.memory_space<vmem>>, %arg4: memref<1x1024xf32, #tpu.memory_space<vmem>>, %arg5: memref<1024x1664xbf16, #tpu.memory_space<vmem>>, %arg6: memref<1x1664xf32, #tpu.memory_space<vmem>>, %arg7: memref<1x1664xf32, #tpu.memory_space<vmem>>, %arg8: memref<8x1664xbf16, #tpu.memory_space<vmem>>) attributes {dimension_semantics = [#tpu.dimension_semantics<parallel>], iteration_bounds = array<i64: 1>, scalar_prefetch = 0 : i64, scratch_operands = 0 : i64, tpu.core_type = #tpu.core_type<tc>, window_params = [{transform_indices = @transform_0, window_bounds = array<i64: 8, 128>}, {pipeline_mode = #tpu.pipeline_mode<synchronous>, transform_indices = @transform_1, window_bounds = array<i64: 128, 1024>}, {pipeline_mode = #tpu.pipeline_mode<synchronous>, transform_indices = @transform_2, window_bounds = array<i64: 1, 1024>}, {pipeline_mode = #tpu.pipeline_mode<synchronous>, transform_indices = @transform_3, window_bounds = array<i64: 1, 1024>}, {pipeline_mode = #tpu.pipeline_mode<synchronous>, transform_indices = @transform_4, window_bounds = array<i64: 1024, 1664>}, {pipeline_mode = #tpu.pipeline_mode<synchronous>, transform_indices = @transform_5, window_bounds = array<i64: 1, 1664>}, {pipeline_mode = #tpu.pipeline_mode<synchronous>, transform_indices = @transform_6, window_bounds = array<i64: 1, 1664>}, {transform_indices = @transform_7, window_bounds = array<i64: 8, 1664>}]} {
    %c0 = arith.constant 0 : index
    %c0_0 = arith.constant 0 : index
    %0 = vector.load %arg1[%c0, %c0_0] : memref<8x128xbf16, #tpu.memory_space<vmem>>, vector<8x128xbf16>
    %c0_1 = arith.constant 0 : index
    %c0_2 = arith.constant 0 : index
    %1 = vector.load %arg2[%c0_1, %c0_2] : memref<128x1024xbf16, #tpu.memory_space<vmem>>, vector<128x1024xbf16>
    %cst = arith.constant dense<0.000000e+00> : vector<8x1024xf32>
    %2 = tpu.matmul %0, %1, %cst {dimension_numbers = #tpu.dot_dimension_numbers<[1], [0], [0], [1], [0, 0, 1, 1], [], []>} : vector<8x128xbf16>, vector<128x1024xbf16>, vector<8x1024xf32> -> vector<8x1024xf32>
    %c0_3 = arith.constant 0 : index
    %c0_4 = arith.constant 0 : index
    %3 = vector.load %arg3[%c0_3, %c0_4] : memref<1x1024xf32, #tpu.memory_space<vmem>>, vector<1x1024xf32>
    %4 = vector.broadcast %3 : vector<1x1024xf32> to vector<8x1024xf32>
    %5 = arith.mulf %2, %4 : vector<8x1024xf32>
    %c0_5 = arith.constant 0 : index
    %c0_6 = arith.constant 0 : index
    %6 = vector.load %arg4[%c0_5, %c0_6] : memref<1x1024xf32, #tpu.memory_space<vmem>>, vector<1x1024xf32>
    %7 = vector.broadcast %6 : vector<1x1024xf32> to vector<8x1024xf32>
    %8 = arith.addf %5, %7 : vector<8x1024xf32>
    %cst_7 = arith.constant 0.000000e+00 : f32
    %9 = vector.broadcast %cst_7 : f32 to vector<8x1024xf32>
    %10 = arith.maximumf %8, %9 : vector<8x1024xf32>
    %11 = arith.truncf %10 : vector<8x1024xf32> to vector<8x1024xbf16>
    %c0_8 = arith.constant 0 : index
    %c0_9 = arith.constant 0 : index
    %12 = vector.load %arg5[%c0_8, %c0_9] : memref<1024x1664xbf16, #tpu.memory_space<vmem>>, vector<1024x1664xbf16>
    %cst_10 = arith.constant dense<0.000000e+00> : vector<8x1664xf32>
    %13 = tpu.matmul %11, %12, %cst_10 {dimension_numbers = #tpu.dot_dimension_numbers<[1], [0], [0], [1], [0, 0, 1, 1], [], []>} : vector<8x1024xbf16>, vector<1024x1664xbf16>, vector<8x1664xf32> -> vector<8x1664xf32>
    %c0_11 = arith.constant 0 : index
    %c0_12 = arith.constant 0 : index
    %14 = vector.load %arg6[%c0_11, %c0_12] : memref<1x1664xf32, #tpu.memory_space<vmem>>, vector<1x1664xf32>
    %15 = vector.broadcast %14 : vector<1x1664xf32> to vector<8x1664xf32>
    %16 = arith.mulf %13, %15 : vector<8x1664xf32>
    %c0_13 = arith.constant 0 : index
    %c0_14 = arith.constant 0 : index
    %17 = vector.load %arg7[%c0_13, %c0_14] : memref<1x1664xf32, #tpu.memory_space<vmem>>, vector<1x1664xf32>
    %18 = vector.broadcast %17 : vector<1x1664xf32> to vector<8x1664xf32>
    %19 = arith.addf %16, %18 : vector<8x1664xf32>
    %cst_15 = arith.constant 0.000000e+00 : f32
    %20 = vector.broadcast %cst_15 : f32 to vector<8x1664xf32>
    %21 = arith.maximumf %19, %20 : vector<8x1664xf32>
    %22 = arith.truncf %21 : vector<8x1664xf32> to vector<8x1664xbf16>
    %c0_16 = arith.constant 0 : index
    %c0_17 = arith.constant 0 : index
    %23 = vector.load %arg8[%c0_16, %c0_17] : memref<8x1664xbf16, #tpu.memory_space<vmem>>, vector<8x1664xbf16>
    tpu.vector_store %arg8[%c0_16, %c0_17], %22 {strides = array<i32>} : memref<8x1664xbf16, #tpu.memory_space<vmem>>, vector<8x1664xbf16>,
    return
  }
  func.func @transform_0(%arg0: i32) -> (i32, i32) {
    %c0_i32 = arith.constant 0 : i32
    %c0_i32_0 = arith.constant 0 : i32
    return %arg0, %c0_i32 : i32, i32
  }
  func.func @transform_1(%arg0: i32) -> (i32, i32) {
    %c0_i32 = arith.constant 0 : i32
    %c0_i32_0 = arith.constant 0 : i32
    %c0_i32_1 = arith.constant 0 : i32
    return %c0_i32, %c0_i32_0 : i32, i32
  }
  func.func @transform_2(%arg0: i32) -> (i32, i32) {
    %c0_i32 = arith.constant 0 : i32
    %c0_i32_0 = arith.constant 0 : i32
    %c0_i32_1 = arith.constant 0 : i32
    return %c0_i32, %c0_i32_0 : i32, i32
  }
  func.func @transform_3(%arg0: i32) -> (i32, i32) {
    %c0_i32 = arith.constant 0 : i32
    %c0_i32_0 = arith.constant 0 : i32
    %c0_i32_1 = arith.constant 0 : i32
    return %c0_i32, %c0_i32_0 : i32, i32
  }
  func.func @transform_4(%arg0: i32) -> (i32, i32) {
    %c0_i32 = arith.constant 0 : i32
    %c0_i32_0 = arith.constant 0 : i32
    %c0_i32_1 = arith.constant 0 : i32
    return %c0_i32, %c0_i32_0 : i32, i32
  }
  func.func @transform_5(%arg0: i32) -> (i32, i32) {
    %c0_i32 = arith.constant 0 : i32
    %c0_i32_0 = arith.constant 0 : i32
    %c0_i32_1 = arith.constant 0 : i32
    return %c0_i32, %c0_i32_0 : i32, i32
  }
  func.func @transform_6(%arg0: i32) -> (i32, i32) {
    %c0_i32 = arith.constant 0 : i32
    %c0_i32_0 = arith.constant 0 : i32
    %c0_i32_1 = arith.constant 0 : i32
    return %c0_i32, %c0_i32_0 : i32, i32
  }
  func.func @transform_7(%arg0: i32) -> (i32, i32) {
    %c0_i32 = arith.constant 0 : i32
    %c0_i32_0 = arith.constant 0 : i32
    return %arg0, %c0_i32 : i32, i32
  }
}

module attributes {stable_mosaic.version = 11 : i64} {
  func.func @_head_kernel(%arg0: i32, %arg1: memref<104x128xbf16, #tpu.memory_space<vmem>>, %arg2: memref<128x128xbf16, #tpu.memory_space<vmem>>, %arg3: memref<1x128xf32, #tpu.memory_space<vmem>>, %arg4: memref<1x128xf32, #tpu.memory_space<vmem>>, %arg5: memref<128x128xbf16, #tpu.memory_space<vmem>>, %arg6: memref<1x128xf32, #tpu.memory_space<vmem>>, %arg7: memref<1x128xf32, #tpu.memory_space<vmem>>, %arg8: memref<128x128xbf16, #tpu.memory_space<vmem>>, %arg9: memref<1x128xf32, #tpu.memory_space<vmem>>, %arg10: memref<1x128xf32, #tpu.memory_space<vmem>>, %arg11: memref<104x128xf32, #tpu.memory_space<vmem>>) attributes {dimension_semantics = [#tpu.dimension_semantics<parallel>], iteration_bounds = array<i64: 1>, scalar_prefetch = 0 : i64, scratch_operands = 0 : i64, tpu.core_type = #tpu.core_type<tc>, window_params = [{transform_indices = @transform_0, window_bounds = array<i64: 104, 128>}, {pipeline_mode = #tpu.pipeline_mode<synchronous>, transform_indices = @transform_1, window_bounds = array<i64: 128, 128>}, {pipeline_mode = #tpu.pipeline_mode<synchronous>, transform_indices = @transform_2, window_bounds = array<i64: 1, 128>}, {pipeline_mode = #tpu.pipeline_mode<synchronous>, transform_indices = @transform_3, window_bounds = array<i64: 1, 128>}, {pipeline_mode = #tpu.pipeline_mode<synchronous>, transform_indices = @transform_4, window_bounds = array<i64: 128, 128>}, {pipeline_mode = #tpu.pipeline_mode<synchronous>, transform_indices = @transform_5, window_bounds = array<i64: 1, 128>}, {pipeline_mode = #tpu.pipeline_mode<synchronous>, transform_indices = @transform_6, window_bounds = array<i64: 1, 128>}, {pipeline_mode = #tpu.pipeline_mode<synchronous>, transform_indices = @transform_7, window_bounds = array<i64: 128, 128>}, {pipeline_mode = #tpu.pipeline_mode<synchronous>, transform_indices = @transform_8, window_bounds = array<i64: 1, 128>}, {pipeline_mode = #tpu.pipeline_mode<synchronous>, transform_indices = @transform_9, window_bounds = array<i64: 1, 128>}, {transform_indices = @transform_10, window_bounds = array<i64: 104, 128>}]} {
    %c0 = arith.constant 0 : index
    %c0_0 = arith.constant 0 : index
    %0 = vector.load %arg1[%c0, %c0_0] : memref<104x128xbf16, #tpu.memory_space<vmem>>, vector<104x128xbf16>
    %c0_1 = arith.constant 0 : index
    %c0_2 = arith.constant 0 : index
    %1 = vector.load %arg2[%c0_1, %c0_2] : memref<128x128xbf16, #tpu.memory_space<vmem>>, vector<128x128xbf16>
    %cst = arith.constant dense<0.000000e+00> : vector<104x128xf32>
    %2 = tpu.matmul %0, %1, %cst {dimension_numbers = #tpu.dot_dimension_numbers<[1], [0], [0], [1], [0, 0, 1, 1], [], []>} : vector<104x128xbf16>, vector<128x128xbf16>, vector<104x128xf32> -> vector<104x128xf32>
    %c0_3 = arith.constant 0 : index
    %c0_4 = arith.constant 0 : index
    %3 = vector.load %arg3[%c0_3, %c0_4] : memref<1x128xf32, #tpu.memory_space<vmem>>, vector<1x128xf32>
    %4 = vector.broadcast %3 : vector<1x128xf32> to vector<104x128xf32>
    %5 = arith.mulf %2, %4 : vector<104x128xf32>
    %c0_5 = arith.constant 0 : index
    %c0_6 = arith.constant 0 : index
    %6 = vector.load %arg4[%c0_5, %c0_6] : memref<1x128xf32, #tpu.memory_space<vmem>>, vector<1x128xf32>
    %7 = vector.broadcast %6 : vector<1x128xf32> to vector<104x128xf32>
    %8 = arith.addf %5, %7 : vector<104x128xf32>
    %cst_7 = arith.constant 0.000000e+00 : f32
    %9 = vector.broadcast %cst_7 : f32 to vector<104x128xf32>
    %10 = arith.maximumf %8, %9 : vector<104x128xf32>
    %11 = arith.truncf %10 : vector<104x128xf32> to vector<104x128xbf16>
    %c0_8 = arith.constant 0 : index
    %c0_9 = arith.constant 0 : index
    %12 = vector.load %arg5[%c0_8, %c0_9] : memref<128x128xbf16, #tpu.memory_space<vmem>>, vector<128x128xbf16>
    %cst_10 = arith.constant dense<0.000000e+00> : vector<104x128xf32>
    %13 = tpu.matmul %11, %12, %cst_10 {dimension_numbers = #tpu.dot_dimension_numbers<[1], [0], [0], [1], [0, 0, 1, 1], [], []>} : vector<104x128xbf16>, vector<128x128xbf16>, vector<104x128xf32> -> vector<104x128xf32>
    %c0_11 = arith.constant 0 : index
    %c0_12 = arith.constant 0 : index
    %14 = vector.load %arg6[%c0_11, %c0_12] : memref<1x128xf32, #tpu.memory_space<vmem>>, vector<1x128xf32>
    %15 = vector.broadcast %14 : vector<1x128xf32> to vector<104x128xf32>
    %16 = arith.mulf %13, %15 : vector<104x128xf32>
    %c0_13 = arith.constant 0 : index
    %c0_14 = arith.constant 0 : index
    %17 = vector.load %arg7[%c0_13, %c0_14] : memref<1x128xf32, #tpu.memory_space<vmem>>, vector<1x128xf32>
    %18 = vector.broadcast %17 : vector<1x128xf32> to vector<104x128xf32>
    %19 = arith.addf %16, %18 : vector<104x128xf32>
    %cst_15 = arith.constant 0.000000e+00 : f32
    %20 = vector.broadcast %cst_15 : f32 to vector<104x128xf32>
    %21 = arith.maximumf %19, %20 : vector<104x128xf32>
    %22 = arith.truncf %21 : vector<104x128xf32> to vector<104x128xbf16>
    %c0_16 = arith.constant 0 : index
    %c0_17 = arith.constant 0 : index
    %23 = vector.load %arg8[%c0_16, %c0_17] : memref<128x128xbf16, #tpu.memory_space<vmem>>, vector<128x128xbf16>
    %cst_18 = arith.constant dense<0.000000e+00> : vector<104x128xf32>
    %24 = tpu.matmul %22, %23, %cst_18 {dimension_numbers = #tpu.dot_dimension_numbers<[1], [0], [0], [1], [0, 0, 1, 1], [], []>} : vector<104x128xbf16>, vector<128x128xbf16>, vector<104x128xf32> -> vector<104x128xf32>
    %c0_19 = arith.constant 0 : index
    %c0_20 = arith.constant 0 : index
    %25 = vector.load %arg9[%c0_19, %c0_20] : memref<1x128xf32, #tpu.memory_space<vmem>>, vector<1x128xf32>
    %26 = vector.broadcast %25 : vector<1x128xf32> to vector<104x128xf32>
    %27 = arith.mulf %24, %26 : vector<104x128xf32>
    %c0_21 = arith.constant 0 : index
    %c0_22 = arith.constant 0 : index
    %28 = vector.load %arg10[%c0_21, %c0_22] : memref<1x128xf32, #tpu.memory_space<vmem>>, vector<1x128xf32>
    %29 = vector.broadcast %28 : vector<1x128xf32> to vector<104x128xf32>
    %30 = arith.addf %27, %29 : vector<104x128xf32>
    %c0_23 = arith.constant 0 : index
    %c0_24 = arith.constant 0 : index
    %31 = vector.load %arg11[%c0_23, %c0_24] : memref<104x128xf32, #tpu.memory_space<vmem>>, vector<104x128xf32>
    tpu.vector_store %arg11[%c0_23, %c0_24], %30 {strides = array<i32>} : memref<104x128xf32, #tpu.memory_space<vmem>>, vector<104x128xf32>,
    return
  }
  func.func @transform_0(%arg0: i32) -> (i32, i32) {
    %c0_i32 = arith.constant 0 : i32
    %c0_i32_0 = arith.constant 0 : i32
    return %arg0, %c0_i32 : i32, i32
  }
  func.func @transform_1(%arg0: i32) -> (i32, i32) {
    %c0_i32 = arith.constant 0 : i32
    %c0_i32_0 = arith.constant 0 : i32
    %c0_i32_1 = arith.constant 0 : i32
    return %c0_i32, %c0_i32_0 : i32, i32
  }
  func.func @transform_2(%arg0: i32) -> (i32, i32) {
    %c0_i32 = arith.constant 0 : i32
    %c0_i32_0 = arith.constant 0 : i32
    %c0_i32_1 = arith.constant 0 : i32
    return %c0_i32, %c0_i32_0 : i32, i32
  }
  func.func @transform_3(%arg0: i32) -> (i32, i32) {
    %c0_i32 = arith.constant 0 : i32
    %c0_i32_0 = arith.constant 0 : i32
    %c0_i32_1 = arith.constant 0 : i32
    return %c0_i32, %c0_i32_0 : i32, i32
  }
  func.func @transform_4(%arg0: i32) -> (i32, i32) {
    %c0_i32 = arith.constant 0 : i32
    %c0_i32_0 = arith.constant 0 : i32
    %c0_i32_1 = arith.constant 0 : i32
    return %c0_i32, %c0_i32_0 : i32, i32
  }
  func.func @transform_5(%arg0: i32) -> (i32, i32) {
    %c0_i32 = arith.constant 0 : i32
    %c0_i32_0 = arith.constant 0 : i32
    %c0_i32_1 = arith.constant 0 : i32
    return %c0_i32, %c0_i32_0 : i32, i32
  }
  func.func @transform_6(%arg0: i32) -> (i32, i32) {
    %c0_i32 = arith.constant 0 : i32
    %c0_i32_0 = arith.constant 0 : i32
    %c0_i32_1 = arith.constant 0 : i32
    return %c0_i32, %c0_i32_0 : i32, i32
  }
  func.func @transform_7(%arg0: i32) -> (i32, i32) {
    %c0_i32 = arith.constant 0 : i32
    %c0_i32_0 = arith.constant 0 : i32
    %c0_i32_1 = arith.constant 0 : i32
    return %c0_i32, %c0_i32_0 : i32, i32
  }
  func.func @transform_8(%arg0: i32) -> (i32, i32) {
    %c0_i32 = arith.constant 0 : i32
    %c0_i32_0 = arith.constant 0 : i32
    %c0_i32_1 = arith.constant 0 : i32
    return %c0_i32, %c0_i32_0 : i32, i32
  }
  func.func @transform_9(%arg0: i32) -> (i32, i32) {
    %c0_i32 = arith.constant 0 : i32
    %c0_i32_0 = arith.constant 0 : i32
    %c0_i32_1 = arith.constant 0 : i32
    return %c0_i32, %c0_i32_0 : i32, i32
  }
  func.func @transform_10(%arg0: i32) -> (i32, i32) {
    %c0_i32 = arith.constant 0 : i32
    %c0_i32_0 = arith.constant 0 : i32
    return %arg0, %c0_i32 : i32, i32
  }
}

</mosaic_0001>

<llo_original>
// kernel: pallas_forward.3
$region0: #{pallas_forward.3}
  #allocation0 [shape = 'u32[]', space=smem, size = 0x4, offset = 0x4, fixed_abs, tag = 'smem constant byte address 0x4 - core index']
  #allocation1 [shape = 'u32[144,128]{1,0:T(1,128)}', space=vmem, size = 0x12000, scoped, tag = 'internal scratch']
  %s0 = inlined_call_operand.vmem [shape: bf16[104,128], index: 0, kind: input, shape index: {}]
  %s1 = inlined_call_operand.vmem [shape: bf16[128,128], index: 1, kind: input, shape index: {}]
  %s2 = inlined_call_operand.vmem [shape: f32[1,128], index: 2, kind: input, shape index: {}]
  %s3 = inlined_call_operand.vmem [shape: f32[1,128], index: 3, kind: input, shape index: {}]
  %s4 = inlined_call_operand.vmem [shape: bf16[128,128], index: 4, kind: input, shape index: {}]
  %s5 = inlined_call_operand.vmem [shape: f32[1,128], index: 5, kind: input, shape index: {}]
  %s6 = inlined_call_operand.vmem [shape: f32[1,128], index: 6, kind: input, shape index: {}]
  %s7 = inlined_call_operand.vmem [shape: bf16[128,128], index: 7, kind: input, shape index: {}]
  %s8 = inlined_call_operand.vmem [shape: f32[1,128], index: 8, kind: input, shape index: {}]
  %s9 = inlined_call_operand.vmem [shape: f32[1,128], index: 9, kind: input, shape index: {}]
  %s10 = inlined_call_operand.vmem [shape: f32[104,128], index: 10, kind: output, shape index: {}]
  %s11 = sld [smem:[#allocation0]]
  $region50: #{pallas_forward.3} parent=0
    _
  %s13 = ssub.s32 1, %s11
  %s14 = scalar_select 0, %s13, %s11
  // Predicated region
  $region2: #{pallas_forward.3} parent=0 // pred_check
    _
  $region3: #{pallas_forward.3} parent=0 // pred_check_branch
    %16 = sbr.rel (0) target = $region5
  $region4: #{pallas_forward.3} parent=0 // pred_region
    _
  $region5: #{pallas_forward.3} parent=0 // pred_fallthru
    _
  // Predicated region
  $region6: #{pallas_forward.3} parent=0 // pred_check
    _
  $region7: #{pallas_forward.3} parent=0 // pred_check_branch
    %18 = sbr.rel (0) target = $region9
  $region8: #{pallas_forward.3} parent=0 // pred_region
    _
  $region9: #{pallas_forward.3} parent=0 // pred_fallthru
    _
  // Predicated region
  $region10: #{pallas_forward.3} parent=0 // pred_check
    _
  $region11: #{pallas_forward.3} parent=0 // pred_check_branch
    %20 = sbr.rel (0) target = $region13
  $region12: #{pallas_forward.3} parent=0 // pred_region
    _
  $region13: #{pallas_forward.3} parent=0 // pred_fallthru
    _
  // Predicated region
  $region14: #{pallas_forward.3} parent=0 // pred_check
    _
  $region15: #{pallas_forward.3} parent=0 // pred_check_branch
    %22 = sbr.rel (0) target = $region17
  $region16: #{pallas_forward.3} parent=0 // pred_region
    _
  $region17: #{pallas_forward.3} parent=0 // pred_fallthru
    _
  // Predicated region
  $region18: #{pallas_forward.3} parent=0 // pred_check
    _
  $region19: #{pallas_forward.3} parent=0 // pred_check_branch
    %24 = sbr.rel (0) target = $region21
  $region20: #{pallas_forward.3} parent=0 // pred_region
    _
  $region21: #{pallas_forward.3} parent=0 // pred_fallthru
    _
  // Predicated region
  $region22: #{pallas_forward.3} parent=0 // pred_check
    _
  $region23: #{pallas_forward.3} parent=0 // pred_check_branch
    %26 = sbr.rel (0) target = $region25
  $region24: #{pallas_forward.3} parent=0 // pred_region
    _
  $region25: #{pallas_forward.3} parent=0 // pred_fallthru
    _
  // Predicated region
  $region26: #{pallas_forward.3} parent=0 // pred_check
    _
  $region27: #{pallas_forward.3} parent=0 // pred_check_branch
    %28 = sbr.rel (0) target = $region29
  $region28: #{pallas_forward.3} parent=0 // pred_region
    _
  $region29: #{pallas_forward.3} parent=0 // pred_fallthru
    _
  // Predicated region
  $region30: #{pallas_forward.3} parent=0 // pred_check
    _
  $region31: #{pallas_forward.3} parent=0 // pred_check_branch
    %30 = sbr.rel (0) target = $region33
  $region32: #{pallas_forward.3} parent=0 // pred_region
    _
  $region33: #{pallas_forward.3} parent=0 // pred_fallthru
    _
  // Predicated region
  $region34: #{pallas_forward.3} parent=0 // pred_check
    _
  $region35: #{pallas_forward.3} parent=0 // pred_check_branch
    %32 = sbr.rel (0) target = $region37
  $region36: #{pallas_forward.3} parent=0 // pred_region
    _
  $region37: #{pallas_forward.3} parent=0 // pred_fallthru
    _
  // Predicated region
  $region38: #{pallas_forward.3} parent=0 // pred_check
    _
  $region39: #{pallas_forward.3} parent=0 // pred_check_branch
    %34 = sbr.rel (0) target = $region41
  $region40: #{pallas_forward.3} parent=0 // pred_region
    _
  $region41: #{pallas_forward.3} parent=0 // pred_fallthru
    _
  %v36 = vld [vmem:[%s0] sm:$0xf]
  %v37 = vld [vmem:[%s0 + $0x4] sm:$0xf]
  %v38 = vld [vmem:[%s0 + $0x8] sm:$0xf]
  %v39 = vld [vmem:[%s0 + $0xc] sm:$0xf]
  %v40 = vld [vmem:[%s0 + $0x10] sm:$0xf]
  %v41 = vld [vmem:[%s0 + $0x14] sm:$0xf]
  %v42 = vld [vmem:[%s0 + $0x18] sm:$0xf]
  %v43 = vld [vmem:[%s0 + $0x1c] sm:$0xf]
  %v44 = vld [vmem:[%s0 + $0x20] sm:$0xf]
  %v45 = vld [vmem:[%s0 + $0x24] sm:$0xf]
  %v46 = vld [vmem:[%s0 + $0x28] sm:$0xf]
  %v47 = vld [vmem:[%s0 + $0x2c] sm:$0xf]
  %v48 = vld [vmem:[%s0 + $0x30] sm:$0xf]
  %v49 = vld [vmem:[%s1] sm:$0xf]
  %v50 = vld [vmem:[%s1 + $0x4] sm:$0xf]
  %v51 = vld [vmem:[%s1 + $0x8] sm:$0xf]
  %v52 = vld [vmem:[%s1 + $0xc] sm:$0xf]
  %v53 = vld [vmem:[%s1 + $0x10] sm:$0xf]
  %v54 = vld [vmem:[%s1 + $0x14] sm:$0xf]
  %v55 = vld [vmem:[%s1 + $0x18] sm:$0xf]
  %v56 = vld [vmem:[%s1 + $0x1c] sm:$0xf]
  %v57 = vld [vmem:[%s1 + $0x20] sm:$0xf]
  %v58 = vld [vmem:[%s1 + $0x24] sm:$0xf]
  %v59 = vld [vmem:[%s1 + $0x28] sm:$0xf]
  %v60 = vld [vmem:[%s1 + $0x2c] sm:$0xf]
  %v61 = vld [vmem:[%s1 + $0x30] sm:$0xf]
  %v62 = vld [vmem:[%s1 + $0x34] sm:$0xf]
  %v63 = vld [vmem:[%s1 + $0x38] sm:$0xf]
  %v64 = vld [vmem:[%s1 + $0x3c] sm:$0xf]
  %v78 = vunpack.c.l.b16 %v36
  %v79 = vunpack.c.l.b16 %v37
  %v80 = vunpack.c.l.b16 %v38
  %v81 = vunpack.c.l.b16 %v39
  %v82 = vunpack.c.l.b16 %v40
  %v83 = vunpack.c.l.b16 %v41
  %v84 = vunpack.c.l.b16 %v42
  %v85 = vunpack.c.l.b16 %v43
  %v86 = vunpack.c.l.b16 %v44
  %v87 = vunpack.c.l.b16 %v45
  %v88 = vunpack.c.l.b16 %v46
  %v89 = vunpack.c.l.b16 %v47
  %v90 = vunpack.c.l.b16 %v48
  %v91 = vpack.c.b16 %v79, %v78
  %v92 = vpack.c.b16 %v81, %v80
  %v93 = vpack.c.b16 %v83, %v82
  %v94 = vpack.c.b16 %v85, %v84
  %v95 = vpack.c.b16 %v87, %v86
  %v96 = vpack.c.b16 %v89, %v88
  %v97 = vpack.c.b16 %v90, %v90
  %v121 = vunpack.c.l.b16 %v49
  %v122 = vunpack.c.l.b16 %v50
  %v123 = vunpack.c.l.b16 %v51
  %v124 = vunpack.c.l.b16 %v52
  %v125 = vunpack.c.l.b16 %v53
  %v126 = vunpack.c.l.b16 %v54
  %v127 = vunpack.c.l.b16 %v55
  %v128 = vunpack.c.l.b16 %v56
  %v129 = vunpack.c.l.b16 %v57
  %v130 = vunpack.c.l.b16 %v58
  %v131 = vunpack.c.l.b16 %v59
  %v132 = vunpack.c.l.b16 %v60
  %v133 = vunpack.c.l.b16 %v61
  %v134 = vunpack.c.l.b16 %v62
  %v135 = vunpack.c.l.b16 %v63
  %v136 = vunpack.c.l.b16 %v64
  %v137 = vpack.c.b16 %v122, %v121
  %v138 = vpack.c.b16 %v124, %v123
  %v139 = vpack.c.b16 %v126, %v125
  %v140 = vpack.c.b16 %v128, %v127
  %v141 = vpack.c.b16 %v130, %v129
  %v142 = vpack.c.b16 %v132, %v131
  %v143 = vpack.c.b16 %v134, %v133
  %v144 = vpack.c.b16 %v136, %v135
  %153 = vmatprep.subr.bf16.mxu0 0
  %154 = vmatpush1.bf16.msra.mxu0 %v137
  %155 = vmatprep.subr.bf16.mxu0 0
  %156 = vmatpush1.bf16.msra.mxu0 %v138
  %157 = vmatprep.subr.bf16.mxu0 0
  %158 = vmatpush1.bf16.msra.mxu0 %v139
  %159 = vmatprep.subr.bf16.mxu0 0
  %160 = vmatpush1.bf16.msra.mxu0 %v140
  %161 = vmatprep.subr.bf16.mxu0 0
  %162 = vmatpush1.bf16.msra.mxu0 %v141
  %163 = vmatprep.subr.bf16.mxu0 0
  %164 = vmatpush1.bf16.msra.mxu0 %v142
  %165 = vmatprep.subr.bf16.mxu0 0
  %166 = vmatpush1.bf16.msra.mxu0 %v143
  %167 = vmatprep.subr.bf16.mxu0 0
  %168 = vmatpush1.bf16.msra.mxu0 %v144
  %169 = vmatprep.subr.bf16.mxu0 0
  %170 = vmatpush1.bf16.msra.mxu0 0
  %171 = vmatprep.subr.bf16.mxu0 0
  %172 = vmatpush1.bf16.msra.mxu0 0
  %173 = vmatprep.subr.bf16.mxu0 0
  %174 = vmatpush1.bf16.msra.mxu0 0
  %175 = vmatprep.subr.bf16.mxu0 0
  %176 = vmatpush1.bf16.msra.mxu0 0
  %177 = vmatprep.subr.bf16.mxu0 0
  %178 = vmatpush1.bf16.msra.mxu0 0
  %179 = vmatprep.subr.bf16.mxu0 0
  %180 = vmatpush1.bf16.msra.mxu0 0
  %181 = vmatprep.subr.bf16.mxu0 0
  %182 = vmatpush1.bf16.msra.mxu0 0
  %183 = vmatprep.subr.bf16.mxu0 0
  %184 = vmatpush1.bf16.msra.mxu0 0
  %185 = vmatprep.mubr.bf16.mxu0 0
  %186 = vmatmul.mubr.bf16.gmra.mrb[0].mxu0 %v91
  %v187 = vpop.f32.mrb[0].mxu0
  %v188 = vadd.f32 0.0, %v187
  %v189 = vpop.f32.mrb[0].mxu0
  %v190 = vpop.f32.mrb[0].mxu0
  %v191 = vadd.f32 0.0, %v190
  %v192 = vpop.f32.mrb[0].mxu0
  %193 = vmatprep.mubr.bf16.mxu0 0
  %194 = vmatmul.mubr.bf16.gmra.mrb[0].mxu0 %v92
  %v195 = vpop.f32.mrb[0].mxu0
  %v196 = vadd.f32 0.0, %v195
  %v197 = vpop.f32.mrb[0].mxu0
  %v198 = vpop.f32.mrb[0].mxu0
  %v199 = vadd.f32 0.0, %v198
  %v200 = vpop.f32.mrb[0].mxu0
  %201 = vmatprep.mubr.bf16.mxu0 0
  %202 = vmatmul.mubr.bf16.gmra.mrb[0].mxu0 %v93
  %v203 = vpop.f32.mrb[0].mxu0
  %v204 = vadd.f32 0.0, %v203
  %v205 = vpop.f32.mrb[0].mxu0
  %v206 = vpop.f32.mrb[0].mxu0
  %v207 = vadd.f32 0.0, %v206
  %v208 = vpop.f32.mrb[0].mxu0
  %209 = vmatprep.mubr.bf16.mxu0 0
  %210 = vmatmul.mubr.bf16.gmra.mrb[0].mxu0 %v94
  %v211 = vpop.f32.mrb[0].mxu0
  %v212 = vadd.f32 0.0, %v211
  %v213 = vpop.f32.mrb[0].mxu0
  %v214 = vpop.f32.mrb[0].mxu0
  %v215 = vadd.f32 0.0, %v214
  %v216 = vpop.f32.mrb[0].mxu0
  %217 = vmatprep.mubr.bf16.mxu0 0
  %218 = vmatmul.mubr.bf16.gmra.mrb[0].mxu0 %v95
  %v219 = vpop.f32.mrb[0].mxu0
  %v220 = vadd.f32 0.0, %v219
  %v221 = vpop.f32.mrb[0].mxu0
  %v222 = vpop.f32.mrb[0].mxu0
  %v223 = vadd.f32 0.0, %v222
  %v224 = vpop.f32.mrb[0].mxu0
  %225 = vmatprep.mubr.bf16.mxu0 0
  %226 = vmatmul.mubr.bf16.gmra.mrb[0].mxu0 %v96
  %v227 = vpop.f32.mrb[0].mxu0
  %v228 = vadd.f32 0.0, %v227
  %v229 = vpop.f32.mrb[0].mxu0
  %v230 = vpop.f32.mrb[0].mxu0
  %v231 = vadd.f32 0.0, %v230
  %v232 = vpop.f32.mrb[0].mxu0
  %233 = vmatprep.mubr.bf16.mxu0 0
  %234 = vmatmul.mubr.bf16.gmra.mrb[0].mxu0 %v97
  %v235 = vpop.f32.mrb[0].mxu0
  %v236 = vadd.f32 0.0, %v235
  %v237 = vpop.f32.mrb[0].mxu0
  %v238 = vpop.f32.mrb[0].mxu0
  %v239 = vpop.f32.mrb[0].mxu0
  %240 = vdwg.mxu0
  %v241 = vld [vmem:[%s2] sm:$0x1]
  %v243 = vlaneseq
  %v244 = vshrl.u32 %v243, 7
  %v245 = vsub.s32 0, %v244
  %v246 = vrot.slane %v241, %v245
  %v248 = vmul.f32 %v188, %v246
  %v249 = vmul.f32 %v191, %v246
  %v250 = vmul.f32 %v196, %v246
  %v251 = vmul.f32 %v199, %v246
  %v252 = vmul.f32 %v204, %v246
  %v253 = vmul.f32 %v207, %v246
  %v254 = vmul.f32 %v212, %v246
  %v255 = vmul.f32 %v215, %v246
  %v256 = vmul.f32 %v220, %v246
  %v257 = vmul.f32 %v223, %v246
  %v258 = vmul.f32 %v228, %v246
  %v259 = vmul.f32 %v231, %v246
  %v260 = vmul.f32 %v236, %v246
  %v261 = vld [vmem:[%s3] sm:$0x1]
  %v263 = vlaneseq
  %v264 = vshrl.u32 %v263, 7
  %v265 = vsub.s32 0, %v264
  %v266 = vrot.slane %v261, %v265
  %v268 = vadd.f32 %v248, %v266
  %v269 = vadd.f32 %v249, %v266
  %v270 = vadd.f32 %v250, %v266
  %v271 = vadd.f32 %v251, %v266
  %v272 = vadd.f32 %v252, %v266
  %v273 = vadd.f32 %v253, %v266
  %v274 = vadd.f32 %v254, %v266
  %v275 = vadd.f32 %v255, %v266
  %v276 = vadd.f32 %v256, %v266
  %v277 = vadd.f32 %v257, %v266
  %v278 = vadd.f32 %v258, %v266
  %v279 = vadd.f32 %v259, %v266
  %v280 = vadd.f32 %v260, %v266
  %v281 = vmax.f32 %v268, 0.0
  %v282 = vmax.f32 %v269, 0.0
  %v283 = vmax.f32 %v270, 0.0
  %v284 = vmax.f32 %v271, 0.0
  %v285 = vmax.f32 %v272, 0.0
  %v286 = vmax.f32 %v273, 0.0
  %v287 = vmax.f32 %v274, 0.0
  %v288 = vmax.f32 %v275, 0.0
  %v289 = vmax.f32 %v276, 0.0
  %v290 = vmax.f32 %v277, 0.0
  %v291 = vmax.f32 %v278, 0.0
  %v292 = vmax.f32 %v279, 0.0
  %v293 = vmax.f32 %v280, 0.0
  %v294 = vpack.c.bf16 %v282, %v281
  %v295 = vpack.c.bf16 %v284, %v283
  %v296 = vpack.c.bf16 %v286, %v285
  %v297 = vpack.c.bf16 %v288, %v287
  %v298 = vpack.c.bf16 %v290, %v289
  %v299 = vpack.c.bf16 %v292, %v291
  %v300 = vpack.c.bf16 %v293, %v293
  %v301 = vld [vmem:[%s4] sm:$0xf]
  %v302 = vld [vmem:[%s4 + $0x4] sm:$0xf]
  %v303 = vld [vmem:[%s4 + $0x8] sm:$0xf]
  %v304 = vld [vmem:[%s4 + $0xc] sm:$0xf]
  %v305 = vld [vmem:[%s4 + $0x10] sm:$0xf]
  %v306 = vld [vmem:[%s4 + $0x14] sm:$0xf]
  %v307 = vld [vmem:[%s4 + $0x18] sm:$0xf]
  %v308 = vld [vmem:[%s4 + $0x1c] sm:$0xf]
  %v309 = vld [vmem:[%s4 + $0x20] sm:$0xf]
  %v310 = vld [vmem:[%s4 + $0x24] sm:$0xf]
  %v311 = vld [vmem:[%s4 + $0x28] sm:$0xf]
  %v312 = vld [vmem:[%s4 + $0x2c] sm:$0xf]
  %v313 = vld [vmem:[%s4 + $0x30] sm:$0xf]
  %v314 = vld [vmem:[%s4 + $0x34] sm:$0xf]
  %v315 = vld [vmem:[%s4 + $0x38] sm:$0xf]
  %v316 = vld [vmem:[%s4 + $0x3c] sm:$0xf]
  %v333 = vunpack.c.l.b16 %v301
  %v334 = vunpack.c.l.b16 %v302
  %v335 = vunpack.c.l.b16 %v303
  %v336 = vunpack.c.l.b16 %v304
  %v337 = vunpack.c.l.b16 %v305
  %v338 = vunpack.c.l.b16 %v306
  %v339 = vunpack.c.l.b16 %v307
  %v340 = vunpack.c.l.b16 %v308
  %v341 = vunpack.c.l.b16 %v309
  %v342 = vunpack.c.l.b16 %v310
  %v343 = vunpack.c.l.b16 %v311
  %v344 = vunpack.c.l.b16 %v312
  %v345 = vunpack.c.l.b16 %v313
  %v346 = vunpack.c.l.b16 %v314
  %v347 = vunpack.c.l.b16 %v315
  %v348 = vunpack.c.l.b16 %v316
  %v349 = vpack.c.b16 %v334, %v333
  %v350 = vpack.c.b16 %v336, %v335
  %v351 = vpack.c.b16 %v338, %v337
  %v352 = vpack.c.b16 %v340, %v339
  %v353 = vpack.c.b16 %v342, %v341
  %v354 = vpack.c.b16 %v344, %v343
  %v355 = vpack.c.b16 %v346, %v345
  %v356 = vpack.c.b16 %v348, %v347
  %365 = vmatprep.subr.bf16.mxu0 0
  %366 = vmatpush1.bf16.msra.mxu0 %v349
  %367 = vmatprep.subr.bf16.mxu0 0
  %368 = vmatpush1.bf16.msra.mxu0 %v350
  %369 = vmatprep.subr.bf16.mxu0 0
  %370 = vmatpush1.bf16.msra.mxu0 %v351
  %371 = vmatprep.subr.bf16.mxu0 0
  %372 = vmatpush1.bf16.msra.mxu0 %v352
  %373 = vmatprep.subr.bf16.mxu0 0
  %374 = vmatpush1.bf16.msra.mxu0 %v353
  %375 = vmatprep.subr.bf16.mxu0 0
  %376 = vmatpush1.bf16.msra.mxu0 %v354
  %377 = vmatprep.subr.bf16.mxu0 0
  %378 = vmatpush1.bf16.msra.mxu0 %v355
  %379 = vmatprep.subr.bf16.mxu0 0
  %380 = vmatpush1.bf16.msra.mxu0 %v356
  %381 = vmatprep.subr.bf16.mxu0 0
  %382 = vmatpush1.bf16.msra.mxu0 0
  %383 = vmatprep.subr.bf16.mxu0 0
  %384 = vmatpush1.bf16.msra.mxu0 0
  %385 = vmatprep.subr.bf16.mxu0 0
  %386 = vmatpush1.bf16.msra.mxu0 0
  %387 = vmatprep.subr.bf16.mxu0 0
  %388 = vmatpush1.bf16.msra.mxu0 0
  %389 = vmatprep.subr.bf16.mxu0 0
  %390 = vmatpush1.bf16.msra.mxu0 0
  %391 = vmatprep.subr.bf16.mxu0 0
  %392 = vmatpush1.bf16.msra.mxu0 0
  %393 = vmatprep.subr.bf16.mxu0 0
  %394 = vmatpush1.bf16.msra.mxu0 0
  %395 = vmatprep.subr.bf16.mxu0 0
  %396 = vmatpush1.bf16.msra.mxu0 0
  %397 = vmatprep.mubr.bf16.mxu0 0
  %398 = vmatmul.mubr.bf16.gmra.mrb[0].mxu0 %v294
  %v399 = vpop.f32.mrb[0].mxu0
  %v400 = vadd.f32 0.0, %v399
  %v401 = vpop.f32.mrb[0].mxu0
  %v402 = vpop.f32.mrb[0].mxu0
  %v403 = vadd.f32 0.0, %v402
  %v404 = vpop.f32.mrb[0].mxu0
  %405 = vmatprep.mubr.bf16.mxu0 0
  %406 = vmatmul.mubr.bf16.gmra.mrb[0].mxu0 %v295
  %v407 = vpop.f32.mrb[0].mxu0
  %v408 = vadd.f32 0.0, %v407
  %v409 = vpop.f32.mrb[0].mxu0
  %v410 = vpop.f32.mrb[0].mxu0
  %v411 = vadd.f32 0.0, %v410
  %v412 = vpop.f32.mrb[0].mxu0
  %413 = vmatprep.mubr.bf16.mxu0 0
  %414 = vmatmul.mubr.bf16.gmra.mrb[0].mxu0 %v296
  %v415 = vpop.f32.mrb[0].mxu0
  %v416 = vadd.f32 0.0, %v415
  %v417 = vpop.f32.mrb[0].mxu0
  %v418 = vpop.f32.mrb[0].mxu0
  %v419 = vadd.f32 0.0, %v418
  %v420 = vpop.f32.mrb[0].mxu0
  %421 = vmatprep.mubr.bf16.mxu0 0
  %422 = vmatmul.mubr.bf16.gmra.mrb[0].mxu0 %v297
  %v423 = vpop.f32.mrb[0].mxu0
  %v424 = vadd.f32 0.0, %v423
  %v425 = vpop.f32.mrb[0].mxu0
  %v426 = vpop.f32.mrb[0].mxu0
  %v427 = vadd.f32 0.0, %v426
  %v428 = vpop.f32.mrb[0].mxu0
  %429 = vmatprep.mubr.bf16.mxu0 0
  %430 = vmatmul.mubr.bf16.gmra.mrb[0].mxu0 %v298
  %v431 = vpop.f32.mrb[0].mxu0
  %v432 = vadd.f32 0.0, %v431
  %v433 = vpop.f32.mrb[0].mxu0
  %v434 = vpop.f32.mrb[0].mxu0
  %v435 = vadd.f32 0.0, %v434
  %v436 = vpop.f32.mrb[0].mxu0
  %437 = vmatprep.mubr.bf16.mxu0 0
  %438 = vmatmul.mubr.bf16.gmra.mrb[0].mxu0 %v299
  %v439 = vpop.f32.mrb[0].mxu0
  %v440 = vadd.f32 0.0, %v439
  %v441 = vpop.f32.mrb[0].mxu0
  %v442 = vpop.f32.mrb[0].mxu0
  %v443 = vadd.f32 0.0, %v442
  %v444 = vpop.f32.mrb[0].mxu0
  %445 = vmatprep.mubr.bf16.mxu0 0
  %446 = vmatmul.mubr.bf16.gmra.mrb[0].mxu0 %v300
  %v447 = vpop.f32.mrb[0].mxu0
  %v448 = vadd.f32 0.0, %v447
  %v449 = vpop.f32.mrb[0].mxu0
  %v450 = vpop.f32.mrb[0].mxu0
  %v451 = vpop.f32.mrb[0].mxu0
  %452 = vdwg.mxu0
  %v453 = vld [vmem:[%s5] sm:$0x1]
  %v455 = vlaneseq
  %v456 = vshrl.u32 %v455, 7
  %v457 = vsub.s32 0, %v456
  %v458 = vrot.slane %v453, %v457
  %v460 = vmul.f32 %v400, %v458
  %v461 = vmul.f32 %v403, %v458
  %v462 = vmul.f32 %v408, %v458
  %v463 = vmul.f32 %v411, %v458
  %v464 = vmul.f32 %v416, %v458
  %v465 = vmul.f32 %v419, %v458
  %v466 = vmul.f32 %v424, %v458
  %v467 = vmul.f32 %v427, %v458
  %v468 = vmul.f32 %v432, %v458
  %v469 = vmul.f32 %v435, %v458
  %v470 = vmul.f32 %v440, %v458
  %v471 = vmul.f32 %v443, %v458
  %v472 = vmul.f32 %v448, %v458
  %v473 = vld [vmem:[%s6] sm:$0x1]
  %v475 = vlaneseq
  %v476 = vshrl.u32 %v475, 7
  %v477 = vsub.s32 0, %v476
  %v478 = vrot.slane %v473, %v477
  %v480 = vadd.f32 %v460, %v478
  %v481 = vadd.f32 %v461, %v478
  %v482 = vadd.f32 %v462, %v478
  %v483 = vadd.f32 %v463, %v478
  %v484 = vadd.f32 %v464, %v478
  %v485 = vadd.f32 %v465, %v478
  %v486 = vadd.f32 %v466, %v478
  %v487 = vadd.f32 %v467, %v478
  %v488 = vadd.f32 %v468, %v478
  %v489 = vadd.f32 %v469, %v478
  %v490 = vadd.f32 %v470, %v478
  %v491 = vadd.f32 %v471, %v478
  %v492 = vadd.f32 %v472, %v478
  %v493 = vmax.f32 %v480, 0.0
  %v494 = vmax.f32 %v481, 0.0
  %v495 = vmax.f32 %v482, 0.0
  %v496 = vmax.f32 %v483, 0.0
  %v497 = vmax.f32 %v484, 0.0
  %v498 = vmax.f32 %v485, 0.0
  %v499 = vmax.f32 %v486, 0.0
  %v500 = vmax.f32 %v487, 0.0
  %v501 = vmax.f32 %v488, 0.0
  %v502 = vmax.f32 %v489, 0.0
  %v503 = vmax.f32 %v490, 0.0
  %v504 = vmax.f32 %v491, 0.0
  %v505 = vmax.f32 %v492, 0.0
  %v506 = vpack.c.bf16 %v494, %v493
  %v507 = vpack.c.bf16 %v496, %v495
  %v508 = vpack.c.bf16 %v498, %v497
  %v509 = vpack.c.bf16 %v500, %v499
  %v510 = vpack.c.bf16 %v502, %v501
  %v511 = vpack.c.bf16 %v504, %v503
  %v512 = vpack.c.bf16 %v505, %v505
  %v513 = vld [vmem:[%s7] sm:$0xf]
  %v514 = vld [vmem:[%s7 + $0x4] sm:$0xf]
  %v515 = vld [vmem:[%s7 + $0x8] sm:$0xf]
  %v516 = vld [vmem:[%s7 + $0xc] sm:$0xf]
  %v517 = vld [vmem:[%s7 + $0x10] sm:$0xf]
  %v518 = vld [vmem:[%s7 + $0x14] sm:$0xf]
  %v519 = vld [vmem:[%s7 + $0x18] sm:$0xf]
  %v520 = vld [vmem:[%s7 + $0x1c] sm:$0xf]
  %v521 = vld [vmem:[%s7 + $0x20] sm:$0xf]
  %v522 = vld [vmem:[%s7 + $0x24] sm:$0xf]
  %v523 = vld [vmem:[%s7 + $0x28] sm:$0xf]
  %v524 = vld [vmem:[%s7 + $0x2c] sm:$0xf]
  %v525 = vld [vmem:[%s7 + $0x30] sm:$0xf]
  %v526 = vld [vmem:[%s7 + $0x34] sm:$0xf]
  %v527 = vld [vmem:[%s7 + $0x38] sm:$0xf]
  %v528 = vld [vmem:[%s7 + $0x3c] sm:$0xf]
  %v545 = vunpack.c.l.b16 %v513
  %v546 = vunpack.c.l.b16 %v514
  %v547 = vunpack.c.l.b16 %v515
  %v548 = vunpack.c.l.b16 %v516
  %v549 = vunpack.c.l.b16 %v517
  %v550 = vunpack.c.l.b16 %v518
  %v551 = vunpack.c.l.b16 %v519
  %v552 = vunpack.c.l.b16 %v520
  %v553 = vunpack.c.l.b16 %v521
  %v554 = vunpack.c.l.b16 %v522
  %v555 = vunpack.c.l.b16 %v523
  %v556 = vunpack.c.l.b16 %v524
  %v557 = vunpack.c.l.b16 %v525
  %v558 = vunpack.c.l.b16 %v526
  %v559 = vunpack.c.l.b16 %v527
  %v560 = vunpack.c.l.b16 %v528
  %v561 = vpack.c.b16 %v546, %v545
  %v562 = vpack.c.b16 %v548, %v547
  %v563 = vpack.c.b16 %v550, %v549
  %v564 = vpack.c.b16 %v552, %v551
  %v565 = vpack.c.b16 %v554, %v553
  %v566 = vpack.c.b16 %v556, %v555
  %v567 = vpack.c.b16 %v558, %v557
  %v568 = vpack.c.b16 %v560, %v559
  %577 = vmatprep.subr.bf16.mxu0 0
  %578 = vmatpush1.bf16.msra.mxu0 %v561
  %579 = vmatprep.subr.bf16.mxu0 0
  %580 = vmatpush1.bf16.msra.mxu0 %v562
  %581 = vmatprep.subr.bf16.mxu0 0
  %582 = vmatpush1.bf16.msra.mxu0 %v563
  %583 = vmatprep.subr.bf16.mxu0 0
  %584 = vmatpush1.bf16.msra.mxu0 %v564
  %585 = vmatprep.subr.bf16.mxu0 0
  %586 = vmatpush1.bf16.msra.mxu0 %v565
  %587 = vmatprep.subr.bf16.mxu0 0
  %588 = vmatpush1.bf16.msra.mxu0 %v566
  %589 = vmatprep.subr.bf16.mxu0 0
  %590 = vmatpush1.bf16.msra.mxu0 %v567
  %591 = vmatprep.subr.bf16.mxu0 0
  %592 = vmatpush1.bf16.msra.mxu0 %v568
  %593 = vmatprep.subr.bf16.mxu0 0
  %594 = vmatpush1.bf16.msra.mxu0 0
  %595 = vmatprep.subr.bf16.mxu0 0
  %596 = vmatpush1.bf16.msra.mxu0 0
  %597 = vmatprep.subr.bf16.mxu0 0
  %598 = vmatpush1.bf16.msra.mxu0 0
  %599 = vmatprep.subr.bf16.mxu0 0
  %600 = vmatpush1.bf16.msra.mxu0 0
  %601 = vmatprep.subr.bf16.mxu0 0
  %602 = vmatpush1.bf16.msra.mxu0 0
  %603 = vmatprep.subr.bf16.mxu0 0
  %604 = vmatpush1.bf16.msra.mxu0 0
  %605 = vmatprep.subr.bf16.mxu0 0
  %606 = vmatpush1.bf16.msra.mxu0 0
  %607 = vmatprep.subr.bf16.mxu0 0
  %608 = vmatpush1.bf16.msra.mxu0 0
  %609 = vmatprep.mubr.bf16.mxu0 0
  %610 = vmatmul.mubr.bf16.gmra.mrb[0].mxu0 %v506
  %v611 = vpop.f32.mrb[0].mxu0
  %v612 = vadd.f32 0.0, %v611
  %v613 = vpop.f32.mrb[0].mxu0
  %v614 = vpop.f32.mrb[0].mxu0
  %v615 = vadd.f32 0.0, %v614
  %v616 = vpop.f32.mrb[0].mxu0
  %617 = vmatprep.mubr.bf16.mxu0 0
  %618 = vmatmul.mubr.bf16.gmra.mrb[0].mxu0 %v507
  %v619 = vpop.f32.mrb[0].mxu0
  %v620 = vadd.f32 0.0, %v619
  %v621 = vpop.f32.mrb[0].mxu0
  %v622 = vpop.f32.mrb[0].mxu0
  %v623 = vadd.f32 0.0, %v622
  %v624 = vpop.f32.mrb[0].mxu0
  %625 = vmatprep.mubr.bf16.mxu0 0
  %626 = vmatmul.mubr.bf16.gmra.mrb[0].mxu0 %v508
  %v627 = vpop.f32.mrb[0].mxu0
  %v628 = vadd.f32 0.0, %v627
  %v629 = vpop.f32.mrb[0].mxu0
  %v630 = vpop.f32.mrb[0].mxu0
  %v631 = vadd.f32 0.0, %v630
  %v632 = vpop.f32.mrb[0].mxu0
  %633 = vmatprep.mubr.bf16.mxu0 0
  %634 = vmatmul.mubr.bf16.gmra.mrb[0].mxu0 %v509
  %v635 = vpop.f32.mrb[0].mxu0
  %v636 = vadd.f32 0.0, %v635
  %v637 = vpop.f32.mrb[0].mxu0
  %v638 = vpop.f32.mrb[0].mxu0
  %v639 = vadd.f32 0.0, %v638
  %v640 = vpop.f32.mrb[0].mxu0
  %641 = vmatprep.mubr.bf16.mxu0 0
  %642 = vmatmul.mubr.bf16.gmra.mrb[0].mxu0 %v510
  %v643 = vpop.f32.mrb[0].mxu0
  %v644 = vadd.f32 0.0, %v643
  %v645 = vpop.f32.mrb[0].mxu0
  %v646 = vpop.f32.mrb[0].mxu0
  %v647 = vadd.f32 0.0, %v646
  %v648 = vpop.f32.mrb[0].mxu0
  %649 = vmatprep.mubr.bf16.mxu0 0
  %650 = vmatmul.mubr.bf16.gmra.mrb[0].mxu0 %v511
  %v651 = vpop.f32.mrb[0].mxu0
  %v652 = vadd.f32 0.0, %v651
  %v653 = vpop.f32.mrb[0].mxu0
  %v654 = vpop.f32.mrb[0].mxu0
  %v655 = vadd.f32 0.0, %v654
  %v656 = vpop.f32.mrb[0].mxu0
  %657 = vmatprep.mubr.bf16.mxu0 0
  %658 = vmatmul.mubr.bf16.gmra.mrb[0].mxu0 %v512
  %v659 = vpop.f32.mrb[0].mxu0
  %v660 = vadd.f32 0.0, %v659
  %v661 = vpop.f32.mrb[0].mxu0
  %v662 = vpop.f32.mrb[0].mxu0
  %v663 = vpop.f32.mrb[0].mxu0
  %664 = vdwg.mxu0
  %v665 = vld [vmem:[%s8] sm:$0x1]
  %v667 = vlaneseq
  %v668 = vshrl.u32 %v667, 7
  %v669 = vsub.s32 0, %v668
  %v670 = vrot.slane %v665, %v669
  %v672 = vmul.f32 %v612, %v670
  %v673 = vmul.f32 %v615, %v670
  %v674 = vmul.f32 %v620, %v670
  %v675 = vmul.f32 %v623, %v670
  %v676 = vmul.f32 %v628, %v670
  %v677 = vmul.f32 %v631, %v670
  %v678 = vmul.f32 %v636, %v670
  %v679 = vmul.f32 %v639, %v670
  %v680 = vmul.f32 %v644, %v670
  %v681 = vmul.f32 %v647, %v670
  %v682 = vmul.f32 %v652, %v670
  %v683 = vmul.f32 %v655, %v670
  %v684 = vmul.f32 %v660, %v670
  %v685 = vld [vmem:[%s9] sm:$0x1]
  %v687 = vlaneseq
  %v688 = vshrl.u32 %v687, 7
  %v689 = vsub.s32 0, %v688
  %v690 = vrot.slane %v685, %v689
  %v692 = vadd.f32 %v672, %v690
  %v693 = vadd.f32 %v673, %v690
  %v694 = vadd.f32 %v674, %v690
  %v695 = vadd.f32 %v675, %v690
  %v696 = vadd.f32 %v676, %v690
  %v697 = vadd.f32 %v677, %v690
  %v698 = vadd.f32 %v678, %v690
  %v699 = vadd.f32 %v679, %v690
  %v700 = vadd.f32 %v680, %v690
  %v701 = vadd.f32 %v681, %v690
  %v702 = vadd.f32 %v682, %v690
  %v703 = vadd.f32 %v683, %v690
  %v704 = vadd.f32 %v684, %v690
  %705 = vst [vmem:[%s10] sm:$0xff] %v692
  %706 = vst [vmem:[%s10 + $0x8] sm:$0xff] %v693
  %707 = vst [vmem:[%s10 + $0x10] sm:$0xff] %v694
  %708 = vst [vmem:[%s10 + $0x18] sm:$0xff] %v695
  %709 = vst [vmem:[%s10 + $0x20] sm:$0xff] %v696
  %710 = vst [vmem:[%s10 + $0x28] sm:$0xff] %v697
  %711 = vst [vmem:[%s10 + $0x30] sm:$0xff] %v698
  %712 = vst [vmem:[%s10 + $0x38] sm:$0xff] %v699
  %713 = vst [vmem:[%s10 + $0x40] sm:$0xff] %v700
  %714 = vst [vmem:[%s10 + $0x48] sm:$0xff] %v701
  %715 = vst [vmem:[%s10 + $0x50] sm:$0xff] %v702
  %716 = vst [vmem:[%s10 + $0x58] sm:$0xff] %v703
  %717 = vst [vmem:[%s10 + $0x60] sm:$0xff] %v704
  // Predicated region
  $region42: #{pallas_forward.3} parent=0 // pred_check
    _
  $region43: #{pallas_forward.3} parent=0 // pred_check_branch
    %719 = sbr.rel (0) target = $region45
  $region44: #{pallas_forward.3} parent=0 // pred_region
    _
  $region45: #{pallas_forward.3} parent=0 // pred_fallthru
    _
  // Predicated region
  $region46: #{pallas_forward.3} parent=0 // pred_check
    _
  $region47: #{pallas_forward.3} parent=0 // pred_check_branch
    %721 = sbr.rel (0) target = $region49
  $region48: #{pallas_forward.3} parent=0 // pred_region
    _
  $region49: #{pallas_forward.3} parent=0 // pred_fallthru
    _

// kernel: pallas_forward.2
$region0: #{pallas_forward.2}
  #allocation0 [shape = 'u32[]', space=smem, size = 0x4, offset = 0x4, fixed_abs, tag = 'smem constant byte address 0x4 - core index']
  #allocation1 [shape = 'u32[144,128]{1,0:T(1,128)}', space=vmem, size = 0x12000, scoped, tag = 'internal scratch']
  %s0 = inlined_call_operand.vmem [shape: bf16[8,128], index: 0, kind: input, shape index: {}]
  %s1 = inlined_call_operand.hbm [shape: bf16[128,1024], index: 1, kind: input, shape index: {}]
  %s2 = inlined_call_operand.hbm [shape: f32[1,1024], index: 2, kind: input, shape index: {}]
  %s3 = inlined_call_operand.hbm [shape: f32[1,1024], index: 3, kind: input, shape index: {}]
  %s4 = inlined_call_operand.hbm [shape: bf16[1024,1664], index: 4, kind: input, shape index: {}]
  %s5 = inlined_call_operand.hbm [shape: f32[1,1664], index: 5, kind: input, shape index: {}]
  %s6 = inlined_call_operand.hbm [shape: f32[1,1664], index: 6, kind: input, shape index: {}]
  %s7 = inlined_call_operand.vmem [shape: bf16[8,1664], index: 7, kind: output, shape index: {}]
  %s8 = sld [smem:[#allocation0]]
  $region62: #{pallas_forward.2} parent=0
    _
  %s10 = ssub.s32 1, %s8
  %s11 = scalar_select 0, %s10, %s8
  $region1: #{pallas_forward.2} parent=0
    #allocation2 [shape = 'u8[262144]{0}', space=vmem, size = 0x40000, scoped, tag = 'input window, operand 1, single buffered']
    #allocation3 [shape = 's32[1]{0}', space=sflag, size = 0x4, scoped, tag = 'scoped memory for pallas_forward.2']
    #allocation4 [shape = 'u8[4096]{0}', space=vmem, size = 0x1000, scoped, tag = 'input window, operand 2, single buffered']
    #allocation5 [shape = 's32[1]{0}', space=sflag, size = 0x4, scoped, tag = 'scoped memory for pallas_forward.2']
    #allocation6 [shape = 'u8[4096]{0}', space=vmem, size = 0x1000, scoped, tag = 'input window, operand 3, single buffered']
    #allocation7 [shape = 'u8[3407872]{0}', space=vmem, size = 0x340000, scoped, tag = 'input window, operand 4, single buffered']
    #allocation8 [shape = 's32[1]{0}', space=sflag, size = 0x4, scoped, tag = 'scoped memory for pallas_forward.2']
    #allocation9 [shape = 'u8[6656]{0}', space=vmem, size = 0x1c00, scoped, tag = 'input window, operand 5, single buffered']
    #allocation10 [shape = 'u8[6656]{0}', space=vmem, size = 0x1c00, scoped, tag = 'input window, operand 6, single buffered']
    #allocation11 [shape = 's32[1]{0}', space=sflag, size = 0x4, scoped, tag = 'scoped memory for pallas_forward.2']
    %12 = vsyncpa [#allocation3], 0
    %13 = vsyncpa [#allocation5], 0
    %14 = vsyncpa [#allocation8], 0
    %15 = vsyncpa [#allocation11], 0
    // Predicated region
    $region2: #{pallas_forward.2} parent=1 // pred_check
      _
    $region3: #{pallas_forward.2} parent=1 // pred_check_branch
      %17 = sbr.rel (0) target = $region5
    $region4: #{pallas_forward.2} parent=1 // pred_region
      _
    $region5: #{pallas_forward.2} parent=1 // pred_fallthru
      _
    // Predicated region
    $region6: #{pallas_forward.2} parent=1 // pred_check
      _
    $region7: #{pallas_forward.2} parent=1 // pred_check_branch
      %19 = sbr.rel (0) target = $region9
    $region8: #{pallas_forward.2} parent=1 // pred_region
      %s21 = ssub.s32 8192, 8192
      %22 = vsyncadd [#allocation3], %s21
      %s23 = sshll.u32 [#allocation2], 4
      %s24 = int_to_ptr.vmem [resolvable:$true] %s23
      %29 = dma.hbm_to_vmem [thread:$0]  %s1, 8192, %s24, [#allocation3], 512, 512, 32
    $region9: #{pallas_forward.2} parent=1 // pred_fallthru
      _
    // Predicated region
    $region10: #{pallas_forward.2} parent=1 // pred_check
      _
    $region11: #{pallas_forward.2} parent=1 // pred_check_branch
      %31 = sbr.rel (0) target = $region13
    $region12: #{pallas_forward.2} parent=1 // pred_region
      %s33 = ssub.s32 128, 128
      %34 = vsyncadd [#allocation5], %s33
      %s36 = sshll.u32 [#allocation4], 4
      %s37 = int_to_ptr.vmem [resolvable:$true] %s36
      %39 = dma.hbm_to_vmem [thread:$0]  %s2, 128, %s37, [#allocation5]
    $region13: #{pallas_forward.2} parent=1 // pred_fallthru
      _
    // Predicated region
    $region14: #{pallas_forward.2} parent=1 // pred_check
      _
    $region15: #{pallas_forward.2} parent=1 // pred_check_branch
      %41 = sbr.rel (0) target = $region17
    $region16: #{pallas_forward.2} parent=1 // pred_region
      %s43 = ssub.s32 128, 128
      %44 = vsyncadd [#allocation5], %s43
      %s46 = sshll.u32 [#allocation6], 4
      %s47 = int_to_ptr.vmem [resolvable:$true] %s46
      %49 = dma.hbm_to_vmem [thread:$0]  %s3, 128, %s47, [#allocation5]
    $region17: #{pallas_forward.2} parent=1 // pred_fallthru
      _
    // Predicated region
    $region18: #{pallas_forward.2} parent=1 // pred_check
      _
    $region19: #{pallas_forward.2} parent=1 // pred_check_branch
      %51 = sbr.rel (0) target = $region21
    $region20: #{pallas_forward.2} parent=1 // pred_region
      %s53 = ssub.s32 106496, 106496
      %54 = vsyncadd [#allocation8], %s53
      %s55 = sshll.u32 [#allocation7], 4
      %s56 = int_to_ptr.vmem [resolvable:$true] %s55
      %61 = dma.hbm_to_vmem [thread:$0]  %s4, 106496, %s56, [#allocation8], 832, 832, 52
    $region21: #{pallas_forward.2} parent=1 // pred_fallthru
      _
    // Predicated region
    $region22: #{pallas_forward.2} parent=1 // pred_check
      _
    $region23: #{pallas_forward.2} parent=1 // pred_check_branch
      %63 = sbr.rel (0) target = $region25
    $region24: #{pallas_forward.2} parent=1 // pred_region
      %s65 = ssub.s32 208, 208
      %66 = vsyncadd [#allocation8], %s65
      %s68 = sshll.u32 [#allocation9], 4
      %s69 = int_to_ptr.vmem [resolvable:$true] %s68
      %71 = dma.hbm_to_vmem [thread:$0]  %s5, 208, %s69, [#allocation8]
    $region25: #{pallas_forward.2} parent=1 // pred_fallthru
      _
    // Predicated region
    $region26: #{pallas_forward.2} parent=1 // pred_check
      _
    $region27: #{pallas_forward.2} parent=1 // pred_check_branch
      %73 = sbr.rel (0) target = $region29
    $region28: #{pallas_forward.2} parent=1 // pred_region
      %s75 = ssub.s32 208, 208
      %76 = vsyncadd [#allocation11], %s75
      %s78 = sshll.u32 [#allocation10], 4
      %s79 = int_to_ptr.vmem [resolvable:$true] %s78
      %81 = dma.hbm_to_vmem [thread:$0]  %s6, 208, %s79, [#allocation11]
    $region29: #{pallas_forward.2} parent=1 // pred_fallthru
      _
    // Predicated region
    $region30: #{pallas_forward.2} parent=1 // pred_check
      _
    $region31: #{pallas_forward.2} parent=1 // pred_check_branch
      %83 = sbr.rel (0) target = $region33
    $region32: #{pallas_forward.2} parent=1 // pred_region
      %84 = dma.done [#allocation3], 8192
    $region33: #{pallas_forward.2} parent=1 // pred_fallthru
      _
    // Predicated region
    $region34: #{pallas_forward.2} parent=1 // pred_check
      _
    $region35: #{pallas_forward.2} parent=1 // pred_check_branch
      %86 = sbr.rel (0) target = $region37
    $region36: #{pallas_forward.2} parent=1 // pred_region
      %87 = dma.done [#allocation5], 128
    $region37: #{pallas_forward.2} parent=1 // pred_fallthru
      _
    // Predicated region
    $region38: #{pallas_forward.2} parent=1 // pred_check
      _
    $region39: #{pallas_forward.2} parent=1 // pred_check_branch
      %89 = sbr.rel (0) target = $region41
    $region40: #{pallas_forward.2} parent=1 // pred_region
      %90 = dma.done [#allocation5], 128
    $region41: #{pallas_forward.2} parent=1 // pred_fallthru
      _
    // Predicated region
    $region42: #{pallas_forward.2} parent=1 // pred_check
      _
    $region43: #{pallas_forward.2} parent=1 // pred_check_branch
      %92 = sbr.rel (0) target = $region45
    $region44: #{pallas_forward.2} parent=1 // pred_region
      %93 = dma.done [#allocation8], 106496
    $region45: #{pallas_forward.2} parent=1 // pred_fallthru
      _
    // Predicated region
    $region46: #{pallas_forward.2} parent=1 // pred_check
      _
    $region47: #{pallas_forward.2} parent=1 // pred_check_branch
      %95 = sbr.rel (0) target = $region49
    $region48: #{pallas_forward.2} parent=1 // pred_region
      %96 = dma.done [#allocation8], 208
    $region49: #{pallas_forward.2} parent=1 // pred_fallthru
      _
    // Predicated region
    $region50: #{pallas_forward.2} parent=1 // pred_check
      _
    $region51: #{pallas_forward.2} parent=1 // pred_check_branch
      %98 = sbr.rel (0) target = $region53
    $region52: #{pallas_forward.2} parent=1 // pred_region
      %99 = dma.done [#allocation11], 208
    $region53: #{pallas_forward.2} parent=1 // pred_fallthru
      _
    %v101 = vld [vmem:[%s0] sm:$0xf]
    %v102 = vld [vmem:[#allocation2] sm:$0xff]
    %v103 = vld [vmem:[#allocation2 + $0x8] sm:$0xff]
    %v104 = vld [vmem:[#allocation2 + $0x10] sm:$0xff]
    %v105 = vld [vmem:[#allocation2 + $0x18] sm:$0xff]
    %v106 = vld [vmem:[#allocation2 + $0x20] sm:$0xff]
    %v107 = vld [vmem:[#allocation2 + $0x28] sm:$0xff]
    %v108 = vld [vmem:[#allocation2 + $0x30] sm:$0xff]
    %v109 = vld [vmem:[#allocation2 + $0x38] sm:$0xff]
    %v110 = vld [vmem:[#allocation2 + $0x40] sm:$0xff]
    %v111 = vld [vmem:[#allocation2 + $0x48] sm:$0xff]
    %v112 = vld [vmem:[#allocation2 + $0x50] sm:$0xff]
    %v113 = vld [vmem:[#allocation2 + $0x58] sm:$0xff]
    %v114 = vld [vmem:[#allocation2 + $0x60] sm:$0xff]
    %v115 = vld [vmem:[#allocation2 + $0x68] sm:$0xff]
    %v116 = vld [vmem:[#allocation2 + $0x70] sm:$0xff]
    %v117 = vld [vmem:[#allocation2 + $0x78] sm:$0xff]
    %v118 = vld [vmem:[#allocation2 + $0x80] sm:$0xff]
    %v119 = vld [vmem:[#allocation2 + $0x88] sm:$0xff]
    %v120 = vld [vmem:[#allocation2 + $0x90] sm:$0xff]
    %v121 = vld [vmem:[#allocation2 + $0x98] sm:$0xff]
    %v122 = vld [vmem:[#allocation2 + $0xa0] sm:$0xff]
    %v123 = vld [vmem:[#allocation2 + $0xa8] sm:$0xff]
    %v124 = vld [vmem:[#allocation2 + $0xb0] sm:$0xff]
    %v125 = vld [vmem:[#allocation2 + $0xb8] sm:$0xff]
    %v126 = vld [vmem:[#allocation2 + $0xc0] sm:$0xff]
    %v127 = vld [vmem:[#allocation2 + $0xc8] sm:$0xff]
    %v128 = vld [vmem:[#allocation2 + $0xd0] sm:$0xff]
    %v129 = vld [vmem:[#allocation2 + $0xd8] sm:$0xff]
    %v130 = vld [vmem:[#allocation2 + $0xe0] sm:$0xff]
    %v131 = vld [vmem:[#allocation2 + $0xe8] sm:$0xff]
    %v132 = vld [vmem:[#allocation2 + $0xf0] sm:$0xff]
    %v133 = vld [vmem:[#allocation2 + $0xf8] sm:$0xff]
    %v134 = vld [vmem:[#allocation2 + $0x100] sm:$0xff]
    %v135 = vld [vmem:[#allocation2 + $0x108] sm:$0xff]
    %v136 = vld [vmem:[#allocation2 + $0x110] sm:$0xff]
    %v137 = vld [vmem:[#allocation2 + $0x118] sm:$0xff]
    %v138 = vld [vmem:[#allocation2 + $0x120] sm:$0xff]
    %v139 = vld [vmem:[#allocation2 + $0x128] sm:$0xff]
    %v140 = vld [vmem:[#allocation2 + $0x130] sm:$0xff]
    %v141 = vld [vmem:[#allocation2 + $0x138] sm:$0xff]
    %v142 = vld [vmem:[#allocation2 + $0x140] sm:$0xff]
    %v143 = vld [vmem:[#allocation2 + $0x148] sm:$0xff]
    %v144 = vld [vmem:[#allocation2 + $0x150] sm:$0xff]
    %v145 = vld [vmem:[#allocation2 + $0x158] sm:$0xff]
    %v146 = vld [vmem:[#allocation2 + $0x160] sm:$0xff]
    %v147 = vld [vmem:[#allocation2 + $0x168] sm:$0xff]
    %v148 = vld [vmem:[#allocation2 + $0x170] sm:$0xff]
    %v149 = vld [vmem:[#allocation2 + $0x178] sm:$0xff]
    %v150 = vld [vmem:[#allocation2 + $0x180] sm:$0xff]
    %v151 = vld [vmem:[#allocation2 + $0x188] sm:$0xff]
    %v152 = vld [vmem:[#allocation2 + $0x190] sm:$0xff]
    %v153 = vld [vmem:[#allocation2 + $0x198] sm:$0xff]
    %v154 = vld [vmem:[#allocation2 + $0x1a0] sm:$0xff]
    %v155 = vld [vmem:[#allocation2 + $0x1a8] sm:$0xff]
    %v156 = vld [vmem:[#allocation2 + $0x1b0] sm:$0xff]
    %v157 = vld [vmem:[#allocation2 + $0x1b8] sm:$0xff]
    %v158 = vld [vmem:[#allocation2 + $0x1c0] sm:$0xff]
    %v159 = vld [vmem:[#allocation2 + $0x1c8] sm:$0xff]
    %v160 = vld [vmem:[#allocation2 + $0x1d0] sm:$0xff]
    %v161 = vld [vmem:[#allocation2 + $0x1d8] sm:$0xff]
    %v162 = vld [vmem:[#allocation2 + $0x1e0] sm:$0xff]
    %v163 = vld [vmem:[#allocation2 + $0x1e8] sm:$0xff]
    %v164 = vld [vmem:[#allocation2 + $0x1f0] sm:$0xff]
    %v165 = vld [vmem:[#allocation2 + $0x1f8] sm:$0xff]
    %v230 = vunpack.c.l.b16 %v102
    %v231 = vunpack.c.h.b16 %v102
    %v232 = vunpack.c.l.b16 %v103
    %v233 = vunpack.c.h.b16 %v103
    %v234 = vunpack.c.l.b16 %v104
    %v235 = vunpack.c.h.b16 %v104
    %v236 = vunpack.c.l.b16 %v105
    %v237 = vunpack.c.h.b16 %v105
    %v238 = vunpack.c.l.b16 %v106
    %v239 = vunpack.c.h.b16 %v106
    %v240 = vunpack.c.l.b16 %v107
    %v241 = vunpack.c.h.b16 %v107
    %v242 = vunpack.c.l.b16 %v108
    %v243 = vunpack.c.h.b16 %v108
    %v244 = vunpack.c.l.b16 %v109
    %v245 = vunpack.c.h.b16 %v109
    %v246 = vunpack.c.l.b16 %v110
    %v247 = vunpack.c.h.b16 %v110
    %v248 = vunpack.c.l.b16 %v111
    %v249 = vunpack.c.h.b16 %v111
    %v250 = vunpack.c.l.b16 %v112
    %v251 = vunpack.c.h.b16 %v112
    %v252 = vunpack.c.l.b16 %v113
    %v253 = vunpack.c.h.b16 %v113
    %v254 = vunpack.c.l.b16 %v114
    %v255 = vunpack.c.h.b16 %v114
    %v256 = vunpack.c.l.b16 %v115
    %v257 = vunpack.c.h.b16 %v115
    %v258 = vunpack.c.l.b16 %v116
    %v259 = vunpack.c.h.b16 %v116
    %v260 = vunpack.c.l.b16 %v117
    %v261 = vunpack.c.h.b16 %v117
    %v262 = vunpack.c.l.b16 %v118
    %v263 = vunpack.c.h.b16 %v118
    %v264 = vunpack.c.l.b16 %v119
    %v265 = vunpack.c.h.b16 %v119
    %v266 = vunpack.c.l.b16 %v120
    %v267 = vunpack.c.h.b16 %v120
    %v268 = vunpack.c.l.b16 %v121
    %v269 = vunpack.c.h.b16 %v121
    %v270 = vunpack.c.l.b16 %v122
    %v271 = vunpack.c.h.b16 %v122
    %v272 = vunpack.c.l.b16 %v123
    %v273 = vunpack.c.h.b16 %v123
    %v274 = vunpack.c.l.b16 %v124
    %v275 = vunpack.c.h.b16 %v124
    %v276 = vunpack.c.l.b16 %v125
    %v277 = vunpack.c.h.b16 %v125
    %v278 = vunpack.c.l.b16 %v126
    %v279 = vunpack.c.h.b16 %v126
    %v280 = vunpack.c.l.b16 %v127
    %v281 = vunpack.c.h.b16 %v127
    %v282 = vunpack.c.l.b16 %v128
    %v283 = vunpack.c.h.b16 %v128
    %v284 = vunpack.c.l.b16 %v129
    %v285 = vunpack.c.h.b16 %v129
    %v286 = vunpack.c.l.b16 %v130
    %v287 = vunpack.c.h.b16 %v130
    %v288 = vunpack.c.l.b16 %v131
    %v289 = vunpack.c.h.b16 %v131
    %v290 = vunpack.c.l.b16 %v132
    %v291 = vunpack.c.h.b16 %v132
    %v292 = vunpack.c.l.b16 %v133
    %v293 = vunpack.c.h.b16 %v133
    %v294 = vunpack.c.l.b16 %v134
    %v295 = vunpack.c.h.b16 %v134
    %v296 = vunpack.c.l.b16 %v135
    %v297 = vunpack.c.h.b16 %v135
    %v298 = vunpack.c.l.b16 %v136
    %v299 = vunpack.c.h.b16 %v136
    %v300 = vunpack.c.l.b16 %v137
    %v301 = vunpack.c.h.b16 %v137
    %v302 = vunpack.c.l.b16 %v138
    %v303 = vunpack.c.h.b16 %v138
    %v304 = vunpack.c.l.b16 %v139
    %v305 = vunpack.c.h.b16 %v139
    %v306 = vunpack.c.l.b16 %v140
    %v307 = vunpack.c.h.b16 %v140
    %v308 = vunpack.c.l.b16 %v141
    %v309 = vunpack.c.h.b16 %v141
    %v310 = vunpack.c.l.b16 %v142
    %v311 = vunpack.c.h.b16 %v142
    %v312 = vunpack.c.l.b16 %v143
    %v313 = vunpack.c.h.b16 %v143
    %v314 = vunpack.c.l.b16 %v144
    %v315 = vunpack.c.h.b16 %v144
    %v316 = vunpack.c.l.b16 %v145
    %v317 = vunpack.c.h.b16 %v145
    %v318 = vunpack.c.l.b16 %v146
    %v319 = vunpack.c.h.b16 %v146
    %v320 = vunpack.c.l.b16 %v147
    %v321 = vunpack.c.h.b16 %v147
    %v322 = vunpack.c.l.b16 %v148
    %v323 = vunpack.c.h.b16 %v148
    %v324 = vunpack.c.l.b16 %v149
    %v325 = vunpack.c.h.b16 %v149
    %v326 = vunpack.c.l.b16 %v150
    %v327 = vunpack.c.h.b16 %v150
    %v328 = vunpack.c.l.b16 %v151
    %v329 = vunpack.c.h.b16 %v151
    %v330 = vunpack.c.l.b16 %v152
    %v331 = vunpack.c.h.b16 %v152
    %v332 = vunpack.c.l.b16 %v153
    %v333 = vunpack.c.h.b16 %v153
    %v334 = vunpack.c.l.b16 %v154
    %v335 = vunpack.c.h.b16 %v154
    %v336 = vunpack.c.l.b16 %v155
    %v337 = vunpack.c.h.b16 %v155
    %v338 = vunpack.c.l.b16 %v156
    %v339 = vunpack.c.h.b16 %v156
    %v340 = vunpack.c.l.b16 %v157
    %v341 = vunpack.c.h.b16 %v157
    %v342 = vunpack.c.l.b16 %v158
    %v343 = vunpack.c.h.b16 %v158
    %v344 = vunpack.c.l.b16 %v159
    %v345 = vunpack.c.h.b16 %v159
    %v346 = vunpack.c.l.b16 %v160
    %v347 = vunpack.c.h.b16 %v160
    %v348 = vunpack.c.l.b16 %v161
    %v349 = vunpack.c.h.b16 %v161
    %v350 = vunpack.c.l.b16 %v162
    %v351 = vunpack.c.h.b16 %v162
    %v352 = vunpack.c.l.b16 %v163
    %v353 = vunpack.c.h.b16 %v163
    %v354 = vunpack.c.l.b16 %v164
    %v355 = vunpack.c.h.b16 %v164
    %v356 = vunpack.c.l.b16 %v165
    %v357 = vunpack.c.h.b16 %v165
    %v358 = vpack.c.b16 %v238, %v230
    %v359 = vpack.c.b16 %v239, %v231
    %v360 = vpack.c.b16 %v240, %v232
    %v361 = vpack.c.b16 %v241, %v233
    %v362 = vpack.c.b16 %v242, %v234
    %v363 = vpack.c.b16 %v243, %v235
    %v364 = vpack.c.b16 %v244, %v236
    %v365 = vpack.c.b16 %v245, %v237
    %v366 = vpack.c.b16 %v254, %v246
    %v367 = vpack.c.b16 %v255, %v247
    %v368 = vpack.c.b16 %v256, %v248
    %v369 = vpack.c.b16 %v257, %v249
    %v370 = vpack.c.b16 %v258, %v250
    %v371 = vpack.c.b16 %v259, %v251
    %v372 = vpack.c.b16 %v260, %v252
    %v373 = vpack.c.b16 %v261, %v253
    %v374 = vpack.c.b16 %v270, %v262
    %v375 = vpack.c.b16 %v271, %v263
    %v376 = vpack.c.b16 %v272, %v264
    %v377 = vpack.c.b16 %v273, %v265
    %v378 = vpack.c.b16 %v274, %v266
    %v379 = vpack.c.b16 %v275, %v267
    %v380 = vpack.c.b16 %v276, %v268
    %v381 = vpack.c.b16 %v277, %v269
    %v382 = vpack.c.b16 %v286, %v278
    %v383 = vpack.c.b16 %v287, %v279
    %v384 = vpack.c.b16 %v288, %v280
    %v385 = vpack.c.b16 %v289, %v281
    %v386 = vpack.c.b16 %v290, %v282
    %v387 = vpack.c.b16 %v291, %v283
    %v388 = vpack.c.b16 %v292, %v284
    %v389 = vpack.c.b16 %v293, %v285
    %v390 = vpack.c.b16 %v302, %v294
    %v391 = vpack.c.b16 %v303, %v295
    %v392 = vpack.c.b16 %v304, %v296
    %v393 = vpack.c.b16 %v305, %v297
    %v394 = vpack.c.b16 %v306, %v298
    %v395 = vpack.c.b16 %v307, %v299
    %v396 = vpack.c.b16 %v308, %v300
    %v397 = vpack.c.b16 %v309, %v301
    %v398 = vpack.c.b16 %v318, %v310
    %v399 = vpack.c.b16 %v319, %v311
    %v400 = vpack.c.b16 %v320, %v312
    %v401 = vpack.c.b16 %v321, %v313
    %v402 = vpack.c.b16 %v322, %v314
    %v403 = vpack.c.b16 %v323, %v315
    %v404 = vpack.c.b16 %v324, %v316
    %v405 = vpack.c.b16 %v325, %v317
    %v406 = vpack.c.b16 %v334, %v326
    %v407 = vpack.c.b16 %v335, %v327
    %v408 = vpack.c.b16 %v336, %v328
    %v409 = vpack.c.b16 %v337, %v329
    %v410 = vpack.c.b16 %v338, %v330
    %v411 = vpack.c.b16 %v339, %v331
    %v412 = vpack.c.b16 %v340, %v332
    %v413 = vpack.c.b16 %v341, %v333
    %v414 = vpack.c.b16 %v350, %v342
    %v415 = vpack.c.b16 %v351, %v343
    %v416 = vpack.c.b16 %v352, %v344
    %v417 = vpack.c.b16 %v353, %v345
    %v418 = vpack.c.b16 %v354, %v346
    %v419 = vpack.c.b16 %v355, %v347
    %v420 = vpack.c.b16 %v356, %v348
    %v421 = vpack.c.b16 %v357, %v349
    %486 = vmatprep.subr.bf16.mxu0 %v359
    %487 = vmatpush1.bf16.msra.mxu0 %v358
    %488 = vmatprep.subr.bf16.mxu0 %v367
    %489 = vmatpush1.bf16.msra.mxu0 %v366
    %490 = vmatprep.subr.bf16.mxu0 %v375
    %491 = vmatpush1.bf16.msra.mxu0 %v374
    %492 = vmatprep.subr.bf16.mxu0 %v383
    %493 = vmatpush1.bf16.msra.mxu0 %v382
    %494 = vmatprep.subr.bf16.mxu0 %v391
    %495 = vmatpush1.bf16.msra.mxu0 %v390
    %496 = vmatprep.subr.bf16.mxu0 %v399
    %497 = vmatpush1.bf16.msra.mxu0 %v398
    %498 = vmatprep.subr.bf16.mxu0 %v407
    %499 = vmatpush1.bf16.msra.mxu0 %v406
    %500 = vmatprep.subr.bf16.mxu0 %v415
    %501 = vmatpush1.bf16.msra.mxu0 %v414
    %502 = vmatprep.subr.bf16.mxu0 0
    %503 = vmatpush1.bf16.msra.mxu0 0
    %504 = vmatprep.subr.bf16.mxu0 0
    %505 = vmatpush1.bf16.msra.mxu0 0
    %506 = vmatprep.subr.bf16.mxu0 0
    %507 = vmatpush1.bf16.msra.mxu0 0
    %508 = vmatprep.subr.bf16.mxu0 0
    %509 = vmatpush1.bf16.msra.mxu0 0
    %510 = vmatprep.subr.bf16.mxu0 0
    %511 = vmatpush1.bf16.msra.mxu0 0
    %512 = vmatprep.subr.bf16.mxu0 0
    %513 = vmatpush1.bf16.msra.mxu0 0
    %514 = vmatprep.subr.bf16.mxu0 0
    %515 = vmatpush1.bf16.msra.mxu0 0
    %516 = vmatprep.subr.bf16.mxu0 0
    %517 = vmatpush1.bf16.msra.mxu0 0
    %518 = vmatprep.mubr.bf16.mxu0 0
    %519 = vmatmul.mubr.bf16.gmra.mrb[0].mxu0 %v101
    %v520 = vpop.f32.mrb[0].mxu0
    %v521 = vadd.f32 0.0, %v520
    %v522 = vpop.f32.mrb[0].mxu0
    %v523 = vadd.f32 0.0, %v522
    %v524 = vpop.f32.mrb[0].mxu0
    %v525 = vpop.f32.mrb[0].mxu0
    %526 = vdwg.mxu0
    %527 = vmatprep.subr.bf16.mxu0 %v361
    %528 = vmatpush1.bf16.msra.mxu0 %v360
    %529 = vmatprep.subr.bf16.mxu0 %v369
    %530 = vmatpush1.bf16.msra.mxu0 %v368
    %531 = vmatprep.subr.bf16.mxu0 %v377
    %532 = vmatpush1.bf16.msra.mxu0 %v376
    %533 = vmatprep.subr.bf16.mxu0 %v385
    %534 = vmatpush1.bf16.msra.mxu0 %v384
    %535 = vmatprep.subr.bf16.mxu0 %v393
    %536 = vmatpush1.bf16.msra.mxu0 %v392
    %537 = vmatprep.subr.bf16.mxu0 %v401
    %538 = vmatpush1.bf16.msra.mxu0 %v400
    %539 = vmatprep.subr.bf16.mxu0 %v409
    %540 = vmatpush1.bf16.msra.mxu0 %v408
    %541 = vmatprep.subr.bf16.mxu0 %v417
    %542 = vmatpush1.bf16.msra.mxu0 %v416
    %543 = vmatprep.subr.bf16.mxu0 0
    %544 = vmatpush1.bf16.msra.mxu0 0
    %545 = vmatprep.subr.bf16.mxu0 0
    %546 = vmatpush1.bf16.msra.mxu0 0
    %547 = vmatprep.subr.bf16.mxu0 0
    %548 = vmatpush1.bf16.msra.mxu0 0
    %549 = vmatprep.subr.bf16.mxu0 0
    %550 = vmatpush1.bf16.msra.mxu0 0
    %551 = vmatprep.subr.bf16.mxu0 0
    %552 = vmatpush1.bf16.msra.mxu0 0
    %553 = vmatprep.subr.bf16.mxu0 0
    %554 = vmatpush1.bf16.msra.mxu0 0
    %555 = vmatprep.subr.bf16.mxu0 0
    %556 = vmatpush1.bf16.msra.mxu0 0
    %557 = vmatprep.subr.bf16.mxu0 0
    %558 = vmatpush1.bf16.msra.mxu0 0
    %559 = vmatprep.mubr.bf16.mxu0 0
    %560 = vmatmul.mubr.bf16.gmra.mrb[0].mxu0 %v101
    %v561 = vpop.f32.mrb[0].mxu0
    %v562 = vadd.f32 0.0, %v561
    %v563 = vpop.f32.mrb[0].mxu0
    %v564 = vadd.f32 0.0, %v563
    %v565 = vpop.f32.mrb[0].mxu0
    %v566 = vpop.f32.mrb[0].mxu0
    %567 = vdwg.mxu0
    %568 = vmatprep.subr.bf16.mxu0 %v363
    %569 = vmatpush1.bf16.msra.mxu0 %v362
    %570 = vmatprep.subr.bf16.mxu0 %v371
    %571 = vmatpush1.bf16.msra.mxu0 %v370
    %572 = vmatprep.subr.bf16.mxu0 %v379
    %573 = vmatpush1.bf16.msra.mxu0 %v378
    %574 = vmatprep.subr.bf16.mxu0 %v387
    %575 = vmatpush1.bf16.msra.mxu0 %v386
    %576 = vmatprep.subr.bf16.mxu0 %v395
    %577 = vmatpush1.bf16.msra.mxu0 %v394
    %578 = vmatprep.subr.bf16.mxu0 %v403
    %579 = vmatpush1.bf16.msra.mxu0 %v402
    %580 = vmatprep.subr.bf16.mxu0 %v411
    %581 = vmatpush1.bf16.msra.mxu0 %v410
    %582 = vmatprep.subr.bf16.mxu0 %v419
    %583 = vmatpush1.bf16.msra.mxu0 %v418
    %584 = vmatprep.subr.bf16.mxu0 0
    %585 = vmatpush1.bf16.msra.mxu0 0
    %586 = vmatprep.subr.bf16.mxu0 0
    %587 = vmatpush1.bf16.msra.mxu0 0
    %588 = vmatprep.subr.bf16.mxu0 0
    %589 = vmatpush1.bf16.msra.mxu0 0
    %590 = vmatprep.subr.bf16.mxu0 0
    %591 = vmatpush1.bf16.msra.mxu0 0
    %592 = vmatprep.subr.bf16.mxu0 0
    %593 = vmatpush1.bf16.msra.mxu0 0
    %594 = vmatprep.subr.bf16.mxu0 0
    %595 = vmatpush1.bf16.msra.mxu0 0
    %596 = vmatprep.subr.bf16.mxu0 0
    %597 = vmatpush1.bf16.msra.mxu0 0
    %598 = vmatprep.subr.bf16.mxu0 0
    %599 = vmatpush1.bf16.msra.mxu0 0
    %600 = vmatprep.mubr.bf16.mxu0 0
    %601 = vmatmul.mubr.bf16.gmra.mrb[0].mxu0 %v101
    %v602 = vpop.f32.mrb[0].mxu0
    %v603 = vadd.f32 0.0, %v602
    %v604 = vpop.f32.mrb[0].mxu0
    %v605 = vadd.f32 0.0, %v604
    %v606 = vpop.f32.mrb[0].mxu0
    %v607 = vpop.f32.mrb[0].mxu0
    %608 = vdwg.mxu0
    %609 = vmatprep.subr.bf16.mxu0 %v365
    %610 = vmatpush1.bf16.msra.mxu0 %v364
    %611 = vmatprep.subr.bf16.mxu0 %v373
    %612 = vmatpush1.bf16.msra.mxu0 %v372
    %613 = vmatprep.subr.bf16.mxu0 %v381
    %614 = vmatpush1.bf16.msra.mxu0 %v380
    %615 = vmatprep.subr.bf16.mxu0 %v389
    %616 = vmatpush1.bf16.msra.mxu0 %v388
    %617 = vmatprep.subr.bf16.mxu0 %v397
    %618 = vmatpush1.bf16.msra.mxu0 %v396
    %619 = vmatprep.subr.bf16.mxu0 %v405
    %620 = vmatpush1.bf16.msra.mxu0 %v404
    %621 = vmatprep.subr.bf16.mxu0 %v413
    %622 = vmatpush1.bf16.msra.mxu0 %v412
    %623 = vmatprep.subr.bf16.mxu0 %v421
    %624 = vmatpush1.bf16.msra.mxu0 %v420
    %625 = vmatprep.subr.bf16.mxu0 0
    %626 = vmatpush1.bf16.msra.mxu0 0
    %627 = vmatprep.subr.bf16.mxu0 0
    %628 = vmatpush1.bf16.msra.mxu0 0
    %629 = vmatprep.subr.bf16.mxu0 0
    %630 = vmatpush1.bf16.msra.mxu0 0
    %631 = vmatprep.subr.bf16.mxu0 0
    %632 = vmatpush1.bf16.msra.mxu0 0
    %633 = vmatprep.subr.bf16.mxu0 0
    %634 = vmatpush1.bf16.msra.mxu0 0
    %635 = vmatprep.subr.bf16.mxu0 0
    %636 = vmatpush1.bf16.msra.mxu0 0
    %637 = vmatprep.subr.bf16.mxu0 0
    %638 = vmatpush1.bf16.msra.mxu0 0
    %639 = vmatprep.subr.bf16.mxu0 0
    %640 = vmatpush1.bf16.msra.mxu0 0
    %641 = vmatprep.mubr.bf16.mxu0 0
    %642 = vmatmul.mubr.bf16.gmra.mrb[0].mxu0 %v101
    %v643 = vpop.f32.mrb[0].mxu0
    %v644 = vadd.f32 0.0, %v643
    %v645 = vpop.f32.mrb[0].mxu0
    %v646 = vadd.f32 0.0, %v645
    %v647 = vpop.f32.mrb[0].mxu0
    %v648 = vpop.f32.mrb[0].mxu0
    %649 = vdwg.mxu0
    %v650 = vld [vmem:[#allocation4] sm:$0xff]
    %v652 = vlaneseq
    %v653 = vshrl.u32 %v652, 7
    %v654 = vsub.s32 0, %v653
    %v655 = vrot.slane %v650, %v654
    %v656 = vlaneseq
    %v657 = vshrl.u32 %v656, 7
    %v658 = vsub.s32 1, %v657
    %v659 = vrot.slane %v650, %v658
    %v660 = vlaneseq
    %v661 = vshrl.u32 %v660, 7
    %v662 = vsub.s32 2, %v661
    %v663 = vrot.slane %v650, %v662
    %v664 = vlaneseq
    %v665 = vshrl.u32 %v664, 7
    %v666 = vsub.s32 3, %v665
    %v667 = vrot.slane %v650, %v666
    %v668 = vlaneseq
    %v669 = vshrl.u32 %v668, 7
    %v670 = vsub.s32 4, %v669
    %v671 = vrot.slane %v650, %v670
    %v672 = vlaneseq
    %v673 = vshrl.u32 %v672, 7
    %v674 = vsub.s32 5, %v673
    %v675 = vrot.slane %v650, %v674
    %v676 = vlaneseq
    %v677 = vshrl.u32 %v676, 7
    %v678 = vsub.s32 6, %v677
    %v679 = vrot.slane %v650, %v678
    %v680 = vlaneseq
    %v681 = vshrl.u32 %v680, 7
    %v682 = vsub.s32 7, %v681
    %v683 = vrot.slane %v650, %v682
    %v692 = vmul.f32 %v521, %v655
    %v693 = vmul.f32 %v523, %v659
    %v694 = vmul.f32 %v562, %v663
    %v695 = vmul.f32 %v564, %v667
    %v696 = vmul.f32 %v603, %v671
    %v697 = vmul.f32 %v605, %v675
    %v698 = vmul.f32 %v644, %v679
    %v699 = vmul.f32 %v646, %v683
    %v700 = vld [vmem:[#allocation6] sm:$0xff]
    %v702 = vlaneseq
    %v703 = vshrl.u32 %v702, 7
    %v704 = vsub.s32 0, %v703
    %v705 = vrot.slane %v700, %v704
    %v706 = vlaneseq
    %v707 = vshrl.u32 %v706, 7
    %v708 = vsub.s32 1, %v707
    %v709 = vrot.slane %v700, %v708
    %v710 = vlaneseq
    %v711 = vshrl.u32 %v710, 7
    %v712 = vsub.s32 2, %v711
    %v713 = vrot.slane %v700, %v712
    %v714 = vlaneseq
    %v715 = vshrl.u32 %v714, 7
    %v716 = vsub.s32 3, %v715
    %v717 = vrot.slane %v700, %v716
    %v718 = vlaneseq
    %v719 = vshrl.u32 %v718, 7
    %v720 = vsub.s32 4, %v719
    %v721 = vrot.slane %v700, %v720
    %v722 = vlaneseq
    %v723 = vshrl.u32 %v722, 7
    %v724 = vsub.s32 5, %v723
    %v725 = vrot.slane %v700, %v724
    %v726 = vlaneseq
    %v727 = vshrl.u32 %v726, 7
    %v728 = vsub.s32 6, %v727
    %v729 = vrot.slane %v700, %v728
    %v730 = vlaneseq
    %v731 = vshrl.u32 %v730, 7
    %v732 = vsub.s32 7, %v731
    %v733 = vrot.slane %v700, %v732
    %v742 = vadd.f32 %v692, %v705
    %v743 = vadd.f32 %v693, %v709
    %v744 = vadd.f32 %v694, %v713
    %v745 = vadd.f32 %v695, %v717
    %v746 = vadd.f32 %v696, %v721
    %v747 = vadd.f32 %v697, %v725
    %v748 = vadd.f32 %v698, %v729
    %v749 = vadd.f32 %v699, %v733
    %v750 = vmax.f32 %v742, 0.0
    %v751 = vmax.f32 %v743, 0.0
    %v752 = vmax.f32 %v744, 0.0
    %v753 = vmax.f32 %v745, 0.0
    %v754 = vmax.f32 %v746, 0.0
    %v755 = vmax.f32 %v747, 0.0
    %v756 = vmax.f32 %v748, 0.0
    %v757 = vmax.f32 %v749, 0.0
    %v758 = vpack.c.bf16 %v750, %v750
    %v759 = vpack.c.bf16 %v751, %v751
    %v760 = vpack.c.bf16 %v752, %v752
    %v761 = vpack.c.bf16 %v753, %v753
    %v762 = vpack.c.bf16 %v754, %v754
    %v763 = vpack.c.bf16 %v755, %v755
    %v764 = vpack.c.bf16 %v756, %v756
    %v765 = vpack.c.bf16 %v757, %v757
    %v766 = vld [vmem:[#allocation7] sm:$0xff]
    %v767 = vld [vmem:[#allocation7 + $0x8] sm:$0xff]
    %v768 = vld [vmem:[#allocation7 + $0x10] sm:$0xff]
    %v769 = vld [vmem:[#allocation7 + $0x18] sm:$0xff]
    %v770 = vld [vmem:[#allocation7 + $0x20] sm:$0xff]
    %v771 = vld [vmem:[#allocation7 + $0x28] sm:$0xff]
    %v772 = vld [vmem:[#allocation7 + $0x30] sm:$0xf]
    %v773 = vld [vmem:[#allocation7 + $0x34] sm:$0xff]
    %v774 = vld [vmem:[#allocation7 + $0x3c] sm:$0xff]
    %v775 = vld [vmem:[#allocation7 + $0x44] sm:$0xff]
    %v776 = vld [vmem:[#allocation7 + $0x4c] sm:$0xff]
    %v777 = vld [vmem:[#allocation7 + $0x54] sm:$0xff]
    %v778 = vld [vmem:[#allocation7 + $0x5c] sm:$0xff]
    %v779 = vld [vmem:[#allocation7 + $0x64] sm:$0xf]
    %v780 = vld [vmem:[#allocation7 + $0x68] sm:$0xff]
    %v781 = vld [vmem:[#allocation7 + $0x70] sm:$0xff]
    %v782 = vld [vmem:[#allocation7 + $0x78] sm:$0xff]
    %v783 = vld [vmem:[#allocation7 + $0x80] sm:$0xff]
    %v784 = vld [vmem:[#allocation7 + $0x88] sm:$0xff]
    %v785 = vld [vmem:[#allocation7 + $0x90] sm:$0xff]
    %v786 = vld [vmem:[#allocation7 + $0x98] sm:$0xf]
    %v787 = vld [vmem:[#allocation7 + $0x9c] sm:$0xff]
    %v788 = vld [vmem:[#allocation7 + $0xa4] sm:$0xff]
    %v789 = vld [vmem:[#allocation7 + $0xac] sm:$0xff]
    %v790 = vld [vmem:[#allocation7 + $0xb4] sm:$0xff]
    %v791 = vld [vmem:[#allocation7 + $0xbc] sm:$0xff]
    %v792 = vld [vmem:[#allocation7 + $0xc4] sm:$0xff]
    %v793 = vld [vmem:[#allocation7 + $0xcc] sm:$0xf]
    %v794 = vld [vmem:[#allocation7 + $0xd0] sm:$0xff]
    %v795 = vld [vmem:[#allocation7 + $0xd8] sm:$0xff]
    %v796 = vld [vmem:[#allocation7 + $0xe0] sm:$0xff]
    %v797 = vld [vmem:[#allocation7 + $0xe8] sm:$0xff]
    %v798 = vld [vmem:[#allocation7 + $0xf0] sm:$0xff]
    %v799 = vld [vmem:[#allocation7 + $0xf8] sm:$0xff]
    %v800 = vld [vmem:[#allocation7 + $0x100] sm:$0xf]
    %v801 = vld [vmem:[#allocation7 + $0x104] sm:$0xff]
    %v802 = vld [vmem:[#allocation7 + $0x10c] sm:$0xff]
    %v803 = vld [vmem:[#allocation7 + $0x114] sm:$0xff]
    %v804 = vld [vmem:[#allocation7 + $0x11c] sm:$0xff]
    %v805 = vld [vmem:[#allocation7 + $0x124] sm:$0xff]
    %v806 = vld [vmem:[#allocation7 + $0x12c] sm:$0xff]
    %v807 = vld [vmem:[#allocation7 + $0x134] sm:$0xf]
    %v808 = vld [vmem:[#allocation7 + $0x138] sm:$0xff]
    %v809 = vld [vmem:[#allocation7 + $0x140] sm:$0xff]
    %v810 = vld [vmem:[#allocation7 + $0x148] sm:$0xff]
    %v811 = vld [vmem:[#allocation7 + $0x150] sm:$0xff]
    %v812 = vld [vmem:[#allocation7 + $0x158] sm:$0xff]
    %v813 = vld [vmem:[#allocation7 + $0x160] sm:$0xff]
    %v814 = vld [vmem:[#allocation7 + $0x168] sm:$0xf]
    %v815 = vld [vmem:[#allocation7 + $0x16c] sm:$0xff]
    %v816 = vld [vmem:[#allocation7 + $0x174] sm:$0xff]
    %v817 = vld [vmem:[#allocation7 + $0x17c] sm:$0xff]
    %v818 = vld [vmem:[#allocation7 + $0x184] sm:$0xff]
    %v819 = vld [vmem:[#allocation7 + $0x18c] sm:$0xff]
    %v820 = vld [vmem:[#allocation7 + $0x194] sm:$0xff]
    %v821 = vld [vmem:[#allocation7 + $0x19c] sm:$0xf]
    %v822 = vld [vmem:[#allocation7 + $0x1a0] sm:$0xff]
    %v823 = vld [vmem:[#allocation7 + $0x1a8] sm:$0xff]
    %v824 = vld [vmem:[#allocation7 + $0x1b0] sm:$0xff]
    %v825 = vld [vmem:[#allocation7 + $0x1b8] sm:$0xff]
    %v826 = vld [vmem:[#allocation7 + $0x1c0] sm:$0xff]
    %v827 = vld [vmem:[#allocation7 + $0x1c8] sm:$0xff]
    %v828 = vld [vmem:[#allocation7 + $0x1d0] sm:$0xf]
    %v829 = vld [vmem:[#allocation7 + $0x1d4] sm:$0xff]
    %v830 = vld [vmem:[#allocation7 + $0x1dc] sm:$0xff]
    %v831 = vld [vmem:[#allocation7 + $0x1e4] sm:$0xff]
    %v832 = vld [vmem:[#allocation7 + $0x1ec] sm:$0xff]
    %v833 = vld [vmem:[#allocation7 + $0x1f4] sm:$0xff]
    %v834 = vld [vmem:[#allocation7 + $0x1fc] sm:$0xff]
    %v835 = vld [vmem:[#allocation7 + $0x204] sm:$0xf]
    %v836 = vld [vmem:[#allocation7 + $0x208] sm:$0xff]
    %v837 = vld [vmem:[#allocation7 + $0x210] sm:$0xff]
    %v838 = vld [vmem:[#allocation7 + $0x218] sm:$0xff]
    %v839 = vld [vmem:[#allocation7 + $0x220] sm:$0xff]
    %v840 = vld [vmem:[#allocation7 + $0x228] sm:$0xff]
    %v841 = vld [vmem:[#allocation7 + $0x230] sm:$0xff]
    %v842 = vld [vmem:[#allocation7 + $0x238] sm:$0xf]
    %v843 = vld [vmem:[#allocation7 + $0x23c] sm:$0xff]
    %v844 = vld [vmem:[#allocation7 + $0x244] sm:$0xff]
    %v845 = vld [vmem:[#allocation7 + $0x24c] sm:$0xff]
    %v846 = vld [vmem:[#allocation7 + $0x254] sm:$0xff]
    %v847 = vld [vmem:[#allocation7 + $0x25c] sm:$0xff]
    %v848 = vld [vmem:[#allocation7 + $0x264] sm:$0xff]
    %v849 = vld [vmem:[#allocation7 + $0x26c] sm:$0xf]
    %v850 = vld [vmem:[#allocation7 + $0x270] sm:$0xff]
    %v851 = vld [vmem:[#allocation7 + $0x278] sm:$0xff]
    %v852 = vld [vmem:[#allocation7 + $0x280] sm:$0xff]
    %v853 = vld [vmem:[#allocation7 + $0x288] sm:$0xff]
    %v854 = vld [vmem:[#allocation7 + $0x290] sm:$0xff]
    %v855 = vld [vmem:[#allocation7 + $0x298] sm:$0xff]
    %v856 = vld [vmem:[#allocation7 + $0x2a0] sm:$0xf]
    %v857 = vld [vmem:[#allocation7 + $0x2a4] sm:$0xff]
    %v858 = vld [vmem:[#allocation7 + $0x2ac] sm:$0xff]
    %v859 = vld [vmem:[#allocation7 + $0x2b4] sm:$0xff]
    %v860 = vld [vmem:[#allocation7 + $0x2bc] sm:$0xff]
    %v861 = vld [vmem:[#allocation7 + $0x2c4] sm:$0xff]
    %v862 = vld [vmem:[#allocation7 + $0x2cc] sm:$0xff]
    %v863 = vld [vmem:[#allocation7 + $0x2d4] sm:$0xf]
    %v864 = vld [vmem:[#allocation7 + $0x2d8] sm:$0xff]
    %v865 = vld [vmem:[#allocation7 + $0x2e0] sm:$0xff]
    %v866 = vld [vmem:[#allocation7 + $0x2e8] sm:$0xff]
    %v867 = vld [vmem:[#allocation7 + $0x2f0] sm:$0xff]
    %v868 = vld [vmem:[#allocation7 + $0x2f8] sm:$0xff]
    %v869 = vld [vmem:[#allocation7 + $0x300] sm:$0xff]
    %v870 = vld [vmem:[#allocation7 + $0x308] sm:$0xf]
    %v871 = vld [vmem:[#allocation7 + $0x30c] sm:$0xff]
    %v872 = vld [vmem:[#allocation7 + $0x314] sm:$0xff]
    %v873 = vld [vmem:[#allocation7 + $0x31c] sm:$0xff]
    %v874 = vld [vmem:[#allocation7 + $0x324] sm:$0xff]
    %v875 = vld [vmem:[#allocation7 + $0x32c] sm:$0xff]
    %v876 = vld [vmem:[#allocation7 + $0x334] sm:$0xff]
    %v877 = vld [vmem:[#allocation7 + $0x33c] sm:$0xf]
    %v878 = vld [vmem:[#allocation7 + $0x340] sm:$0xff]
    %v879 = vld [vmem:[#allocation7 + $0x348] sm:$0xff]
    %v880 = vld [vmem:[#allocation7 + $0x350] sm:$0xff]
    %v881 = vld [vmem:[#allocation7 + $0x358] sm:$0xff]
    %v882 = vld [vmem:[#allocation7 + $0x360] sm:$0xff]
    %v883 = vld [vmem:[#allocation7 + $0x368] sm:$0xff]
    %v884 = vld [vmem:[#allocation7 + $0x370] sm:$0xf]
    %v885 = vld [vmem:[#allocation7 + $0x374] sm:$0xff]
    %v886 = vld [vmem:[#allocation7 + $0x37c] sm:$0xff]
    %v887 = vld [vmem:[#allocation7 + $0x384] sm:$0xff]
    %v888 = vld [vmem:[#allocation7 + $0x38c] sm:$0xff]
    %v889 = vld [vmem:[#allocation7 + $0x394] sm:$0xff]
    %v890 = vld [vmem:[#allocation7 + $0x39c] sm:$0xff]
    %v891 = vld [vmem:[#allocation7 + $0x3a4] sm:$0xf]
    %v892 = vld [vmem:[#allocation7 + $0x3a8] sm:$0xff]
    %v893 = vld [vmem:[#allocation7 + $0x3b0] sm:$0xff]
    %v894 = vld [vmem:[#allocation7 + $0x3b8] sm:$0xff]
    %v895 = vld [vmem:[#allocation7 + $0x3c0] sm:$0xff]
    %v896 = vld [vmem:[#allocation7 + $0x3c8] sm:$0xff]
    %v897 = vld [vmem:[#allocation7 + $0x3d0] sm:$0xff]
    %v898 = vld [vmem:[#allocation7 + $0x3d8] sm:$0xf]
    %v899 = vld [vmem:[#allocation7 + $0x3dc] sm:$0xff]
    %v900 = vld [vmem:[#allocation7 + $0x3e4] sm:$0xff]
    %v901 = vld [vmem:[#allocation7 + $0x3ec] sm:$0xff]
    %v902 = vld [vmem:[#allocation7 + $0x3f4] sm:$0xff]
    %v903 = vld [vmem:[#allocation7 + $0x3fc] sm:$0xff]
    %v904 = vld [vmem:[#allocation7 + $0x404] sm:$0xff]
    %v905 = vld [vmem:[#allocation7 + $0x40c] sm:$0xf]
    %v906 = vld [vmem:[#allocation7 + $0x410] sm:$0xff]
    %v907 = vld [vmem:[#allocation7 + $0x418] sm:$0xff]
    %v908 = vld [vmem:[#allocation7 + $0x420] sm:$0xff]
    %v909 = vld [vmem:[#allocation7 + $0x428] sm:$0xff]
    %v910 = vld [vmem:[#allocation7 + $0x430] sm:$0xff]
    %v911 = vld [vmem:[#allocation7 + $0x438] sm:$0xff]
    %v912 = vld [vmem:[#allocation7 + $0x440] sm:$0xf]
    %v913 = vld [vmem:[#allocation7 + $0x444] sm:$0xff]
    %v914 = vld [vmem:[#allocation7 + $0x44c] sm:$0xff]
    %v915 = vld [vmem:[#allocation7 + $0x454] sm:$0xff]
    %v916 = vld [vmem:[#allocation7 + $0x45c] sm:$0xff]
    %v917 = vld [vmem:[#allocation7 + $0x464] sm:$0xff]
    %v918 = vld [vmem:[#allocation7 + $0x46c] sm:$0xff]
    %v919 = vld [vmem:[#allocation7 + $0x474] sm:$0xf]
    %v920 = vld [vmem:[#allocation7 + $0x478] sm:$0xff]
    %v921 = vld [vmem:[#allocation7 + $0x480] sm:$0xff]
    %v922 = vld [vmem:[#allocation7 + $0x488] sm:$0xff]
    %v923 = vld [vmem:[#allocation7 + $0x490] sm:$0xff]
    %v924 = vld [vmem:[#allocation7 + $0x498] sm:$0xff]
    %v925 = vld [vmem:[#allocation7 + $0x4a0] sm:$0xff]
    %v926 = vld [vmem:[#allocation7 + $0x4a8] sm:$0xf]
    %v927 = vld [vmem:[#allocation7 + $0x4ac] sm:$0xff]
    %v928 = vld [vmem:[#allocation7 + $0x4b4] sm:$0xff]
    %v929 = vld [vmem:[#allocation7 + $0x4bc] sm:$0xff]
    %v930 = vld [vmem:[#allocation7 + $0x4c4] sm:$0xff]
    %v931 = vld [vmem:[#allocation7 + $0x4cc] sm:$0xff]
    %v932 = vld [vmem:[#allocation7 + $0x4d4] sm:$0xff]
    %v933 = vld [vmem:[#allocation7 + $0x4dc] sm:$0xf]
    %v934 = vld [vmem:[#allocation7 + $0x4e0] sm:$0xff]
    %v935 = vld [vmem:[#allocation7 + $0x4e8] sm:$0xff]
    %v936 = vld [vmem:[#allocation7 + $0x4f0] sm:$0xff]
    %v937 = vld [vmem:[#allocation7 + $0x4f8] sm:$0xff]
    %v938 = vld [vmem:[#allocation7 + $0x500] sm:$0xff]
    %v939 = vld [vmem:[#allocation7 + $0x508] sm:$0xff]
    %v940 = vld [vmem:[#allocation7 + $0x510] sm:$0xf]
    %v941 = vld [vmem:[#allocation7 + $0x514] sm:$0xff]
    %v942 = vld [vmem:[#allocation7 + $0x51c] sm:$0xff]
    %v943 = vld [vmem:[#allocation7 + $0x524] sm:$0xff]
    %v944 = vld [vmem:[#allocation7 + $0x52c] sm:$0xff]
    %v945 = vld [vmem:[#allocation7 + $0x534] sm:$0xff]
    %v946 = vld [vmem:[#allocation7 + $0x53c] sm:$0xff]
    %v947 = vld [vmem:[#allocation7 + $0x544] sm:$0xf]
    %v948 = vld [vmem:[#allocation7 + $0x548] sm:$0xff]
    %v949 = vld [vmem:[#allocation7 + $0x550] sm:$0xff]
    %v950 = vld [vmem:[#allocation7 + $0x558] sm:$0xff]
    %v951 = vld [vmem:[#allocation7 + $0x560] sm:$0xff]
    %v952 = vld [vmem:[#allocation7 + $0x568] sm:$0xff]
    %v953 = vld [vmem:[#allocation7 + $0x570] sm:$0xff]
    %v954 = vld [vmem:[#allocation7 + $0x578] sm:$0xf]
    %v955 = vld [vmem:[#allocation7 + $0x57c] sm:$0xff]
    %v956 = vld [vmem:[#allocation7 + $0x584] sm:$0xff]
    %v957 = vld [vmem:[#allocation7 + $0x58c] sm:$0xff]
    %v958 = vld [vmem:[#allocation7 + $0x594] sm:$0xff]
    %v959 = vld [vmem:[#allocation7 + $0x59c] sm:$0xff]
    %v960 = vld [vmem:[#allocation7 + $0x5a4] sm:$0xff]
    %v961 = vld [vmem:[#allocation7 + $0x5ac] sm:$0xf]
    %v962 = vld [vmem:[#allocation7 + $0x5b0] sm:$0xff]
    %v963 = vld [vmem:[#allocation7 + $0x5b8] sm:$0xff]
    %v964 = vld [vmem:[#allocation7 + $0x5c0] sm:$0xff]
    %v965 = vld [vmem:[#allocation7 + $0x5c8] sm:$0xff]
    %v966 = vld [vmem:[#allocation7 + $0x5d0] sm:$0xff]
    %v967 = vld [vmem:[#allocation7 + $0x5d8] sm:$0xff]
    %v968 = vld [vmem:[#allocation7 + $0x5e0] sm:$0xf]
    %v969 = vld [vmem:[#allocation7 + $0x5e4] sm:$0xff]
    %v970 = vld [vmem:[#allocation7 + $0x5ec] sm:$0xff]
    %v971 = vld [vmem:[#allocation7 + $0x5f4] sm:$0xff]
    %v972 = vld [vmem:[#allocation7 + $0x5fc] sm:$0xff]
    %v973 = vld [vmem:[#allocation7 + $0x604] sm:$0xff]
    %v974 = vld [vmem:[#allocation7 + $0x60c] sm:$0xff]
    %v975 = vld [vmem:[#allocation7 + $0x614] sm:$0xf]
    %v976 = vld [vmem:[#allocation7 + $0x618] sm:$0xff]
    %v977 = vld [vmem:[#allocation7 + $0x620] sm:$0xff]
    %v978 = vld [vmem:[#allocation7 + $0x628] sm:$0xff]
    %v979 = vld [vmem:[#allocation7 + $0x630] sm:$0xff]
    %v980 = vld [vmem:[#allocation7 + $0x638] sm:$0xff]
    %v981 = vld [vmem:[#allocation7 + $0x640] sm:$0xff]
    %v982 = vld [vmem:[#allocation7 + $0x648] sm:$0xf]
    %v983 = vld [vmem:[#allocation7 + $0x64c] sm:$0xff]
    %v984 = vld [vmem:[#allocation7 + $0x654] sm:$0xff]
    %v985 = vld [vmem:[#allocation7 + $0x65c] sm:$0xff]
    %v986 = vld [vmem:[#allocation7 + $0x664] sm:$0xff]
    %v987 = vld [vmem:[#allocation7 + $0x66c] sm:$0xff]
    %v988 = vld [vmem:[#allocation7 + $0x674] sm:$0xff]
    %v989 = vld [vmem:[#allocation7 + $0x67c] sm:$0xf]
    %v990 = vld [vmem:[#allocation7 + $0x680] sm:$0xff]
    %v991 = vld [vmem:[#allocation7 + $0x688] sm:$0xff]
    %v992 = vld [vmem:[#allocation7 + $0x690] sm:$0xff]
    %v993 = vld [vmem:[#allocation7 + $0x698] sm:$0xff]
    %v994 = vld [vmem:[#allocation7 + $0x6a0] sm:$0xff]
    %v995 = vld [vmem:[#allocation7 + $0x6a8] sm:$0xff]
    %v996 = vld [vmem:[#allocation7 + $0x6b0] sm:$0xf]
    %v997 = vld [vmem:[#allocation7 + $0x6b4] sm:$0xff]
    %v998 = vld [vmem:[#allocation7 + $0x6bc] sm:$0xff]
    %v999 = vld [vmem:[#allocation7 + $0x6c4] sm:$0xff]
    %v1000 = vld [vmem:[#allocation7 + $0x6cc] sm:$0xff]
    %v1001 = vld [vmem:[#allocation7 + $0x6d4] sm:$0xff]
    %v1002 = vld [vmem:[#allocation7 + $0x6dc] sm:$0xff]
    %v1003 = vld [vmem:[#allocation7 + $0x6e4] sm:$0xf]
    %v1004 = vld [vmem:[#allocation7 + $0x6e8] sm:$0xff]
    %v1005 = vld [vmem:[#allocation7 + $0x6f0] sm:$0xff]
    %v1006 = vld [vmem:[#allocation7 + $0x6f8] sm:$0xff]
    %v1007 = vld [vmem:[#allocation7 + $0x700] sm:$0xff]
    %v1008 = vld [vmem:[#allocation7 + $0x708] sm:$0xff]
    %v1009 = vld [vmem:[#allocation7 + $0x710] sm:$0xff]
    %v1010 = vld [vmem:[#allocation7 + $0x718] sm:$0xf]
    %v1011 = vld [vmem:[#allocation7 + $0x71c] sm:$0xff]
    %v1012 = vld [vmem:[#allocation7 + $0x724] sm:$0xff]
    %v1013 = vld [vmem:[#allocation7 + $0x72c] sm:$0xff]
    %v1014 = vld [vmem:[#allocation7 + $0x734] sm:$0xff]
    %v1015 = vld [vmem:[#allocation7 + $0x73c] sm:$0xff]
    %v1016 = vld [vmem:[#allocation7 + $0x744] sm:$0xff]
    %v1017 = vld [vmem:[#allocation7 + $0x74c] sm:$0xf]
    %v1018 = vld [vmem:[#allocation7 + $0x750] sm:$0xff]
    %v1019 = vld [vmem:[#allocation7 + $0x758] sm:$0xff]
    %v1020 = vld [vmem:[#allocation7 + $0x760] sm:$0xff]
    %v1021 = vld [vmem:[#allocation7 + $0x768] sm:$0xff]
    %v1022 = vld [vmem:[#allocation7 + $0x770] sm:$0xff]
    %v1023 = vld [vmem:[#allocation7 + $0x778] sm:$0xff]
    %v1024 = vld [vmem:[#allocation7 + $0x780] sm:$0xf]
    %v1025 = vld [vmem:[#allocation7 + $0x784] sm:$0xff]
    %v1026 = vld [vmem:[#allocation7 + $0x78c] sm:$0xff]
    %v1027 = vld [vmem:[#allocation7 + $0x794] sm:$0xff]
    %v1028 = vld [vmem:[#allocation7 + $0x79c] sm:$0xff]
    %v1029 = vld [vmem:[#allocation7 + $0x7a4] sm:$0xff]
    %v1030 = vld [vmem:[#allocation7 + $0x7ac] sm:$0xff]
    %v1031 = vld [vmem:[#allocation7 + $0x7b4] sm:$0xf]
    %v1032 = vld [vmem:[#allocation7 + $0x7b8] sm:$0xff]
    %v1033 = vld [vmem:[#allocation7 + $0x7c0] sm:$0xff]
    %v1034 = vld [vmem:[#allocation7 + $0x7c8] sm:$0xff]
    %v1035 = vld [vmem:[#allocation7 + $0x7d0] sm:$0xff]
    %v1036 = vld [vmem:[#allocation7 + $0x7d8] sm:$0xff]
    %v1037 = vld [vmem:[#allocation7 + $0x7e0] sm:$0xff]
    %v1038 = vld [vmem:[#allocation7 + $0x7e8] sm:$0xf]
    %v1039 = vld [vmem:[#allocation7 + $0x7ec] sm:$0xff]
    %v1040 = vld [vmem:[#allocation7 + $0x7f4] sm:$0xff]
    %v1041 = vld [vmem:[#allocation7 + $0x7fc] sm:$0xff]
    %v1042 = vld [vmem:[#allocation7 + $0x804] sm:$0xff]
    %v1043 = vld [vmem:[#allocation7 + $0x80c] sm:$0xff]
    %v1044 = vld [vmem:[#allocation7 + $0x814] sm:$0xff]
    %v1045 = vld [vmem:[#allocation7 + $0x81c] sm:$0xf]
    %v1046 = vld [vmem:[#allocation7 + $0x820] sm:$0xff]
    %v1047 = vld [vmem:[#allocation7 + $0x828] sm:$0xff]
    %v1048 = vld [vmem:[#allocation7 + $0x830] sm:$0xff]
    %v1049 = vld [vmem:[#allocation7 + $0x838] sm:$0xff]
    %v1050 = vld [vmem:[#allocation7 + $0x840] sm:$0xff]
    %v1051 = vld [vmem:[#allocation7 + $0x848] sm:$0xff]
    %v1052 = vld [vmem:[#allocation7 + $0x850] sm:$0xf]
    %v1053 = vld [vmem:[#allocation7 + $0x854] sm:$0xff]
    %v1054 = vld [vmem:[#allocation7 + $0x85c] sm:$0xff]
    %v1055 = vld [vmem:[#allocation7 + $0x864] sm:$0xff]
    %v1056 = vld [vmem:[#allocation7 + $0x86c] sm:$0xff]
    %v1057 = vld [vmem:[#allocation7 + $0x874] sm:$0xff]
    %v1058 = vld [vmem:[#allocation7 + $0x87c] sm:$0xff]
    %v1059 = vld [vmem:[#allocation7 + $0x884] sm:$0xf]
    %v1060 = vld [vmem:[#allocation7 + $0x888] sm:$0xff]
    %v1061 = vld [vmem:[#allocation7 + $0x890] sm:$0xff]
    %v1062 = vld [vmem:[#allocation7 + $0x898] sm:$0xff]
    %v1063 = vld [vmem:[#allocation7 + $0x8a0] sm:$0xff]
    %v1064 = vld [vmem:[#allocation7 + $0x8a8] sm:$0xff]
    %v1065 = vld [vmem:[#allocation7 + $0x8b0] sm:$0xff]
    %v1066 = vld [vmem:[#allocation7 + $0x8b8] sm:$0xf]
    %v1067 = vld [vmem:[#allocation7 + $0x8bc] sm:$0xff]
    %v1068 = vld [vmem:[#allocation7 + $0x8c4] sm:$0xff]
    %v1069 = vld [vmem:[#allocation7 + $0x8cc] sm:$0xff]
    %v1070 = vld [vmem:[#allocation7 + $0x8d4] sm:$0xff]
    %v1071 = vld [vmem:[#allocation7 + $0x8dc] sm:$0xff]
    %v1072 = vld [vmem:[#allocation7 + $0x8e4] sm:$0xff]
    %v1073 = vld [vmem:[#allocation7 + $0x8ec] sm:$0xf]
    %v1074 = vld [vmem:[#allocation7 + $0x8f0] sm:$0xff]
    %v1075 = vld [vmem:[#allocation7 + $0x8f8] sm:$0xff]
    %v1076 = vld [vmem:[#allocation7 + $0x900] sm:$0xff]
    %v1077 = vld [vmem:[#allocation7 + $0x908] sm:$0xff]
    %v1078 = vld [vmem:[#allocation7 + $0x910] sm:$0xff]
    %v1079 = vld [vmem:[#allocation7 + $0x918] sm:$0xff]
    %v1080 = vld [vmem:[#allocation7 + $0x920] sm:$0xf]
    %v1081 = vld [vmem:[#allocation7 + $0x924] sm:$0xff]
    %v1082 = vld [vmem:[#allocation7 + $0x92c] sm:$0xff]
    %v1083 = vld [vmem:[#allocation7 + $0x934] sm:$0xff]
    %v1084 = vld [vmem:[#allocation7 + $0x93c] sm:$0xff]
    %v1085 = vld [vmem:[#allocation7 + $0x944] sm:$0xff]
    %v1086 = vld [vmem:[#allocation7 + $0x94c] sm:$0xff]
    %v1087 = vld [vmem:[#allocation7 + $0x954] sm:$0xf]
    %v1088 = vld [vmem:[#allocation7 + $0x958] sm:$0xff]
    %v1089 = vld [vmem:[#allocation7 + $0x960] sm:$0xff]
    %v1090 = vld [vmem:[#allocation7 + $0x968] sm:$0xff]
    %v1091 = vld [vmem:[#allocation7 + $0x970] sm:$0xff]
    %v1092 = vld [vmem:[#allocation7 + $0x978] sm:$0xff]
    %v1093 = vld [vmem:[#allocation7 + $0x980] sm:$0xff]
    %v1094 = vld [vmem:[#allocation7 + $0x988] sm:$0xf]
    %v1095 = vld [vmem:[#allocation7 + $0x98c] sm:$0xff]
    %v1096 = vld [vmem:[#allocation7 + $0x994] sm:$0xff]
    %v1097 = vld [vmem:[#allocation7 + $0x99c] sm:$0xff]
    %v1098 = vld [vmem:[#allocation7 + $0x9a4] sm:$0xff]
    %v1099 = vld [vmem:[#allocation7 + $0x9ac] sm:$0xff]
    %v1100 = vld [vmem:[#allocation7 + $0x9b4] sm:$0xff]
    %v1101 = vld [vmem:[#allocation7 + $0x9bc] sm:$0xf]
    %v1102 = vld [vmem:[#allocation7 + $0x9c0] sm:$0xff]
    %v1103 = vld [vmem:[#allocation7 + $0x9c8] sm:$0xff]
    %v1104 = vld [vmem:[#allocation7 + $0x9d0] sm:$0xff]
    %v1105 = vld [vmem:[#allocation7 + $0x9d8] sm:$0xff]
    %v1106 = vld [vmem:[#allocation7 + $0x9e0] sm:$0xff]
    %v1107 = vld [vmem:[#allocation7 + $0x9e8] sm:$0xff]
    %v1108 = vld [vmem:[#allocation7 + $0x9f0] sm:$0xf]
    %v1109 = vld [vmem:[#allocation7 + $0x9f4] sm:$0xff]
    %v1110 = vld [vmem:[#allocation7 + $0x9fc] sm:$0xff]
    %v1111 = vld [vmem:[#allocation7 + $0xa04] sm:$0xff]
    %v1112 = vld [vmem:[#allocation7 + $0xa0c] sm:$0xff]
    %v1113 = vld [vmem:[#allocation7 + $0xa14] sm:$0xff]
    %v1114 = vld [vmem:[#allocation7 + $0xa1c] sm:$0xff]
    %v1115 = vld [vmem:[#allocation7 + $0xa24] sm:$0xf]
    %v1116 = vld [vmem:[#allocation7 + $0xa28] sm:$0xff]
    %v1117 = vld [vmem:[#allocation7 + $0xa30] sm:$0xff]
    %v1118 = vld [vmem:[#allocation7 + $0xa38] sm:$0xff]
    %v1119 = vld [vmem:[#allocation7 + $0xa40] sm:$0xff]
    %v1120 = vld [vmem:[#allocation7 + $0xa48] sm:$0xff]
    %v1121 = vld [vmem:[#allocation7 + $0xa50] sm:$0xff]
    %v1122 = vld [vmem:[#allocation7 + $0xa58] sm:$0xf]
    %v1123 = vld [vmem:[#allocation7 + $0xa5c] sm:$0xff]
    %v1124 = vld [vmem:[#allocation7 + $0xa64] sm:$0xff]
    %v1125 = vld [vmem:[#allocation7 + $0xa6c] sm:$0xff]
    %v1126 = vld [vmem:[#allocation7 + $0xa74] sm:$0xff]
    %v1127 = vld [vmem:[#allocation7 + $0xa7c] sm:$0xff]
    %v1128 = vld [vmem:[#allocation7 + $0xa84] sm:$0xff]
    %v1129 = vld [vmem:[#allocation7 + $0xa8c] sm:$0xf]
    %v1130 = vld [vmem:[#allocation7 + $0xa90] sm:$0xff]
    %v1131 = vld [vmem:[#allocation7 + $0xa98] sm:$0xff]
    %v1132 = vld [vmem:[#allocation7 + $0xaa0] sm:$0xff]
    %v1133 = vld [vmem:[#allocation7 + $0xaa8] sm:$0xff]
    %v1134 = vld [vmem:[#allocation7 + $0xab0] sm:$0xff]
    %v1135 = vld [vmem:[#allocation7 + $0xab8] sm:$0xff]
    %v1136 = vld [vmem:[#allocation7 + $0xac0] sm:$0xf]
    %v1137 = vld [vmem:[#allocation7 + $0xac4] sm:$0xff]
    %v1138 = vld [vmem:[#allocation7 + $0xacc] sm:$0xff]
    %v1139 = vld [vmem:[#allocation7 + $0xad4] sm:$0xff]
    %v1140 = vld [vmem:[#allocation7 + $0xadc] sm:$0xff]
    %v1141 = vld [vmem:[#allocation7 + $0xae4] sm:$0xff]
    %v1142 = vld [vmem:[#allocation7 + $0xaec] sm:$0xff]
    %v1143 = vld [vmem:[#allocation7 + $0xaf4] sm:$0xf]
    %v1144 = vld [vmem:[#allocation7 + $0xaf8] sm:$0xff]
    %v1145 = vld [vmem:[#allocation7 + $0xb00] sm:$0xff]
    %v1146 = vld [vmem:[#allocation7 + $0xb08] sm:$0xff]
    %v1147 = vld [vmem:[#allocation7 + $0xb10] sm:$0xff]
    %v1148 = vld [vmem:[#allocation7 + $0xb18] sm:$0xff]
    %v1149 = vld [vmem:[#allocation7 + $0xb20] sm:$0xff]
    %v1150 = vld [vmem:[#allocation7 + $0xb28] sm:$0xf]
    %v1151 = vld [vmem:[#allocation7 + $0xb2c] sm:$0xff]
    %v1152 = vld [vmem:[#allocation7 + $0xb34] sm:$0xff]
    %v1153 = vld [vmem:[#allocation7 + $0xb3c] sm:$0xff]
    %v1154 = vld [vmem:[#allocation7 + $0xb44] sm:$0xff]
    %v1155 = vld [vmem:[#allocation7 + $0xb4c] sm:$0xff]
    %v1156 = vld [vmem:[#allocation7 + $0xb54] sm:$0xff]
    %v1157 = vld [vmem:[#allocation7 + $0xb5c] sm:$0xf]
    %v1158 = vld [vmem:[#allocation7 + $0xb60] sm:$0xff]
    %v1159 = vld [vmem:[#allocation7 + $0xb68] sm:$0xff]
    %v1160 = vld [vmem:[#allocation7 + $0xb70] sm:$0xff]
    %v1161 = vld [vmem:[#allocation7 + $0xb78] sm:$0xff]
    %v1162 = vld [vmem:[#allocation7 + $0xb80] sm:$0xff]
    %v1163 = vld [vmem:[#allocation7 + $0xb88] sm:$0xff]
    %v1164 = vld [vmem:[#allocation7 + $0xb90] sm:$0xf]
    %v1165 = vld [vmem:[#allocation7 + $0xb94] sm:$0xff]
    %v1166 = vld [vmem:[#allocation7 + $0xb9c] sm:$0xff]
    %v1167 = vld [vmem:[#allocation7 + $0xba4] sm:$0xff]
    %v1168 = vld [vmem:[#allocation7 + $0xbac] sm:$0xff]
    %v1169 = vld [vmem:[#allocation7 + $0xbb4] sm:$0xff]
    %v1170 = vld [vmem:[#allocation7 + $0xbbc] sm:$0xff]
    %v1171 = vld [vmem:[#allocation7 + $0xbc4] sm:$0xf]
    %v1172 = vld [vmem:[#allocation7 + $0xbc8] sm:$0xff]
    %v1173 = vld [vmem:[#allocation7 + $0xbd0] sm:$0xff]
    %v1174 = vld [vmem:[#allocation7 + $0xbd8] sm:$0xff]
    %v1175 = vld [vmem:[#allocation7 + $0xbe0] sm:$0xff]
    %v1176 = vld [vmem:[#allocation7 + $0xbe8] sm:$0xff]
    %v1177 = vld [vmem:[#allocation7 + $0xbf0] sm:$0xff]
    %v1178 = vld [vmem:[#allocation7 + $0xbf8] sm:$0xf]
    %v1179 = vld [vmem:[#allocation7 + $0xbfc] sm:$0xff]
    %v1180 = vld [vmem:[#allocation7 + $0xc04] sm:$0xff]
    %v1181 = vld [vmem:[#allocation7 + $0xc0c] sm:$0xff]
    %v1182 = vld [vmem:[#allocation7 + $0xc14] sm:$0xff]
    %v1183 = vld [vmem:[#allocation7 + $0xc1c] sm:$0xff]
    %v1184 = vld [vmem:[#allocation7 + $0xc24] sm:$0xff]
    %v1185 = vld [vmem:[#allocation7 + $0xc2c] sm:$0xf]
    %v1186 = vld [vmem:[#allocation7 + $0xc30] sm:$0xff]
    %v1187 = vld [vmem:[#allocation7 + $0xc38] sm:$0xff]
    %v1188 = vld [vmem:[#allocation7 + $0xc40] sm:$0xff]
    %v1189 = vld [vmem:[#allocation7 + $0xc48] sm:$0xff]
    %v1190 = vld [vmem:[#allocation7 + $0xc50] sm:$0xff]
    %v1191 = vld [vmem:[#allocation7 + $0xc58] sm:$0xff]
    %v1192 = vld [vmem:[#allocation7 + $0xc60] sm:$0xf]
    %v1193 = vld [vmem:[#allocation7 + $0xc64] sm:$0xff]
    %v1194 = vld [vmem:[#allocation7 + $0xc6c] sm:$0xff]
    %v1195 = vld [vmem:[#allocation7 + $0xc74] sm:$0xff]
    %v1196 = vld [vmem:[#allocation7 + $0xc7c] sm:$0xff]
    %v1197 = vld [vmem:[#allocation7 + $0xc84] sm:$0xff]
    %v1198 = vld [vmem:[#allocation7 + $0xc8c] sm:$0xff]
    %v1199 = vld [vmem:[#allocation7 + $0xc94] sm:$0xf]
    %v1200 = vld [vmem:[#allocation7 + $0xc98] sm:$0xff]
    %v1201 = vld [vmem:[#allocation7 + $0xca0] sm:$0xff]
    %v1202 = vld [vmem:[#allocation7 + $0xca8] sm:$0xff]
    %v1203 = vld [vmem:[#allocation7 + $0xcb0] sm:$0xff]
    %v1204 = vld [vmem:[#allocation7 + $0xcb8] sm:$0xff]
    %v1205 = vld [vmem:[#allocation7 + $0xcc0] sm:$0xff]
    %v1206 = vld [vmem:[#allocation7 + $0xcc8] sm:$0xf]
    %v1207 = vld [vmem:[#allocation7 + $0xccc] sm:$0xff]
    %v1208 = vld [vmem:[#allocation7 + $0xcd4] sm:$0xff]
    %v1209 = vld [vmem:[#allocation7 + $0xcdc] sm:$0xff]
    %v1210 = vld [vmem:[#allocation7 + $0xce4] sm:$0xff]
    %v1211 = vld [vmem:[#allocation7 + $0xcec] sm:$0xff]
    %v1212 = vld [vmem:[#allocation7 + $0xcf4] sm:$0xff]
    %v1213 = vld [vmem:[#allocation7 + $0xcfc] sm:$0xf]
    %v1214 = vld [vmem:[#allocation7 + $0xd00] sm:$0xff]
    %v1215 = vld [vmem:[#allocation7 + $0xd08] sm:$0xff]
    %v1216 = vld [vmem:[#allocation7 + $0xd10] sm:$0xff]
    %v1217 = vld [vmem:[#allocation7 + $0xd18] sm:$0xff]
    %v1218 = vld [vmem:[#allocation7 + $0xd20] sm:$0xff]
    %v1219 = vld [vmem:[#allocation7 + $0xd28] sm:$0xff]
    %v1220 = vld [vmem:[#allocation7 + $0xd30] sm:$0xf]
    %v1221 = vld [vmem:[#allocation7 + $0xd34] sm:$0xff]
    %v1222 = vld [vmem:[#allocation7 + $0xd3c] sm:$0xff]
    %v1223 = vld [vmem:[#allocation7 + $0xd44] sm:$0xff]
    %v1224 = vld [vmem:[#allocation7 + $0xd4c] sm:$0xff]
    %v1225 = vld [vmem:[#allocation7 + $0xd54] sm:$0xff]
    %v1226 = vld [vmem:[#allocation7 + $0xd5c] sm:$0xff]
    %v1227 = vld [vmem:[#allocation7 + $0xd64] sm:$0xf]
    %v1228 = vld [vmem:[#allocation7 + $0xd68] sm:$0xff]
    %v1229 = vld [vmem:[#allocation7 + $0xd70] sm:$0xff]
    %v1230 = vld [vmem:[#allocation7 + $0xd78] sm:$0xff]
    %v1231 = vld [vmem:[#allocation7 + $0xd80] sm:$0xff]
    %v1232 = vld [vmem:[#allocation7 + $0xd88] sm:$0xff]
    %v1233 = vld [vmem:[#allocation7 + $0xd90] sm:$0xff]
    %v1234 = vld [vmem:[#allocation7 + $0xd98] sm:$0xf]
    %v1235 = vld [vmem:[#allocation7 + $0xd9c] sm:$0xff]
    %v1236 = vld [vmem:[#allocation7 + $0xda4] sm:$0xff]
    %v1237 = vld [vmem:[#allocation7 + $0xdac] sm:$0xff]
    %v1238 = vld [vmem:[#allocation7 + $0xdb4] sm:$0xff]
    %v1239 = vld [vmem:[#allocation7 + $0xdbc] sm:$0xff]
    %v1240 = vld [vmem:[#allocation7 + $0xdc4] sm:$0xff]
    %v1241 = vld [vmem:[#allocation7 + $0xdcc] sm:$0xf]
    %v1242 = vld [vmem:[#allocation7 + $0xdd0] sm:$0xff]
    %v1243 = vld [vmem:[#allocation7 + $0xdd8] sm:$0xff]
    %v1244 = vld [vmem:[#allocation7 + $0xde0] sm:$0xff]
    %v1245 = vld [vmem:[#allocation7 + $0xde8] sm:$0xff]
    %v1246 = vld [vmem:[#allocation7 + $0xdf0] sm:$0xff]
    %v1247 = vld [vmem:[#allocation7 + $0xdf8] sm:$0xff]
    %v1248 = vld [vmem:[#allocation7 + $0xe00] sm:$0xf]
    %v1249 = vld [vmem:[#allocation7 + $0xe04] sm:$0xff]
    %v1250 = vld [vmem:[#allocation7 + $0xe0c] sm:$0xff]
    %v1251 = vld [vmem:[#allocation7 + $0xe14] sm:$0xff]
    %v1252 = vld [vmem:[#allocation7 + $0xe1c] sm:$0xff]
    %v1253 = vld [vmem:[#allocation7 + $0xe24] sm:$0xff]
    %v1254 = vld [vmem:[#allocation7 + $0xe2c] sm:$0xff]
    %v1255 = vld [vmem:[#allocation7 + $0xe34] sm:$0xf]
    %v1256 = vld [vmem:[#allocation7 + $0xe38] sm:$0xff]
    %v1257 = vld [vmem:[#allocation7 + $0xe40] sm:$0xff]
    %v1258 = vld [vmem:[#allocation7 + $0xe48] sm:$0xff]
    %v1259 = vld [vmem:[#allocation7 + $0xe50] sm:$0xff]
    %v1260 = vld [vmem:[#allocation7 + $0xe58] sm:$0xff]
    %v1261 = vld [vmem:[#allocation7 + $0xe60] sm:$0xff]
    %v1262 = vld [vmem:[#allocation7 + $0xe68] sm:$0xf]
    %v1263 = vld [vmem:[#allocation7 + $0xe6c] sm:$0xff]
    %v1264 = vld [vmem:[#allocation7 + $0xe74] sm:$0xff]
    %v1265 = vld [vmem:[#allocation7 + $0xe7c] sm:$0xff]
    %v1266 = vld [vmem:[#allocation7 + $0xe84] sm:$0xff]
    %v1267 = vld [vmem:[#allocation7 + $0xe8c] sm:$0xff]
    %v1268 = vld [vmem:[#allocation7 + $0xe94] sm:$0xff]
    %v1269 = vld [vmem:[#allocation7 + $0xe9c] sm:$0xf]
    %v1270 = vld [vmem:[#allocation7 + $0xea0] sm:$0xff]
    %v1271 = vld [vmem:[#allocation7 + $0xea8] sm:$0xff]
    %v1272 = vld [vmem:[#allocation7 + $0xeb0] sm:$0xff]
    %v1273 = vld [vmem:[#allocation7 + $0xeb8] sm:$0xff]
    %v1274 = vld [vmem:[#allocation7 + $0xec0] sm:$0xff]
    %v1275 = vld [vmem:[#allocation7 + $0xec8] sm:$0xff]
    %v1276 = vld [vmem:[#allocation7 + $0xed0] sm:$0xf]
    %v1277 = vld [vmem:[#allocation7 + $0xed4] sm:$0xff]
    %v1278 = vld [vmem:[#allocation7 + $0xedc] sm:$0xff]
    %v1279 = vld [vmem:[#allocation7 + $0xee4] sm:$0xff]
    %v1280 = vld [vmem:[#allocation7 + $0xeec] sm:$0xff]
    %v1281 = vld [vmem:[#allocation7 + $0xef4] sm:$0xff]
    %v1282 = vld [vmem:[#allocation7 + $0xefc] sm:$0xff]
    %v1283 = vld [vmem:[#allocation7 + $0xf04] sm:$0xf]
    %v1284 = vld [vmem:[#allocation7 + $0xf08] sm:$0xff]
    %v1285 = vld [vmem:[#allocation7 + $0xf10] sm:$0xff]
    %v1286 = vld [vmem:[#allocation7 + $0xf18] sm:$0xff]
    %v1287 = vld [vmem:[#allocation7 + $0xf20] sm:$0xff]
    %v1288 = vld [vmem:[#allocation7 + $0xf28] sm:$0xff]
    %v1289 = vld [vmem:[#allocation7 + $0xf30] sm:$0xff]
    %v1290 = vld [vmem:[#allocation7 + $0xf38] sm:$0xf]
    %v1291 = vld [vmem:[#allocation7 + $0xf3c] sm:$0xff]
    %v1292 = vld [vmem:[#allocation7 + $0xf44] sm:$0xff]
    %v1293 = vld [vmem:[#allocation7 + $0xf4c] sm:$0xff]
    %v1294 = vld [vmem:[#allocation7 + $0xf54] sm:$0xff]
    %v1295 = vld [vmem:[#allocation7 + $0xf5c] sm:$0xff]
    %v1296 = vld [vmem:[#allocation7 + $0xf64] sm:$0xff]
    %v1297 = vld [vmem:[#allocation7 + $0xf6c] sm:$0xf]
    %v1298 = vld [vmem:[#allocation7 + $0xf70] sm:$0xff]
    %v1299 = vld [vmem:[#allocation7 + $0xf78] sm:$0xff]
    %v1300 = vld [vmem:[#allocation7 + $0xf80] sm:$0xff]
    %v1301 = vld [vmem:[#allocation7 + $0xf88] sm:$0xff]
    %v1302 = vld [vmem:[#allocation7 + $0xf90] sm:$0xff]
    %v1303 = vld [vmem:[#allocation7 + $0xf98] sm:$0xff]
    %v1304 = vld [vmem:[#allocation7 + $0xfa0] sm:$0xf]
    %v1305 = vld [vmem:[#allocation7 + $0xfa4] sm:$0xff]
    %v1306 = vld [vmem:[#allocation7 + $0xfac] sm:$0xff]
    %v1307 = vld [vmem:[#allocation7 + $0xfb4] sm:$0xff]
    %v1308 = vld [vmem:[#allocation7 + $0xfbc] sm:$0xff]
    %v1309 = vld [vmem:[#allocation7 + $0xfc4] sm:$0xff]
    %v1310 = vld [vmem:[#allocation7 + $0xfcc] sm:$0xff]
    %v1311 = vld [vmem:[#allocation7 + $0xfd4] sm:$0xf]
    %v1312 = vld [vmem:[#allocation7 + $0xfd8] sm:$0xff]
    %v1313 = vld [vmem:[#allocation7 + $0xfe0] sm:$0xff]
    %v1314 = vld [vmem:[#allocation7 + $0xfe8] sm:$0xff]
    %v1315 = vld [vmem:[#allocation7 + $0xff0] sm:$0xff]
    %v1316 = vld [vmem:[#allocation7 + $0xff8] sm:$0xff]
    %v1317 = vld [vmem:[#allocation7 + $0x1000] sm:$0xff]
    %v1318 = vld [vmem:[#allocation7 + $0x1008] sm:$0xf]
    %v1319 = vld [vmem:[#allocation7 + $0x100c] sm:$0xff]
    %v1320 = vld [vmem:[#allocation7 + $0x1014] sm:$0xff]
    %v1321 = vld [vmem:[#allocation7 + $0x101c] sm:$0xff]
    %v1322 = vld [vmem:[#allocation7 + $0x1024] sm:$0xff]
    %v1323 = vld [vmem:[#allocation7 + $0x102c] sm:$0xff]
    %v1324 = vld [vmem:[#allocation7 + $0x1034] sm:$0xff]
    %v1325 = vld [vmem:[#allocation7 + $0x103c] sm:$0xf]
    %v1326 = vld [vmem:[#allocation7 + $0x1040] sm:$0xff]
    %v1327 = vld [vmem:[#allocation7 + $0x1048] sm:$0xff]
    %v1328 = vld [vmem:[#allocation7 + $0x1050] sm:$0xff]
    %v1329 = vld [vmem:[#allocation7 + $0x1058] sm:$0xff]
    %v1330 = vld [vmem:[#allocation7 + $0x1060] sm:$0xff]
    %v1331 = vld [vmem:[#allocation7 + $0x1068] sm:$0xff]
    %v1332 = vld [vmem:[#allocation7 + $0x1070] sm:$0xf]
    %v1333 = vld [vmem:[#allocation7 + $0x1074] sm:$0xff]
    %v1334 = vld [vmem:[#allocation7 + $0x107c] sm:$0xff]
    %v1335 = vld [vmem:[#allocation7 + $0x1084] sm:$0xff]
    %v1336 = vld [vmem:[#allocation7 + $0x108c] sm:$0xff]
    %v1337 = vld [vmem:[#allocation7 + $0x1094] sm:$0xff]
    %v1338 = vld [vmem:[#allocation7 + $0x109c] sm:$0xff]
    %v1339 = vld [vmem:[#allocation7 + $0x10a4] sm:$0xf]
    %v1340 = vld [vmem:[#allocation7 + $0x10a8] sm:$0xff]
    %v1341 = vld [vmem:[#allocation7 + $0x10b0] sm:$0xff]
    %v1342 = vld [vmem:[#allocation7 + $0x10b8] sm:$0xff]
    %v1343 = vld [vmem:[#allocation7 + $0x10c0] sm:$0xff]
    %v1344 = vld [vmem:[#allocation7 + $0x10c8] sm:$0xff]
    %v1345 = vld [vmem:[#allocation7 + $0x10d0] sm:$0xff]
    %v1346 = vld [vmem:[#allocation7 + $0x10d8] sm:$0xf]
    %v1347 = vld [vmem:[#allocation7 + $0x10dc] sm:$0xff]
    %v1348 = vld [vmem:[#allocation7 + $0x10e4] sm:$0xff]
    %v1349 = vld [vmem:[#allocation7 + $0x10ec] sm:$0xff]
    %v1350 = vld [vmem:[#allocation7 + $0x10f4] sm:$0xff]
    %v1351 = vld [vmem:[#allocation7 + $0x10fc] sm:$0xff]
    %v1352 = vld [vmem:[#allocation7 + $0x1104] sm:$0xff]
    %v1353 = vld [vmem:[#allocation7 + $0x110c] sm:$0xf]
    %v1354 = vld [vmem:[#allocation7 + $0x1110] sm:$0xff]
    %v1355 = vld [vmem:[#allocation7 + $0x1118] sm:$0xff]
    %v1356 = vld [vmem:[#allocation7 + $0x1120] sm:$0xff]
    %v1357 = vld [vmem:[#allocation7 + $0x1128] sm:$0xff]
    %v1358 = vld [vmem:[#allocation7 + $0x1130] sm:$0xff]
    %v1359 = vld [vmem:[#allocation7 + $0x1138] sm:$0xff]
    %v1360 = vld [vmem:[#allocation7 + $0x1140] sm:$0xf]
    %v1361 = vld [vmem:[#allocation7 + $0x1144] sm:$0xff]
    %v1362 = vld [vmem:[#allocation7 + $0x114c] sm:$0xff]
    %v1363 = vld [vmem:[#allocation7 + $0x1154] sm:$0xff]
    %v1364 = vld [vmem:[#allocation7 + $0x115c] sm:$0xff]
    %v1365 = vld [vmem:[#allocation7 + $0x1164] sm:$0xff]
    %v1366 = vld [vmem:[#allocation7 + $0x116c] sm:$0xff]
    %v1367 = vld [vmem:[#allocation7 + $0x1174] sm:$0xf]
    %v1368 = vld [vmem:[#allocation7 + $0x1178] sm:$0xff]
    %v1369 = vld [vmem:[#allocation7 + $0x1180] sm:$0xff]
    %v1370 = vld [vmem:[#allocation7 + $0x1188] sm:$0xff]
    %v1371 = vld [vmem:[#allocation7 + $0x1190] sm:$0xff]
    %v1372 = vld [vmem:[#allocation7 + $0x1198] sm:$0xff]
    %v1373 = vld [vmem:[#allocation7 + $0x11a0] sm:$0xff]
    %v1374 = vld [vmem:[#allocation7 + $0x11a8] sm:$0xf]
    %v1375 = vld [vmem:[#allocation7 + $0x11ac] sm:$0xff]
    %v1376 = vld [vmem:[#allocation7 + $0x11b4] sm:$0xff]
    %v1377 = vld [vmem:[#allocation7 + $0x11bc] sm:$0xff]
    %v1378 = vld [vmem:[#allocation7 + $0x11c4] sm:$0xff]
    %v1379 = vld [vmem:[#allocation7 + $0x11cc] sm:$0xff]
    %v1380 = vld [vmem:[#allocation7 + $0x11d4] sm:$0xff]
    %v1381 = vld [vmem:[#allocation7 + $0x11dc] sm:$0xf]
    %v1382 = vld [vmem:[#allocation7 + $0x11e0] sm:$0xff]
    %v1383 = vld [vmem:[#allocation7 + $0x11e8] sm:$0xff]
    %v1384 = vld [vmem:[#allocation7 + $0x11f0] sm:$0xff]
    %v1385 = vld [vmem:[#allocation7 + $0x11f8] sm:$0xff]
    %v1386 = vld [vmem:[#allocation7 + $0x1200] sm:$0xff]
    %v1387 = vld [vmem:[#allocation7 + $0x1208] sm:$0xff]
    %v1388 = vld [vmem:[#allocation7 + $0x1210] sm:$0xf]
    %v1389 = vld [vmem:[#allocation7 + $0x1214] sm:$0xff]
    %v1390 = vld [vmem:[#allocation7 + $0x121c] sm:$0xff]
    %v1391 = vld [vmem:[#allocation7 + $0x1224] sm:$0xff]
    %v1392 = vld [vmem:[#allocation7 + $0x122c] sm:$0xff]
    %v1393 = vld [vmem:[#allocation7 + $0x1234] sm:$0xff]
    %v1394 = vld [vmem:[#allocation7 + $0x123c] sm:$0xff]
    %v1395 = vld [vmem:[#allocation7 + $0x1244] sm:$0xf]
    %v1396 = vld [vmem:[#allocation7 + $0x1248] sm:$0xff]
    %v1397 = vld [vmem:[#allocation7 + $0x1250] sm:$0xff]
    %v1398 = vld [vmem:[#allocation7 + $0x1258] sm:$0xff]
    %v1399 = vld [vmem:[#allocation7 + $0x1260] sm:$0xff]
    %v1400 = vld [vmem:[#allocation7 + $0x1268] sm:$0xff]
    %v1401 = vld [vmem:[#allocation7 + $0x1270] sm:$0xff]
    %v1402 = vld [vmem:[#allocation7 + $0x1278] sm:$0xf]
    %v1403 = vld [vmem:[#allocation7 + $0x127c] sm:$0xff]
    %v1404 = vld [vmem:[#allocation7 + $0x1284] sm:$0xff]
    %v1405 = vld [vmem:[#allocation7 + $0x128c] sm:$0xff]
    %v1406 = vld [vmem:[#allocation7 + $0x1294] sm:$0xff]
    %v1407 = vld [vmem:[#allocation7 + $0x129c] sm:$0xff]
    %v1408 = vld [vmem:[#allocation7 + $0x12a4] sm:$0xff]
    %v1409 = vld [vmem:[#allocation7 + $0x12ac] sm:$0xf]
    %v1410 = vld [vmem:[#allocation7 + $0x12b0] sm:$0xff]
    %v1411 = vld [vmem:[#allocation7 + $0x12b8] sm:$0xff]
    %v1412 = vld [vmem:[#allocation7 + $0x12c0] sm:$0xff]
    %v1413 = vld [vmem:[#allocation7 + $0x12c8] sm:$0xff]
    %v1414 = vld [vmem:[#allocation7 + $0x12d0] sm:$0xff]
    %v1415 = vld [vmem:[#allocation7 + $0x12d8] sm:$0xff]
    %v1416 = vld [vmem:[#allocation7 + $0x12e0] sm:$0xf]
    %v1417 = vld [vmem:[#allocation7 + $0x12e4] sm:$0xff]
    %v1418 = vld [vmem:[#allocation7 + $0x12ec] sm:$0xff]
    %v1419 = vld [vmem:[#allocation7 + $0x12f4] sm:$0xff]
    %v1420 = vld [vmem:[#allocation7 + $0x12fc] sm:$0xff]
    %v1421 = vld [vmem:[#allocation7 + $0x1304] sm:$0xff]
    %v1422 = vld [vmem:[#allocation7 + $0x130c] sm:$0xff]
    %v1423 = vld [vmem:[#allocation7 + $0x1314] sm:$0xf]
    %v1424 = vld [vmem:[#allocation7 + $0x1318] sm:$0xff]
    %v1425 = vld [vmem:[#allocation7 + $0x1320] sm:$0xff]
    %v1426 = vld [vmem:[#allocation7 + $0x1328] sm:$0xff]
    %v1427 = vld [vmem:[#allocation7 + $0x1330] sm:$0xff]
    %v1428 = vld [vmem:[#allocation7 + $0x1338] sm:$0xff]
    %v1429 = vld [vmem:[#allocation7 + $0x1340] sm:$0xff]
    %v1430 = vld [vmem:[#allocation7 + $0x1348] sm:$0xf]
    %v1431 = vld [vmem:[#allocation7 + $0x134c] sm:$0xff]
    %v1432 = vld [vmem:[#allocation7 + $0x1354] sm:$0xff]
    %v1433 = vld [vmem:[#allocation7 + $0x135c] sm:$0xff]
    %v1434 = vld [vmem:[#allocation7 + $0x1364] sm:$0xff]
    %v1435 = vld [vmem:[#allocation7 + $0x136c] sm:$0xff]
    %v1436 = vld [vmem:[#allocation7 + $0x1374] sm:$0xff]
    %v1437 = vld [vmem:[#allocation7 + $0x137c] sm:$0xf]
    %v1438 = vld [vmem:[#allocation7 + $0x1380] sm:$0xff]
    %v1439 = vld [vmem:[#allocation7 + $0x1388] sm:$0xff]
    %v1440 = vld [vmem:[#allocation7 + $0x1390] sm:$0xff]
    %v1441 = vld [vmem:[#allocation7 + $0x1398] sm:$0xff]
    %v1442 = vld [vmem:[#allocation7 + $0x13a0] sm:$0xff]
    %v1443 = vld [vmem:[#allocation7 + $0x13a8] sm:$0xff]
    %v1444 = vld [vmem:[#allocation7 + $0x13b0] sm:$0xf]
    %v1445 = vld [vmem:[#allocation7 + $0x13b4] sm:$0xff]
    %v1446 = vld [vmem:[#allocation7 + $0x13bc] sm:$0xff]
    %v1447 = vld [vmem:[#allocation7 + $0x13c4] sm:$0xff]
    %v1448 = vld [vmem:[#allocation7 + $0x13cc] sm:$0xff]
    %v1449 = vld [vmem:[#allocation7 + $0x13d4] sm:$0xff]
    %v1450 = vld [vmem:[#allocation7 + $0x13dc] sm:$0xff]
    %v1451 = vld [vmem:[#allocation7 + $0x13e4] sm:$0xf]
    %v1452 = vld [vmem:[#allocation7 + $0x13e8] sm:$0xff]
    %v1453 = vld [vmem:[#allocation7 + $0x13f0] sm:$0xff]
    %v1454 = vld [vmem:[#allocation7 + $0x13f8] sm:$0xff]
    %v1455 = vld [vmem:[#allocation7 + $0x1400] sm:$0xff]
    %v1456 = vld [vmem:[#allocation7 + $0x1408] sm:$0xff]
    %v1457 = vld [vmem:[#allocation7 + $0x1410] sm:$0xff]
    %v1458 = vld [vmem:[#allocation7 + $0x1418] sm:$0xf]
    %v1459 = vld [vmem:[#allocation7 + $0x141c] sm:$0xff]
    %v1460 = vld [vmem:[#allocation7 + $0x1424] sm:$0xff]
    %v1461 = vld [vmem:[#allocation7 + $0x142c] sm:$0xff]
    %v1462 = vld [vmem:[#allocation7 + $0x1434] sm:$0xff]
    %v1463 = vld [vmem:[#allocation7 + $0x143c] sm:$0xff]
    %v1464 = vld [vmem:[#allocation7 + $0x1444] sm:$0xff]
    %v1465 = vld [vmem:[#allocation7 + $0x144c] sm:$0xf]
    %v1466 = vld [vmem:[#allocation7 + $0x1450] sm:$0xff]
    %v1467 = vld [vmem:[#allocation7 + $0x1458] sm:$0xff]
    %v1468 = vld [vmem:[#allocation7 + $0x1460] sm:$0xff]
    %v1469 = vld [vmem:[#allocation7 + $0x1468] sm:$0xff]
    %v1470 = vld [vmem:[#allocation7 + $0x1470] sm:$0xff]
    %v1471 = vld [vmem:[#allocation7 + $0x1478] sm:$0xff]
    %v1472 = vld [vmem:[#allocation7 + $0x1480] sm:$0xf]
    %v1473 = vld [vmem:[#allocation7 + $0x1484] sm:$0xff]
    %v1474 = vld [vmem:[#allocation7 + $0x148c] sm:$0xff]
    %v1475 = vld [vmem:[#allocation7 + $0x1494] sm:$0xff]
    %v1476 = vld [vmem:[#allocation7 + $0x149c] sm:$0xff]
    %v1477 = vld [vmem:[#allocation7 + $0x14a4] sm:$0xff]
    %v1478 = vld [vmem:[#allocation7 + $0x14ac] sm:$0xff]
    %v1479 = vld [vmem:[#allocation7 + $0x14b4] sm:$0xf]
    %v1480 = vld [vmem:[#allocation7 + $0x14b8] sm:$0xff]
    %v1481 = vld [vmem:[#allocation7 + $0x14c0] sm:$0xff]
    %v1482 = vld [vmem:[#allocation7 + $0x14c8] sm:$0xff]
    %v1483 = vld [vmem:[#allocation7 + $0x14d0] sm:$0xff]
    %v1484 = vld [vmem:[#allocation7 + $0x14d8] sm:$0xff]
    %v1485 = vld [vmem:[#allocation7 + $0x14e0] sm:$0xff]
    %v1486 = vld [vmem:[#allocation7 + $0x14e8] sm:$0xf]
    %v1487 = vld [vmem:[#allocation7 + $0x14ec] sm:$0xff]
    %v1488 = vld [vmem:[#allocation7 + $0x14f4] sm:$0xff]
    %v1489 = vld [vmem:[#allocation7 + $0x14fc] sm:$0xff]
    %v1490 = vld [vmem:[#allocation7 + $0x1504] sm:$0xff]
    %v1491 = vld [vmem:[#allocation7 + $0x150c] sm:$0xff]
    %v1492 = vld [vmem:[#allocation7 + $0x1514] sm:$0xff]
    %v1493 = vld [vmem:[#allocation7 + $0x151c] sm:$0xf]
    %v1494 = vld [vmem:[#allocation7 + $0x1520] sm:$0xff]
    %v1495 = vld [vmem:[#allocation7 + $0x1528] sm:$0xff]
    %v1496 = vld [vmem:[#allocation7 + $0x1530] sm:$0xff]
    %v1497 = vld [vmem:[#allocation7 + $0x1538] sm:$0xff]
    %v1498 = vld [vmem:[#allocation7 + $0x1540] sm:$0xff]
    %v1499 = vld [vmem:[#allocation7 + $0x1548] sm:$0xff]
    %v1500 = vld [vmem:[#allocation7 + $0x1550] sm:$0xf]
    %v1501 = vld [vmem:[#allocation7 + $0x1554] sm:$0xff]
    %v1502 = vld [vmem:[#allocation7 + $0x155c] sm:$0xff]
    %v1503 = vld [vmem:[#allocation7 + $0x1564] sm:$0xff]
    %v1504 = vld [vmem:[#allocation7 + $0x156c] sm:$0xff]
    %v1505 = vld [vmem:[#allocation7 + $0x1574] sm:$0xff]
    %v1506 = vld [vmem:[#allocation7 + $0x157c] sm:$0xff]
    %v1507 = vld [vmem:[#allocation7 + $0x1584] sm:$0xf]
    %v1508 = vld [vmem:[#allocation7 + $0x1588] sm:$0xff]
    %v1509 = vld [vmem:[#allocation7 + $0x1590] sm:$0xff]
    %v1510 = vld [vmem:[#allocation7 + $0x1598] sm:$0xff]
    %v1511 = vld [vmem:[#allocation7 + $0x15a0] sm:$0xff]
    %v1512 = vld [vmem:[#allocation7 + $0x15a8] sm:$0xff]
    %v1513 = vld [vmem:[#allocation7 + $0x15b0] sm:$0xff]
    %v1514 = vld [vmem:[#allocation7 + $0x15b8] sm:$0xf]
    %v1515 = vld [vmem:[#allocation7 + $0x15bc] sm:$0xff]
    %v1516 = vld [vmem:[#allocation7 + $0x15c4] sm:$0xff]
    %v1517 = vld [vmem:[#allocation7 + $0x15cc] sm:$0xff]
    %v1518 = vld [vmem:[#allocation7 + $0x15d4] sm:$0xff]
    %v1519 = vld [vmem:[#allocation7 + $0x15dc] sm:$0xff]
    %v1520 = vld [vmem:[#allocation7 + $0x15e4] sm:$0xff]
    %v1521 = vld [vmem:[#allocation7 + $0x15ec] sm:$0xf]
    %v1522 = vld [vmem:[#allocation7 + $0x15f0] sm:$0xff]
    %v1523 = vld [vmem:[#allocation7 + $0x15f8] sm:$0xff]
    %v1524 = vld [vmem:[#allocation7 + $0x1600] sm:$0xff]
    %v1525 = vld [vmem:[#allocation7 + $0x1608] sm:$0xff]
    %v1526 = vld [vmem:[#allocation7 + $0x1610] sm:$0xff]
    %v1527 = vld [vmem:[#allocation7 + $0x1618] sm:$0xff]
    %v1528 = vld [vmem:[#allocation7 + $0x1620] sm:$0xf]
    %v1529 = vld [vmem:[#allocation7 + $0x1624] sm:$0xff]
    %v1530 = vld [vmem:[#allocation7 + $0x162c] sm:$0xff]
    %v1531 = vld [vmem:[#allocation7 + $0x1634] sm:$0xff]
    %v1532 = vld [vmem:[#allocation7 + $0x163c] sm:$0xff]
    %v1533 = vld [vmem:[#allocation7 + $0x1644] sm:$0xff]
    %v1534 = vld [vmem:[#allocation7 + $0x164c] sm:$0xff]
    %v1535 = vld [vmem:[#allocation7 + $0x1654] sm:$0xf]
    %v1536 = vld [vmem:[#allocation7 + $0x1658] sm:$0xff]
    %v1537 = vld [vmem:[#allocation7 + $0x1660] sm:$0xff]
    %v1538 = vld [vmem:[#allocation7 + $0x1668] sm:$0xff]
    %v1539 = vld [vmem:[#allocation7 + $0x1670] sm:$0xff]
    %v1540 = vld [vmem:[#allocation7 + $0x1678] sm:$0xff]
    %v1541 = vld [vmem:[#allocation7 + $0x1680] sm:$0xff]
    %v1542 = vld [vmem:[#allocation7 + $0x1688] sm:$0xf]
    %v1543 = vld [vmem:[#allocation7 + $0x168c] sm:$0xff]
    %v1544 = vld [vmem:[#allocation7 + $0x1694] sm:$0xff]
    %v1545 = vld [vmem:[#allocation7 + $0x169c] sm:$0xff]
    %v1546 = vld [vmem:[#allocation7 + $0x16a4] sm:$0xff]
    %v1547 = vld [vmem:[#allocation7 + $0x16ac] sm:$0xff]
    %v1548 = vld [vmem:[#allocation7 + $0x16b4] sm:$0xff]
    %v1549 = vld [vmem:[#allocation7 + $0x16bc] sm:$0xf]
    %v1550 = vld [vmem:[#allocation7 + $0x16c0] sm:$0xff]
    %v1551 = vld [vmem:[#allocation7 + $0x16c8] sm:$0xff]
    %v1552 = vld [vmem:[#allocation7 + $0x16d0] sm:$0xff]
    %v1553 = vld [vmem:[#allocation7 + $0x16d8] sm:$0xff]
    %v1554 = vld [vmem:[#allocation7 + $0x16e0] sm:$0xff]
    %v1555 = vld [vmem:[#allocation7 + $0x16e8] sm:$0xff]
    %v1556 = vld [vmem:[#allocation7 + $0x16f0] sm:$0xf]
    %v1557 = vld [vmem:[#allocation7 + $0x16f4] sm:$0xff]
    %v1558 = vld [vmem:[#allocation7 + $0x16fc] sm:$0xff]
    %v1559 = vld [vmem:[#allocation7 + $0x1704] sm:$0xff]
    %v1560 = vld [vmem:[#allocation7 + $0x170c] sm:$0xff]
    %v1561 = vld [vmem:[#allocation7 + $0x1714] sm:$0xff]
    %v1562 = vld [vmem:[#allocation7 + $0x171c] sm:$0xff]
    %v1563 = vld [vmem:[#allocation7 + $0x1724] sm:$0xf]
    %v1564 = vld [vmem:[#allocation7 + $0x1728] sm:$0xff]
    %v1565 = vld [vmem:[#allocation7 + $0x1730] sm:$0xff]
    %v1566 = vld [vmem:[#allocation7 + $0x1738] sm:$0xff]
    %v1567 = vld [vmem:[#allocation7 + $0x1740] sm:$0xff]
    %v1568 = vld [vmem:[#allocation7 + $0x1748] sm:$0xff]
    %v1569 = vld [vmem:[#allocation7 + $0x1750] sm:$0xff]
    %v1570 = vld [vmem:[#allocation7 + $0x1758] sm:$0xf]
    %v1571 = vld [vmem:[#allocation7 + $0x175c] sm:$0xff]
    %v1572 = vld [vmem:[#allocation7 + $0x1764] sm:$0xff]
    %v1573 = vld [vmem:[#allocation7 + $0x176c] sm:$0xff]
    %v1574 = vld [vmem:[#allocation7 + $0x1774] sm:$0xff]
    %v1575 = vld [vmem:[#allocation7 + $0x177c] sm:$0xff]
    %v1576 = vld [vmem:[#allocation7 + $0x1784] sm:$0xff]
    %v1577 = vld [vmem:[#allocation7 + $0x178c] sm:$0xf]
    %v1578 = vld [vmem:[#allocation7 + $0x1790] sm:$0xff]
    %v1579 = vld [vmem:[#allocation7 + $0x1798] sm:$0xff]
    %v1580 = vld [vmem:[#allocation7 + $0x17a0] sm:$0xff]
    %v1581 = vld [vmem:[#allocation7 + $0x17a8] sm:$0xff]
    %v1582 = vld [vmem:[#allocation7 + $0x17b0] sm:$0xff]
    %v1583 = vld [vmem:[#allocation7 + $0x17b8] sm:$0xff]
    %v1584 = vld [vmem:[#allocation7 + $0x17c0] sm:$0xf]
    %v1585 = vld [vmem:[#allocation7 + $0x17c4] sm:$0xff]
    %v1586 = vld [vmem:[#allocation7 + $0x17cc] sm:$0xff]
    %v1587 = vld [vmem:[#allocation7 + $0x17d4] sm:$0xff]
    %v1588 = vld [vmem:[#allocation7 + $0x17dc] sm:$0xff]
    %v1589 = vld [vmem:[#allocation7 + $0x17e4] sm:$0xff]
    %v1590 = vld [vmem:[#allocation7 + $0x17ec] sm:$0xff]
    %v1591 = vld [vmem:[#allocation7 + $0x17f4] sm:$0xf]
    %v1592 = vld [vmem:[#allocation7 + $0x17f8] sm:$0xff]
    %v1593 = vld [vmem:[#allocation7 + $0x1800] sm:$0xff]
    %v1594 = vld [vmem:[#allocation7 + $0x1808] sm:$0xff]
    %v1595 = vld [vmem:[#allocation7 + $0x1810] sm:$0xff]
    %v1596 = vld [vmem:[#allocation7 + $0x1818] sm:$0xff]
    %v1597 = vld [vmem:[#allocation7 + $0x1820] sm:$0xff]
    %v1598 = vld [vmem:[#allocation7 + $0x1828] sm:$0xf]
    %v1599 = vld [vmem:[#allocation7 + $0x182c] sm:$0xff]
    %v1600 = vld [vmem:[#allocation7 + $0x1834] sm:$0xff]
    %v1601 = vld [vmem:[#allocation7 + $0x183c] sm:$0xff]
    %v1602 = vld [vmem:[#allocation7 + $0x1844] sm:$0xff]
    %v1603 = vld [vmem:[#allocation7 + $0x184c] sm:$0xff]
    %v1604 = vld [vmem:[#allocation7 + $0x1854] sm:$0xff]
    %v1605 = vld [vmem:[#allocation7 + $0x185c] sm:$0xf]
    %v1606 = vld [vmem:[#allocation7 + $0x1860] sm:$0xff]
    %v1607 = vld [vmem:[#allocation7 + $0x1868] sm:$0xff]
    %v1608 = vld [vmem:[#allocation7 + $0x1870] sm:$0xff]
    %v1609 = vld [vmem:[#allocation7 + $0x1878] sm:$0xff]
    %v1610 = vld [vmem:[#allocation7 + $0x1880] sm:$0xff]
    %v1611 = vld [vmem:[#allocation7 + $0x1888] sm:$0xff]
    %v1612 = vld [vmem:[#allocation7 + $0x1890] sm:$0xf]
    %v1613 = vld [vmem:[#allocation7 + $0x1894] sm:$0xff]
    %v1614 = vld [vmem:[#allocation7 + $0x189c] sm:$0xff]
    %v1615 = vld [vmem:[#allocation7 + $0x18a4] sm:$0xff]
    %v1616 = vld [vmem:[#allocation7 + $0x18ac] sm:$0xff]
    %v1617 = vld [vmem:[#allocation7 + $0x18b4] sm:$0xff]
    %v1618 = vld [vmem:[#allocation7 + $0x18bc] sm:$0xff]
    %v1619 = vld [vmem:[#allocation7 + $0x18c4] sm:$0xf]
    %v1620 = vld [vmem:[#allocation7 + $0x18c8] sm:$0xff]
    %v1621 = vld [vmem:[#allocation7 + $0x18d0] sm:$0xff]
    %v1622 = vld [vmem:[#allocation7 + $0x18d8] sm:$0xff]
    %v1623 = vld [vmem:[#allocation7 + $0x18e0] sm:$0xff]
    %v1624 = vld [vmem:[#allocation7 + $0x18e8] sm:$0xff]
    %v1625 = vld [vmem:[#allocation7 + $0x18f0] sm:$0xff]
    %v1626 = vld [vmem:[#allocation7 + $0x18f8] sm:$0xf]
    %v1627 = vld [vmem:[#allocation7 + $0x18fc] sm:$0xff]
    %v1628 = vld [vmem:[#allocation7 + $0x1904] sm:$0xff]
    %v1629 = vld [vmem:[#allocation7 + $0x190c] sm:$0xff]
    %v1630 = vld [vmem:[#allocation7 + $0x1914] sm:$0xff]
    %v1631 = vld [vmem:[#allocation7 + $0x191c] sm:$0xff]
    %v1632 = vld [vmem:[#allocation7 + $0x1924] sm:$0xff]
    %v1633 = vld [vmem:[#allocation7 + $0x192c] sm:$0xf]
    %v1634 = vld [vmem:[#allocation7 + $0x1930] sm:$0xff]
    %v1635 = vld [vmem:[#allocation7 + $0x1938] sm:$0xff]
    %v1636 = vld [vmem:[#allocation7 + $0x1940] sm:$0xff]
    %v1637 = vld [vmem:[#allocation7 + $0x1948] sm:$0xff]
    %v1638 = vld [vmem:[#allocation7 + $0x1950] sm:$0xff]
    %v1639 = vld [vmem:[#allocation7 + $0x1958] sm:$0xff]
    %v1640 = vld [vmem:[#allocation7 + $0x1960] sm:$0xf]
    %v1641 = vld [vmem:[#allocation7 + $0x1964] sm:$0xff]
    %v1642 = vld [vmem:[#allocation7 + $0x196c] sm:$0xff]
    %v1643 = vld [vmem:[#allocation7 + $0x1974] sm:$0xff]
    %v1644 = vld [vmem:[#allocation7 + $0x197c] sm:$0xff]
    %v1645 = vld [vmem:[#allocation7 + $0x1984] sm:$0xff]
    %v1646 = vld [vmem:[#allocation7 + $0x198c] sm:$0xff]
    %v1647 = vld [vmem:[#allocation7 + $0x1994] sm:$0xf]
    %v1648 = vld [vmem:[#allocation7 + $0x1998] sm:$0xff]
    %v1649 = vld [vmem:[#allocation7 + $0x19a0] sm:$0xff]
    %v1650 = vld [vmem:[#allocation7 + $0x19a8] sm:$0xff]
    %v1651 = vld [vmem:[#allocation7 + $0x19b0] sm:$0xff]
    %v1652 = vld [vmem:[#allocation7 + $0x19b8] sm:$0xff]
    %v1653 = vld [vmem:[#allocation7 + $0x19c0] sm:$0xff]
    %v1654 = vld [vmem:[#allocation7 + $0x19c8] sm:$0xf]
    %v1655 = vld [vmem:[#allocation7 + $0x19cc] sm:$0xff]
    %v1656 = vld [vmem:[#allocation7 + $0x19d4] sm:$0xff]
    %v1657 = vld [vmem:[#allocation7 + $0x19dc] sm:$0xff]
    %v1658 = vld [vmem:[#allocation7 + $0x19e4] sm:$0xff]
    %v1659 = vld [vmem:[#allocation7 + $0x19ec] sm:$0xff]
    %v1660 = vld [vmem:[#allocation7 + $0x19f4] sm:$0xff]
    %v1661 = vld [vmem:[#allocation7 + $0x19fc] sm:$0xf]
    %v2558 = vunpack.c.l.b16 %v766
    %v2559 = vunpack.c.h.b16 %v766
    %v2560 = vunpack.c.l.b16 %v767
    %v2561 = vunpack.c.h.b16 %v767
    %v2562 = vunpack.c.l.b16 %v768
    %v2563 = vunpack.c.h.b16 %v768
    %v2564 = vunpack.c.l.b16 %v769
    %v2565 = vunpack.c.h.b16 %v769
    %v2566 = vunpack.c.l.b16 %v770
    %v2567 = vunpack.c.h.b16 %v770
    %v2568 = vunpack.c.l.b16 %v771
    %v2569 = vunpack.c.h.b16 %v771
    %v2570 = vunpack.c.l.b16 %v772
    %v2571 = vunpack.c.l.b16 %v773
    %v2572 = vunpack.c.h.b16 %v773
    %v2573 = vunpack.c.l.b16 %v774
    %v2574 = vunpack.c.h.b16 %v774
    %v2575 = vunpack.c.l.b16 %v775
    %v2576 = vunpack.c.h.b16 %v775
    %v2577 = vunpack.c.l.b16 %v776
    %v2578 = vunpack.c.h.b16 %v776
    %v2579 = vunpack.c.l.b16 %v777
    %v2580 = vunpack.c.h.b16 %v777
    %v2581 = vunpack.c.l.b16 %v778
    %v2582 = vunpack.c.h.b16 %v778
    %v2583 = vunpack.c.l.b16 %v779
    %v2584 = vunpack.c.l.b16 %v780
    %v2585 = vunpack.c.h.b16 %v780
    %v2586 = vunpack.c.l.b16 %v781
    %v2587 = vunpack.c.h.b16 %v781
    %v2588 = vunpack.c.l.b16 %v782
    %v2589 = vunpack.c.h.b16 %v782
    %v2590 = vunpack.c.l.b16 %v783
    %v2591 = vunpack.c.h.b16 %v783
    %v2592 = vunpack.c.l.b16 %v784
    %v2593 = vunpack.c.h.b16 %v784
    %v2594 = vunpack.c.l.b16 %v785
    %v2595 = vunpack.c.h.b16 %v785
    %v2596 = vunpack.c.l.b16 %v786
    %v2597 = vunpack.c.l.b16 %v787
    %v2598 = vunpack.c.h.b16 %v787
    %v2599 = vunpack.c.l.b16 %v788
    %v2600 = vunpack.c.h.b16 %v788
    %v2601 = vunpack.c.l.b16 %v789
    %v2602 = vunpack.c.h.b16 %v789
    %v2603 = vunpack.c.l.b16 %v790
    %v2604 = vunpack.c.h.b16 %v790
    %v2605 = vunpack.c.l.b16 %v791
    %v2606 = vunpack.c.h.b16 %v791
    %v2607 = vunpack.c.l.b16 %v792
    %v2608 = vunpack.c.h.b16 %v792
    %v2609 = vunpack.c.l.b16 %v793
    %v2610 = vunpack.c.l.b16 %v794
    %v2611 = vunpack.c.h.b16 %v794
    %v2612 = vunpack.c.l.b16 %v795
    %v2613 = vunpack.c.h.b16 %v795
    %v2614 = vunpack.c.l.b16 %v796
    %v2615 = vunpack.c.h.b16 %v796
    %v2616 = vunpack.c.l.b16 %v797
    %v2617 = vunpack.c.h.b16 %v797
    %v2618 = vunpack.c.l.b16 %v798
    %v2619 = vunpack.c.h.b16 %v798
    %v2620 = vunpack.c.l.b16 %v799
    %v2621 = vunpack.c.h.b16 %v799
    %v2622 = vunpack.c.l.b16 %v800
    %v2623 = vunpack.c.l.b16 %v801
    %v2624 = vunpack.c.h.b16 %v801
    %v2625 = vunpack.c.l.b16 %v802
    %v2626 = vunpack.c.h.b16 %v802
    %v2627 = vunpack.c.l.b16 %v803
    %v2628 = vunpack.c.h.b16 %v803
    %v2629 = vunpack.c.l.b16 %v804
    %v2630 = vunpack.c.h.b16 %v804
    %v2631 = vunpack.c.l.b16 %v805
    %v2632 = vunpack.c.h.b16 %v805
    %v2633 = vunpack.c.l.b16 %v806
    %v2634 = vunpack.c.h.b16 %v806
    %v2635 = vunpack.c.l.b16 %v807
    %v2636 = vunpack.c.l.b16 %v808
    %v2637 = vunpack.c.h.b16 %v808
    %v2638 = vunpack.c.l.b16 %v809
    %v2639 = vunpack.c.h.b16 %v809
    %v2640 = vunpack.c.l.b16 %v810
    %v2641 = vunpack.c.h.b16 %v810
    %v2642 = vunpack.c.l.b16 %v811
    %v2643 = vunpack.c.h.b16 %v811
    %v2644 = vunpack.c.l.b16 %v812
    %v2645 = vunpack.c.h.b16 %v812
    %v2646 = vunpack.c.l.b16 %v813
    %v2647 = vunpack.c.h.b16 %v813
    %v2648 = vunpack.c.l.b16 %v814
    %v2649 = vunpack.c.l.b16 %v815
    %v2650 = vunpack.c.h.b16 %v815
    %v2651 = vunpack.c.l.b16 %v816
    %v2652 = vunpack.c.h.b16 %v816
    %v2653 = vunpack.c.l.b16 %v817
    %v2654 = vunpack.c.h.b16 %v817
    %v2655 = vunpack.c.l.b16 %v818
    %v2656 = vunpack.c.h.b16 %v818
    %v2657 = vunpack.c.l.b16 %v819
    %v2658 = vunpack.c.h.b16 %v819
    %v2659 = vunpack.c.l.b16 %v820
    %v2660 = vunpack.c.h.b16 %v820
    %v2661 = vunpack.c.l.b16 %v821
    %v2662 = vunpack.c.l.b16 %v822
    %v2663 = vunpack.c.h.b16 %v822
    %v2664 = vunpack.c.l.b16 %v823
    %v2665 = vunpack.c.h.b16 %v823
    %v2666 = vunpack.c.l.b16 %v824
    %v2667 = vunpack.c.h.b16 %v824
    %v2668 = vunpack.c.l.b16 %v825
    %v2669 = vunpack.c.h.b16 %v825
    %v2670 = vunpack.c.l.b16 %v826
    %v2671 = vunpack.c.h.b16 %v826
    %v2672 = vunpack.c.l.b16 %v827
    %v2673 = vunpack.c.h.b16 %v827
    %v2674 = vunpack.c.l.b16 %v828
    %v2675 = vunpack.c.l.b16 %v829
    %v2676 = vunpack.c.h.b16 %v829
    %v2677 = vunpack.c.l.b16 %v830
    %v2678 = vunpack.c.h.b16 %v830
    %v2679 = vunpack.c.l.b16 %v831
    %v2680 = vunpack.c.h.b16 %v831
    %v2681 = vunpack.c.l.b16 %v832
    %v2682 = vunpack.c.h.b16 %v832
    %v2683 = vunpack.c.l.b16 %v833
    %v2684 = vunpack.c.h.b16 %v833
    %v2685 = vunpack.c.l.b16 %v834
    %v2686 = vunpack.c.h.b16 %v834
    %v2687 = vunpack.c.l.b16 %v835
    %v2688 = vunpack.c.l.b16 %v836
    %v2689 = vunpack.c.h.b16 %v836
    %v2690 = vunpack.c.l.b16 %v837
    %v2691 = vunpack.c.h.b16 %v837
    %v2692 = vunpack.c.l.b16 %v838
    %v2693 = vunpack.c.h.b16 %v838
    %v2694 = vunpack.c.l.b16 %v839
    %v2695 = vunpack.c.h.b16 %v839
    %v2696 = vunpack.c.l.b16 %v840
    %v2697 = vunpack.c.h.b16 %v840
    %v2698 = vunpack.c.l.b16 %v841
    %v2699 = vunpack.c.h.b16 %v841
    %v2700 = vunpack.c.l.b16 %v842
    %v2701 = vunpack.c.l.b16 %v843
    %v2702 = vunpack.c.h.b16 %v843
    %v2703 = vunpack.c.l.b16 %v844
    %v2704 = vunpack.c.h.b16 %v844
    %v2705 = vunpack.c.l.b16 %v845
    %v2706 = vunpack.c.h.b16 %v845
    %v2707 = vunpack.c.l.b16 %v846
    %v2708 = vunpack.c.h.b16 %v846
    %v2709 = vunpack.c.l.b16 %v847
    %v2710 = vunpack.c.h.b16 %v847
    %v2711 = vunpack.c.l.b16 %v848
    %v2712 = vunpack.c.h.b16 %v848
    %v2713 = vunpack.c.l.b16 %v849
    %v2714 = vunpack.c.l.b16 %v850
    %v2715 = vunpack.c.h.b16 %v850
    %v2716 = vunpack.c.l.b16 %v851
    %v2717 = vunpack.c.h.b16 %v851
    %v2718 = vunpack.c.l.b16 %v852
    %v2719 = vunpack.c.h.b16 %v852
    %v2720 = vunpack.c.l.b16 %v853
    %v2721 = vunpack.c.h.b16 %v853
    %v2722 = vunpack.c.l.b16 %v854
    %v2723 = vunpack.c.h.b16 %v854
    %v2724 = vunpack.c.l.b16 %v855
    %v2725 = vunpack.c.h.b16 %v855
    %v2726 = vunpack.c.l.b16 %v856
    %v2727 = vunpack.c.l.b16 %v857
    %v2728 = vunpack.c.h.b16 %v857
    %v2729 = vunpack.c.l.b16 %v858
    %v2730 = vunpack.c.h.b16 %v858
    %v2731 = vunpack.c.l.b16 %v859
    %v2732 = vunpack.c.h.b16 %v859
    %v2733 = vunpack.c.l.b16 %v860
    %v2734 = vunpack.c.h.b16 %v860
    %v2735 = vunpack.c.l.b16 %v861
    %v2736 = vunpack.c.h.b16 %v861
    %v2737 = vunpack.c.l.b16 %v862
    %v2738 = vunpack.c.h.b16 %v862
    %v2739 = vunpack.c.l.b16 %v863
    %v2740 = vunpack.c.l.b16 %v864
    %v2741 = vunpack.c.h.b16 %v864
    %v2742 = vunpack.c.l.b16 %v865
    %v2743 = vunpack.c.h.b16 %v865
    %v2744 = vunpack.c.l.b16 %v866
    %v2745 = vunpack.c.h.b16 %v866
    %v2746 = vunpack.c.l.b16 %v867
    %v2747 = vunpack.c.h.b16 %v867
    %v2748 = vunpack.c.l.b16 %v868
    %v2749 = vunpack.c.h.b16 %v868
    %v2750 = vunpack.c.l.b16 %v869
    %v2751 = vunpack.c.h.b16 %v869
    %v2752 = vunpack.c.l.b16 %v870
    %v2753 = vunpack.c.l.b16 %v871
    %v2754 = vunpack.c.h.b16 %v871
    %v2755 = vunpack.c.l.b16 %v872
    %v2756 = vunpack.c.h.b16 %v872
    %v2757 = vunpack.c.l.b16 %v873
    %v2758 = vunpack.c.h.b16 %v873
    %v2759 = vunpack.c.l.b16 %v874
    %v2760 = vunpack.c.h.b16 %v874
    %v2761 = vunpack.c.l.b16 %v875
    %v2762 = vunpack.c.h.b16 %v875
    %v2763 = vunpack.c.l.b16 %v876
    %v2764 = vunpack.c.h.b16 %v876
    %v2765 = vunpack.c.l.b16 %v877
    %v2766 = vunpack.c.l.b16 %v878
    %v2767 = vunpack.c.h.b16 %v878
    %v2768 = vunpack.c.l.b16 %v879
    %v2769 = vunpack.c.h.b16 %v879
    %v2770 = vunpack.c.l.b16 %v880
    %v2771 = vunpack.c.h.b16 %v880
    %v2772 = vunpack.c.l.b16 %v881
    %v2773 = vunpack.c.h.b16 %v881
    %v2774 = vunpack.c.l.b16 %v882
    %v2775 = vunpack.c.h.b16 %v882
    %v2776 = vunpack.c.l.b16 %v883
    %v2777 = vunpack.c.h.b16 %v883
    %v2778 = vunpack.c.l.b16 %v884
    %v2779 = vunpack.c.l.b16 %v885
    %v2780 = vunpack.c.h.b16 %v885
    %v2781 = vunpack.c.l.b16 %v886
    %v2782 = vunpack.c.h.b16 %v886
    %v2783 = vunpack.c.l.b16 %v887
    %v2784 = vunpack.c.h.b16 %v887
    %v2785 = vunpack.c.l.b16 %v888
    %v2786 = vunpack.c.h.b16 %v888
    %v2787 = vunpack.c.l.b16 %v889
    %v2788 = vunpack.c.h.b16 %v889
    %v2789 = vunpack.c.l.b16 %v890
    %v2790 = vunpack.c.h.b16 %v890
    %v2791 = vunpack.c.l.b16 %v891
    %v2792 = vunpack.c.l.b16 %v892
    %v2793 = vunpack.c.h.b16 %v892
    %v2794 = vunpack.c.l.b16 %v893
    %v2795 = vunpack.c.h.b16 %v893
    %v2796 = vunpack.c.l.b16 %v894
    %v2797 = vunpack.c.h.b16 %v894
    %v2798 = vunpack.c.l.b16 %v895
    %v2799 = vunpack.c.h.b16 %v895
    %v2800 = vunpack.c.l.b16 %v896
    %v2801 = vunpack.c.h.b16 %v896
    %v2802 = vunpack.c.l.b16 %v897
    %v2803 = vunpack.c.h.b16 %v897
    %v2804 = vunpack.c.l.b16 %v898
    %v2805 = vunpack.c.l.b16 %v899
    %v2806 = vunpack.c.h.b16 %v899
    %v2807 = vunpack.c.l.b16 %v900
    %v2808 = vunpack.c.h.b16 %v900
    %v2809 = vunpack.c.l.b16 %v901
    %v2810 = vunpack.c.h.b16 %v901
    %v2811 = vunpack.c.l.b16 %v902
    %v2812 = vunpack.c.h.b16 %v902
    %v2813 = vunpack.c.l.b16 %v903
    %v2814 = vunpack.c.h.b16 %v903
    %v2815 = vunpack.c.l.b16 %v904
    %v2816 = vunpack.c.h.b16 %v904
    %v2817 = vunpack.c.l.b16 %v905
    %v2818 = vunpack.c.l.b16 %v906
    %v2819 = vunpack.c.h.b16 %v906
    %v2820 = vunpack.c.l.b16 %v907
    %v2821 = vunpack.c.h.b16 %v907
    %v2822 = vunpack.c.l.b16 %v908
    %v2823 = vunpack.c.h.b16 %v908
    %v2824 = vunpack.c.l.b16 %v909
    %v2825 = vunpack.c.h.b16 %v909
    %v2826 = vunpack.c.l.b16 %v910
    %v2827 = vunpack.c.h.b16 %v910
    %v2828 = vunpack.c.l.b16 %v911
    %v2829 = vunpack.c.h.b16 %v911
    %v2830 = vunpack.c.l.b16 %v912
    %v2831 = vunpack.c.l.b16 %v913
    %v2832 = vunpack.c.h.b16 %v913
    %v2833 = vunpack.c.l.b16 %v914
    %v2834 = vunpack.c.h.b16 %v914
    %v2835 = vunpack.c.l.b16 %v915
    %v2836 = vunpack.c.h.b16 %v915
    %v2837 = vunpack.c.l.b16 %v916
    %v2838 = vunpack.c.h.b16 %v916
    %v2839 = vunpack.c.l.b16 %v917
    %v2840 = vunpack.c.h.b16 %v917
    %v2841 = vunpack.c.l.b16 %v918
    %v2842 = vunpack.c.h.b16 %v918
    %v2843 = vunpack.c.l.b16 %v919
    %v2844 = vunpack.c.l.b16 %v920
    %v2845 = vunpack.c.h.b16 %v920
    %v2846 = vunpack.c.l.b16 %v921
    %v2847 = vunpack.c.h.b16 %v921
    %v2848 = vunpack.c.l.b16 %v922
    %v2849 = vunpack.c.h.b16 %v922
    %v2850 = vunpack.c.l.b16 %v923
    %v2851 = vunpack.c.h.b16 %v923
    %v2852 = vunpack.c.l.b16 %v924
    %v2853 = vunpack.c.h.b16 %v924
    %v2854 = vunpack.c.l.b16 %v925
    %v2855 = vunpack.c.h.b16 %v925
    %v2856 = vunpack.c.l.b16 %v926
    %v2857 = vunpack.c.l.b16 %v927
    %v2858 = vunpack.c.h.b16 %v927
    %v2859 = vunpack.c.l.b16 %v928
    %v2860 = vunpack.c.h.b16 %v928
    %v2861 = vunpack.c.l.b16 %v929
    %v2862 = vunpack.c.h.b16 %v929
    %v2863 = vunpack.c.l.b16 %v930
    %v2864 = vunpack.c.h.b16 %v930
    %v2865 = vunpack.c.l.b16 %v931
    %v2866 = vunpack.c.h.b16 %v931
    %v2867 = vunpack.c.l.b16 %v932
    %v2868 = vunpack.c.h.b16 %v932
    %v2869 = vunpack.c.l.b16 %v933
    %v2870 = vunpack.c.l.b16 %v934
    %v2871 = vunpack.c.h.b16 %v934
    %v2872 = vunpack.c.l.b16 %v935
    %v2873 = vunpack.c.h.b16 %v935
    %v2874 = vunpack.c.l.b16 %v936
    %v2875 = vunpack.c.h.b16 %v936
    %v2876 = vunpack.c.l.b16 %v937
    %v2877 = vunpack.c.h.b16 %v937
    %v2878 = vunpack.c.l.b16 %v938
    %v2879 = vunpack.c.h.b16 %v938
    %v2880 = vunpack.c.l.b16 %v939
    %v2881 = vunpack.c.h.b16 %v939
    %v2882 = vunpack.c.l.b16 %v940
    %v2883 = vunpack.c.l.b16 %v941
    %v2884 = vunpack.c.h.b16 %v941
    %v2885 = vunpack.c.l.b16 %v942
    %v2886 = vunpack.c.h.b16 %v942
    %v2887 = vunpack.c.l.b16 %v943
    %v2888 = vunpack.c.h.b16 %v943
    %v2889 = vunpack.c.l.b16 %v944
    %v2890 = vunpack.c.h.b16 %v944
    %v2891 = vunpack.c.l.b16 %v945
    %v2892 = vunpack.c.h.b16 %v945
    %v2893 = vunpack.c.l.b16 %v946
    %v2894 = vunpack.c.h.b16 %v946
    %v2895 = vunpack.c.l.b16 %v947
    %v2896 = vunpack.c.l.b16 %v948
    %v2897 = vunpack.c.h.b16 %v948
    %v2898 = vunpack.c.l.b16 %v949
    %v2899 = vunpack.c.h.b16 %v949
    %v2900 = vunpack.c.l.b16 %v950
    %v2901 = vunpack.c.h.b16 %v950
    %v2902 = vunpack.c.l.b16 %v951
    %v2903 = vunpack.c.h.b16 %v951
    %v2904 = vunpack.c.l.b16 %v952
    %v2905 = vunpack.c.h.b16 %v952
    %v2906 = vunpack.c.l.b16 %v953
    %v2907 = vunpack.c.h.b16 %v953
    %v2908 = vunpack.c.l.b16 %v954
    %v2909 = vunpack.c.l.b16 %v955
    %v2910 = vunpack.c.h.b16 %v955
    %v2911 = vunpack.c.l.b16 %v956
    %v2912 = vunpack.c.h.b16 %v956
    %v2913 = vunpack.c.l.b16 %v957
    %v2914 = vunpack.c.h.b16 %v957
    %v2915 = vunpack.c.l.b16 %v958
    %v2916 = vunpack.c.h.b16 %v958
    %v2917 = vunpack.c.l.b16 %v959
    %v2918 = vunpack.c.h.b16 %v959
    %v2919 = vunpack.c.l.b16 %v960
    %v2920 = vunpack.c.h.b16 %v960
    %v2921 = vunpack.c.l.b16 %v961
    %v2922 = vunpack.c.l.b16 %v962
    %v2923 = vunpack.c.h.b16 %v962
    %v2924 = vunpack.c.l.b16 %v963
    %v2925 = vunpack.c.h.b16 %v963
    %v2926 = vunpack.c.l.b16 %v964
    %v2927 = vunpack.c.h.b16 %v964
    %v2928 = vunpack.c.l.b16 %v965
    %v2929 = vunpack.c.h.b16 %v965
    %v2930 = vunpack.c.l.b16 %v966
    %v2931 = vunpack.c.h.b16 %v966
    %v2932 = vunpack.c.l.b16 %v967
    %v2933 = vunpack.c.h.b16 %v967
    %v2934 = vunpack.c.l.b16 %v968
    %v2935 = vunpack.c.l.b16 %v969
    %v2936 = vunpack.c.h.b16 %v969
    %v2937 = vunpack.c.l.b16 %v970
    %v2938 = vunpack.c.h.b16 %v970
    %v2939 = vunpack.c.l.b16 %v971
    %v2940 = vunpack.c.h.b16 %v971
    %v2941 = vunpack.c.l.b16 %v972
    %v2942 = vunpack.c.h.b16 %v972
    %v2943 = vunpack.c.l.b16 %v973
    %v2944 = vunpack.c.h.b16 %v973
    %v2945 = vunpack.c.l.b16 %v974
    %v2946 = vunpack.c.h.b16 %v974
    %v2947 = vunpack.c.l.b16 %v975
    %v2948 = vunpack.c.l.b16 %v976
    %v2949 = vunpack.c.h.b16 %v976
    %v2950 = vunpack.c.l.b16 %v977
    %v2951 = vunpack.c.h.b16 %v977
    %v2952 = vunpack.c.l.b16 %v978
    %v2953 = vunpack.c.h.b16 %v978
    %v2954 = vunpack.c.l.b16 %v979
    %v2955 = vunpack.c.h.b16 %v979
    %v2956 = vunpack.c.l.b16 %v980
    %v2957 = vunpack.c.h.b16 %v980
    %v2958 = vunpack.c.l.b16 %v981
    %v2959 = vunpack.c.h.b16 %v981
    %v2960 = vunpack.c.l.b16 %v982
    %v2961 = vunpack.c.l.b16 %v983
    %v2962 = vunpack.c.h.b16 %v983
    %v2963 = vunpack.c.l.b16 %v984
    %v2964 = vunpack.c.h.b16 %v984
    %v2965 = vunpack.c.l.b16 %v985
    %v2966 = vunpack.c.h.b16 %v985
    %v2967 = vunpack.c.l.b16 %v986
    %v2968 = vunpack.c.h.b16 %v986
    %v2969 = vunpack.c.l.b16 %v987
    %v2970 = vunpack.c.h.b16 %v987
    %v2971 = vunpack.c.l.b16 %v988
    %v2972 = vunpack.c.h.b16 %v988
    %v2973 = vunpack.c.l.b16 %v989
    %v2974 = vunpack.c.l.b16 %v990
    %v2975 = vunpack.c.h.b16 %v990
    %v2976 = vunpack.c.l.b16 %v991
    %v2977 = vunpack.c.h.b16 %v991
    %v2978 = vunpack.c.l.b16 %v992
    %v2979 = vunpack.c.h.b16 %v992
    %v2980 = vunpack.c.l.b16 %v993
    %v2981 = vunpack.c.h.b16 %v993
    %v2982 = vunpack.c.l.b16 %v994
    %v2983 = vunpack.c.h.b16 %v994
    %v2984 = vunpack.c.l.b16 %v995
    %v2985 = vunpack.c.h.b16 %v995
    %v2986 = vunpack.c.l.b16 %v996
    %v2987 = vunpack.c.l.b16 %v997
    %v2988 = vunpack.c.h.b16 %v997
    %v2989 = vunpack.c.l.b16 %v998
    %v2990 = vunpack.c.h.b16 %v998
    %v2991 = vunpack.c.l.b16 %v999
    %v2992 = vunpack.c.h.b16 %v999
    %v2993 = vunpack.c.l.b16 %v1000
    %v2994 = vunpack.c.h.b16 %v1000
    %v2995 = vunpack.c.l.b16 %v1001
    %v2996 = vunpack.c.h.b16 %v1001
    %v2997 = vunpack.c.l.b16 %v1002
    %v2998 = vunpack.c.h.b16 %v1002
    %v2999 = vunpack.c.l.b16 %v1003
    %v3000 = vunpack.c.l.b16 %v1004
    %v3001 = vunpack.c.h.b16 %v1004
    %v3002 = vunpack.c.l.b16 %v1005
    %v3003 = vunpack.c.h.b16 %v1005
    %v3004 = vunpack.c.l.b16 %v1006
    %v3005 = vunpack.c.h.b16 %v1006
    %v3006 = vunpack.c.l.b16 %v1007
    %v3007 = vunpack.c.h.b16 %v1007
    %v3008 = vunpack.c.l.b16 %v1008
    %v3009 = vunpack.c.h.b16 %v1008
    %v3010 = vunpack.c.l.b16 %v1009
    %v3011 = vunpack.c.h.b16 %v1009
    %v3012 = vunpack.c.l.b16 %v1010
    %v3013 = vunpack.c.l.b16 %v1011
    %v3014 = vunpack.c.h.b16 %v1011
    %v3015 = vunpack.c.l.b16 %v1012
    %v3016 = vunpack.c.h.b16 %v1012
    %v3017 = vunpack.c.l.b16 %v1013
    %v3018 = vunpack.c.h.b16 %v1013
    %v3019 = vunpack.c.l.b16 %v1014
    %v3020 = vunpack.c.h.b16 %v1014
    %v3021 = vunpack.c.l.b16 %v1015
    %v3022 = vunpack.c.h.b16 %v1015
    %v3023 = vunpack.c.l.b16 %v1016
    %v3024 = vunpack.c.h.b16 %v1016
    %v3025 = vunpack.c.l.b16 %v1017
    %v3026 = vunpack.c.l.b16 %v1018
    %v3027 = vunpack.c.h.b16 %v1018
    %v3028 = vunpack.c.l.b16 %v1019
    %v3029 = vunpack.c.h.b16 %v1019
    %v3030 = vunpack.c.l.b16 %v1020
    %v3031 = vunpack.c.h.b16 %v1020
    %v3032 = vunpack.c.l.b16 %v1021
    %v3033 = vunpack.c.h.b16 %v1021
    %v3034 = vunpack.c.l.b16 %v1022
    %v3035 = vunpack.c.h.b16 %v1022
    %v3036 = vunpack.c.l.b16 %v1023
    %v3037 = vunpack.c.h.b16 %v1023
    %v3038 = vunpack.c.l.b16 %v1024
    %v3039 = vunpack.c.l.b16 %v1025
    %v3040 = vunpack.c.h.b16 %v1025
    %v3041 = vunpack.c.l.b16 %v1026
    %v3042 = vunpack.c.h.b16 %v1026
    %v3043 = vunpack.c.l.b16 %v1027
    %v3044 = vunpack.c.h.b16 %v1027
    %v3045 = vunpack.c.l.b16 %v1028
    %v3046 = vunpack.c.h.b16 %v1028
    %v3047 = vunpack.c.l.b16 %v1029
    %v3048 = vunpack.c.h.b16 %v1029
    %v3049 = vunpack.c.l.b16 %v1030
    %v3050 = vunpack.c.h.b16 %v1030
    %v3051 = vunpack.c.l.b16 %v1031
    %v3052 = vunpack.c.l.b16 %v1032
    %v3053 = vunpack.c.h.b16 %v1032
    %v3054 = vunpack.c.l.b16 %v1033
    %v3055 = vunpack.c.h.b16 %v1033
    %v3056 = vunpack.c.l.b16 %v1034
    %v3057 = vunpack.c.h.b16 %v1034
    %v3058 = vunpack.c.l.b16 %v1035
    %v3059 = vunpack.c.h.b16 %v1035
    %v3060 = vunpack.c.l.b16 %v1036
    %v3061 = vunpack.c.h.b16 %v1036
    %v3062 = vunpack.c.l.b16 %v1037
    %v3063 = vunpack.c.h.b16 %v1037
    %v3064 = vunpack.c.l.b16 %v1038
    %v3065 = vunpack.c.l.b16 %v1039
    %v3066 = vunpack.c.h.b16 %v1039
    %v3067 = vunpack.c.l.b16 %v1040
    %v3068 = vunpack.c.h.b16 %v1040
    %v3069 = vunpack.c.l.b16 %v1041
    %v3070 = vunpack.c.h.b16 %v1041
    %v3071 = vunpack.c.l.b16 %v1042
    %v3072 = vunpack.c.h.b16 %v1042
    %v3073 = vunpack.c.l.b16 %v1043
    %v3074 = vunpack.c.h.b16 %v1043
    %v3075 = vunpack.c.l.b16 %v1044
    %v3076 = vunpack.c.h.b16 %v1044
    %v3077 = vunpack.c.l.b16 %v1045
    %v3078 = vunpack.c.l.b16 %v1046
    %v3079 = vunpack.c.h.b16 %v1046
    %v3080 = vunpack.c.l.b16 %v1047
    %v3081 = vunpack.c.h.b16 %v1047
    %v3082 = vunpack.c.l.b16 %v1048
    %v3083 = vunpack.c.h.b16 %v1048
    %v3084 = vunpack.c.l.b16 %v1049
    %v3085 = vunpack.c.h.b16 %v1049
    %v3086 = vunpack.c.l.b16 %v1050
    %v3087 = vunpack.c.h.b16 %v1050
    %v3088 = vunpack.c.l.b16 %v1051
    %v3089 = vunpack.c.h.b16 %v1051
    %v3090 = vunpack.c.l.b16 %v1052
    %v3091 = vunpack.c.l.b16 %v1053
    %v3092 = vunpack.c.h.b16 %v1053
    %v3093 = vunpack.c.l.b16 %v1054
    %v3094 = vunpack.c.h.b16 %v1054
    %v3095 = vunpack.c.l.b16 %v1055
    %v3096 = vunpack.c.h.b16 %v1055
    %v3097 = vunpack.c.l.b16 %v1056
    %v3098 = vunpack.c.h.b16 %v1056
    %v3099 = vunpack.c.l.b16 %v1057
    %v3100 = vunpack.c.h.b16 %v1057
    %v3101 = vunpack.c.l.b16 %v1058
    %v3102 = vunpack.c.h.b16 %v1058
    %v3103 = vunpack.c.l.b16 %v1059
    %v3104 = vunpack.c.l.b16 %v1060
    %v3105 = vunpack.c.h.b16 %v1060
    %v3106 = vunpack.c.l.b16 %v1061
    %v3107 = vunpack.c.h.b16 %v1061
    %v3108 = vunpack.c.l.b16 %v1062
    %v3109 = vunpack.c.h.b16 %v1062
    %v3110 = vunpack.c.l.b16 %v1063
    %v3111 = vunpack.c.h.b16 %v1063
    %v3112 = vunpack.c.l.b16 %v1064
    %v3113 = vunpack.c.h.b16 %v1064
    %v3114 = vunpack.c.l.b16 %v1065
    %v3115 = vunpack.c.h.b16 %v1065
    %v3116 = vunpack.c.l.b16 %v1066
    %v3117 = vunpack.c.l.b16 %v1067
    %v3118 = vunpack.c.h.b16 %v1067
    %v3119 = vunpack.c.l.b16 %v1068
    %v3120 = vunpack.c.h.b16 %v1068
    %v3121 = vunpack.c.l.b16 %v1069
    %v3122 = vunpack.c.h.b16 %v1069
    %v3123 = vunpack.c.l.b16 %v1070
    %v3124 = vunpack.c.h.b16 %v1070
    %v3125 = vunpack.c.l.b16 %v1071
    %v3126 = vunpack.c.h.b16 %v1071
    %v3127 = vunpack.c.l.b16 %v1072
    %v3128 = vunpack.c.h.b16 %v1072
    %v3129 = vunpack.c.l.b16 %v1073
    %v3130 = vunpack.c.l.b16 %v1074
    %v3131 = vunpack.c.h.b16 %v1074
    %v3132 = vunpack.c.l.b16 %v1075
    %v3133 = vunpack.c.h.b16 %v1075
    %v3134 = vunpack.c.l.b16 %v1076
    %v3135 = vunpack.c.h.b16 %v1076
    %v3136 = vunpack.c.l.b16 %v1077
    %v3137 = vunpack.c.h.b16 %v1077
    %v3138 = vunpack.c.l.b16 %v1078
    %v3139 = vunpack.c.h.b16 %v1078
    %v3140 = vunpack.c.l.b16 %v1079
    %v3141 = vunpack.c.h.b16 %v1079
    %v3142 = vunpack.c.l.b16 %v1080
    %v3143 = vunpack.c.l.b16 %v1081
    %v3144 = vunpack.c.h.b16 %v1081
    %v3145 = vunpack.c.l.b16 %v1082
    %v3146 = vunpack.c.h.b16 %v1082
    %v3147 = vunpack.c.l.b16 %v1083
    %v3148 = vunpack.c.h.b16 %v1083
    %v3149 = vunpack.c.l.b16 %v1084
    %v3150 = vunpack.c.h.b16 %v1084
    %v3151 = vunpack.c.l.b16 %v1085
    %v3152 = vunpack.c.h.b16 %v1085
    %v3153 = vunpack.c.l.b16 %v1086
    %v3154 = vunpack.c.h.b16 %v1086
    %v3155 = vunpack.c.l.b16 %v1087
    %v3156 = vunpack.c.l.b16 %v1088
    %v3157 = vunpack.c.h.b16 %v1088
    %v3158 = vunpack.c.l.b16 %v1089
    %v3159 = vunpack.c.h.b16 %v1089
    %v3160 = vunpack.c.l.b16 %v1090
    %v3161 = vunpack.c.h.b16 %v1090
    %v3162 = vunpack.c.l.b16 %v1091
    %v3163 = vunpack.c.h.b16 %v1091
    %v3164 = vunpack.c.l.b16 %v1092
    %v3165 = vunpack.c.h.b16 %v1092
    %v3166 = vunpack.c.l.b16 %v1093
    %v3167 = vunpack.c.h.b16 %v1093
    %v3168 = vunpack.c.l.b16 %v1094
    %v3169 = vunpack.c.l.b16 %v1095
    %v3170 = vunpack.c.h.b16 %v1095
    %v3171 = vunpack.c.l.b16 %v1096
    %v3172 = vunpack.c.h.b16 %v1096
    %v3173 = vunpack.c.l.b16 %v1097
    %v3174 = vunpack.c.h.b16 %v1097
    %v3175 = vunpack.c.l.b16 %v1098
    %v3176 = vunpack.c.h.b16 %v1098
    %v3177 = vunpack.c.l.b16 %v1099
    %v3178 = vunpack.c.h.b16 %v1099
    %v3179 = vunpack.c.l.b16 %v1100
    %v3180 = vunpack.c.h.b16 %v1100
    %v3181 = vunpack.c.l.b16 %v1101
    %v3182 = vunpack.c.l.b16 %v1102
    %v3183 = vunpack.c.h.b16 %v1102
    %v3184 = vunpack.c.l.b16 %v1103
    %v3185 = vunpack.c.h.b16 %v1103
    %v3186 = vunpack.c.l.b16 %v1104
    %v3187 = vunpack.c.h.b16 %v1104
    %v3188 = vunpack.c.l.b16 %v1105
    %v3189 = vunpack.c.h.b16 %v1105
    %v3190 = vunpack.c.l.b16 %v1106
    %v3191 = vunpack.c.h.b16 %v1106
    %v3192 = vunpack.c.l.b16 %v1107
    %v3193 = vunpack.c.h.b16 %v1107
    %v3194 = vunpack.c.l.b16 %v1108
    %v3195 = vunpack.c.l.b16 %v1109
    %v3196 = vunpack.c.h.b16 %v1109
    %v3197 = vunpack.c.l.b16 %v1110
    %v3198 = vunpack.c.h.b16 %v1110
    %v3199 = vunpack.c.l.b16 %v1111
    %v3200 = vunpack.c.h.b16 %v1111
    %v3201 = vunpack.c.l.b16 %v1112
    %v3202 = vunpack.c.h.b16 %v1112
    %v3203 = vunpack.c.l.b16 %v1113
    %v3204 = vunpack.c.h.b16 %v1113
    %v3205 = vunpack.c.l.b16 %v1114
    %v3206 = vunpack.c.h.b16 %v1114
    %v3207 = vunpack.c.l.b16 %v1115
    %v3208 = vunpack.c.l.b16 %v1116
    %v3209 = vunpack.c.h.b16 %v1116
    %v3210 = vunpack.c.l.b16 %v1117
    %v3211 = vunpack.c.h.b16 %v1117
    %v3212 = vunpack.c.l.b16 %v1118
    %v3213 = vunpack.c.h.b16 %v1118
    %v3214 = vunpack.c.l.b16 %v1119
    %v3215 = vunpack.c.h.b16 %v1119
    %v3216 = vunpack.c.l.b16 %v1120
    %v3217 = vunpack.c.h.b16 %v1120
    %v3218 = vunpack.c.l.b16 %v1121
    %v3219 = vunpack.c.h.b16 %v1121
    %v3220 = vunpack.c.l.b16 %v1122
    %v3221 = vunpack.c.l.b16 %v1123
    %v3222 = vunpack.c.h.b16 %v1123
    %v3223 = vunpack.c.l.b16 %v1124
    %v3224 = vunpack.c.h.b16 %v1124
    %v3225 = vunpack.c.l.b16 %v1125
    %v3226 = vunpack.c.h.b16 %v1125
    %v3227 = vunpack.c.l.b16 %v1126
    %v3228 = vunpack.c.h.b16 %v1126
    %v3229 = vunpack.c.l.b16 %v1127
    %v3230 = vunpack.c.h.b16 %v1127
    %v3231 = vunpack.c.l.b16 %v1128
    %v3232 = vunpack.c.h.b16 %v1128
    %v3233 = vunpack.c.l.b16 %v1129
    %v3234 = vunpack.c.l.b16 %v1130
    %v3235 = vunpack.c.h.b16 %v1130
    %v3236 = vunpack.c.l.b16 %v1131
    %v3237 = vunpack.c.h.b16 %v1131
    %v3238 = vunpack.c.l.b16 %v1132
    %v3239 = vunpack.c.h.b16 %v1132
    %v3240 = vunpack.c.l.b16 %v1133
    %v3241 = vunpack.c.h.b16 %v1133
    %v3242 = vunpack.c.l.b16 %v1134
    %v3243 = vunpack.c.h.b16 %v1134
    %v3244 = vunpack.c.l.b16 %v1135
    %v3245 = vunpack.c.h.b16 %v1135
    %v3246 = vunpack.c.l.b16 %v1136
    %v3247 = vunpack.c.l.b16 %v1137
    %v3248 = vunpack.c.h.b16 %v1137
    %v3249 = vunpack.c.l.b16 %v1138
    %v3250 = vunpack.c.h.b16 %v1138
    %v3251 = vunpack.c.l.b16 %v1139
    %v3252 = vunpack.c.h.b16 %v1139
    %v3253 = vunpack.c.l.b16 %v1140
    %v3254 = vunpack.c.h.b16 %v1140
    %v3255 = vunpack.c.l.b16 %v1141
    %v3256 = vunpack.c.h.b16 %v1141
    %v3257 = vunpack.c.l.b16 %v1142
    %v3258 = vunpack.c.h.b16 %v1142
    %v3259 = vunpack.c.l.b16 %v1143
    %v3260 = vunpack.c.l.b16 %v1144
    %v3261 = vunpack.c.h.b16 %v1144
    %v3262 = vunpack.c.l.b16 %v1145
    %v3263 = vunpack.c.h.b16 %v1145
    %v3264 = vunpack.c.l.b16 %v1146
    %v3265 = vunpack.c.h.b16 %v1146
    %v3266 = vunpack.c.l.b16 %v1147
    %v3267 = vunpack.c.h.b16 %v1147
    %v3268 = vunpack.c.l.b16 %v1148
    %v3269 = vunpack.c.h.b16 %v1148
    %v3270 = vunpack.c.l.b16 %v1149
    %v3271 = vunpack.c.h.b16 %v1149
    %v3272 = vunpack.c.l.b16 %v1150
    %v3273 = vunpack.c.l.b16 %v1151
    %v3274 = vunpack.c.h.b16 %v1151
    %v3275 = vunpack.c.l.b16 %v1152
    %v3276 = vunpack.c.h.b16 %v1152
    %v3277 = vunpack.c.l.b16 %v1153
    %v3278 = vunpack.c.h.b16 %v1153
    %v3279 = vunpack.c.l.b16 %v1154
    %v3280 = vunpack.c.h.b16 %v1154
    %v3281 = vunpack.c.l.b16 %v1155
    %v3282 = vunpack.c.h.b16 %v1155
    %v3283 = vunpack.c.l.b16 %v1156
    %v3284 = vunpack.c.h.b16 %v1156
    %v3285 = vunpack.c.l.b16 %v1157
    %v3286 = vunpack.c.l.b16 %v1158
    %v3287 = vunpack.c.h.b16 %v1158
    %v3288 = vunpack.c.l.b16 %v1159
    %v3289 = vunpack.c.h.b16 %v1159
    %v3290 = vunpack.c.l.b16 %v1160
    %v3291 = vunpack.c.h.b16 %v1160
    %v3292 = vunpack.c.l.b16 %v1161
    %v3293 = vunpack.c.h.b16 %v1161
    %v3294 = vunpack.c.l.b16 %v1162
    %v3295 = vunpack.c.h.b16 %v1162
    %v3296 = vunpack.c.l.b16 %v1163
    %v3297 = vunpack.c.h.b16 %v1163
    %v3298 = vunpack.c.l.b16 %v1164
    %v3299 = vunpack.c.l.b16 %v1165
    %v3300 = vunpack.c.h.b16 %v1165
    %v3301 = vunpack.c.l.b16 %v1166
    %v3302 = vunpack.c.h.b16 %v1166
    %v3303 = vunpack.c.l.b16 %v1167
    %v3304 = vunpack.c.h.b16 %v1167
    %v3305 = vunpack.c.l.b16 %v1168
    %v3306 = vunpack.c.h.b16 %v1168
    %v3307 = vunpack.c.l.b16 %v1169
    %v3308 = vunpack.c.h.b16 %v1169
    %v3309 = vunpack.c.l.b16 %v1170
    %v3310 = vunpack.c.h.b16 %v1170
    %v3311 = vunpack.c.l.b16 %v1171
    %v3312 = vunpack.c.l.b16 %v1172
    %v3313 = vunpack.c.h.b16 %v1172
    %v3314 = vunpack.c.l.b16 %v1173
    %v3315 = vunpack.c.h.b16 %v1173
    %v3316 = vunpack.c.l.b16 %v1174
    %v3317 = vunpack.c.h.b16 %v1174
    %v3318 = vunpack.c.l.b16 %v1175
    %v3319 = vunpack.c.h.b16 %v1175
    %v3320 = vunpack.c.l.b16 %v1176
    %v3321 = vunpack.c.h.b16 %v1176
    %v3322 = vunpack.c.l.b16 %v1177
    %v3323 = vunpack.c.h.b16 %v1177
    %v3324 = vunpack.c.l.b16 %v1178
    %v3325 = vunpack.c.l.b16 %v1179
    %v3326 = vunpack.c.h.b16 %v1179
    %v3327 = vunpack.c.l.b16 %v1180
    %v3328 = vunpack.c.h.b16 %v1180
    %v3329 = vunpack.c.l.b16 %v1181
    %v3330 = vunpack.c.h.b16 %v1181
    %v3331 = vunpack.c.l.b16 %v1182
    %v3332 = vunpack.c.h.b16 %v1182
    %v3333 = vunpack.c.l.b16 %v1183
    %v3334 = vunpack.c.h.b16 %v1183
    %v3335 = vunpack.c.l.b16 %v1184
    %v3336 = vunpack.c.h.b16 %v1184
    %v3337 = vunpack.c.l.b16 %v1185
    %v3338 = vunpack.c.l.b16 %v1186
    %v3339 = vunpack.c.h.b16 %v1186
    %v3340 = vunpack.c.l.b16 %v1187
    %v3341 = vunpack.c.h.b16 %v1187
    %v3342 = vunpack.c.l.b16 %v1188
    %v3343 = vunpack.c.h.b16 %v1188
    %v3344 = vunpack.c.l.b16 %v1189
    %v3345 = vunpack.c.h.b16 %v1189
    %v3346 = vunpack.c.l.b16 %v1190
    %v3347 = vunpack.c.h.b16 %v1190
    %v3348 = vunpack.c.l.b16 %v1191
    %v3349 = vunpack.c.h.b16 %v1191
    %v3350 = vunpack.c.l.b16 %v1192
    %v3351 = vunpack.c.l.b16 %v1193
    %v3352 = vunpack.c.h.b16 %v1193
    %v3353 = vunpack.c.l.b16 %v1194
    %v3354 = vunpack.c.h.b16 %v1194
    %v3355 = vunpack.c.l.b16 %v1195
    %v3356 = vunpack.c.h.b16 %v1195
    %v3357 = vunpack.c.l.b16 %v1196
    %v3358 = vunpack.c.h.b16 %v1196
    %v3359 = vunpack.c.l.b16 %v1197
    %v3360 = vunpack.c.h.b16 %v1197
    %v3361 = vunpack.c.l.b16 %v1198
    %v3362 = vunpack.c.h.b16 %v1198
    %v3363 = vunpack.c.l.b16 %v1199
    %v3364 = vunpack.c.l.b16 %v1200
    %v3365 = vunpack.c.h.b16 %v1200
    %v3366 = vunpack.c.l.b16 %v1201
    %v3367 = vunpack.c.h.b16 %v1201
    %v3368 = vunpack.c.l.b16 %v1202
    %v3369 = vunpack.c.h.b16 %v1202
    %v3370 = vunpack.c.l.b16 %v1203
    %v3371 = vunpack.c.h.b16 %v1203
    %v3372 = vunpack.c.l.b16 %v1204
    %v3373 = vunpack.c.h.b16 %v1204
    %v3374 = vunpack.c.l.b16 %v1205
    %v3375 = vunpack.c.h.b16 %v1205
    %v3376 = vunpack.c.l.b16 %v1206
    %v3377 = vunpack.c.l.b16 %v1207
    %v3378 = vunpack.c.h.b16 %v1207
    %v3379 = vunpack.c.l.b16 %v1208
    %v3380 = vunpack.c.h.b16 %v1208
    %v3381 = vunpack.c.l.b16 %v1209
    %v3382 = vunpack.c.h.b16 %v1209
    %v3383 = vunpack.c.l.b16 %v1210
    %v3384 = vunpack.c.h.b16 %v1210
    %v3385 = vunpack.c.l.b16 %v1211
    %v3386 = vunpack.c.h.b16 %v1211
    %v3387 = vunpack.c.l.b16 %v1212
    %v3388 = vunpack.c.h.b16 %v1212
    %v3389 = vunpack.c.l.b16 %v1213
    %v3390 = vunpack.c.l.b16 %v1214
    %v3391 = vunpack.c.h.b16 %v1214
    %v3392 = vunpack.c.l.b16 %v1215
    %v3393 = vunpack.c.h.b16 %v1215
    %v3394 = vunpack.c.l.b16 %v1216
    %v3395 = vunpack.c.h.b16 %v1216
    %v3396 = vunpack.c.l.b16 %v1217
    %v3397 = vunpack.c.h.b16 %v1217
    %v3398 = vunpack.c.l.b16 %v1218
    %v3399 = vunpack.c.h.b16 %v1218
    %v3400 = vunpack.c.l.b16 %v1219
    %v3401 = vunpack.c.h.b16 %v1219
    %v3402 = vunpack.c.l.b16 %v1220
    %v3403 = vunpack.c.l.b16 %v1221
    %v3404 = vunpack.c.h.b16 %v1221
    %v3405 = vunpack.c.l.b16 %v1222
    %v3406 = vunpack.c.h.b16 %v1222
    %v3407 = vunpack.c.l.b16 %v1223
    %v3408 = vunpack.c.h.b16 %v1223
    %v3409 = vunpack.c.l.b16 %v1224
    %v3410 = vunpack.c.h.b16 %v1224
    %v3411 = vunpack.c.l.b16 %v1225
    %v3412 = vunpack.c.h.b16 %v1225
    %v3413 = vunpack.c.l.b16 %v1226
    %v3414 = vunpack.c.h.b16 %v1226
    %v3415 = vunpack.c.l.b16 %v1227
    %v3416 = vunpack.c.l.b16 %v1228
    %v3417 = vunpack.c.h.b16 %v1228
    %v3418 = vunpack.c.l.b16 %v1229
    %v3419 = vunpack.c.h.b16 %v1229
    %v3420 = vunpack.c.l.b16 %v1230
    %v3421 = vunpack.c.h.b16 %v1230
    %v3422 = vunpack.c.l.b16 %v1231
    %v3423 = vunpack.c.h.b16 %v1231
    %v3424 = vunpack.c.l.b16 %v1232
    %v3425 = vunpack.c.h.b16 %v1232
    %v3426 = vunpack.c.l.b16 %v1233
    %v3427 = vunpack.c.h.b16 %v1233
    %v3428 = vunpack.c.l.b16 %v1234
    %v3429 = vunpack.c.l.b16 %v1235
    %v3430 = vunpack.c.h.b16 %v1235
    %v3431 = vunpack.c.l.b16 %v1236
    %v3432 = vunpack.c.h.b16 %v1236
    %v3433 = vunpack.c.l.b16 %v1237
    %v3434 = vunpack.c.h.b16 %v1237
    %v3435 = vunpack.c.l.b16 %v1238
    %v3436 = vunpack.c.h.b16 %v1238
    %v3437 = vunpack.c.l.b16 %v1239
    %v3438 = vunpack.c.h.b16 %v1239
    %v3439 = vunpack.c.l.b16 %v1240
    %v3440 = vunpack.c.h.b16 %v1240
    %v3441 = vunpack.c.l.b16 %v1241
    %v3442 = vunpack.c.l.b16 %v1242
    %v3443 = vunpack.c.h.b16 %v1242
    %v3444 = vunpack.c.l.b16 %v1243
    %v3445 = vunpack.c.h.b16 %v1243
    %v3446 = vunpack.c.l.b16 %v1244
    %v3447 = vunpack.c.h.b16 %v1244
    %v3448 = vunpack.c.l.b16 %v1245
    %v3449 = vunpack.c.h.b16 %v1245
    %v3450 = vunpack.c.l.b16 %v1246
    %v3451 = vunpack.c.h.b16 %v1246
    %v3452 = vunpack.c.l.b16 %v1247
    %v3453 = vunpack.c.h.b16 %v1247
    %v3454 = vunpack.c.l.b16 %v1248
    %v3455 = vunpack.c.l.b16 %v1249
    %v3456 = vunpack.c.h.b16 %v1249
    %v3457 = vunpack.c.l.b16 %v1250
    %v3458 = vunpack.c.h.b16 %v1250
    %v3459 = vunpack.c.l.b16 %v1251
    %v3460 = vunpack.c.h.b16 %v1251
    %v3461 = vunpack.c.l.b16 %v1252
    %v3462 = vunpack.c.h.b16 %v1252
    %v3463 = vunpack.c.l.b16 %v1253
    %v3464 = vunpack.c.h.b16 %v1253
    %v3465 = vunpack.c.l.b16 %v1254
    %v3466 = vunpack.c.h.b16 %v1254
    %v3467 = vunpack.c.l.b16 %v1255
    %v3468 = vunpack.c.l.b16 %v1256
    %v3469 = vunpack.c.h.b16 %v1256
    %v3470 = vunpack.c.l.b16 %v1257
    %v3471 = vunpack.c.h.b16 %v1257
    %v3472 = vunpack.c.l.b16 %v1258
    %v3473 = vunpack.c.h.b16 %v1258
    %v3474 = vunpack.c.l.b16 %v1259
    %v3475 = vunpack.c.h.b16 %v1259
    %v3476 = vunpack.c.l.b16 %v1260
    %v3477 = vunpack.c.h.b16 %v1260
    %v3478 = vunpack.c.l.b16 %v1261
    %v3479 = vunpack.c.h.b16 %v1261
    %v3480 = vunpack.c.l.b16 %v1262
    %v3481 = vunpack.c.l.b16 %v1263
    %v3482 = vunpack.c.h.b16 %v1263
    %v3483 = vunpack.c.l.b16 %v1264
    %v3484 = vunpack.c.h.b16 %v1264
    %v3485 = vunpack.c.l.b16 %v1265
    %v3486 = vunpack.c.h.b16 %v1265
    %v3487 = vunpack.c.l.b16 %v1266
    %v3488 = vunpack.c.h.b16 %v1266
    %v3489 = vunpack.c.l.b16 %v1267
    %v3490 = vunpack.c.h.b16 %v1267
    %v3491 = vunpack.c.l.b16 %v1268
    %v3492 = vunpack.c.h.b16 %v1268
    %v3493 = vunpack.c.l.b16 %v1269
    %v3494 = vunpack.c.l.b16 %v1270
    %v3495 = vunpack.c.h.b16 %v1270
    %v3496 = vunpack.c.l.b16 %v1271
    %v3497 = vunpack.c.h.b16 %v1271
    %v3498 = vunpack.c.l.b16 %v1272
    %v3499 = vunpack.c.h.b16 %v1272
    %v3500 = vunpack.c.l.b16 %v1273
    %v3501 = vunpack.c.h.b16 %v1273
    %v3502 = vunpack.c.l.b16 %v1274
    %v3503 = vunpack.c.h.b16 %v1274
    %v3504 = vunpack.c.l.b16 %v1275
    %v3505 = vunpack.c.h.b16 %v1275
    %v3506 = vunpack.c.l.b16 %v1276
    %v3507 = vunpack.c.l.b16 %v1277
    %v3508 = vunpack.c.h.b16 %v1277
    %v3509 = vunpack.c.l.b16 %v1278
    %v3510 = vunpack.c.h.b16 %v1278
    %v3511 = vunpack.c.l.b16 %v1279
    %v3512 = vunpack.c.h.b16 %v1279
    %v3513 = vunpack.c.l.b16 %v1280
    %v3514 = vunpack.c.h.b16 %v1280
    %v3515 = vunpack.c.l.b16 %v1281
    %v3516 = vunpack.c.h.b16 %v1281
    %v3517 = vunpack.c.l.b16 %v1282
    %v3518 = vunpack.c.h.b16 %v1282
    %v3519 = vunpack.c.l.b16 %v1283
    %v3520 = vunpack.c.l.b16 %v1284
    %v3521 = vunpack.c.h.b16 %v1284
    %v3522 = vunpack.c.l.b16 %v1285
    %v3523 = vunpack.c.h.b16 %v1285
    %v3524 = vunpack.c.l.b16 %v1286
    %v3525 = vunpack.c.h.b16 %v1286
    %v3526 = vunpack.c.l.b16 %v1287
    %v3527 = vunpack.c.h.b16 %v1287
    %v3528 = vunpack.c.l.b16 %v1288
    %v3529 = vunpack.c.h.b16 %v1288
    %v3530 = vunpack.c.l.b16 %v1289
    %v3531 = vunpack.c.h.b16 %v1289
    %v3532 = vunpack.c.l.b16 %v1290
    %v3533 = vunpack.c.l.b16 %v1291
    %v3534 = vunpack.c.h.b16 %v1291
    %v3535 = vunpack.c.l.b16 %v1292
    %v3536 = vunpack.c.h.b16 %v1292
    %v3537 = vunpack.c.l.b16 %v1293
    %v3538 = vunpack.c.h.b16 %v1293
    %v3539 = vunpack.c.l.b16 %v1294
    %v3540 = vunpack.c.h.b16 %v1294
    %v3541 = vunpack.c.l.b16 %v1295
    %v3542 = vunpack.c.h.b16 %v1295
    %v3543 = vunpack.c.l.b16 %v1296
    %v3544 = vunpack.c.h.b16 %v1296
    %v3545 = vunpack.c.l.b16 %v1297
    %v3546 = vunpack.c.l.b16 %v1298
    %v3547 = vunpack.c.h.b16 %v1298
    %v3548 = vunpack.c.l.b16 %v1299
    %v3549 = vunpack.c.h.b16 %v1299
    %v3550 = vunpack.c.l.b16 %v1300
    %v3551 = vunpack.c.h.b16 %v1300
    %v3552 = vunpack.c.l.b16 %v1301
    %v3553 = vunpack.c.h.b16 %v1301
    %v3554 = vunpack.c.l.b16 %v1302
    %v3555 = vunpack.c.h.b16 %v1302
    %v3556 = vunpack.c.l.b16 %v1303
    %v3557 = vunpack.c.h.b16 %v1303
    %v3558 = vunpack.c.l.b16 %v1304
    %v3559 = vunpack.c.l.b16 %v1305
    %v3560 = vunpack.c.h.b16 %v1305
    %v3561 = vunpack.c.l.b16 %v1306
    %v3562 = vunpack.c.h.b16 %v1306
    %v3563 = vunpack.c.l.b16 %v1307
    %v3564 = vunpack.c.h.b16 %v1307
    %v3565 = vunpack.c.l.b16 %v1308
    %v3566 = vunpack.c.h.b16 %v1308
    %v3567 = vunpack.c.l.b16 %v1309
    %v3568 = vunpack.c.h.b16 %v1309
    %v3569 = vunpack.c.l.b16 %v1310
    %v3570 = vunpack.c.h.b16 %v1310
    %v3571 = vunpack.c.l.b16 %v1311
    %v3572 = vunpack.c.l.b16 %v1312
    %v3573 = vunpack.c.h.b16 %v1312
    %v3574 = vunpack.c.l.b16 %v1313
    %v3575 = vunpack.c.h.b16 %v1313
    %v3576 = vunpack.c.l.b16 %v1314
    %v3577 = vunpack.c.h.b16 %v1314
    %v3578 = vunpack.c.l.b16 %v1315
    %v3579 = vunpack.c.h.b16 %v1315
    %v3580 = vunpack.c.l.b16 %v1316
    %v3581 = vunpack.c.h.b16 %v1316
    %v3582 = vunpack.c.l.b16 %v1317
    %v3583 = vunpack.c.h.b16 %v1317
    %v3584 = vunpack.c.l.b16 %v1318
    %v3585 = vunpack.c.l.b16 %v1319
    %v3586 = vunpack.c.h.b16 %v1319
    %v3587 = vunpack.c.l.b16 %v1320
    %v3588 = vunpack.c.h.b16 %v1320
    %v3589 = vunpack.c.l.b16 %v1321
    %v3590 = vunpack.c.h.b16 %v1321
    %v3591 = vunpack.c.l.b16 %v1322
    %v3592 = vunpack.c.h.b16 %v1322
    %v3593 = vunpack.c.l.b16 %v1323
    %v3594 = vunpack.c.h.b16 %v1323
    %v3595 = vunpack.c.l.b16 %v1324
    %v3596 = vunpack.c.h.b16 %v1324
    %v3597 = vunpack.c.l.b16 %v1325
    %v3598 = vunpack.c.l.b16 %v1326
    %v3599 = vunpack.c.h.b16 %v1326
    %v3600 = vunpack.c.l.b16 %v1327
    %v3601 = vunpack.c.h.b16 %v1327
    %v3602 = vunpack.c.l.b16 %v1328
    %v3603 = vunpack.c.h.b16 %v1328
    %v3604 = vunpack.c.l.b16 %v1329
    %v3605 = vunpack.c.h.b16 %v1329
    %v3606 = vunpack.c.l.b16 %v1330
    %v3607 = vunpack.c.h.b16 %v1330
    %v3608 = vunpack.c.l.b16 %v1331
    %v3609 = vunpack.c.h.b16 %v1331
    %v3610 = vunpack.c.l.b16 %v1332
    %v3611 = vunpack.c.l.b16 %v1333
    %v3612 = vunpack.c.h.b16 %v1333
    %v3613 = vunpack.c.l.b16 %v1334
    %v3614 = vunpack.c.h.b16 %v1334
    %v3615 = vunpack.c.l.b16 %v1335
    %v3616 = vunpack.c.h.b16 %v1335
    %v3617 = vunpack.c.l.b16 %v1336
    %v3618 = vunpack.c.h.b16 %v1336
    %v3619 = vunpack.c.l.b16 %v1337
    %v3620 = vunpack.c.h.b16 %v1337
    %v3621 = vunpack.c.l.b16 %v1338
    %v3622 = vunpack.c.h.b16 %v1338
    %v3623 = vunpack.c.l.b16 %v1339
    %v3624 = vunpack.c.l.b16 %v1340
    %v3625 = vunpack.c.h.b16 %v1340
    %v3626 = vunpack.c.l.b16 %v1341
    %v3627 = vunpack.c.h.b16 %v1341
    %v3628 = vunpack.c.l.b16 %v1342
    %v3629 = vunpack.c.h.b16 %v1342
    %v3630 = vunpack.c.l.b16 %v1343
    %v3631 = vunpack.c.h.b16 %v1343
    %v3632 = vunpack.c.l.b16 %v1344
    %v3633 = vunpack.c.h.b16 %v1344
    %v3634 = vunpack.c.l.b16 %v1345
    %v3635 = vunpack.c.h.b16 %v1345
    %v3636 = vunpack.c.l.b16 %v1346
    %v3637 = vunpack.c.l.b16 %v1347
    %v3638 = vunpack.c.h.b16 %v1347
    %v3639 = vunpack.c.l.b16 %v1348
    %v3640 = vunpack.c.h.b16 %v1348
    %v3641 = vunpack.c.l.b16 %v1349
    %v3642 = vunpack.c.h.b16 %v1349
    %v3643 = vunpack.c.l.b16 %v1350
    %v3644 = vunpack.c.h.b16 %v1350
    %v3645 = vunpack.c.l.b16 %v1351
    %v3646 = vunpack.c.h.b16 %v1351
    %v3647 = vunpack.c.l.b16 %v1352
    %v3648 = vunpack.c.h.b16 %v1352
    %v3649 = vunpack.c.l.b16 %v1353
    %v3650 = vunpack.c.l.b16 %v1354
    %v3651 = vunpack.c.h.b16 %v1354
    %v3652 = vunpack.c.l.b16 %v1355
    %v3653 = vunpack.c.h.b16 %v1355
    %v3654 = vunpack.c.l.b16 %v1356
    %v3655 = vunpack.c.h.b16 %v1356
    %v3656 = vunpack.c.l.b16 %v1357
    %v3657 = vunpack.c.h.b16 %v1357
    %v3658 = vunpack.c.l.b16 %v1358
    %v3659 = vunpack.c.h.b16 %v1358
    %v3660 = vunpack.c.l.b16 %v1359
    %v3661 = vunpack.c.h.b16 %v1359
    %v3662 = vunpack.c.l.b16 %v1360
    %v3663 = vunpack.c.l.b16 %v1361
    %v3664 = vunpack.c.h.b16 %v1361
    %v3665 = vunpack.c.l.b16 %v1362
    %v3666 = vunpack.c.h.b16 %v1362
    %v3667 = vunpack.c.l.b16 %v1363
    %v3668 = vunpack.c.h.b16 %v1363
    %v3669 = vunpack.c.l.b16 %v1364
    %v3670 = vunpack.c.h.b16 %v1364
    %v3671 = vunpack.c.l.b16 %v1365
    %v3672 = vunpack.c.h.b16 %v1365
    %v3673 = vunpack.c.l.b16 %v1366
    %v3674 = vunpack.c.h.b16 %v1366
    %v3675 = vunpack.c.l.b16 %v1367
    %v3676 = vunpack.c.l.b16 %v1368
    %v3677 = vunpack.c.h.b16 %v1368
    %v3678 = vunpack.c.l.b16 %v1369
    %v3679 = vunpack.c.h.b16 %v1369
    %v3680 = vunpack.c.l.b16 %v1370
    %v3681 = vunpack.c.h.b16 %v1370
    %v3682 = vunpack.c.l.b16 %v1371
    %v3683 = vunpack.c.h.b16 %v1371
    %v3684 = vunpack.c.l.b16 %v1372
    %v3685 = vunpack.c.h.b16 %v1372
    %v3686 = vunpack.c.l.b16 %v1373
    %v3687 = vunpack.c.h.b16 %v1373
    %v3688 = vunpack.c.l.b16 %v1374
    %v3689 = vunpack.c.l.b16 %v1375
    %v3690 = vunpack.c.h.b16 %v1375
    %v3691 = vunpack.c.l.b16 %v1376
    %v3692 = vunpack.c.h.b16 %v1376
    %v3693 = vunpack.c.l.b16 %v1377
    %v3694 = vunpack.c.h.b16 %v1377
    %v3695 = vunpack.c.l.b16 %v1378
    %v3696 = vunpack.c.h.b16 %v1378
    %v3697 = vunpack.c.l.b16 %v1379
    %v3698 = vunpack.c.h.b16 %v1379
    %v3699 = vunpack.c.l.b16 %v1380
    %v3700 = vunpack.c.h.b16 %v1380
    %v3701 = vunpack.c.l.b16 %v1381
    %v3702 = vunpack.c.l.b16 %v1382
    %v3703 = vunpack.c.h.b16 %v1382
    %v3704 = vunpack.c.l.b16 %v1383
    %v3705 = vunpack.c.h.b16 %v1383
    %v3706 = vunpack.c.l.b16 %v1384
    %v3707 = vunpack.c.h.b16 %v1384
    %v3708 = vunpack.c.l.b16 %v1385
    %v3709 = vunpack.c.h.b16 %v1385
    %v3710 = vunpack.c.l.b16 %v1386
    %v3711 = vunpack.c.h.b16 %v1386
    %v3712 = vunpack.c.l.b16 %v1387
    %v3713 = vunpack.c.h.b16 %v1387
    %v3714 = vunpack.c.l.b16 %v1388
    %v3715 = vunpack.c.l.b16 %v1389
    %v3716 = vunpack.c.h.b16 %v1389
    %v3717 = vunpack.c.l.b16 %v1390
    %v3718 = vunpack.c.h.b16 %v1390
    %v3719 = vunpack.c.l.b16 %v1391
    %v3720 = vunpack.c.h.b16 %v1391
    %v3721 = vunpack.c.l.b16 %v1392
    %v3722 = vunpack.c.h.b16 %v1392
    %v3723 = vunpack.c.l.b16 %v1393
    %v3724 = vunpack.c.h.b16 %v1393
    %v3725 = vunpack.c.l.b16 %v1394
    %v3726 = vunpack.c.h.b16 %v1394
    %v3727 = vunpack.c.l.b16 %v1395
    %v3728 = vunpack.c.l.b16 %v1396
    %v3729 = vunpack.c.h.b16 %v1396
    %v3730 = vunpack.c.l.b16 %v1397
    %v3731 = vunpack.c.h.b16 %v1397
    %v3732 = vunpack.c.l.b16 %v1398
    %v3733 = vunpack.c.h.b16 %v1398
    %v3734 = vunpack.c.l.b16 %v1399
    %v3735 = vunpack.c.h.b16 %v1399
    %v3736 = vunpack.c.l.b16 %v1400
    %v3737 = vunpack.c.h.b16 %v1400
    %v3738 = vunpack.c.l.b16 %v1401
    %v3739 = vunpack.c.h.b16 %v1401
    %v3740 = vunpack.c.l.b16 %v1402
    %v3741 = vunpack.c.l.b16 %v1403
    %v3742 = vunpack.c.h.b16 %v1403
    %v3743 = vunpack.c.l.b16 %v1404
    %v3744 = vunpack.c.h.b16 %v1404
    %v3745 = vunpack.c.l.b16 %v1405
    %v3746 = vunpack.c.h.b16 %v1405
    %v3747 = vunpack.c.l.b16 %v1406
    %v3748 = vunpack.c.h.b16 %v1406
    %v3749 = vunpack.c.l.b16 %v1407
    %v3750 = vunpack.c.h.b16 %v1407
    %v3751 = vunpack.c.l.b16 %v1408
    %v3752 = vunpack.c.h.b16 %v1408
    %v3753 = vunpack.c.l.b16 %v1409
    %v3754 = vunpack.c.l.b16 %v1410
    %v3755 = vunpack.c.h.b16 %v1410
    %v3756 = vunpack.c.l.b16 %v1411
    %v3757 = vunpack.c.h.b16 %v1411
    %v3758 = vunpack.c.l.b16 %v1412
    %v3759 = vunpack.c.h.b16 %v1412
    %v3760 = vunpack.c.l.b16 %v1413
    %v3761 = vunpack.c.h.b16 %v1413
    %v3762 = vunpack.c.l.b16 %v1414
    %v3763 = vunpack.c.h.b16 %v1414
    %v3764 = vunpack.c.l.b16 %v1415
    %v3765 = vunpack.c.h.b16 %v1415
    %v3766 = vunpack.c.l.b16 %v1416
    %v3767 = vunpack.c.l.b16 %v1417
    %v3768 = vunpack.c.h.b16 %v1417
    %v3769 = vunpack.c.l.b16 %v1418
    %v3770 = vunpack.c.h.b16 %v1418
    %v3771 = vunpack.c.l.b16 %v1419
    %v3772 = vunpack.c.h.b16 %v1419
    %v3773 = vunpack.c.l.b16 %v1420
    %v3774 = vunpack.c.h.b16 %v1420
    %v3775 = vunpack.c.l.b16 %v1421
    %v3776 = vunpack.c.h.b16 %v1421
    %v3777 = vunpack.c.l.b16 %v1422
    %v3778 = vunpack.c.h.b16 %v1422
    %v3779 = vunpack.c.l.b16 %v1423
    %v3780 = vunpack.c.l.b16 %v1424
    %v3781 = vunpack.c.h.b16 %v1424
    %v3782 = vunpack.c.l.b16 %v1425
    %v3783 = vunpack.c.h.b16 %v1425
    %v3784 = vunpack.c.l.b16 %v1426
    %v3785 = vunpack.c.h.b16 %v1426
    %v3786 = vunpack.c.l.b16 %v1427
    %v3787 = vunpack.c.h.b16 %v1427
    %v3788 = vunpack.c.l.b16 %v1428
    %v3789 = vunpack.c.h.b16 %v1428
    %v3790 = vunpack.c.l.b16 %v1429
    %v3791 = vunpack.c.h.b16 %v1429
    %v3792 = vunpack.c.l.b16 %v1430
    %v3793 = vunpack.c.l.b16 %v1431
    %v3794 = vunpack.c.h.b16 %v1431
    %v3795 = vunpack.c.l.b16 %v1432
    %v3796 = vunpack.c.h.b16 %v1432
    %v3797 = vunpack.c.l.b16 %v1433
    %v3798 = vunpack.c.h.b16 %v1433
    %v3799 = vunpack.c.l.b16 %v1434
    %v3800 = vunpack.c.h.b16 %v1434
    %v3801 = vunpack.c.l.b16 %v1435
    %v3802 = vunpack.c.h.b16 %v1435
    %v3803 = vunpack.c.l.b16 %v1436
    %v3804 = vunpack.c.h.b16 %v1436
    %v3805 = vunpack.c.l.b16 %v1437
    %v3806 = vunpack.c.l.b16 %v1438
    %v3807 = vunpack.c.h.b16 %v1438
    %v3808 = vunpack.c.l.b16 %v1439
    %v3809 = vunpack.c.h.b16 %v1439
    %v3810 = vunpack.c.l.b16 %v1440
    %v3811 = vunpack.c.h.b16 %v1440
    %v3812 = vunpack.c.l.b16 %v1441
    %v3813 = vunpack.c.h.b16 %v1441
    %v3814 = vunpack.c.l.b16 %v1442
    %v3815 = vunpack.c.h.b16 %v1442
    %v3816 = vunpack.c.l.b16 %v1443
    %v3817 = vunpack.c.h.b16 %v1443
    %v3818 = vunpack.c.l.b16 %v1444
    %v3819 = vunpack.c.l.b16 %v1445
    %v3820 = vunpack.c.h.b16 %v1445
    %v3821 = vunpack.c.l.b16 %v1446
    %v3822 = vunpack.c.h.b16 %v1446
    %v3823 = vunpack.c.l.b16 %v1447
    %v3824 = vunpack.c.h.b16 %v1447
    %v3825 = vunpack.c.l.b16 %v1448
    %v3826 = vunpack.c.h.b16 %v1448
    %v3827 = vunpack.c.l.b16 %v1449
    %v3828 = vunpack.c.h.b16 %v1449
    %v3829 = vunpack.c.l.b16 %v1450
    %v3830 = vunpack.c.h.b16 %v1450
    %v3831 = vunpack.c.l.b16 %v1451
    %v3832 = vunpack.c.l.b16 %v1452
    %v3833 = vunpack.c.h.b16 %v1452
    %v3834 = vunpack.c.l.b16 %v1453
    %v3835 = vunpack.c.h.b16 %v1453
    %v3836 = vunpack.c.l.b16 %v1454
    %v3837 = vunpack.c.h.b16 %v1454
    %v3838 = vunpack.c.l.b16 %v1455
    %v3839 = vunpack.c.h.b16 %v1455
    %v3840 = vunpack.c.l.b16 %v1456
    %v3841 = vunpack.c.h.b16 %v1456
    %v3842 = vunpack.c.l.b16 %v1457
    %v3843 = vunpack.c.h.b16 %v1457
    %v3844 = vunpack.c.l.b16 %v1458
    %v3845 = vunpack.c.l.b16 %v1459
    %v3846 = vunpack.c.h.b16 %v1459
    %v3847 = vunpack.c.l.b16 %v1460
    %v3848 = vunpack.c.h.b16 %v1460
    %v3849 = vunpack.c.l.b16 %v1461
    %v3850 = vunpack.c.h.b16 %v1461
    %v3851 = vunpack.c.l.b16 %v1462
    %v3852 = vunpack.c.h.b16 %v1462
    %v3853 = vunpack.c.l.b16 %v1463
    %v3854 = vunpack.c.h.b16 %v1463
    %v3855 = vunpack.c.l.b16 %v1464
    %v3856 = vunpack.c.h.b16 %v1464
    %v3857 = vunpack.c.l.b16 %v1465
    %v3858 = vunpack.c.l.b16 %v1466
    %v3859 = vunpack.c.h.b16 %v1466
    %v3860 = vunpack.c.l.b16 %v1467
    %v3861 = vunpack.c.h.b16 %v1467
    %v3862 = vunpack.c.l.b16 %v1468
    %v3863 = vunpack.c.h.b16 %v1468
    %v3864 = vunpack.c.l.b16 %v1469
    %v3865 = vunpack.c.h.b16 %v1469
    %v3866 = vunpack.c.l.b16 %v1470
    %v3867 = vunpack.c.h.b16 %v1470
    %v3868 = vunpack.c.l.b16 %v1471
    %v3869 = vunpack.c.h.b16 %v1471
    %v3870 = vunpack.c.l.b16 %v1472
    %v3871 = vunpack.c.l.b16 %v1473
    %v3872 = vunpack.c.h.b16 %v1473
    %v3873 = vunpack.c.l.b16 %v1474
    %v3874 = vunpack.c.h.b16 %v1474
    %v3875 = vunpack.c.l.b16 %v1475
    %v3876 = vunpack.c.h.b16 %v1475
    %v3877 = vunpack.c.l.b16 %v1476
    %v3878 = vunpack.c.h.b16 %v1476
    %v3879 = vunpack.c.l.b16 %v1477
    %v3880 = vunpack.c.h.b16 %v1477
    %v3881 = vunpack.c.l.b16 %v1478
    %v3882 = vunpack.c.h.b16 %v1478
    %v3883 = vunpack.c.l.b16 %v1479
    %v3884 = vunpack.c.l.b16 %v1480
    %v3885 = vunpack.c.h.b16 %v1480
    %v3886 = vunpack.c.l.b16 %v1481
    %v3887 = vunpack.c.h.b16 %v1481
    %v3888 = vunpack.c.l.b16 %v1482
    %v3889 = vunpack.c.h.b16 %v1482
    %v3890 = vunpack.c.l.b16 %v1483
    %v3891 = vunpack.c.h.b16 %v1483
    %v3892 = vunpack.c.l.b16 %v1484
    %v3893 = vunpack.c.h.b16 %v1484
    %v3894 = vunpack.c.l.b16 %v1485
    %v3895 = vunpack.c.h.b16 %v1485
    %v3896 = vunpack.c.l.b16 %v1486
    %v3897 = vunpack.c.l.b16 %v1487
    %v3898 = vunpack.c.h.b16 %v1487
    %v3899 = vunpack.c.l.b16 %v1488
    %v3900 = vunpack.c.h.b16 %v1488
    %v3901 = vunpack.c.l.b16 %v1489
    %v3902 = vunpack.c.h.b16 %v1489
    %v3903 = vunpack.c.l.b16 %v1490
    %v3904 = vunpack.c.h.b16 %v1490
    %v3905 = vunpack.c.l.b16 %v1491
    %v3906 = vunpack.c.h.b16 %v1491
    %v3907 = vunpack.c.l.b16 %v1492
    %v3908 = vunpack.c.h.b16 %v1492
    %v3909 = vunpack.c.l.b16 %v1493
    %v3910 = vunpack.c.l.b16 %v1494
    %v3911 = vunpack.c.h.b16 %v1494
    %v3912 = vunpack.c.l.b16 %v1495
    %v3913 = vunpack.c.h.b16 %v1495
    %v3914 = vunpack.c.l.b16 %v1496
    %v3915 = vunpack.c.h.b16 %v1496
    %v3916 = vunpack.c.l.b16 %v1497
    %v3917 = vunpack.c.h.b16 %v1497
    %v3918 = vunpack.c.l.b16 %v1498
    %v3919 = vunpack.c.h.b16 %v1498
    %v3920 = vunpack.c.l.b16 %v1499
    %v3921 = vunpack.c.h.b16 %v1499
    %v3922 = vunpack.c.l.b16 %v1500
    %v3923 = vunpack.c.l.b16 %v1501
    %v3924 = vunpack.c.h.b16 %v1501
    %v3925 = vunpack.c.l.b16 %v1502
    %v3926 = vunpack.c.h.b16 %v1502
    %v3927 = vunpack.c.l.b16 %v1503
    %v3928 = vunpack.c.h.b16 %v1503
    %v3929 = vunpack.c.l.b16 %v1504
    %v3930 = vunpack.c.h.b16 %v1504
    %v3931 = vunpack.c.l.b16 %v1505
    %v3932 = vunpack.c.h.b16 %v1505
    %v3933 = vunpack.c.l.b16 %v1506
    %v3934 = vunpack.c.h.b16 %v1506
    %v3935 = vunpack.c.l.b16 %v1507
    %v3936 = vunpack.c.l.b16 %v1508
    %v3937 = vunpack.c.h.b16 %v1508
    %v3938 = vunpack.c.l.b16 %v1509
    %v3939 = vunpack.c.h.b16 %v1509
    %v3940 = vunpack.c.l.b16 %v1510
    %v3941 = vunpack.c.h.b16 %v1510
    %v3942 = vunpack.c.l.b16 %v1511
    %v3943 = vunpack.c.h.b16 %v1511
    %v3944 = vunpack.c.l.b16 %v1512
    %v3945 = vunpack.c.h.b16 %v1512
    %v3946 = vunpack.c.l.b16 %v1513
    %v3947 = vunpack.c.h.b16 %v1513
    %v3948 = vunpack.c.l.b16 %v1514
    %v3949 = vunpack.c.l.b16 %v1515
    %v3950 = vunpack.c.h.b16 %v1515
    %v3951 = vunpack.c.l.b16 %v1516
    %v3952 = vunpack.c.h.b16 %v1516
    %v3953 = vunpack.c.l.b16 %v1517
    %v3954 = vunpack.c.h.b16 %v1517
    %v3955 = vunpack.c.l.b16 %v1518
    %v3956 = vunpack.c.h.b16 %v1518
    %v3957 = vunpack.c.l.b16 %v1519
    %v3958 = vunpack.c.h.b16 %v1519
    %v3959 = vunpack.c.l.b16 %v1520
    %v3960 = vunpack.c.h.b16 %v1520
    %v3961 = vunpack.c.l.b16 %v1521
    %v3962 = vunpack.c.l.b16 %v1522
    %v3963 = vunpack.c.h.b16 %v1522
    %v3964 = vunpack.c.l.b16 %v1523
    %v3965 = vunpack.c.h.b16 %v1523
    %v3966 = vunpack.c.l.b16 %v1524
    %v3967 = vunpack.c.h.b16 %v1524
    %v3968 = vunpack.c.l.b16 %v1525
    %v3969 = vunpack.c.h.b16 %v1525
    %v3970 = vunpack.c.l.b16 %v1526
    %v3971 = vunpack.c.h.b16 %v1526
    %v3972 = vunpack.c.l.b16 %v1527
    %v3973 = vunpack.c.h.b16 %v1527
    %v3974 = vunpack.c.l.b16 %v1528
    %v3975 = vunpack.c.l.b16 %v1529
    %v3976 = vunpack.c.h.b16 %v1529
    %v3977 = vunpack.c.l.b16 %v1530
    %v3978 = vunpack.c.h.b16 %v1530
    %v3979 = vunpack.c.l.b16 %v1531
    %v3980 = vunpack.c.h.b16 %v1531
    %v3981 = vunpack.c.l.b16 %v1532
    %v3982 = vunpack.c.h.b16 %v1532
    %v3983 = vunpack.c.l.b16 %v1533
    %v3984 = vunpack.c.h.b16 %v1533
    %v3985 = vunpack.c.l.b16 %v1534
    %v3986 = vunpack.c.h.b16 %v1534
    %v3987 = vunpack.c.l.b16 %v1535
    %v3988 = vunpack.c.l.b16 %v1536
    %v3989 = vunpack.c.h.b16 %v1536
    %v3990 = vunpack.c.l.b16 %v1537
    %v3991 = vunpack.c.h.b16 %v1537
    %v3992 = vunpack.c.l.b16 %v1538
    %v3993 = vunpack.c.h.b16 %v1538
    %v3994 = vunpack.c.l.b16 %v1539
    %v3995 = vunpack.c.h.b16 %v1539
    %v3996 = vunpack.c.l.b16 %v1540
    %v3997 = vunpack.c.h.b16 %v1540
    %v3998 = vunpack.c.l.b16 %v1541
    %v3999 = vunpack.c.h.b16 %v1541
    %v4000 = vunpack.c.l.b16 %v1542
    %v4001 = vunpack.c.l.b16 %v1543
    %v4002 = vunpack.c.h.b16 %v1543
    %v4003 = vunpack.c.l.b16 %v1544
    %v4004 = vunpack.c.h.b16 %v1544
    %v4005 = vunpack.c.l.b16 %v1545
    %v4006 = vunpack.c.h.b16 %v1545
    %v4007 = vunpack.c.l.b16 %v1546
    %v4008 = vunpack.c.h.b16 %v1546
    %v4009 = vunpack.c.l.b16 %v1547
    %v4010 = vunpack.c.h.b16 %v1547
    %v4011 = vunpack.c.l.b16 %v1548
    %v4012 = vunpack.c.h.b16 %v1548
    %v4013 = vunpack.c.l.b16 %v1549
    %v4014 = vunpack.c.l.b16 %v1550
    %v4015 = vunpack.c.h.b16 %v1550
    %v4016 = vunpack.c.l.b16 %v1551
    %v4017 = vunpack.c.h.b16 %v1551
    %v4018 = vunpack.c.l.b16 %v1552
    %v4019 = vunpack.c.h.b16 %v1552
    %v4020 = vunpack.c.l.b16 %v1553
    %v4021 = vunpack.c.h.b16 %v1553
    %v4022 = vunpack.c.l.b16 %v1554
    %v4023 = vunpack.c.h.b16 %v1554
    %v4024 = vunpack.c.l.b16 %v1555
    %v4025 = vunpack.c.h.b16 %v1555
    %v4026 = vunpack.c.l.b16 %v1556
    %v4027 = vunpack.c.l.b16 %v1557
    %v4028 = vunpack.c.h.b16 %v1557
    %v4029 = vunpack.c.l.b16 %v1558
    %v4030 = vunpack.c.h.b16 %v1558
    %v4031 = vunpack.c.l.b16 %v1559
    %v4032 = vunpack.c.h.b16 %v1559
    %v4033 = vunpack.c.l.b16 %v1560
    %v4034 = vunpack.c.h.b16 %v1560
    %v4035 = vunpack.c.l.b16 %v1561
    %v4036 = vunpack.c.h.b16 %v1561
    %v4037 = vunpack.c.l.b16 %v1562
    %v4038 = vunpack.c.h.b16 %v1562
    %v4039 = vunpack.c.l.b16 %v1563
    %v4040 = vunpack.c.l.b16 %v1564
    %v4041 = vunpack.c.h.b16 %v1564
    %v4042 = vunpack.c.l.b16 %v1565
    %v4043 = vunpack.c.h.b16 %v1565
    %v4044 = vunpack.c.l.b16 %v1566
    %v4045 = vunpack.c.h.b16 %v1566
    %v4046 = vunpack.c.l.b16 %v1567
    %v4047 = vunpack.c.h.b16 %v1567
    %v4048 = vunpack.c.l.b16 %v1568
    %v4049 = vunpack.c.h.b16 %v1568
    %v4050 = vunpack.c.l.b16 %v1569
    %v4051 = vunpack.c.h.b16 %v1569
    %v4052 = vunpack.c.l.b16 %v1570
    %v4053 = vunpack.c.l.b16 %v1571
    %v4054 = vunpack.c.h.b16 %v1571
    %v4055 = vunpack.c.l.b16 %v1572
    %v4056 = vunpack.c.h.b16 %v1572
    %v4057 = vunpack.c.l.b16 %v1573
    %v4058 = vunpack.c.h.b16 %v1573
    %v4059 = vunpack.c.l.b16 %v1574
    %v4060 = vunpack.c.h.b16 %v1574
    %v4061 = vunpack.c.l.b16 %v1575
    %v4062 = vunpack.c.h.b16 %v1575
    %v4063 = vunpack.c.l.b16 %v1576
    %v4064 = vunpack.c.h.b16 %v1576
    %v4065 = vunpack.c.l.b16 %v1577
    %v4066 = vunpack.c.l.b16 %v1578
    %v4067 = vunpack.c.h.b16 %v1578
    %v4068 = vunpack.c.l.b16 %v1579
    %v4069 = vunpack.c.h.b16 %v1579
    %v4070 = vunpack.c.l.b16 %v1580
    %v4071 = vunpack.c.h.b16 %v1580
    %v4072 = vunpack.c.l.b16 %v1581
    %v4073 = vunpack.c.h.b16 %v1581
    %v4074 = vunpack.c.l.b16 %v1582
    %v4075 = vunpack.c.h.b16 %v1582
    %v4076 = vunpack.c.l.b16 %v1583
    %v4077 = vunpack.c.h.b16 %v1583
    %v4078 = vunpack.c.l.b16 %v1584
    %v4079 = vunpack.c.l.b16 %v1585
    %v4080 = vunpack.c.h.b16 %v1585
    %v4081 = vunpack.c.l.b16 %v1586
    %v4082 = vunpack.c.h.b16 %v1586
    %v4083 = vunpack.c.l.b16 %v1587
    %v4084 = vunpack.c.h.b16 %v1587
    %v4085 = vunpack.c.l.b16 %v1588
    %v4086 = vunpack.c.h.b16 %v1588
    %v4087 = vunpack.c.l.b16 %v1589
    %v4088 = vunpack.c.h.b16 %v1589
    %v4089 = vunpack.c.l.b16 %v1590
    %v4090 = vunpack.c.h.b16 %v1590
    %v4091 = vunpack.c.l.b16 %v1591
    %v4092 = vunpack.c.l.b16 %v1592
    %v4093 = vunpack.c.h.b16 %v1592
    %v4094 = vunpack.c.l.b16 %v1593
    %v4095 = vunpack.c.h.b16 %v1593
    %v4096 = vunpack.c.l.b16 %v1594
    %v4097 = vunpack.c.h.b16 %v1594
    %v4098 = vunpack.c.l.b16 %v1595
    %v4099 = vunpack.c.h.b16 %v1595
    %v4100 = vunpack.c.l.b16 %v1596
    %v4101 = vunpack.c.h.b16 %v1596
    %v4102 = vunpack.c.l.b16 %v1597
    %v4103 = vunpack.c.h.b16 %v1597
    %v4104 = vunpack.c.l.b16 %v1598
    %v4105 = vunpack.c.l.b16 %v1599
    %v4106 = vunpack.c.h.b16 %v1599
    %v4107 = vunpack.c.l.b16 %v1600
    %v4108 = vunpack.c.h.b16 %v1600
    %v4109 = vunpack.c.l.b16 %v1601
    %v4110 = vunpack.c.h.b16 %v1601
    %v4111 = vunpack.c.l.b16 %v1602
    %v4112 = vunpack.c.h.b16 %v1602
    %v4113 = vunpack.c.l.b16 %v1603
    %v4114 = vunpack.c.h.b16 %v1603
    %v4115 = vunpack.c.l.b16 %v1604
    %v4116 = vunpack.c.h.b16 %v1604
    %v4117 = vunpack.c.l.b16 %v1605
    %v4118 = vunpack.c.l.b16 %v1606
    %v4119 = vunpack.c.h.b16 %v1606
    %v4120 = vunpack.c.l.b16 %v1607
    %v4121 = vunpack.c.h.b16 %v1607
    %v4122 = vunpack.c.l.b16 %v1608
    %v4123 = vunpack.c.h.b16 %v1608
    %v4124 = vunpack.c.l.b16 %v1609
    %v4125 = vunpack.c.h.b16 %v1609
    %v4126 = vunpack.c.l.b16 %v1610
    %v4127 = vunpack.c.h.b16 %v1610
    %v4128 = vunpack.c.l.b16 %v1611
    %v4129 = vunpack.c.h.b16 %v1611
    %v4130 = vunpack.c.l.b16 %v1612
    %v4131 = vunpack.c.l.b16 %v1613
    %v4132 = vunpack.c.h.b16 %v1613
    %v4133 = vunpack.c.l.b16 %v1614
    %v4134 = vunpack.c.h.b16 %v1614
    %v4135 = vunpack.c.l.b16 %v1615
    %v4136 = vunpack.c.h.b16 %v1615
    %v4137 = vunpack.c.l.b16 %v1616
    %v4138 = vunpack.c.h.b16 %v1616
    %v4139 = vunpack.c.l.b16 %v1617
    %v4140 = vunpack.c.h.b16 %v1617
    %v4141 = vunpack.c.l.b16 %v1618
    %v4142 = vunpack.c.h.b16 %v1618
    %v4143 = vunpack.c.l.b16 %v1619
    %v4144 = vunpack.c.l.b16 %v1620
    %v4145 = vunpack.c.h.b16 %v1620
    %v4146 = vunpack.c.l.b16 %v1621
    %v4147 = vunpack.c.h.b16 %v1621
    %v4148 = vunpack.c.l.b16 %v1622
    %v4149 = vunpack.c.h.b16 %v1622
    %v4150 = vunpack.c.l.b16 %v1623
    %v4151 = vunpack.c.h.b16 %v1623
    %v4152 = vunpack.c.l.b16 %v1624
    %v4153 = vunpack.c.h.b16 %v1624
    %v4154 = vunpack.c.l.b16 %v1625
    %v4155 = vunpack.c.h.b16 %v1625
    %v4156 = vunpack.c.l.b16 %v1626
    %v4157 = vunpack.c.l.b16 %v1627
    %v4158 = vunpack.c.h.b16 %v1627
    %v4159 = vunpack.c.l.b16 %v1628
    %v4160 = vunpack.c.h.b16 %v1628
    %v4161 = vunpack.c.l.b16 %v1629
    %v4162 = vunpack.c.h.b16 %v1629
    %v4163 = vunpack.c.l.b16 %v1630
    %v4164 = vunpack.c.h.b16 %v1630
    %v4165 = vunpack.c.l.b16 %v1631
    %v4166 = vunpack.c.h.b16 %v1631
    %v4167 = vunpack.c.l.b16 %v1632
    %v4168 = vunpack.c.h.b16 %v1632
    %v4169 = vunpack.c.l.b16 %v1633
    %v4170 = vunpack.c.l.b16 %v1634
    %v4171 = vunpack.c.h.b16 %v1634
    %v4172 = vunpack.c.l.b16 %v1635
    %v4173 = vunpack.c.h.b16 %v1635
    %v4174 = vunpack.c.l.b16 %v1636
    %v4175 = vunpack.c.h.b16 %v1636
    %v4176 = vunpack.c.l.b16 %v1637
    %v4177 = vunpack.c.h.b16 %v1637
    %v4178 = vunpack.c.l.b16 %v1638
    %v4179 = vunpack.c.h.b16 %v1638
    %v4180 = vunpack.c.l.b16 %v1639
    %v4181 = vunpack.c.h.b16 %v1639
    %v4182 = vunpack.c.l.b16 %v1640
    %v4183 = vunpack.c.l.b16 %v1641
    %v4184 = vunpack.c.h.b16 %v1641
    %v4185 = vunpack.c.l.b16 %v1642
    %v4186 = vunpack.c.h.b16 %v1642
    %v4187 = vunpack.c.l.b16 %v1643
    %v4188 = vunpack.c.h.b16 %v1643
    %v4189 = vunpack.c.l.b16 %v1644
    %v4190 = vunpack.c.h.b16 %v1644
    %v4191 = vunpack.c.l.b16 %v1645
    %v4192 = vunpack.c.h.b16 %v1645
    %v4193 = vunpack.c.l.b16 %v1646
    %v4194 = vunpack.c.h.b16 %v1646
    %v4195 = vunpack.c.l.b16 %v1647
    %v4196 = vunpack.c.l.b16 %v1648
    %v4197 = vunpack.c.h.b16 %v1648
    %v4198 = vunpack.c.l.b16 %v1649
    %v4199 = vunpack.c.h.b16 %v1649
    %v4200 = vunpack.c.l.b16 %v1650
    %v4201 = vunpack.c.h.b16 %v1650
    %v4202 = vunpack.c.l.b16 %v1651
    %v4203 = vunpack.c.h.b16 %v1651
    %v4204 = vunpack.c.l.b16 %v1652
    %v4205 = vunpack.c.h.b16 %v1652
    %v4206 = vunpack.c.l.b16 %v1653
    %v4207 = vunpack.c.h.b16 %v1653
    %v4208 = vunpack.c.l.b16 %v1654
    %v4209 = vunpack.c.l.b16 %v1655
    %v4210 = vunpack.c.h.b16 %v1655
    %v4211 = vunpack.c.l.b16 %v1656
    %v4212 = vunpack.c.h.b16 %v1656
    %v4213 = vunpack.c.l.b16 %v1657
    %v4214 = vunpack.c.h.b16 %v1657
    %v4215 = vunpack.c.l.b16 %v1658
    %v4216 = vunpack.c.h.b16 %v1658
    %v4217 = vunpack.c.l.b16 %v1659
    %v4218 = vunpack.c.h.b16 %v1659
    %v4219 = vunpack.c.l.b16 %v1660
    %v4220 = vunpack.c.h.b16 %v1660
    %v4221 = vunpack.c.l.b16 %v1661
    %v4222 = vpack.c.b16 %v2571, %v2558
    %v4223 = vpack.c.b16 %v2572, %v2559
    %v4224 = vpack.c.b16 %v2573, %v2560
    %v4225 = vpack.c.b16 %v2574, %v2561
    %v4226 = vpack.c.b16 %v2575, %v2562
    %v4227 = vpack.c.b16 %v2576, %v2563
    %v4228 = vpack.c.b16 %v2577, %v2564
    %v4229 = vpack.c.b16 %v2578, %v2565
    %v4230 = vpack.c.b16 %v2579, %v2566
    %v4231 = vpack.c.b16 %v2580, %v2567
    %v4232 = vpack.c.b16 %v2581, %v2568
    %v4233 = vpack.c.b16 %v2582, %v2569
    %v4234 = vpack.c.b16 %v2583, %v2570
    %v4235 = vpack.c.b16 %v2597, %v2584
    %v4236 = vpack.c.b16 %v2598, %v2585
    %v4237 = vpack.c.b16 %v2599, %v2586
    %v4238 = vpack.c.b16 %v2600, %v2587
    %v4239 = vpack.c.b16 %v2601, %v2588
    %v4240 = vpack.c.b16 %v2602, %v2589
    %v4241 = vpack.c.b16 %v2603, %v2590
    %v4242 = vpack.c.b16 %v2604, %v2591
    %v4243 = vpack.c.b16 %v2605, %v2592
    %v4244 = vpack.c.b16 %v2606, %v2593
    %v4245 = vpack.c.b16 %v2607, %v2594
    %v4246 = vpack.c.b16 %v2608, %v2595
    %v4247 = vpack.c.b16 %v2609, %v2596
    %v4248 = vpack.c.b16 %v2623, %v2610
    %v4249 = vpack.c.b16 %v2624, %v2611
    %v4250 = vpack.c.b16 %v2625, %v2612
    %v4251 = vpack.c.b16 %v2626, %v2613
    %v4252 = vpack.c.b16 %v2627, %v2614
    %v4253 = vpack.c.b16 %v2628, %v2615
    %v4254 = vpack.c.b16 %v2629, %v2616
    %v4255 = vpack.c.b16 %v2630, %v2617
    %v4256 = vpack.c.b16 %v2631, %v2618
    %v4257 = vpack.c.b16 %v2632, %v2619
    %v4258 = vpack.c.b16 %v2633, %v2620
    %v4259 = vpack.c.b16 %v2634, %v2621
    %v4260 = vpack.c.b16 %v2635, %v2622
    %v4261 = vpack.c.b16 %v2649, %v2636
    %v4262 = vpack.c.b16 %v2650, %v2637
    %v4263 = vpack.c.b16 %v2651, %v2638
    %v4264 = vpack.c.b16 %v2652, %v2639
    %v4265 = vpack.c.b16 %v2653, %v2640
    %v4266 = vpack.c.b16 %v2654, %v2641
    %v4267 = vpack.c.b16 %v2655, %v2642
    %v4268 = vpack.c.b16 %v2656, %v2643
    %v4269 = vpack.c.b16 %v2657, %v2644
    %v4270 = vpack.c.b16 %v2658, %v2645
    %v4271 = vpack.c.b16 %v2659, %v2646
    %v4272 = vpack.c.b16 %v2660, %v2647
    %v4273 = vpack.c.b16 %v2661, %v2648
    %v4274 = vpack.c.b16 %v2675, %v2662
    %v4275 = vpack.c.b16 %v2676, %v2663
    %v4276 = vpack.c.b16 %v2677, %v2664
    %v4277 = vpack.c.b16 %v2678, %v2665
    %v4278 = vpack.c.b16 %v2679, %v2666
    %v4279 = vpack.c.b16 %v2680, %v2667
    %v4280 = vpack.c.b16 %v2681, %v2668
    %v4281 = vpack.c.b16 %v2682, %v2669
    %v4282 = vpack.c.b16 %v2683, %v2670
    %v4283 = vpack.c.b16 %v2684, %v2671
    %v4284 = vpack.c.b16 %v2685, %v2672
    %v4285 = vpack.c.b16 %v2686, %v2673
    %v4286 = vpack.c.b16 %v2687, %v2674
    %v4287 = vpack.c.b16 %v2701, %v2688
    %v4288 = vpack.c.b16 %v2702, %v2689
    %v4289 = vpack.c.b16 %v2703, %v2690
    %v4290 = vpack.c.b16 %v2704, %v2691
    %v4291 = vpack.c.b16 %v2705, %v2692
    %v4292 = vpack.c.b16 %v2706, %v2693
    %v4293 = vpack.c.b16 %v2707, %v2694
    %v4294 = vpack.c.b16 %v2708, %v2695
    %v4295 = vpack.c.b16 %v2709, %v2696
    %v4296 = vpack.c.b16 %v2710, %v2697
    %v4297 = vpack.c.b16 %v2711, %v2698
    %v4298 = vpack.c.b16 %v2712, %v2699
    %v4299 = vpack.c.b16 %v2713, %v2700
    %v4300 = vpack.c.b16 %v2727, %v2714
    %v4301 = vpack.c.b16 %v2728, %v2715
    %v4302 = vpack.c.b16 %v2729, %v2716
    %v4303 = vpack.c.b16 %v2730, %v2717
    %v4304 = vpack.c.b16 %v2731, %v2718
    %v4305 = vpack.c.b16 %v2732, %v2719
    %v4306 = vpack.c.b16 %v2733, %v2720
    %v4307 = vpack.c.b16 %v2734, %v2721
    %v4308 = vpack.c.b16 %v2735, %v2722
    %v4309 = vpack.c.b16 %v2736, %v2723
    %v4310 = vpack.c.b16 %v2737, %v2724
    %v4311 = vpack.c.b16 %v2738, %v2725
    %v4312 = vpack.c.b16 %v2739, %v2726
    %v4313 = vpack.c.b16 %v2753, %v2740
    %v4314 = vpack.c.b16 %v2754, %v2741
    %v4315 = vpack.c.b16 %v2755, %v2742
    %v4316 = vpack.c.b16 %v2756, %v2743
    %v4317 = vpack.c.b16 %v2757, %v2744
    %v4318 = vpack.c.b16 %v2758, %v2745
    %v4319 = vpack.c.b16 %v2759, %v2746
    %v4320 = vpack.c.b16 %v2760, %v2747
    %v4321 = vpack.c.b16 %v2761, %v2748
    %v4322 = vpack.c.b16 %v2762, %v2749
    %v4323 = vpack.c.b16 %v2763, %v2750
    %v4324 = vpack.c.b16 %v2764, %v2751
    %v4325 = vpack.c.b16 %v2765, %v2752
    %v4326 = vpack.c.b16 %v2779, %v2766
    %v4327 = vpack.c.b16 %v2780, %v2767
    %v4328 = vpack.c.b16 %v2781, %v2768
    %v4329 = vpack.c.b16 %v2782, %v2769
    %v4330 = vpack.c.b16 %v2783, %v2770
    %v4331 = vpack.c.b16 %v2784, %v2771
    %v4332 = vpack.c.b16 %v2785, %v2772
    %v4333 = vpack.c.b16 %v2786, %v2773
    %v4334 = vpack.c.b16 %v2787, %v2774
    %v4335 = vpack.c.b16 %v2788, %v2775
    %v4336 = vpack.c.b16 %v2789, %v2776
    %v4337 = vpack.c.b16 %v2790, %v2777
    %v4338 = vpack.c.b16 %v2791, %v2778
    %v4339 = vpack.c.b16 %v2805, %v2792
    %v4340 = vpack.c.b16 %v2806, %v2793
    %v4341 = vpack.c.b16 %v2807, %v2794
    %v4342 = vpack.c.b16 %v2808, %v2795
    %v4343 = vpack.c.b16 %v2809, %v2796
    %v4344 = vpack.c.b16 %v2810, %v2797
    %v4345 = vpack.c.b16 %v2811, %v2798
    %v4346 = vpack.c.b16 %v2812, %v2799
    %v4347 = vpack.c.b16 %v2813, %v2800
    %v4348 = vpack.c.b16 %v2814, %v2801
    %v4349 = vpack.c.b16 %v2815, %v2802
    %v4350 = vpack.c.b16 %v2816, %v2803
    %v4351 = vpack.c.b16 %v2817, %v2804
    %v4352 = vpack.c.b16 %v2831, %v2818
    %v4353 = vpack.c.b16 %v2832, %v2819
    %v4354 = vpack.c.b16 %v2833, %v2820
    %v4355 = vpack.c.b16 %v2834, %v2821
    %v4356 = vpack.c.b16 %v2835, %v2822
    %v4357 = vpack.c.b16 %v2836, %v2823
    %v4358 = vpack.c.b16 %v2837, %v2824
    %v4359 = vpack.c.b16 %v2838, %v2825
    %v4360 = vpack.c.b16 %v2839, %v2826
    %v4361 = vpack.c.b16 %v2840, %v2827
    %v4362 = vpack.c.b16 %v2841, %v2828
    %v4363 = vpack.c.b16 %v2842, %v2829
    %v4364 = vpack.c.b16 %v2843, %v2830
    %v4365 = vpack.c.b16 %v2857, %v2844
    %v4366 = vpack.c.b16 %v2858, %v2845
    %v4367 = vpack.c.b16 %v2859, %v2846
    %v4368 = vpack.c.b16 %v2860, %v2847
    %v4369 = vpack.c.b16 %v2861, %v2848
    %v4370 = vpack.c.b16 %v2862, %v2849
    %v4371 = vpack.c.b16 %v2863, %v2850
    %v4372 = vpack.c.b16 %v2864, %v2851
    %v4373 = vpack.c.b16 %v2865, %v2852
    %v4374 = vpack.c.b16 %v2866, %v2853
    %v4375 = vpack.c.b16 %v2867, %v2854
    %v4376 = vpack.c.b16 %v2868, %v2855
    %v4377 = vpack.c.b16 %v2869, %v2856
    %v4378 = vpack.c.b16 %v2883, %v2870
    %v4379 = vpack.c.b16 %v2884, %v2871
    %v4380 = vpack.c.b16 %v2885, %v2872
    %v4381 = vpack.c.b16 %v2886, %v2873
    %v4382 = vpack.c.b16 %v2887, %v2874
    %v4383 = vpack.c.b16 %v2888, %v2875
    %v4384 = vpack.c.b16 %v2889, %v2876
    %v4385 = vpack.c.b16 %v2890, %v2877
    %v4386 = vpack.c.b16 %v2891, %v2878
    %v4387 = vpack.c.b16 %v2892, %v2879
    %v4388 = vpack.c.b16 %v2893, %v2880
    %v4389 = vpack.c.b16 %v2894, %v2881
    %v4390 = vpack.c.b16 %v2895, %v2882
    %v4391 = vpack.c.b16 %v2909, %v2896
    %v4392 = vpack.c.b16 %v2910, %v2897
    %v4393 = vpack.c.b16 %v2911, %v2898
    %v4394 = vpack.c.b16 %v2912, %v2899
    %v4395 = vpack.c.b16 %v2913, %v2900
    %v4396 = vpack.c.b16 %v2914, %v2901
    %v4397 = vpack.c.b16 %v2915, %v2902
    %v4398 = vpack.c.b16 %v2916, %v2903
    %v4399 = vpack.c.b16 %v2917, %v2904
    %v4400 = vpack.c.b16 %v2918, %v2905
    %v4401 = vpack.c.b16 %v2919, %v2906
    %v4402 = vpack.c.b16 %v2920, %v2907
    %v4403 = vpack.c.b16 %v2921, %v2908
    %v4404 = vpack.c.b16 %v2935, %v2922
    %v4405 = vpack.c.b16 %v2936, %v2923
    %v4406 = vpack.c.b16 %v2937, %v2924
    %v4407 = vpack.c.b16 %v2938, %v2925
    %v4408 = vpack.c.b16 %v2939, %v2926
    %v4409 = vpack.c.b16 %v2940, %v2927
    %v4410 = vpack.c.b16 %v2941, %v2928
    %v4411 = vpack.c.b16 %v2942, %v2929
    %v4412 = vpack.c.b16 %v2943, %v2930
    %v4413 = vpack.c.b16 %v2944, %v2931
    %v4414 = vpack.c.b16 %v2945, %v2932
    %v4415 = vpack.c.b16 %v2946, %v2933
    %v4416 = vpack.c.b16 %v2947, %v2934
    %v4417 = vpack.c.b16 %v2961, %v2948
    %v4418 = vpack.c.b16 %v2962, %v2949
    %v4419 = vpack.c.b16 %v2963, %v2950
    %v4420 = vpack.c.b16 %v2964, %v2951
    %v4421 = vpack.c.b16 %v2965, %v2952
    %v4422 = vpack.c.b16 %v2966, %v2953
    %v4423 = vpack.c.b16 %v2967, %v2954
    %v4424 = vpack.c.b16 %v2968, %v2955
    %v4425 = vpack.c.b16 %v2969, %v2956
    %v4426 = vpack.c.b16 %v2970, %v2957
    %v4427 = vpack.c.b16 %v2971, %v2958
    %v4428 = vpack.c.b16 %v2972, %v2959
    %v4429 = vpack.c.b16 %v2973, %v2960
    %v4430 = vpack.c.b16 %v2987, %v2974
    %v4431 = vpack.c.b16 %v2988, %v2975
    %v4432 = vpack.c.b16 %v2989, %v2976
    %v4433 = vpack.c.b16 %v2990, %v2977
    %v4434 = vpack.c.b16 %v2991, %v2978
    %v4435 = vpack.c.b16 %v2992, %v2979
    %v4436 = vpack.c.b16 %v2993, %v2980
    %v4437 = vpack.c.b16 %v2994, %v2981
    %v4438 = vpack.c.b16 %v2995, %v2982
    %v4439 = vpack.c.b16 %v2996, %v2983
    %v4440 = vpack.c.b16 %v2997, %v2984
    %v4441 = vpack.c.b16 %v2998, %v2985
    %v4442 = vpack.c.b16 %v2999, %v2986
    %v4443 = vpack.c.b16 %v3013, %v3000
    %v4444 = vpack.c.b16 %v3014, %v3001
    %v4445 = vpack.c.b16 %v3015, %v3002
    %v4446 = vpack.c.b16 %v3016, %v3003
    %v4447 = vpack.c.b16 %v3017, %v3004
    %v4448 = vpack.c.b16 %v3018, %v3005
    %v4449 = vpack.c.b16 %v3019, %v3006
    %v4450 = vpack.c.b16 %v3020, %v3007
    %v4451 = vpack.c.b16 %v3021, %v3008
    %v4452 = vpack.c.b16 %v3022, %v3009
    %v4453 = vpack.c.b16 %v3023, %v3010
    %v4454 = vpack.c.b16 %v3024, %v3011
    %v4455 = vpack.c.b16 %v3025, %v3012
    %v4456 = vpack.c.b16 %v3039, %v3026
    %v4457 = vpack.c.b16 %v3040, %v3027
    %v4458 = vpack.c.b16 %v3041, %v3028
    %v4459 = vpack.c.b16 %v3042, %v3029
    %v4460 = vpack.c.b16 %v3043, %v3030
    %v4461 = vpack.c.b16 %v3044, %v3031
    %v4462 = vpack.c.b16 %v3045, %v3032
    %v4463 = vpack.c.b16 %v3046, %v3033
    %v4464 = vpack.c.b16 %v3047, %v3034
    %v4465 = vpack.c.b16 %v3048, %v3035
    %v4466 = vpack.c.b16 %v3049, %v3036
    %v4467 = vpack.c.b16 %v3050, %v3037
    %v4468 = vpack.c.b16 %v3051, %v3038
    %v4469 = vpack.c.b16 %v3065, %v3052
    %v4470 = vpack.c.b16 %v3066, %v3053
    %v4471 = vpack.c.b16 %v3067, %v3054
    %v4472 = vpack.c.b16 %v3068, %v3055
    %v4473 = vpack.c.b16 %v3069, %v3056
    %v4474 = vpack.c.b16 %v3070, %v3057
    %v4475 = vpack.c.b16 %v3071, %v3058
    %v4476 = vpack.c.b16 %v3072, %v3059
    %v4477 = vpack.c.b16 %v3073, %v3060
    %v4478 = vpack.c.b16 %v3074, %v3061
    %v4479 = vpack.c.b16 %v3075, %v3062
    %v4480 = vpack.c.b16 %v3076, %v3063
    %v4481 = vpack.c.b16 %v3077, %v3064
    %v4482 = vpack.c.b16 %v3091, %v3078
    %v4483 = vpack.c.b16 %v3092, %v3079
    %v4484 = vpack.c.b16 %v3093, %v3080
    %v4485 = vpack.c.b16 %v3094, %v3081
    %v4486 = vpack.c.b16 %v3095, %v3082
    %v4487 = vpack.c.b16 %v3096, %v3083
    %v4488 = vpack.c.b16 %v3097, %v3084
    %v4489 = vpack.c.b16 %v3098, %v3085
    %v4490 = vpack.c.b16 %v3099, %v3086
    %v4491 = vpack.c.b16 %v3100, %v3087
    %v4492 = vpack.c.b16 %v3101, %v3088
    %v4493 = vpack.c.b16 %v3102, %v3089
    %v4494 = vpack.c.b16 %v3103, %v3090
    %v4495 = vpack.c.b16 %v3117, %v3104
    %v4496 = vpack.c.b16 %v3118, %v3105
    %v4497 = vpack.c.b16 %v3119, %v3106
    %v4498 = vpack.c.b16 %v3120, %v3107
    %v4499 = vpack.c.b16 %v3121, %v3108
    %v4500 = vpack.c.b16 %v3122, %v3109
    %v4501 = vpack.c.b16 %v3123, %v3110
    %v4502 = vpack.c.b16 %v3124, %v3111
    %v4503 = vpack.c.b16 %v3125, %v3112
    %v4504 = vpack.c.b16 %v3126, %v3113
    %v4505 = vpack.c.b16 %v3127, %v3114
    %v4506 = vpack.c.b16 %v3128, %v3115
    %v4507 = vpack.c.b16 %v3129, %v3116
    %v4508 = vpack.c.b16 %v3143, %v3130
    %v4509 = vpack.c.b16 %v3144, %v3131
    %v4510 = vpack.c.b16 %v3145, %v3132
    %v4511 = vpack.c.b16 %v3146, %v3133
    %v4512 = vpack.c.b16 %v3147, %v3134
    %v4513 = vpack.c.b16 %v3148, %v3135
    %v4514 = vpack.c.b16 %v3149, %v3136
    %v4515 = vpack.c.b16 %v3150, %v3137
    %v4516 = vpack.c.b16 %v3151, %v3138
    %v4517 = vpack.c.b16 %v3152, %v3139
    %v4518 = vpack.c.b16 %v3153, %v3140
    %v4519 = vpack.c.b16 %v3154, %v3141
    %v4520 = vpack.c.b16 %v3155, %v3142
    %v4521 = vpack.c.b16 %v3169, %v3156
    %v4522 = vpack.c.b16 %v3170, %v3157
    %v4523 = vpack.c.b16 %v3171, %v3158
    %v4524 = vpack.c.b16 %v3172, %v3159
    %v4525 = vpack.c.b16 %v3173, %v3160
    %v4526 = vpack.c.b16 %v3174, %v3161
    %v4527 = vpack.c.b16 %v3175, %v3162
    %v4528 = vpack.c.b16 %v3176, %v3163
    %v4529 = vpack.c.b16 %v3177, %v3164
    %v4530 = vpack.c.b16 %v3178, %v3165
    %v4531 = vpack.c.b16 %v3179, %v3166
    %v4532 = vpack.c.b16 %v3180, %v3167
    %v4533 = vpack.c.b16 %v3181, %v3168
    %v4534 = vpack.c.b16 %v3195, %v3182
    %v4535 = vpack.c.b16 %v3196, %v3183
    %v4536 = vpack.c.b16 %v3197, %v3184
    %v4537 = vpack.c.b16 %v3198, %v3185
    %v4538 = vpack.c.b16 %v3199, %v3186
    %v4539 = vpack.c.b16 %v3200, %v3187
    %v4540 = vpack.c.b16 %v3201, %v3188
    %v4541 = vpack.c.b16 %v3202, %v3189
    %v4542 = vpack.c.b16 %v3203, %v3190
    %v4543 = vpack.c.b16 %v3204, %v3191
    %v4544 = vpack.c.b16 %v3205, %v3192
    %v4545 = vpack.c.b16 %v3206, %v3193
    %v4546 = vpack.c.b16 %v3207, %v3194
    %v4547 = vpack.c.b16 %v3221, %v3208
    %v4548 = vpack.c.b16 %v3222, %v3209
    %v4549 = vpack.c.b16 %v3223, %v3210
    %v4550 = vpack.c.b16 %v3224, %v3211
    %v4551 = vpack.c.b16 %v3225, %v3212
    %v4552 = vpack.c.b16 %v3226, %v3213
    %v4553 = vpack.c.b16 %v3227, %v3214
    %v4554 = vpack.c.b16 %v3228, %v3215
    %v4555 = vpack.c.b16 %v3229, %v3216
    %v4556 = vpack.c.b16 %v3230, %v3217
    %v4557 = vpack.c.b16 %v3231, %v3218
    %v4558 = vpack.c.b16 %v3232, %v3219
    %v4559 = vpack.c.b16 %v3233, %v3220
    %v4560 = vpack.c.b16 %v3247, %v3234
    %v4561 = vpack.c.b16 %v3248, %v3235
    %v4562 = vpack.c.b16 %v3249, %v3236
    %v4563 = vpack.c.b16 %v3250, %v3237
    %v4564 = vpack.c.b16 %v3251, %v3238
    %v4565 = vpack.c.b16 %v3252, %v3239
    %v4566 = vpack.c.b16 %v3253, %v3240
    %v4567 = vpack.c.b16 %v3254, %v3241
    %v4568 = vpack.c.b16 %v3255, %v3242
    %v4569 = vpack.c.b16 %v3256, %v3243
    %v4570 = vpack.c.b16 %v3257, %v3244
    %v4571 = vpack.c.b16 %v3258, %v3245
    %v4572 = vpack.c.b16 %v3259, %v3246
    %v4573 = vpack.c.b16 %v3273, %v3260
    %v4574 = vpack.c.b16 %v3274, %v3261
    %v4575 = vpack.c.b16 %v3275, %v3262
    %v4576 = vpack.c.b16 %v3276, %v3263
    %v4577 = vpack.c.b16 %v3277, %v3264
    %v4578 = vpack.c.b16 %v3278, %v3265
    %v4579 = vpack.c.b16 %v3279, %v3266
    %v4580 = vpack.c.b16 %v3280, %v3267
    %v4581 = vpack.c.b16 %v3281, %v3268
    %v4582 = vpack.c.b16 %v3282, %v3269
    %v4583 = vpack.c.b16 %v3283, %v3270
    %v4584 = vpack.c.b16 %v3284, %v3271
    %v4585 = vpack.c.b16 %v3285, %v3272
    %v4586 = vpack.c.b16 %v3299, %v3286
    %v4587 = vpack.c.b16 %v3300, %v3287
    %v4588 = vpack.c.b16 %v3301, %v3288
    %v4589 = vpack.c.b16 %v3302, %v3289
    %v4590 = vpack.c.b16 %v3303, %v3290
    %v4591 = vpack.c.b16 %v3304, %v3291
    %v4592 = vpack.c.b16 %v3305, %v3292
    %v4593 = vpack.c.b16 %v3306, %v3293
    %v4594 = vpack.c.b16 %v3307, %v3294
    %v4595 = vpack.c.b16 %v3308, %v3295
    %v4596 = vpack.c.b16 %v3309, %v3296
    %v4597 = vpack.c.b16 %v3310, %v3297
    %v4598 = vpack.c.b16 %v3311, %v3298
    %v4599 = vpack.c.b16 %v3325, %v3312
    %v4600 = vpack.c.b16 %v3326, %v3313
    %v4601 = vpack.c.b16 %v3327, %v3314
    %v4602 = vpack.c.b16 %v3328, %v3315
    %v4603 = vpack.c.b16 %v3329, %v3316
    %v4604 = vpack.c.b16 %v3330, %v3317
    %v4605 = vpack.c.b16 %v3331, %v3318
    %v4606 = vpack.c.b16 %v3332, %v3319
    %v4607 = vpack.c.b16 %v3333, %v3320
    %v4608 = vpack.c.b16 %v3334, %v3321
    %v4609 = vpack.c.b16 %v3335, %v3322
    %v4610 = vpack.c.b16 %v3336, %v3323
    %v4611 = vpack.c.b16 %v3337, %v3324
    %v4612 = vpack.c.b16 %v3351, %v3338
    %v4613 = vpack.c.b16 %v3352, %v3339
    %v4614 = vpack.c.b16 %v3353, %v3340
    %v4615 = vpack.c.b16 %v3354, %v3341
    %v4616 = vpack.c.b16 %v3355, %v3342
    %v4617 = vpack.c.b16 %v3356, %v3343
    %v4618 = vpack.c.b16 %v3357, %v3344
    %v4619 = vpack.c.b16 %v3358, %v3345
    %v4620 = vpack.c.b16 %v3359, %v3346
    %v4621 = vpack.c.b16 %v3360, %v3347
    %v4622 = vpack.c.b16 %v3361, %v3348
    %v4623 = vpack.c.b16 %v3362, %v3349
    %v4624 = vpack.c.b16 %v3363, %v3350
    %v4625 = vpack.c.b16 %v3377, %v3364
    %v4626 = vpack.c.b16 %v3378, %v3365
    %v4627 = vpack.c.b16 %v3379, %v3366
    %v4628 = vpack.c.b16 %v3380, %v3367
    %v4629 = vpack.c.b16 %v3381, %v3368
    %v4630 = vpack.c.b16 %v3382, %v3369
    %v4631 = vpack.c.b16 %v3383, %v3370
    %v4632 = vpack.c.b16 %v3384, %v3371
    %v4633 = vpack.c.b16 %v3385, %v3372
    %v4634 = vpack.c.b16 %v3386, %v3373
    %v4635 = vpack.c.b16 %v3387, %v3374
    %v4636 = vpack.c.b16 %v3388, %v3375
    %v4637 = vpack.c.b16 %v3389, %v3376
    %v4638 = vpack.c.b16 %v3403, %v3390
    %v4639 = vpack.c.b16 %v3404, %v3391
    %v4640 = vpack.c.b16 %v3405, %v3392
    %v4641 = vpack.c.b16 %v3406, %v3393
    %v4642 = vpack.c.b16 %v3407, %v3394
    %v4643 = vpack.c.b16 %v3408, %v3395
    %v4644 = vpack.c.b16 %v3409, %v3396
    %v4645 = vpack.c.b16 %v3410, %v3397
    %v4646 = vpack.c.b16 %v3411, %v3398
    %v4647 = vpack.c.b16 %v3412, %v3399
    %v4648 = vpack.c.b16 %v3413, %v3400
    %v4649 = vpack.c.b16 %v3414, %v3401
    %v4650 = vpack.c.b16 %v3415, %v3402
    %v4651 = vpack.c.b16 %v3429, %v3416
    %v4652 = vpack.c.b16 %v3430, %v3417
    %v4653 = vpack.c.b16 %v3431, %v3418
    %v4654 = vpack.c.b16 %v3432, %v3419
    %v4655 = vpack.c.b16 %v3433, %v3420
    %v4656 = vpack.c.b16 %v3434, %v3421
    %v4657 = vpack.c.b16 %v3435, %v3422
    %v4658 = vpack.c.b16 %v3436, %v3423
    %v4659 = vpack.c.b16 %v3437, %v3424
    %v4660 = vpack.c.b16 %v3438, %v3425
    %v4661 = vpack.c.b16 %v3439, %v3426
    %v4662 = vpack.c.b16 %v3440, %v3427
    %v4663 = vpack.c.b16 %v3441, %v3428
    %v4664 = vpack.c.b16 %v3455, %v3442
    %v4665 = vpack.c.b16 %v3456, %v3443
    %v4666 = vpack.c.b16 %v3457, %v3444
    %v4667 = vpack.c.b16 %v3458, %v3445
    %v4668 = vpack.c.b16 %v3459, %v3446
    %v4669 = vpack.c.b16 %v3460, %v3447
    %v4670 = vpack.c.b16 %v3461, %v3448
    %v4671 = vpack.c.b16 %v3462, %v3449
    %v4672 = vpack.c.b16 %v3463, %v3450
    %v4673 = vpack.c.b16 %v3464, %v3451
    %v4674 = vpack.c.b16 %v3465, %v3452
    %v4675 = vpack.c.b16 %v3466, %v3453
    %v4676 = vpack.c.b16 %v3467, %v3454
    %v4677 = vpack.c.b16 %v3481, %v3468
    %v4678 = vpack.c.b16 %v3482, %v3469
    %v4679 = vpack.c.b16 %v3483, %v3470
    %v4680 = vpack.c.b16 %v3484, %v3471
    %v4681 = vpack.c.b16 %v3485, %v3472
    %v4682 = vpack.c.b16 %v3486, %v3473
    %v4683 = vpack.c.b16 %v3487, %v3474
    %v4684 = vpack.c.b16 %v3488, %v3475
    %v4685 = vpack.c.b16 %v3489, %v3476
    %v4686 = vpack.c.b16 %v3490, %v3477
    %v4687 = vpack.c.b16 %v3491, %v3478
    %v4688 = vpack.c.b16 %v3492, %v3479
    %v4689 = vpack.c.b16 %v3493, %v3480
    %v4690 = vpack.c.b16 %v3507, %v3494
    %v4691 = vpack.c.b16 %v3508, %v3495
    %v4692 = vpack.c.b16 %v3509, %v3496
    %v4693 = vpack.c.b16 %v3510, %v3497
    %v4694 = vpack.c.b16 %v3511, %v3498
    %v4695 = vpack.c.b16 %v3512, %v3499
    %v4696 = vpack.c.b16 %v3513, %v3500
    %v4697 = vpack.c.b16 %v3514, %v3501
    %v4698 = vpack.c.b16 %v3515, %v3502
    %v4699 = vpack.c.b16 %v3516, %v3503
    %v4700 = vpack.c.b16 %v3517, %v3504
    %v4701 = vpack.c.b16 %v3518, %v3505
    %v4702 = vpack.c.b16 %v3519, %v3506
    %v4703 = vpack.c.b16 %v3533, %v3520
    %v4704 = vpack.c.b16 %v3534, %v3521
    %v4705 = vpack.c.b16 %v3535, %v3522
    %v4706 = vpack.c.b16 %v3536, %v3523
    %v4707 = vpack.c.b16 %v3537, %v3524
    %v4708 = vpack.c.b16 %v3538, %v3525
    %v4709 = vpack.c.b16 %v3539, %v3526
    %v4710 = vpack.c.b16 %v3540, %v3527
    %v4711 = vpack.c.b16 %v3541, %v3528
    %v4712 = vpack.c.b16 %v3542, %v3529
    %v4713 = vpack.c.b16 %v3543, %v3530
    %v4714 = vpack.c.b16 %v3544, %v3531
    %v4715 = vpack.c.b16 %v3545, %v3532
    %v4716 = vpack.c.b16 %v3559, %v3546
    %v4717 = vpack.c.b16 %v3560, %v3547
    %v4718 = vpack.c.b16 %v3561, %v3548
    %v4719 = vpack.c.b16 %v3562, %v3549
    %v4720 = vpack.c.b16 %v3563, %v3550
    %v4721 = vpack.c.b16 %v3564, %v3551
    %v4722 = vpack.c.b16 %v3565, %v3552
    %v4723 = vpack.c.b16 %v3566, %v3553
    %v4724 = vpack.c.b16 %v3567, %v3554
    %v4725 = vpack.c.b16 %v3568, %v3555
    %v4726 = vpack.c.b16 %v3569, %v3556
    %v4727 = vpack.c.b16 %v3570, %v3557
    %v4728 = vpack.c.b16 %v3571, %v3558
    %v4729 = vpack.c.b16 %v3585, %v3572
    %v4730 = vpack.c.b16 %v3586, %v3573
    %v4731 = vpack.c.b16 %v3587, %v3574
    %v4732 = vpack.c.b16 %v3588, %v3575
    %v4733 = vpack.c.b16 %v3589, %v3576
    %v4734 = vpack.c.b16 %v3590, %v3577
    %v4735 = vpack.c.b16 %v3591, %v3578
    %v4736 = vpack.c.b16 %v3592, %v3579
    %v4737 = vpack.c.b16 %v3593, %v3580
    %v4738 = vpack.c.b16 %v3594, %v3581
    %v4739 = vpack.c.b16 %v3595, %v3582
    %v4740 = vpack.c.b16 %v3596, %v3583
    %v4741 = vpack.c.b16 %v3597, %v3584
    %v4742 = vpack.c.b16 %v3611, %v3598
    %v4743 = vpack.c.b16 %v3612, %v3599
    %v4744 = vpack.c.b16 %v3613, %v3600
    %v4745 = vpack.c.b16 %v3614, %v3601
    %v4746 = vpack.c.b16 %v3615, %v3602
    %v4747 = vpack.c.b16 %v3616, %v3603
    %v4748 = vpack.c.b16 %v3617, %v3604
    %v4749 = vpack.c.b16 %v3618, %v3605
    %v4750 = vpack.c.b16 %v3619, %v3606
    %v4751 = vpack.c.b16 %v3620, %v3607
    %v4752 = vpack.c.b16 %v3621, %v3608
    %v4753 = vpack.c.b16 %v3622, %v3609
    %v4754 = vpack.c.b16 %v3623, %v3610
    %v4755 = vpack.c.b16 %v3637, %v3624
    %v4756 = vpack.c.b16 %v3638, %v3625
    %v4757 = vpack.c.b16 %v3639, %v3626
    %v4758 = vpack.c.b16 %v3640, %v3627
    %v4759 = vpack.c.b16 %v3641, %v3628
    %v4760 = vpack.c.b16 %v3642, %v3629
    %v4761 = vpack.c.b16 %v3643, %v3630
    %v4762 = vpack.c.b16 %v3644, %v3631
    %v4763 = vpack.c.b16 %v3645, %v3632
    %v4764 = vpack.c.b16 %v3646, %v3633
    %v4765 = vpack.c.b16 %v3647, %v3634
    %v4766 = vpack.c.b16 %v3648, %v3635
    %v4767 = vpack.c.b16 %v3649, %v3636
    %v4768 = vpack.c.b16 %v3663, %v3650
    %v4769 = vpack.c.b16 %v3664, %v3651
    %v4770 = vpack.c.b16 %v3665, %v3652
    %v4771 = vpack.c.b16 %v3666, %v3653
    %v4772 = vpack.c.b16 %v3667, %v3654
    %v4773 = vpack.c.b16 %v3668, %v3655
    %v4774 = vpack.c.b16 %v3669, %v3656
    %v4775 = vpack.c.b16 %v3670, %v3657
    %v4776 = vpack.c.b16 %v3671, %v3658
    %v4777 = vpack.c.b16 %v3672, %v3659
    %v4778 = vpack.c.b16 %v3673, %v3660
    %v4779 = vpack.c.b16 %v3674, %v3661
    %v4780 = vpack.c.b16 %v3675, %v3662
    %v4781 = vpack.c.b16 %v3689, %v3676
    %v4782 = vpack.c.b16 %v3690, %v3677
    %v4783 = vpack.c.b16 %v3691, %v3678
    %v4784 = vpack.c.b16 %v3692, %v3679
    %v4785 = vpack.c.b16 %v3693, %v3680
    %v4786 = vpack.c.b16 %v3694, %v3681
    %v4787 = vpack.c.b16 %v3695, %v3682
    %v4788 = vpack.c.b16 %v3696, %v3683
    %v4789 = vpack.c.b16 %v3697, %v3684
    %v4790 = vpack.c.b16 %v3698, %v3685
    %v4791 = vpack.c.b16 %v3699, %v3686
    %v4792 = vpack.c.b16 %v3700, %v3687
    %v4793 = vpack.c.b16 %v3701, %v3688
    %v4794 = vpack.c.b16 %v3715, %v3702
    %v4795 = vpack.c.b16 %v3716, %v3703
    %v4796 = vpack.c.b16 %v3717, %v3704
    %v4797 = vpack.c.b16 %v3718, %v3705
    %v4798 = vpack.c.b16 %v3719, %v3706
    %v4799 = vpack.c.b16 %v3720, %v3707
    %v4800 = vpack.c.b16 %v3721, %v3708
    %v4801 = vpack.c.b16 %v3722, %v3709
    %v4802 = vpack.c.b16 %v3723, %v3710
    %v4803 = vpack.c.b16 %v3724, %v3711
    %v4804 = vpack.c.b16 %v3725, %v3712
    %v4805 = vpack.c.b16 %v3726, %v3713
    %v4806 = vpack.c.b16 %v3727, %v3714
    %v4807 = vpack.c.b16 %v3741, %v3728
    %v4808 = vpack.c.b16 %v3742, %v3729
    %v4809 = vpack.c.b16 %v3743, %v3730
    %v4810 = vpack.c.b16 %v3744, %v3731
    %v4811 = vpack.c.b16 %v3745, %v3732
    %v4812 = vpack.c.b16 %v3746, %v3733
    %v4813 = vpack.c.b16 %v3747, %v3734
    %v4814 = vpack.c.b16 %v3748, %v3735
    %v4815 = vpack.c.b16 %v3749, %v3736
    %v4816 = vpack.c.b16 %v3750, %v3737
    %v4817 = vpack.c.b16 %v3751, %v3738
    %v4818 = vpack.c.b16 %v3752, %v3739
    %v4819 = vpack.c.b16 %v3753, %v3740
    %v4820 = vpack.c.b16 %v3767, %v3754
    %v4821 = vpack.c.b16 %v3768, %v3755
    %v4822 = vpack.c.b16 %v3769, %v3756
    %v4823 = vpack.c.b16 %v3770, %v3757
    %v4824 = vpack.c.b16 %v3771, %v3758
    %v4825 = vpack.c.b16 %v3772, %v3759
    %v4826 = vpack.c.b16 %v3773, %v3760
    %v4827 = vpack.c.b16 %v3774, %v3761
    %v4828 = vpack.c.b16 %v3775, %v3762
    %v4829 = vpack.c.b16 %v3776, %v3763
    %v4830 = vpack.c.b16 %v3777, %v3764
    %v4831 = vpack.c.b16 %v3778, %v3765
    %v4832 = vpack.c.b16 %v3779, %v3766
    %v4833 = vpack.c.b16 %v3793, %v3780
    %v4834 = vpack.c.b16 %v3794, %v3781
    %v4835 = vpack.c.b16 %v3795, %v3782
    %v4836 = vpack.c.b16 %v3796, %v3783
    %v4837 = vpack.c.b16 %v3797, %v3784
    %v4838 = vpack.c.b16 %v3798, %v3785
    %v4839 = vpack.c.b16 %v3799, %v3786
    %v4840 = vpack.c.b16 %v3800, %v3787
    %v4841 = vpack.c.b16 %v3801, %v3788
    %v4842 = vpack.c.b16 %v3802, %v3789
    %v4843 = vpack.c.b16 %v3803, %v3790
    %v4844 = vpack.c.b16 %v3804, %v3791
    %v4845 = vpack.c.b16 %v3805, %v3792
    %v4846 = vpack.c.b16 %v3819, %v3806
    %v4847 = vpack.c.b16 %v3820, %v3807
    %v4848 = vpack.c.b16 %v3821, %v3808
    %v4849 = vpack.c.b16 %v3822, %v3809
    %v4850 = vpack.c.b16 %v3823, %v3810
    %v4851 = vpack.c.b16 %v3824, %v3811
    %v4852 = vpack.c.b16 %v3825, %v3812
    %v4853 = vpack.c.b16 %v3826, %v3813
    %v4854 = vpack.c.b16 %v3827, %v3814
    %v4855 = vpack.c.b16 %v3828, %v3815
    %v4856 = vpack.c.b16 %v3829, %v3816
    %v4857 = vpack.c.b16 %v3830, %v3817
    %v4858 = vpack.c.b16 %v3831, %v3818
    %v4859 = vpack.c.b16 %v3845, %v3832
    %v4860 = vpack.c.b16 %v3846, %v3833
    %v4861 = vpack.c.b16 %v3847, %v3834
    %v4862 = vpack.c.b16 %v3848, %v3835
    %v4863 = vpack.c.b16 %v3849, %v3836
    %v4864 = vpack.c.b16 %v3850, %v3837
    %v4865 = vpack.c.b16 %v3851, %v3838
    %v4866 = vpack.c.b16 %v3852, %v3839
    %v4867 = vpack.c.b16 %v3853, %v3840
    %v4868 = vpack.c.b16 %v3854, %v3841
    %v4869 = vpack.c.b16 %v3855, %v3842
    %v4870 = vpack.c.b16 %v3856, %v3843
    %v4871 = vpack.c.b16 %v3857, %v3844
    %v4872 = vpack.c.b16 %v3871, %v3858
    %v4873 = vpack.c.b16 %v3872, %v3859
    %v4874 = vpack.c.b16 %v3873, %v3860
    %v4875 = vpack.c.b16 %v3874, %v3861
    %v4876 = vpack.c.b16 %v3875, %v3862
    %v4877 = vpack.c.b16 %v3876, %v3863
    %v4878 = vpack.c.b16 %v3877, %v3864
    %v4879 = vpack.c.b16 %v3878, %v3865
    %v4880 = vpack.c.b16 %v3879, %v3866
    %v4881 = vpack.c.b16 %v3880, %v3867
    %v4882 = vpack.c.b16 %v3881, %v3868
    %v4883 = vpack.c.b16 %v3882, %v3869
    %v4884 = vpack.c.b16 %v3883, %v3870
    %v4885 = vpack.c.b16 %v3897, %v3884
    %v4886 = vpack.c.b16 %v3898, %v3885
    %v4887 = vpack.c.b16 %v3899, %v3886
    %v4888 = vpack.c.b16 %v3900, %v3887
    %v4889 = vpack.c.b16 %v3901, %v3888
    %v4890 = vpack.c.b16 %v3902, %v3889
    %v4891 = vpack.c.b16 %v3903, %v3890
    %v4892 = vpack.c.b16 %v3904, %v3891
    %v4893 = vpack.c.b16 %v3905, %v3892
    %v4894 = vpack.c.b16 %v3906, %v3893
    %v4895 = vpack.c.b16 %v3907, %v3894
    %v4896 = vpack.c.b16 %v3908, %v3895
    %v4897 = vpack.c.b16 %v3909, %v3896
    %v4898 = vpack.c.b16 %v3923, %v3910
    %v4899 = vpack.c.b16 %v3924, %v3911
    %v4900 = vpack.c.b16 %v3925, %v3912
    %v4901 = vpack.c.b16 %v3926, %v3913
    %v4902 = vpack.c.b16 %v3927, %v3914
    %v4903 = vpack.c.b16 %v3928, %v3915
    %v4904 = vpack.c.b16 %v3929, %v3916
    %v4905 = vpack.c.b16 %v3930, %v3917
    %v4906 = vpack.c.b16 %v3931, %v3918
    %v4907 = vpack.c.b16 %v3932, %v3919
    %v4908 = vpack.c.b16 %v3933, %v3920
    %v4909 = vpack.c.b16 %v3934, %v3921
    %v4910 = vpack.c.b16 %v3935, %v3922
    %v4911 = vpack.c.b16 %v3949, %v3936
    %v4912 = vpack.c.b16 %v3950, %v3937
    %v4913 = vpack.c.b16 %v3951, %v3938
    %v4914 = vpack.c.b16 %v3952, %v3939
    %v4915 = vpack.c.b16 %v3953, %v3940
    %v4916 = vpack.c.b16 %v3954, %v3941
    %v4917 = vpack.c.b16 %v3955, %v3942
    %v4918 = vpack.c.b16 %v3956, %v3943
    %v4919 = vpack.c.b16 %v3957, %v3944
    %v4920 = vpack.c.b16 %v3958, %v3945
    %v4921 = vpack.c.b16 %v3959, %v3946
    %v4922 = vpack.c.b16 %v3960, %v3947
    %v4923 = vpack.c.b16 %v3961, %v3948
    %v4924 = vpack.c.b16 %v3975, %v3962
    %v4925 = vpack.c.b16 %v3976, %v3963
    %v4926 = vpack.c.b16 %v3977, %v3964
    %v4927 = vpack.c.b16 %v3978, %v3965
    %v4928 = vpack.c.b16 %v3979, %v3966
    %v4929 = vpack.c.b16 %v3980, %v3967
    %v4930 = vpack.c.b16 %v3981, %v3968
    %v4931 = vpack.c.b16 %v3982, %v3969
    %v4932 = vpack.c.b16 %v3983, %v3970
    %v4933 = vpack.c.b16 %v3984, %v3971
    %v4934 = vpack.c.b16 %v3985, %v3972
    %v4935 = vpack.c.b16 %v3986, %v3973
    %v4936 = vpack.c.b16 %v3987, %v3974
    %v4937 = vpack.c.b16 %v4001, %v3988
    %v4938 = vpack.c.b16 %v4002, %v3989
    %v4939 = vpack.c.b16 %v4003, %v3990
    %v4940 = vpack.c.b16 %v4004, %v3991
    %v4941 = vpack.c.b16 %v4005, %v3992
    %v4942 = vpack.c.b16 %v4006, %v3993
    %v4943 = vpack.c.b16 %v4007, %v3994
    %v4944 = vpack.c.b16 %v4008, %v3995
    %v4945 = vpack.c.b16 %v4009, %v3996
    %v4946 = vpack.c.b16 %v4010, %v3997
    %v4947 = vpack.c.b16 %v4011, %v3998
    %v4948 = vpack.c.b16 %v4012, %v3999
    %v4949 = vpack.c.b16 %v4013, %v4000
    %v4950 = vpack.c.b16 %v4027, %v4014
    %v4951 = vpack.c.b16 %v4028, %v4015
    %v4952 = vpack.c.b16 %v4029, %v4016
    %v4953 = vpack.c.b16 %v4030, %v4017
    %v4954 = vpack.c.b16 %v4031, %v4018
    %v4955 = vpack.c.b16 %v4032, %v4019
    %v4956 = vpack.c.b16 %v4033, %v4020
    %v4957 = vpack.c.b16 %v4034, %v4021
    %v4958 = vpack.c.b16 %v4035, %v4022
    %v4959 = vpack.c.b16 %v4036, %v4023
    %v4960 = vpack.c.b16 %v4037, %v4024
    %v4961 = vpack.c.b16 %v4038, %v4025
    %v4962 = vpack.c.b16 %v4039, %v4026
    %v4963 = vpack.c.b16 %v4053, %v4040
    %v4964 = vpack.c.b16 %v4054, %v4041
    %v4965 = vpack.c.b16 %v4055, %v4042
    %v4966 = vpack.c.b16 %v4056, %v4043
    %v4967 = vpack.c.b16 %v4057, %v4044
    %v4968 = vpack.c.b16 %v4058, %v4045
    %v4969 = vpack.c.b16 %v4059, %v4046
    %v4970 = vpack.c.b16 %v4060, %v4047
    %v4971 = vpack.c.b16 %v4061, %v4048
    %v4972 = vpack.c.b16 %v4062, %v4049
    %v4973 = vpack.c.b16 %v4063, %v4050
    %v4974 = vpack.c.b16 %v4064, %v4051
    %v4975 = vpack.c.b16 %v4065, %v4052
    %v4976 = vpack.c.b16 %v4079, %v4066
    %v4977 = vpack.c.b16 %v4080, %v4067
    %v4978 = vpack.c.b16 %v4081, %v4068
    %v4979 = vpack.c.b16 %v4082, %v4069
    %v4980 = vpack.c.b16 %v4083, %v4070
    %v4981 = vpack.c.b16 %v4084, %v4071
    %v4982 = vpack.c.b16 %v4085, %v4072
    %v4983 = vpack.c.b16 %v4086, %v4073
    %v4984 = vpack.c.b16 %v4087, %v4074
    %v4985 = vpack.c.b16 %v4088, %v4075
    %v4986 = vpack.c.b16 %v4089, %v4076
    %v4987 = vpack.c.b16 %v4090, %v4077
    %v4988 = vpack.c.b16 %v4091, %v4078
    %v4989 = vpack.c.b16 %v4105, %v4092
    %v4990 = vpack.c.b16 %v4106, %v4093
    %v4991 = vpack.c.b16 %v4107, %v4094
    %v4992 = vpack.c.b16 %v4108, %v4095
    %v4993 = vpack.c.b16 %v4109, %v4096
    %v4994 = vpack.c.b16 %v4110, %v4097
    %v4995 = vpack.c.b16 %v4111, %v4098
    %v4996 = vpack.c.b16 %v4112, %v4099
    %v4997 = vpack.c.b16 %v4113, %v4100
    %v4998 = vpack.c.b16 %v4114, %v4101
    %v4999 = vpack.c.b16 %v4115, %v4102
    %v5000 = vpack.c.b16 %v4116, %v4103
    %v5001 = vpack.c.b16 %v4117, %v4104
    %v5002 = vpack.c.b16 %v4131, %v4118
    %v5003 = vpack.c.b16 %v4132, %v4119
    %v5004 = vpack.c.b16 %v4133, %v4120
    %v5005 = vpack.c.b16 %v4134, %v4121
    %v5006 = vpack.c.b16 %v4135, %v4122
    %v5007 = vpack.c.b16 %v4136, %v4123
    %v5008 = vpack.c.b16 %v4137, %v4124
    %v5009 = vpack.c.b16 %v4138, %v4125
    %v5010 = vpack.c.b16 %v4139, %v4126
    %v5011 = vpack.c.b16 %v4140, %v4127
    %v5012 = vpack.c.b16 %v4141, %v4128
    %v5013 = vpack.c.b16 %v4142, %v4129
    %v5014 = vpack.c.b16 %v4143, %v4130
    %v5015 = vpack.c.b16 %v4157, %v4144
    %v5016 = vpack.c.b16 %v4158, %v4145
    %v5017 = vpack.c.b16 %v4159, %v4146
    %v5018 = vpack.c.b16 %v4160, %v4147
    %v5019 = vpack.c.b16 %v4161, %v4148
    %v5020 = vpack.c.b16 %v4162, %v4149
    %v5021 = vpack.c.b16 %v4163, %v4150
    %v5022 = vpack.c.b16 %v4164, %v4151
    %v5023 = vpack.c.b16 %v4165, %v4152
    %v5024 = vpack.c.b16 %v4166, %v4153
    %v5025 = vpack.c.b16 %v4167, %v4154
    %v5026 = vpack.c.b16 %v4168, %v4155
    %v5027 = vpack.c.b16 %v4169, %v4156
    %v5028 = vpack.c.b16 %v4183, %v4170
    %v5029 = vpack.c.b16 %v4184, %v4171
    %v5030 = vpack.c.b16 %v4185, %v4172
    %v5031 = vpack.c.b16 %v4186, %v4173
    %v5032 = vpack.c.b16 %v4187, %v4174
    %v5033 = vpack.c.b16 %v4188, %v4175
    %v5034 = vpack.c.b16 %v4189, %v4176
    %v5035 = vpack.c.b16 %v4190, %v4177
    %v5036 = vpack.c.b16 %v4191, %v4178
    %v5037 = vpack.c.b16 %v4192, %v4179
    %v5038 = vpack.c.b16 %v4193, %v4180
    %v5039 = vpack.c.b16 %v4194, %v4181
    %v5040 = vpack.c.b16 %v4195, %v4182
    %v5041 = vpack.c.b16 %v4209, %v4196
    %v5042 = vpack.c.b16 %v4210, %v4197
    %v5043 = vpack.c.b16 %v4211, %v4198
    %v5044 = vpack.c.b16 %v4212, %v4199
    %v5045 = vpack.c.b16 %v4213, %v4200
    %v5046 = vpack.c.b16 %v4214, %v4201
    %v5047 = vpack.c.b16 %v4215, %v4202
    %v5048 = vpack.c.b16 %v4216, %v4203
    %v5049 = vpack.c.b16 %v4217, %v4204
    %v5050 = vpack.c.b16 %v4218, %v4205
    %v5051 = vpack.c.b16 %v4219, %v4206
    %v5052 = vpack.c.b16 %v4220, %v4207
    %v5053 = vpack.c.b16 %v4221, %v4208
    %5886 = vmatprep.subr.bf16.mxu0 %v4223
    %5887 = vmatpush1.bf16.msra.mxu0 %v4222
    %5888 = vmatprep.subr.bf16.mxu0 %v4236
    %5889 = vmatpush1.bf16.msra.mxu0 %v4235
    %5890 = vmatprep.subr.bf16.mxu0 %v4249
    %5891 = vmatpush1.bf16.msra.mxu0 %v4248
    %5892 = vmatprep.subr.bf16.mxu0 %v4262
    %5893 = vmatpush1.bf16.msra.mxu0 %v4261
    %5894 = vmatprep.subr.bf16.mxu0 %v4275
    %5895 = vmatpush1.bf16.msra.mxu0 %v4274
    %5896 = vmatprep.subr.bf16.mxu0 %v4288
    %5897 = vmatpush1.bf16.msra.mxu0 %v4287
    %5898 = vmatprep.subr.bf16.mxu0 %v4301
    %5899 = vmatpush1.bf16.msra.mxu0 %v4300
    %5900 = vmatprep.subr.bf16.mxu0 %v4314
    %5901 = vmatpush1.bf16.msra.mxu0 %v4313
    %5902 = vmatprep.subr.bf16.mxu0 %v4327
    %5903 = vmatpush1.bf16.msra.mxu0 %v4326
    %5904 = vmatprep.subr.bf16.mxu0 %v4340
    %5905 = vmatpush1.bf16.msra.mxu0 %v4339
    %5906 = vmatprep.subr.bf16.mxu0 %v4353
    %5907 = vmatpush1.bf16.msra.mxu0 %v4352
    %5908 = vmatprep.subr.bf16.mxu0 %v4366
    %5909 = vmatpush1.bf16.msra.mxu0 %v4365
    %5910 = vmatprep.subr.bf16.mxu0 %v4379
    %5911 = vmatpush1.bf16.msra.mxu0 %v4378
    %5912 = vmatprep.subr.bf16.mxu0 %v4392
    %5913 = vmatpush1.bf16.msra.mxu0 %v4391
    %5914 = vmatprep.subr.bf16.mxu0 %v4405
    %5915 = vmatpush1.bf16.msra.mxu0 %v4404
    %5916 = vmatprep.subr.bf16.mxu0 %v4418
    %5917 = vmatpush1.bf16.msra.mxu0 %v4417
    %5918 = vmatprep.mubr.bf16.mxu0 %v759
    %5919 = vmatmul.mubr.bf16.gmra.mrb[0].mxu0 %v758
    %v5920 = vpop.f32.mrb[0].mxu0
    %v5921 = vadd.f32 0.0, %v5920
    %v5922 = vpop.f32.mrb[0].mxu0
    %v5923 = vadd.f32 0.0, %v5922
    %v5924 = vpop.f32.mrb[0].mxu0
    %v5925 = vpop.f32.mrb[0].mxu0
    %5926 = vdwg.mxu0
    %5927 = vmatprep.subr.bf16.mxu0 %v4431
    %5928 = vmatpush1.bf16.msra.mxu0 %v4430
    %5929 = vmatprep.subr.bf16.mxu0 %v4444
    %5930 = vmatpush1.bf16.msra.mxu0 %v4443
    %5931 = vmatprep.subr.bf16.mxu0 %v4457
    %5932 = vmatpush1.bf16.msra.mxu0 %v4456
    %5933 = vmatprep.subr.bf16.mxu0 %v4470
    %5934 = vmatpush1.bf16.msra.mxu0 %v4469
    %5935 = vmatprep.subr.bf16.mxu0 %v4483
    %5936 = vmatpush1.bf16.msra.mxu0 %v4482
    %5937 = vmatprep.subr.bf16.mxu0 %v4496
    %5938 = vmatpush1.bf16.msra.mxu0 %v4495
    %5939 = vmatprep.subr.bf16.mxu0 %v4509
    %5940 = vmatpush1.bf16.msra.mxu0 %v4508
    %5941 = vmatprep.subr.bf16.mxu0 %v4522
    %5942 = vmatpush1.bf16.msra.mxu0 %v4521
    %5943 = vmatprep.subr.bf16.mxu0 %v4535
    %5944 = vmatpush1.bf16.msra.mxu0 %v4534
    %5945 = vmatprep.subr.bf16.mxu0 %v4548
    %5946 = vmatpush1.bf16.msra.mxu0 %v4547
    %5947 = vmatprep.subr.bf16.mxu0 %v4561
    %5948 = vmatpush1.bf16.msra.mxu0 %v4560
    %5949 = vmatprep.subr.bf16.mxu0 %v4574
    %5950 = vmatpush1.bf16.msra.mxu0 %v4573
    %5951 = vmatprep.subr.bf16.mxu0 %v4587
    %5952 = vmatpush1.bf16.msra.mxu0 %v4586
    %5953 = vmatprep.subr.bf16.mxu0 %v4600
    %5954 = vmatpush1.bf16.msra.mxu0 %v4599
    %5955 = vmatprep.subr.bf16.mxu0 %v4613
    %5956 = vmatpush1.bf16.msra.mxu0 %v4612
    %5957 = vmatprep.subr.bf16.mxu0 %v4626
    %5958 = vmatpush1.bf16.msra.mxu0 %v4625
    %5959 = vmatprep.mubr.bf16.mxu0 %v761
    %5960 = vmatmul.mubr.bf16.gmra.mrb[0].mxu0 %v760
    %v5961 = vpop.f32.mrb[0].mxu0
    %v5962 = vadd.f32 %v5921, %v5961
    %v5963 = vpop.f32.mrb[0].mxu0
    %v5964 = vadd.f32 %v5923, %v5963
    %v5965 = vpop.f32.mrb[0].mxu0
    %v5966 = vpop.f32.mrb[0].mxu0
    %5967 = vdwg.mxu0
    %5968 = vmatprep.subr.bf16.mxu0 %v4639
    %5969 = vmatpush1.bf16.msra.mxu0 %v4638
    %5970 = vmatprep.subr.bf16.mxu0 %v4652
    %5971 = vmatpush1.bf16.msra.mxu0 %v4651
    %5972 = vmatprep.subr.bf16.mxu0 %v4665
    %5973 = vmatpush1.bf16.msra.mxu0 %v4664
    %5974 = vmatprep.subr.bf16.mxu0 %v4678
    %5975 = vmatpush1.bf16.msra.mxu0 %v4677
    %5976 = vmatprep.subr.bf16.mxu0 %v4691
    %5977 = vmatpush1.bf16.msra.mxu0 %v4690
    %5978 = vmatprep.subr.bf16.mxu0 %v4704
    %5979 = vmatpush1.bf16.msra.mxu0 %v4703
    %5980 = vmatprep.subr.bf16.mxu0 %v4717
    %5981 = vmatpush1.bf16.msra.mxu0 %v4716
    %5982 = vmatprep.subr.bf16.mxu0 %v4730
    %5983 = vmatpush1.bf16.msra.mxu0 %v4729
    %5984 = vmatprep.subr.bf16.mxu0 %v4743
    %5985 = vmatpush1.bf16.msra.mxu0 %v4742
    %5986 = vmatprep.subr.bf16.mxu0 %v4756
    %5987 = vmatpush1.bf16.msra.mxu0 %v4755
    %5988 = vmatprep.subr.bf16.mxu0 %v4769
    %5989 = vmatpush1.bf16.msra.mxu0 %v4768
    %5990 = vmatprep.subr.bf16.mxu0 %v4782
    %5991 = vmatpush1.bf16.msra.mxu0 %v4781
    %5992 = vmatprep.subr.bf16.mxu0 %v4795
    %5993 = vmatpush1.bf16.msra.mxu0 %v4794
    %5994 = vmatprep.subr.bf16.mxu0 %v4808
    %5995 = vmatpush1.bf16.msra.mxu0 %v4807
    %5996 = vmatprep.subr.bf16.mxu0 %v4821
    %5997 = vmatpush1.bf16.msra.mxu0 %v4820
    %5998 = vmatprep.subr.bf16.mxu0 %v4834
    %5999 = vmatpush1.bf16.msra.mxu0 %v4833
    %6000 = vmatprep.mubr.bf16.mxu0 %v763
    %6001 = vmatmul.mubr.bf16.gmra.mrb[0].mxu0 %v762
    %v6002 = vpop.f32.mrb[0].mxu0
    %v6003 = vadd.f32 %v5962, %v6002
    %v6004 = vpop.f32.mrb[0].mxu0
    %v6005 = vadd.f32 %v5964, %v6004
    %v6006 = vpop.f32.mrb[0].mxu0
    %v6007 = vpop.f32.mrb[0].mxu0
    %6008 = vdwg.mxu0
    %6009 = vmatprep.subr.bf16.mxu0 %v4847
    %6010 = vmatpush1.bf16.msra.mxu0 %v4846
    %6011 = vmatprep.subr.bf16.mxu0 %v4860
    %6012 = vmatpush1.bf16.msra.mxu0 %v4859
    %6013 = vmatprep.subr.bf16.mxu0 %v4873
    %6014 = vmatpush1.bf16.msra.mxu0 %v4872
    %6015 = vmatprep.subr.bf16.mxu0 %v4886
    %6016 = vmatpush1.bf16.msra.mxu0 %v4885
    %6017 = vmatprep.subr.bf16.mxu0 %v4899
    %6018 = vmatpush1.bf16.msra.mxu0 %v4898
    %6019 = vmatprep.subr.bf16.mxu0 %v4912
    %6020 = vmatpush1.bf16.msra.mxu0 %v4911
    %6021 = vmatprep.subr.bf16.mxu0 %v4925
    %6022 = vmatpush1.bf16.msra.mxu0 %v4924
    %6023 = vmatprep.subr.bf16.mxu0 %v4938
    %6024 = vmatpush1.bf16.msra.mxu0 %v4937
    %6025 = vmatprep.subr.bf16.mxu0 %v4951
    %6026 = vmatpush1.bf16.msra.mxu0 %v4950
    %6027 = vmatprep.subr.bf16.mxu0 %v4964
    %6028 = vmatpush1.bf16.msra.mxu0 %v4963
    %6029 = vmatprep.subr.bf16.mxu0 %v4977
    %6030 = vmatpush1.bf16.msra.mxu0 %v4976
    %6031 = vmatprep.subr.bf16.mxu0 %v4990
    %6032 = vmatpush1.bf16.msra.mxu0 %v4989
    %6033 = vmatprep.subr.bf16.mxu0 %v5003
    %6034 = vmatpush1.bf16.msra.mxu0 %v5002
    %6035 = vmatprep.subr.bf16.mxu0 %v5016
    %6036 = vmatpush1.bf16.msra.mxu0 %v5015
    %6037 = vmatprep.subr.bf16.mxu0 %v5029
    %6038 = vmatpush1.bf16.msra.mxu0 %v5028
    %6039 = vmatprep.subr.bf16.mxu0 %v5042
    %6040 = vmatpush1.bf16.msra.mxu0 %v5041
    %6041 = vmatprep.mubr.bf16.mxu0 %v765
    %6042 = vmatmul.mubr.bf16.gmra.mrb[0].mxu0 %v764
    %v6043 = vpop.f32.mrb[0].mxu0
    %v6044 = vadd.f32 %v6003, %v6043
    %v6045 = vpop.f32.mrb[0].mxu0
    %v6046 = vadd.f32 %v6005, %v6045
    %v6047 = vpop.f32.mrb[0].mxu0
    %v6048 = vpop.f32.mrb[0].mxu0
    %6049 = vdwg.mxu0
    %6050 = vmatprep.subr.bf16.mxu0 %v4225
    %6051 = vmatpush1.bf16.msra.mxu0 %v4224
    %6052 = vmatprep.subr.bf16.mxu0 %v4238
    %6053 = vmatpush1.bf16.msra.mxu0 %v4237
    %6054 = vmatprep.subr.bf16.mxu0 %v4251
    %6055 = vmatpush1.bf16.msra.mxu0 %v4250
    %6056 = vmatprep.subr.bf16.mxu0 %v4264
    %6057 = vmatpush1.bf16.msra.mxu0 %v4263
    %6058 = vmatprep.subr.bf16.mxu0 %v4277
    %6059 = vmatpush1.bf16.msra.mxu0 %v4276
    %6060 = vmatprep.subr.bf16.mxu0 %v4290
    %6061 = vmatpush1.bf16.msra.mxu0 %v4289
    %6062 = vmatprep.subr.bf16.mxu0 %v4303
    %6063 = vmatpush1.bf16.msra.mxu0 %v4302
    %6064 = vmatprep.subr.bf16.mxu0 %v4316
    %6065 = vmatpush1.bf16.msra.mxu0 %v4315
    %6066 = vmatprep.subr.bf16.mxu0 %v4329
    %6067 = vmatpush1.bf16.msra.mxu0 %v4328
    %6068 = vmatprep.subr.bf16.mxu0 %v4342
    %6069 = vmatpush1.bf16.msra.mxu0 %v4341
    %6070 = vmatprep.subr.bf16.mxu0 %v4355
    %6071 = vmatpush1.bf16.msra.mxu0 %v4354
    %6072 = vmatprep.subr.bf16.mxu0 %v4368
    %6073 = vmatpush1.bf16.msra.mxu0 %v4367
    %6074 = vmatprep.subr.bf16.mxu0 %v4381
    %6075 = vmatpush1.bf16.msra.mxu0 %v4380
    %6076 = vmatprep.subr.bf16.mxu0 %v4394
    %6077 = vmatpush1.bf16.msra.mxu0 %v4393
    %6078 = vmatprep.subr.bf16.mxu0 %v4407
    %6079 = vmatpush1.bf16.msra.mxu0 %v4406
    %6080 = vmatprep.subr.bf16.mxu0 %v4420
    %6081 = vmatpush1.bf16.msra.mxu0 %v4419
    %6082 = vmatprep.mubr.bf16.mxu0 %v759
    %6083 = vmatmul.mubr.bf16.gmra.mrb[0].mxu0 %v758
    %v6084 = vpop.f32.mrb[0].mxu0
    %v6085 = vadd.f32 0.0, %v6084
    %v6086 = vpop.f32.mrb[0].mxu0
    %v6087 = vadd.f32 0.0, %v6086
    %v6088 = vpop.f32.mrb[0].mxu0
    %v6089 = vpop.f32.mrb[0].mxu0
    %6090 = vdwg.mxu0
    %6091 = vmatprep.subr.bf16.mxu0 %v4433
    %6092 = vmatpush1.bf16.msra.mxu0 %v4432
    %6093 = vmatprep.subr.bf16.mxu0 %v4446
    %6094 = vmatpush1.bf16.msra.mxu0 %v4445
    %6095 = vmatprep.subr.bf16.mxu0 %v4459
    %6096 = vmatpush1.bf16.msra.mxu0 %v4458
    %6097 = vmatprep.subr.bf16.mxu0 %v4472
    %6098 = vmatpush1.bf16.msra.mxu0 %v4471
    %6099 = vmatprep.subr.bf16.mxu0 %v4485
    %6100 = vmatpush1.bf16.msra.mxu0 %v4484
    %6101 = vmatprep.subr.bf16.mxu0 %v4498
    %6102 = vmatpush1.bf16.msra.mxu0 %v4497
    %6103 = vmatprep.subr.bf16.mxu0 %v4511
    %6104 = vmatpush1.bf16.msra.mxu0 %v4510
    %6105 = vmatprep.subr.bf16.mxu0 %v4524
    %6106 = vmatpush1.bf16.msra.mxu0 %v4523
    %6107 = vmatprep.subr.bf16.mxu0 %v4537
    %6108 = vmatpush1.bf16.msra.mxu0 %v4536
    %6109 = vmatprep.subr.bf16.mxu0 %v4550
    %6110 = vmatpush1.bf16.msra.mxu0 %v4549
    %6111 = vmatprep.subr.bf16.mxu0 %v4563
    %6112 = vmatpush1.bf16.msra.mxu0 %v4562
    %6113 = vmatprep.subr.bf16.mxu0 %v4576
    %6114 = vmatpush1.bf16.msra.mxu0 %v4575
    %6115 = vmatprep.subr.bf16.mxu0 %v4589
    %6116 = vmatpush1.bf16.msra.mxu0 %v4588
    %6117 = vmatprep.subr.bf16.mxu0 %v4602
    %6118 = vmatpush1.bf16.msra.mxu0 %v4601
    %6119 = vmatprep.subr.bf16.mxu0 %v4615
    %6120 = vmatpush1.bf16.msra.mxu0 %v4614
    %6121 = vmatprep.subr.bf16.mxu0 %v4628
    %6122 = vmatpush1.bf16.msra.mxu0 %v4627
    %6123 = vmatprep.mubr.bf16.mxu0 %v761
    %6124 = vmatmul.mubr.bf16.gmra.mrb[0].mxu0 %v760
    %v6125 = vpop.f32.mrb[0].mxu0
    %v6126 = vadd.f32 %v6085, %v6125
    %v6127 = vpop.f32.mrb[0].mxu0
    %v6128 = vadd.f32 %v6087, %v6127
    %v6129 = vpop.f32.mrb[0].mxu0
    %v6130 = vpop.f32.mrb[0].mxu0
    %6131 = vdwg.mxu0
    %6132 = vmatprep.subr.bf16.mxu0 %v4641
    %6133 = vmatpush1.bf16.msra.mxu0 %v4640
    %6134 = vmatprep.subr.bf16.mxu0 %v4654
    %6135 = vmatpush1.bf16.msra.mxu0 %v4653
    %6136 = vmatprep.subr.bf16.mxu0 %v4667
    %6137 = vmatpush1.bf16.msra.mxu0 %v4666
    %6138 = vmatprep.subr.bf16.mxu0 %v4680
    %6139 = vmatpush1.bf16.msra.mxu0 %v4679
    %6140 = vmatprep.subr.bf16.mxu0 %v4693
    %6141 = vmatpush1.bf16.msra.mxu0 %v4692
    %6142 = vmatprep.subr.bf16.mxu0 %v4706
    %6143 = vmatpush1.bf16.msra.mxu0 %v4705
    %6144 = vmatprep.subr.bf16.mxu0 %v4719
    %6145 = vmatpush1.bf16.msra.mxu0 %v4718
    %6146 = vmatprep.subr.bf16.mxu0 %v4732
    %6147 = vmatpush1.bf16.msra.mxu0 %v4731
    %6148 = vmatprep.subr.bf16.mxu0 %v4745
    %6149 = vmatpush1.bf16.msra.mxu0 %v4744
    %6150 = vmatprep.subr.bf16.mxu0 %v4758
    %6151 = vmatpush1.bf16.msra.mxu0 %v4757
    %6152 = vmatprep.subr.bf16.mxu0 %v4771
    %6153 = vmatpush1.bf16.msra.mxu0 %v4770
    %6154 = vmatprep.subr.bf16.mxu0 %v4784
    %6155 = vmatpush1.bf16.msra.mxu0 %v4783
    %6156 = vmatprep.subr.bf16.mxu0 %v4797
    %6157 = vmatpush1.bf16.msra.mxu0 %v4796
    %6158 = vmatprep.subr.bf16.mxu0 %v4810
    %6159 = vmatpush1.bf16.msra.mxu0 %v4809
    %6160 = vmatprep.subr.bf16.mxu0 %v4823
    %6161 = vmatpush1.bf16.msra.mxu0 %v4822
    %6162 = vmatprep.subr.bf16.mxu0 %v4836
    %6163 = vmatpush1.bf16.msra.mxu0 %v4835
    %6164 = vmatprep.mubr.bf16.mxu0 %v763
    %6165 = vmatmul.mubr.bf16.gmra.mrb[0].mxu0 %v762
    %v6166 = vpop.f32.mrb[0].mxu0
    %v6167 = vadd.f32 %v6126, %v6166
    %v6168 = vpop.f32.mrb[0].mxu0
    %v6169 = vadd.f32 %v6128, %v6168
    %v6170 = vpop.f32.mrb[0].mxu0
    %v6171 = vpop.f32.mrb[0].mxu0
    %6172 = vdwg.mxu0
    %6173 = vmatprep.subr.bf16.mxu0 %v4849
    %6174 = vmatpush1.bf16.msra.mxu0 %v4848
    %6175 = vmatprep.subr.bf16.mxu0 %v4862
    %6176 = vmatpush1.bf16.msra.mxu0 %v4861
    %6177 = vmatprep.subr.bf16.mxu0 %v4875
    %6178 = vmatpush1.bf16.msra.mxu0 %v4874
    %6179 = vmatprep.subr.bf16.mxu0 %v4888
    %6180 = vmatpush1.bf16.msra.mxu0 %v4887
    %6181 = vmatprep.subr.bf16.mxu0 %v4901
    %6182 = vmatpush1.bf16.msra.mxu0 %v4900
    %6183 = vmatprep.subr.bf16.mxu0 %v4914
    %6184 = vmatpush1.bf16.msra.mxu0 %v4913
    %6185 = vmatprep.subr.bf16.mxu0 %v4927
    %6186 = vmatpush1.bf16.msra.mxu0 %v4926
    %6187 = vmatprep.subr.bf16.mxu0 %v4940
    %6188 = vmatpush1.bf16.msra.mxu0 %v4939
    %6189 = vmatprep.subr.bf16.mxu0 %v4953
    %6190 = vmatpush1.bf16.msra.mxu0 %v4952
    %6191 = vmatprep.subr.bf16.mxu0 %v4966
    %6192 = vmatpush1.bf16.msra.mxu0 %v4965
    %6193 = vmatprep.subr.bf16.mxu0 %v4979
    %6194 = vmatpush1.bf16.msra.mxu0 %v4978
    %6195 = vmatprep.subr.bf16.mxu0 %v4992
    %6196 = vmatpush1.bf16.msra.mxu0 %v4991
    %6197 = vmatprep.subr.bf16.mxu0 %v5005
    %6198 = vmatpush1.bf16.msra.mxu0 %v5004
    %6199 = vmatprep.subr.bf16.mxu0 %v5018
    %6200 = vmatpush1.bf16.msra.mxu0 %v5017
    %6201 = vmatprep.subr.bf16.mxu0 %v5031
    %6202 = vmatpush1.bf16.msra.mxu0 %v5030
    %6203 = vmatprep.subr.bf16.mxu0 %v5044
    %6204 = vmatpush1.bf16.msra.mxu0 %v5043
    %6205 = vmatprep.mubr.bf16.mxu0 %v765
    %6206 = vmatmul.mubr.bf16.gmra.mrb[0].mxu0 %v764
    %v6207 = vpop.f32.mrb[0].mxu0
    %v6208 = vadd.f32 %v6167, %v6207
    %v6209 = vpop.f32.mrb[0].mxu0
    %v6210 = vadd.f32 %v6169, %v6209
    %v6211 = vpop.f32.mrb[0].mxu0
    %v6212 = vpop.f32.mrb[0].mxu0
    %6213 = vdwg.mxu0
    %6214 = vmatprep.subr.bf16.mxu0 %v4227
    %6215 = vmatpush1.bf16.msra.mxu0 %v4226
    %6216 = vmatprep.subr.bf16.mxu0 %v4240
    %6217 = vmatpush1.bf16.msra.mxu0 %v4239
    %6218 = vmatprep.subr.bf16.mxu0 %v4253
    %6219 = vmatpush1.bf16.msra.mxu0 %v4252
    %6220 = vmatprep.subr.bf16.mxu0 %v4266
    %6221 = vmatpush1.bf16.msra.mxu0 %v4265
    %6222 = vmatprep.subr.bf16.mxu0 %v4279
    %6223 = vmatpush1.bf16.msra.mxu0 %v4278
    %6224 = vmatprep.subr.bf16.mxu0 %v4292
    %6225 = vmatpush1.bf16.msra.mxu0 %v4291
    %6226 = vmatprep.subr.bf16.mxu0 %v4305
    %6227 = vmatpush1.bf16.msra.mxu0 %v4304
    %6228 = vmatprep.subr.bf16.mxu0 %v4318
    %6229 = vmatpush1.bf16.msra.mxu0 %v4317
    %6230 = vmatprep.subr.bf16.mxu0 %v4331
    %6231 = vmatpush1.bf16.msra.mxu0 %v4330
    %6232 = vmatprep.subr.bf16.mxu0 %v4344
    %6233 = vmatpush1.bf16.msra.mxu0 %v4343
    %6234 = vmatprep.subr.bf16.mxu0 %v4357
    %6235 = vmatpush1.bf16.msra.mxu0 %v4356
    %6236 = vmatprep.subr.bf16.mxu0 %v4370
    %6237 = vmatpush1.bf16.msra.mxu0 %v4369
    %6238 = vmatprep.subr.bf16.mxu0 %v4383
    %6239 = vmatpush1.bf16.msra.mxu0 %v4382
    %6240 = vmatprep.subr.bf16.mxu0 %v4396
    %6241 = vmatpush1.bf16.msra.mxu0 %v4395
    %6242 = vmatprep.subr.bf16.mxu0 %v4409
    %6243 = vmatpush1.bf16.msra.mxu0 %v4408
    %6244 = vmatprep.subr.bf16.mxu0 %v4422
    %6245 = vmatpush1.bf16.msra.mxu0 %v4421
    %6246 = vmatprep.mubr.bf16.mxu0 %v759
    %6247 = vmatmul.mubr.bf16.gmra.mrb[0].mxu0 %v758
    %v6248 = vpop.f32.mrb[0].mxu0
    %v6249 = vadd.f32 0.0, %v6248
    %v6250 = vpop.f32.mrb[0].mxu0
    %v6251 = vadd.f32 0.0, %v6250
    %v6252 = vpop.f32.mrb[0].mxu0
    %v6253 = vpop.f32.mrb[0].mxu0
    %6254 = vdwg.mxu0
    %6255 = vmatprep.subr.bf16.mxu0 %v4435
    %6256 = vmatpush1.bf16.msra.mxu0 %v4434
    %6257 = vmatprep.subr.bf16.mxu0 %v4448
    %6258 = vmatpush1.bf16.msra.mxu0 %v4447
    %6259 = vmatprep.subr.bf16.mxu0 %v4461
    %6260 = vmatpush1.bf16.msra.mxu0 %v4460
    %6261 = vmatprep.subr.bf16.mxu0 %v4474
    %6262 = vmatpush1.bf16.msra.mxu0 %v4473
    %6263 = vmatprep.subr.bf16.mxu0 %v4487
    %6264 = vmatpush1.bf16.msra.mxu0 %v4486
    %6265 = vmatprep.subr.bf16.mxu0 %v4500
    %6266 = vmatpush1.bf16.msra.mxu0 %v4499
    %6267 = vmatprep.subr.bf16.mxu0 %v4513
    %6268 = vmatpush1.bf16.msra.mxu0 %v4512
    %6269 = vmatprep.subr.bf16.mxu0 %v4526
    %6270 = vmatpush1.bf16.msra.mxu0 %v4525
    %6271 = vmatprep.subr.bf16.mxu0 %v4539
    %6272 = vmatpush1.bf16.msra.mxu0 %v4538
    %6273 = vmatprep.subr.bf16.mxu0 %v4552
    %6274 = vmatpush1.bf16.msra.mxu0 %v4551
    %6275 = vmatprep.subr.bf16.mxu0 %v4565
    %6276 = vmatpush1.bf16.msra.mxu0 %v4564
    %6277 = vmatprep.subr.bf16.mxu0 %v4578
    %6278 = vmatpush1.bf16.msra.mxu0 %v4577
    %6279 = vmatprep.subr.bf16.mxu0 %v4591
    %6280 = vmatpush1.bf16.msra.mxu0 %v4590
    %6281 = vmatprep.subr.bf16.mxu0 %v4604
    %6282 = vmatpush1.bf16.msra.mxu0 %v4603
    %6283 = vmatprep.subr.bf16.mxu0 %v4617
    %6284 = vmatpush1.bf16.msra.mxu0 %v4616
    %6285 = vmatprep.subr.bf16.mxu0 %v4630
    %6286 = vmatpush1.bf16.msra.mxu0 %v4629
    %6287 = vmatprep.mubr.bf16.mxu0 %v761
    %6288 = vmatmul.mubr.bf16.gmra.mrb[0].mxu0 %v760
    %v6289 = vpop.f32.mrb[0].mxu0
    %v6290 = vadd.f32 %v6249, %v6289
    %v6291 = vpop.f32.mrb[0].mxu0
    %v6292 = vadd.f32 %v6251, %v6291
    %v6293 = vpop.f32.mrb[0].mxu0
    %v6294 = vpop.f32.mrb[0].mxu0
    %6295 = vdwg.mxu0
    %6296 = vmatprep.subr.bf16.mxu0 %v4643
    %6297 = vmatpush1.bf16.msra.mxu0 %v4642
    %6298 = vmatprep.subr.bf16.mxu0 %v4656
    %6299 = vmatpush1.bf16.msra.mxu0 %v4655
    %6300 = vmatprep.subr.bf16.mxu0 %v4669
    %6301 = vmatpush1.bf16.msra.mxu0 %v4668
    %6302 = vmatprep.subr.bf16.mxu0 %v4682
    %6303 = vmatpush1.bf16.msra.mxu0 %v4681
    %6304 = vmatprep.subr.bf16.mxu0 %v4695
    %6305 = vmatpush1.bf16.msra.mxu0 %v4694
    %6306 = vmatprep.subr.bf16.mxu0 %v4708
    %6307 = vmatpush1.bf16.msra.mxu0 %v4707
    %6308 = vmatprep.subr.bf16.mxu0 %v4721
    %6309 = vmatpush1.bf16.msra.mxu0 %v4720
    %6310 = vmatprep.subr.bf16.mxu0 %v4734
    %6311 = vmatpush1.bf16.msra.mxu0 %v4733
    %6312 = vmatprep.subr.bf16.mxu0 %v4747
    %6313 = vmatpush1.bf16.msra.mxu0 %v4746
    %6314 = vmatprep.subr.bf16.mxu0 %v4760
    %6315 = vmatpush1.bf16.msra.mxu0 %v4759
    %6316 = vmatprep.subr.bf16.mxu0 %v4773
    %6317 = vmatpush1.bf16.msra.mxu0 %v4772
    %6318 = vmatprep.subr.bf16.mxu0 %v4786
    %6319 = vmatpush1.bf16.msra.mxu0 %v4785
    %6320 = vmatprep.subr.bf16.mxu0 %v4799
    %6321 = vmatpush1.bf16.msra.mxu0 %v4798
    %6322 = vmatprep.subr.bf16.mxu0 %v4812
    %6323 = vmatpush1.bf16.msra.mxu0 %v4811
    %6324 = vmatprep.subr.bf16.mxu0 %v4825
    %6325 = vmatpush1.bf16.msra.mxu0 %v4824
    %6326 = vmatprep.subr.bf16.mxu0 %v4838
    %6327 = vmatpush1.bf16.msra.mxu0 %v4837
    %6328 = vmatprep.mubr.bf16.mxu0 %v763
    %6329 = vmatmul.mubr.bf16.gmra.mrb[0].mxu0 %v762
    %v6330 = vpop.f32.mrb[0].mxu0
    %v6331 = vadd.f32 %v6290, %v6330
    %v6332 = vpop.f32.mrb[0].mxu0
    %v6333 = vadd.f32 %v6292, %v6332
    %v6334 = vpop.f32.mrb[0].mxu0
    %v6335 = vpop.f32.mrb[0].mxu0
    %6336 = vdwg.mxu0
    %6337 = vmatprep.subr.bf16.mxu0 %v4851
    %6338 = vmatpush1.bf16.msra.mxu0 %v4850
    %6339 = vmatprep.subr.bf16.mxu0 %v4864
    %6340 = vmatpush1.bf16.msra.mxu0 %v4863
    %6341 = vmatprep.subr.bf16.mxu0 %v4877
    %6342 = vmatpush1.bf16.msra.mxu0 %v4876
    %6343 = vmatprep.subr.bf16.mxu0 %v4890
    %6344 = vmatpush1.bf16.msra.mxu0 %v4889
    %6345 = vmatprep.subr.bf16.mxu0 %v4903
    %6346 = vmatpush1.bf16.msra.mxu0 %v4902
    %6347 = vmatprep.subr.bf16.mxu0 %v4916
    %6348 = vmatpush1.bf16.msra.mxu0 %v4915
    %6349 = vmatprep.subr.bf16.mxu0 %v4929
    %6350 = vmatpush1.bf16.msra.mxu0 %v4928
    %6351 = vmatprep.subr.bf16.mxu0 %v4942
    %6352 = vmatpush1.bf16.msra.mxu0 %v4941
    %6353 = vmatprep.subr.bf16.mxu0 %v4955
    %6354 = vmatpush1.bf16.msra.mxu0 %v4954
    %6355 = vmatprep.subr.bf16.mxu0 %v4968
    %6356 = vmatpush1.bf16.msra.mxu0 %v4967
    %6357 = vmatprep.subr.bf16.mxu0 %v4981
    %6358 = vmatpush1.bf16.msra.mxu0 %v4980
    %6359 = vmatprep.subr.bf16.mxu0 %v4994
    %6360 = vmatpush1.bf16.msra.mxu0 %v4993
    %6361 = vmatprep.subr.bf16.mxu0 %v5007
    %6362 = vmatpush1.bf16.msra.mxu0 %v5006
    %6363 = vmatprep.subr.bf16.mxu0 %v5020
    %6364 = vmatpush1.bf16.msra.mxu0 %v5019
    %6365 = vmatprep.subr.bf16.mxu0 %v5033
    %6366 = vmatpush1.bf16.msra.mxu0 %v5032
    %6367 = vmatprep.subr.bf16.mxu0 %v5046
    %6368 = vmatpush1.bf16.msra.mxu0 %v5045
    %6369 = vmatprep.mubr.bf16.mxu0 %v765
    %6370 = vmatmul.mubr.bf16.gmra.mrb[0].mxu0 %v764
    %v6371 = vpop.f32.mrb[0].mxu0
    %v6372 = vadd.f32 %v6331, %v6371
    %v6373 = vpop.f32.mrb[0].mxu0
    %v6374 = vadd.f32 %v6333, %v6373
    %v6375 = vpop.f32.mrb[0].mxu0
    %v6376 = vpop.f32.mrb[0].mxu0
    %6377 = vdwg.mxu0
    %6378 = vmatprep.subr.bf16.mxu0 %v4229
    %6379 = vmatpush1.bf16.msra.mxu0 %v4228
    %6380 = vmatprep.subr.bf16.mxu0 %v4242
    %6381 = vmatpush1.bf16.msra.mxu0 %v4241
    %6382 = vmatprep.subr.bf16.mxu0 %v4255
    %6383 = vmatpush1.bf16.msra.mxu0 %v4254
    %6384 = vmatprep.subr.bf16.mxu0 %v4268
    %6385 = vmatpush1.bf16.msra.mxu0 %v4267
    %6386 = vmatprep.subr.bf16.mxu0 %v4281
    %6387 = vmatpush1.bf16.msra.mxu0 %v4280
    %6388 = vmatprep.subr.bf16.mxu0 %v4294
    %6389 = vmatpush1.bf16.msra.mxu0 %v4293
    %6390 = vmatprep.subr.bf16.mxu0 %v4307
    %6391 = vmatpush1.bf16.msra.mxu0 %v4306
    %6392 = vmatprep.subr.bf16.mxu0 %v4320
    %6393 = vmatpush1.bf16.msra.mxu0 %v4319
    %6394 = vmatprep.subr.bf16.mxu0 %v4333
    %6395 = vmatpush1.bf16.msra.mxu0 %v4332
    %6396 = vmatprep.subr.bf16.mxu0 %v4346
    %6397 = vmatpush1.bf16.msra.mxu0 %v4345
    %6398 = vmatprep.subr.bf16.mxu0 %v4359
    %6399 = vmatpush1.bf16.msra.mxu0 %v4358
    %6400 = vmatprep.subr.bf16.mxu0 %v4372
    %6401 = vmatpush1.bf16.msra.mxu0 %v4371
    %6402 = vmatprep.subr.bf16.mxu0 %v4385
    %6403 = vmatpush1.bf16.msra.mxu0 %v4384
    %6404 = vmatprep.subr.bf16.mxu0 %v4398
    %6405 = vmatpush1.bf16.msra.mxu0 %v4397
    %6406 = vmatprep.subr.bf16.mxu0 %v4411
    %6407 = vmatpush1.bf16.msra.mxu0 %v4410
    %6408 = vmatprep.subr.bf16.mxu0 %v4424
    %6409 = vmatpush1.bf16.msra.mxu0 %v4423
    %6410 = vmatprep.mubr.bf16.mxu0 %v759
    %6411 = vmatmul.mubr.bf16.gmra.mrb[0].mxu0 %v758
    %v6412 = vpop.f32.mrb[0].mxu0
    %v6413 = vadd.f32 0.0, %v6412
    %v6414 = vpop.f32.mrb[0].mxu0
    %v6415 = vadd.f32 0.0, %v6414
    %v6416 = vpop.f32.mrb[0].mxu0
    %v6417 = vpop.f32.mrb[0].mxu0
    %6418 = vdwg.mxu0
    %6419 = vmatprep.subr.bf16.mxu0 %v4437
    %6420 = vmatpush1.bf16.msra.mxu0 %v4436
    %6421 = vmatprep.subr.bf16.mxu0 %v4450
    %6422 = vmatpush1.bf16.msra.mxu0 %v4449
    %6423 = vmatprep.subr.bf16.mxu0 %v4463
    %6424 = vmatpush1.bf16.msra.mxu0 %v4462
    %6425 = vmatprep.subr.bf16.mxu0 %v4476
    %6426 = vmatpush1.bf16.msra.mxu0 %v4475
    %6427 = vmatprep.subr.bf16.mxu0 %v4489
    %6428 = vmatpush1.bf16.msra.mxu0 %v4488
    %6429 = vmatprep.subr.bf16.mxu0 %v4502
    %6430 = vmatpush1.bf16.msra.mxu0 %v4501
    %6431 = vmatprep.subr.bf16.mxu0 %v4515
    %6432 = vmatpush1.bf16.msra.mxu0 %v4514
    %6433 = vmatprep.subr.bf16.mxu0 %v4528
    %6434 = vmatpush1.bf16.msra.mxu0 %v4527
    %6435 = vmatprep.subr.bf16.mxu0 %v4541
    %6436 = vmatpush1.bf16.msra.mxu0 %v4540
    %6437 = vmatprep.subr.bf16.mxu0 %v4554
    %6438 = vmatpush1.bf16.msra.mxu0 %v4553
    %6439 = vmatprep.subr.bf16.mxu0 %v4567
    %6440 = vmatpush1.bf16.msra.mxu0 %v4566
    %6441 = vmatprep.subr.bf16.mxu0 %v4580
    %6442 = vmatpush1.bf16.msra.mxu0 %v4579
    %6443 = vmatprep.subr.bf16.mxu0 %v4593
    %6444 = vmatpush1.bf16.msra.mxu0 %v4592
    %6445 = vmatprep.subr.bf16.mxu0 %v4606
    %6446 = vmatpush1.bf16.msra.mxu0 %v4605
    %6447 = vmatprep.subr.bf16.mxu0 %v4619
    %6448 = vmatpush1.bf16.msra.mxu0 %v4618
    %6449 = vmatprep.subr.bf16.mxu0 %v4632
    %6450 = vmatpush1.bf16.msra.mxu0 %v4631
    %6451 = vmatprep.mubr.bf16.mxu0 %v761
    %6452 = vmatmul.mubr.bf16.gmra.mrb[0].mxu0 %v760
    %v6453 = vpop.f32.mrb[0].mxu0
    %v6454 = vadd.f32 %v6413, %v6453
    %v6455 = vpop.f32.mrb[0].mxu0
    %v6456 = vadd.f32 %v6415, %v6455
    %v6457 = vpop.f32.mrb[0].mxu0
    %v6458 = vpop.f32.mrb[0].mxu0
    %6459 = vdwg.mxu0
    %6460 = vmatprep.subr.bf16.mxu0 %v4645
    %6461 = vmatpush1.bf16.msra.mxu0 %v4644
    %6462 = vmatprep.subr.bf16.mxu0 %v4658
    %6463 = vmatpush1.bf16.msra.mxu0 %v4657
    %6464 = vmatprep.subr.bf16.mxu0 %v4671
    %6465 = vmatpush1.bf16.msra.mxu0 %v4670
    %6466 = vmatprep.subr.bf16.mxu0 %v4684
    %6467 = vmatpush1.bf16.msra.mxu0 %v4683
    %6468 = vmatprep.subr.bf16.mxu0 %v4697
    %6469 = vmatpush1.bf16.msra.mxu0 %v4696
    %6470 = vmatprep.subr.bf16.mxu0 %v4710
    %6471 = vmatpush1.bf16.msra.mxu0 %v4709
    %6472 = vmatprep.subr.bf16.mxu0 %v4723
    %6473 = vmatpush1.bf16.msra.mxu0 %v4722
    %6474 = vmatprep.subr.bf16.mxu0 %v4736
    %6475 = vmatpush1.bf16.msra.mxu0 %v4735
    %6476 = vmatprep.subr.bf16.mxu0 %v4749
    %6477 = vmatpush1.bf16.msra.mxu0 %v4748
    %6478 = vmatprep.subr.bf16.mxu0 %v4762
    %6479 = vmatpush1.bf16.msra.mxu0 %v4761
    %6480 = vmatprep.subr.bf16.mxu0 %v4775
    %6481 = vmatpush1.bf16.msra.mxu0 %v4774
    %6482 = vmatprep.subr.bf16.mxu0 %v4788
    %6483 = vmatpush1.bf16.msra.mxu0 %v4787
    %6484 = vmatprep.subr.bf16.mxu0 %v4801
    %6485 = vmatpush1.bf16.msra.mxu0 %v4800
    %6486 = vmatprep.subr.bf16.mxu0 %v4814
    %6487 = vmatpush1.bf16.msra.mxu0 %v4813
    %6488 = vmatprep.subr.bf16.mxu0 %v4827
    %6489 = vmatpush1.bf16.msra.mxu0 %v4826
    %6490 = vmatprep.subr.bf16.mxu0 %v4840
    %6491 = vmatpush1.bf16.msra.mxu0 %v4839
    %6492 = vmatprep.mubr.bf16.mxu0 %v763
    %6493 = vmatmul.mubr.bf16.gmra.mrb[0].mxu0 %v762
    %v6494 = vpop.f32.mrb[0].mxu0
    %v6495 = vadd.f32 %v6454, %v6494
    %v6496 = vpop.f32.mrb[0].mxu0
    %v6497 = vadd.f32 %v6456, %v6496
    %v6498 = vpop.f32.mrb[0].mxu0
    %v6499 = vpop.f32.mrb[0].mxu0
    %6500 = vdwg.mxu0
    %6501 = vmatprep.subr.bf16.mxu0 %v4853
    %6502 = vmatpush1.bf16.msra.mxu0 %v4852
    %6503 = vmatprep.subr.bf16.mxu0 %v4866
    %6504 = vmatpush1.bf16.msra.mxu0 %v4865
    %6505 = vmatprep.subr.bf16.mxu0 %v4879
    %6506 = vmatpush1.bf16.msra.mxu0 %v4878
    %6507 = vmatprep.subr.bf16.mxu0 %v4892
    %6508 = vmatpush1.bf16.msra.mxu0 %v4891
    %6509 = vmatprep.subr.bf16.mxu0 %v4905
    %6510 = vmatpush1.bf16.msra.mxu0 %v4904
    %6511 = vmatprep.subr.bf16.mxu0 %v4918
    %6512 = vmatpush1.bf16.msra.mxu0 %v4917
    %6513 = vmatprep.subr.bf16.mxu0 %v4931
    %6514 = vmatpush1.bf16.msra.mxu0 %v4930
    %6515 = vmatprep.subr.bf16.mxu0 %v4944
    %6516 = vmatpush1.bf16.msra.mxu0 %v4943
    %6517 = vmatprep.subr.bf16.mxu0 %v4957
    %6518 = vmatpush1.bf16.msra.mxu0 %v4956
    %6519 = vmatprep.subr.bf16.mxu0 %v4970
    %6520 = vmatpush1.bf16.msra.mxu0 %v4969
    %6521 = vmatprep.subr.bf16.mxu0 %v4983
    %6522 = vmatpush1.bf16.msra.mxu0 %v4982
    %6523 = vmatprep.subr.bf16.mxu0 %v4996
    %6524 = vmatpush1.bf16.msra.mxu0 %v4995
    %6525 = vmatprep.subr.bf16.mxu0 %v5009
    %6526 = vmatpush1.bf16.msra.mxu0 %v5008
    %6527 = vmatprep.subr.bf16.mxu0 %v5022
    %6528 = vmatpush1.bf16.msra.mxu0 %v5021
    %6529 = vmatprep.subr.bf16.mxu0 %v5035
    %6530 = vmatpush1.bf16.msra.mxu0 %v5034
    %6531 = vmatprep.subr.bf16.mxu0 %v5048
    %6532 = vmatpush1.bf16.msra.mxu0 %v5047
    %6533 = vmatprep.mubr.bf16.mxu0 %v765
    %6534 = vmatmul.mubr.bf16.gmra.mrb[0].mxu0 %v764
    %v6535 = vpop.f32.mrb[0].mxu0
    %v6536 = vadd.f32 %v6495, %v6535
    %v6537 = vpop.f32.mrb[0].mxu0
    %v6538 = vadd.f32 %v6497, %v6537
    %v6539 = vpop.f32.mrb[0].mxu0
    %v6540 = vpop.f32.mrb[0].mxu0
    %6541 = vdwg.mxu0
    %6542 = vmatprep.subr.bf16.mxu0 %v4231
    %6543 = vmatpush1.bf16.msra.mxu0 %v4230
    %6544 = vmatprep.subr.bf16.mxu0 %v4244
    %6545 = vmatpush1.bf16.msra.mxu0 %v4243
    %6546 = vmatprep.subr.bf16.mxu0 %v4257
    %6547 = vmatpush1.bf16.msra.mxu0 %v4256
    %6548 = vmatprep.subr.bf16.mxu0 %v4270
    %6549 = vmatpush1.bf16.msra.mxu0 %v4269
    %6550 = vmatprep.subr.bf16.mxu0 %v4283
    %6551 = vmatpush1.bf16.msra.mxu0 %v4282
    %6552 = vmatprep.subr.bf16.mxu0 %v4296
    %6553 = vmatpush1.bf16.msra.mxu0 %v4295
    %6554 = vmatprep.subr.bf16.mxu0 %v4309
    %6555 = vmatpush1.bf16.msra.mxu0 %v4308
    %6556 = vmatprep.subr.bf16.mxu0 %v4322
    %6557 = vmatpush1.bf16.msra.mxu0 %v4321
    %6558 = vmatprep.subr.bf16.mxu0 %v4335
    %6559 = vmatpush1.bf16.msra.mxu0 %v4334
    %6560 = vmatprep.subr.bf16.mxu0 %v4348
    %6561 = vmatpush1.bf16.msra.mxu0 %v4347
    %6562 = vmatprep.subr.bf16.mxu0 %v4361
    %6563 = vmatpush1.bf16.msra.mxu0 %v4360
    %6564 = vmatprep.subr.bf16.mxu0 %v4374
    %6565 = vmatpush1.bf16.msra.mxu0 %v4373
    %6566 = vmatprep.subr.bf16.mxu0 %v4387
    %6567 = vmatpush1.bf16.msra.mxu0 %v4386
    %6568 = vmatprep.subr.bf16.mxu0 %v4400
    %6569 = vmatpush1.bf16.msra.mxu0 %v4399
    %6570 = vmatprep.subr.bf16.mxu0 %v4413
    %6571 = vmatpush1.bf16.msra.mxu0 %v4412
    %6572 = vmatprep.subr.bf16.mxu0 %v4426
    %6573 = vmatpush1.bf16.msra.mxu0 %v4425
    %6574 = vmatprep.mubr.bf16.mxu0 %v759
    %6575 = vmatmul.mubr.bf16.gmra.mrb[0].mxu0 %v758
    %v6576 = vpop.f32.mrb[0].mxu0
    %v6577 = vadd.f32 0.0, %v6576
    %v6578 = vpop.f32.mrb[0].mxu0
    %v6579 = vadd.f32 0.0, %v6578
    %v6580 = vpop.f32.mrb[0].mxu0
    %v6581 = vpop.f32.mrb[0].mxu0
    %6582 = vdwg.mxu0
    %6583 = vmatprep.subr.bf16.mxu0 %v4439
    %6584 = vmatpush1.bf16.msra.mxu0 %v4438
    %6585 = vmatprep.subr.bf16.mxu0 %v4452
    %6586 = vmatpush1.bf16.msra.mxu0 %v4451
    %6587 = vmatprep.subr.bf16.mxu0 %v4465
    %6588 = vmatpush1.bf16.msra.mxu0 %v4464
    %6589 = vmatprep.subr.bf16.mxu0 %v4478
    %6590 = vmatpush1.bf16.msra.mxu0 %v4477
    %6591 = vmatprep.subr.bf16.mxu0 %v4491
    %6592 = vmatpush1.bf16.msra.mxu0 %v4490
    %6593 = vmatprep.subr.bf16.mxu0 %v4504
    %6594 = vmatpush1.bf16.msra.mxu0 %v4503
    %6595 = vmatprep.subr.bf16.mxu0 %v4517
    %6596 = vmatpush1.bf16.msra.mxu0 %v4516
    %6597 = vmatprep.subr.bf16.mxu0 %v4530
    %6598 = vmatpush1.bf16.msra.mxu0 %v4529
    %6599 = vmatprep.subr.bf16.mxu0 %v4543
    %6600 = vmatpush1.bf16.msra.mxu0 %v4542
    %6601 = vmatprep.subr.bf16.mxu0 %v4556
    %6602 = vmatpush1.bf16.msra.mxu0 %v4555
    %6603 = vmatprep.subr.bf16.mxu0 %v4569
    %6604 = vmatpush1.bf16.msra.mxu0 %v4568
    %6605 = vmatprep.subr.bf16.mxu0 %v4582
    %6606 = vmatpush1.bf16.msra.mxu0 %v4581
    %6607 = vmatprep.subr.bf16.mxu0 %v4595
    %6608 = vmatpush1.bf16.msra.mxu0 %v4594
    %6609 = vmatprep.subr.bf16.mxu0 %v4608
    %6610 = vmatpush1.bf16.msra.mxu0 %v4607
    %6611 = vmatprep.subr.bf16.mxu0 %v4621
    %6612 = vmatpush1.bf16.msra.mxu0 %v4620
    %6613 = vmatprep.subr.bf16.mxu0 %v4634
    %6614 = vmatpush1.bf16.msra.mxu0 %v4633
    %6615 = vmatprep.mubr.bf16.mxu0 %v761
    %6616 = vmatmul.mubr.bf16.gmra.mrb[0].mxu0 %v760
    %v6617 = vpop.f32.mrb[0].mxu0
    %v6618 = vadd.f32 %v6577, %v6617
    %v6619 = vpop.f32.mrb[0].mxu0
    %v6620 = vadd.f32 %v6579, %v6619
    %v6621 = vpop.f32.mrb[0].mxu0
    %v6622 = vpop.f32.mrb[0].mxu0
    %6623 = vdwg.mxu0
    %6624 = vmatprep.subr.bf16.mxu0 %v4647
    %6625 = vmatpush1.bf16.msra.mxu0 %v4646
    %6626 = vmatprep.subr.bf16.mxu0 %v4660
    %6627 = vmatpush1.bf16.msra.mxu0 %v4659
    %6628 = vmatprep.subr.bf16.mxu0 %v4673
    %6629 = vmatpush1.bf16.msra.mxu0 %v4672
    %6630 = vmatprep.subr.bf16.mxu0 %v4686
    %6631 = vmatpush1.bf16.msra.mxu0 %v4685
    %6632 = vmatprep.subr.bf16.mxu0 %v4699
    %6633 = vmatpush1.bf16.msra.mxu0 %v4698
    %6634 = vmatprep.subr.bf16.mxu0 %v4712
    %6635 = vmatpush1.bf16.msra.mxu0 %v4711
    %6636 = vmatprep.subr.bf16.mxu0 %v4725
    %6637 = vmatpush1.bf16.msra.mxu0 %v4724
    %6638 = vmatprep.subr.bf16.mxu0 %v4738
    %6639 = vmatpush1.bf16.msra.mxu0 %v4737
    %6640 = vmatprep.subr.bf16.mxu0 %v4751
    %6641 = vmatpush1.bf16.msra.mxu0 %v4750
    %6642 = vmatprep.subr.bf16.mxu0 %v4764
    %6643 = vmatpush1.bf16.msra.mxu0 %v4763
    %6644 = vmatprep.subr.bf16.mxu0 %v4777
    %6645 = vmatpush1.bf16.msra.mxu0 %v4776
    %6646 = vmatprep.subr.bf16.mxu0 %v4790
    %6647 = vmatpush1.bf16.msra.mxu0 %v4789
    %6648 = vmatprep.subr.bf16.mxu0 %v4803
    %6649 = vmatpush1.bf16.msra.mxu0 %v4802
    %6650 = vmatprep.subr.bf16.mxu0 %v4816
    %6651 = vmatpush1.bf16.msra.mxu0 %v4815
    %6652 = vmatprep.subr.bf16.mxu0 %v4829
    %6653 = vmatpush1.bf16.msra.mxu0 %v4828
    %6654 = vmatprep.subr.bf16.mxu0 %v4842
    %6655 = vmatpush1.bf16.msra.mxu0 %v4841
    %6656 = vmatprep.mubr.bf16.mxu0 %v763
    %6657 = vmatmul.mubr.bf16.gmra.mrb[0].mxu0 %v762
    %v6658 = vpop.f32.mrb[0].mxu0
    %v6659 = vadd.f32 %v6618, %v6658
    %v6660 = vpop.f32.mrb[0].mxu0
    %v6661 = vadd.f32 %v6620, %v6660
    %v6662 = vpop.f32.mrb[0].mxu0
    %v6663 = vpop.f32.mrb[0].mxu0
    %6664 = vdwg.mxu0
    %6665 = vmatprep.subr.bf16.mxu0 %v4855
    %6666 = vmatpush1.bf16.msra.mxu0 %v4854
    %6667 = vmatprep.subr.bf16.mxu0 %v4868
    %6668 = vmatpush1.bf16.msra.mxu0 %v4867
    %6669 = vmatprep.subr.bf16.mxu0 %v4881
    %6670 = vmatpush1.bf16.msra.mxu0 %v4880
    %6671 = vmatprep.subr.bf16.mxu0 %v4894
    %6672 = vmatpush1.bf16.msra.mxu0 %v4893
    %6673 = vmatprep.subr.bf16.mxu0 %v4907
    %6674 = vmatpush1.bf16.msra.mxu0 %v4906
    %6675 = vmatprep.subr.bf16.mxu0 %v4920
    %6676 = vmatpush1.bf16.msra.mxu0 %v4919
    %6677 = vmatprep.subr.bf16.mxu0 %v4933
    %6678 = vmatpush1.bf16.msra.mxu0 %v4932
    %6679 = vmatprep.subr.bf16.mxu0 %v4946
    %6680 = vmatpush1.bf16.msra.mxu0 %v4945
    %6681 = vmatprep.subr.bf16.mxu0 %v4959
    %6682 = vmatpush1.bf16.msra.mxu0 %v4958
    %6683 = vmatprep.subr.bf16.mxu0 %v4972
    %6684 = vmatpush1.bf16.msra.mxu0 %v4971
    %6685 = vmatprep.subr.bf16.mxu0 %v4985
    %6686 = vmatpush1.bf16.msra.mxu0 %v4984
    %6687 = vmatprep.subr.bf16.mxu0 %v4998
    %6688 = vmatpush1.bf16.msra.mxu0 %v4997
    %6689 = vmatprep.subr.bf16.mxu0 %v5011
    %6690 = vmatpush1.bf16.msra.mxu0 %v5010
    %6691 = vmatprep.subr.bf16.mxu0 %v5024
    %6692 = vmatpush1.bf16.msra.mxu0 %v5023
    %6693 = vmatprep.subr.bf16.mxu0 %v5037
    %6694 = vmatpush1.bf16.msra.mxu0 %v5036
    %6695 = vmatprep.subr.bf16.mxu0 %v5050
    %6696 = vmatpush1.bf16.msra.mxu0 %v5049
    %6697 = vmatprep.mubr.bf16.mxu0 %v765
    %6698 = vmatmul.mubr.bf16.gmra.mrb[0].mxu0 %v764
    %v6699 = vpop.f32.mrb[0].mxu0
    %v6700 = vadd.f32 %v6659, %v6699
    %v6701 = vpop.f32.mrb[0].mxu0
    %v6702 = vadd.f32 %v6661, %v6701
    %v6703 = vpop.f32.mrb[0].mxu0
    %v6704 = vpop.f32.mrb[0].mxu0
    %6705 = vdwg.mxu0
    %6706 = vmatprep.subr.bf16.mxu0 %v4233
    %6707 = vmatpush1.bf16.msra.mxu0 %v4232
    %6708 = vmatprep.subr.bf16.mxu0 %v4246
    %6709 = vmatpush1.bf16.msra.mxu0 %v4245
    %6710 = vmatprep.subr.bf16.mxu0 %v4259
    %6711 = vmatpush1.bf16.msra.mxu0 %v4258
    %6712 = vmatprep.subr.bf16.mxu0 %v4272
    %6713 = vmatpush1.bf16.msra.mxu0 %v4271
    %6714 = vmatprep.subr.bf16.mxu0 %v4285
    %6715 = vmatpush1.bf16.msra.mxu0 %v4284
    %6716 = vmatprep.subr.bf16.mxu0 %v4298
    %6717 = vmatpush1.bf16.msra.mxu0 %v4297
    %6718 = vmatprep.subr.bf16.mxu0 %v4311
    %6719 = vmatpush1.bf16.msra.mxu0 %v4310
    %6720 = vmatprep.subr.bf16.mxu0 %v4324
    %6721 = vmatpush1.bf16.msra.mxu0 %v4323
    %6722 = vmatprep.subr.bf16.mxu0 %v4337
    %6723 = vmatpush1.bf16.msra.mxu0 %v4336
    %6724 = vmatprep.subr.bf16.mxu0 %v4350
    %6725 = vmatpush1.bf16.msra.mxu0 %v4349
    %6726 = vmatprep.subr.bf16.mxu0 %v4363
    %6727 = vmatpush1.bf16.msra.mxu0 %v4362
    %6728 = vmatprep.subr.bf16.mxu0 %v4376
    %6729 = vmatpush1.bf16.msra.mxu0 %v4375
    %6730 = vmatprep.subr.bf16.mxu0 %v4389
    %6731 = vmatpush1.bf16.msra.mxu0 %v4388
    %6732 = vmatprep.subr.bf16.mxu0 %v4402
    %6733 = vmatpush1.bf16.msra.mxu0 %v4401
    %6734 = vmatprep.subr.bf16.mxu0 %v4415
    %6735 = vmatpush1.bf16.msra.mxu0 %v4414
    %6736 = vmatprep.subr.bf16.mxu0 %v4428
    %6737 = vmatpush1.bf16.msra.mxu0 %v4427
    %6738 = vmatprep.mubr.bf16.mxu0 %v759
    %6739 = vmatmul.mubr.bf16.gmra.mrb[0].mxu0 %v758
    %v6740 = vpop.f32.mrb[0].mxu0
    %v6741 = vadd.f32 0.0, %v6740
    %v6742 = vpop.f32.mrb[0].mxu0
    %v6743 = vadd.f32 0.0, %v6742
    %v6744 = vpop.f32.mrb[0].mxu0
    %v6745 = vpop.f32.mrb[0].mxu0
    %6746 = vdwg.mxu0
    %6747 = vmatprep.subr.bf16.mxu0 %v4441
    %6748 = vmatpush1.bf16.msra.mxu0 %v4440
    %6749 = vmatprep.subr.bf16.mxu0 %v4454
    %6750 = vmatpush1.bf16.msra.mxu0 %v4453
    %6751 = vmatprep.subr.bf16.mxu0 %v4467
    %6752 = vmatpush1.bf16.msra.mxu0 %v4466
    %6753 = vmatprep.subr.bf16.mxu0 %v4480
    %6754 = vmatpush1.bf16.msra.mxu0 %v4479
    %6755 = vmatprep.subr.bf16.mxu0 %v4493
    %6756 = vmatpush1.bf16.msra.mxu0 %v4492
    %6757 = vmatprep.subr.bf16.mxu0 %v4506
    %6758 = vmatpush1.bf16.msra.mxu0 %v4505
    %6759 = vmatprep.subr.bf16.mxu0 %v4519
    %6760 = vmatpush1.bf16.msra.mxu0 %v4518
    %6761 = vmatprep.subr.bf16.mxu0 %v4532
    %6762 = vmatpush1.bf16.msra.mxu0 %v4531
    %6763 = vmatprep.subr.bf16.mxu0 %v4545
    %6764 = vmatpush1.bf16.msra.mxu0 %v4544
    %6765 = vmatprep.subr.bf16.mxu0 %v4558
    %6766 = vmatpush1.bf16.msra.mxu0 %v4557
    %6767 = vmatprep.subr.bf16.mxu0 %v4571
    %6768 = vmatpush1.bf16.msra.mxu0 %v4570
    %6769 = vmatprep.subr.bf16.mxu0 %v4584
    %6770 = vmatpush1.bf16.msra.mxu0 %v4583
    %6771 = vmatprep.subr.bf16.mxu0 %v4597
    %6772 = vmatpush1.bf16.msra.mxu0 %v4596
    %6773 = vmatprep.subr.bf16.mxu0 %v4610
    %6774 = vmatpush1.bf16.msra.mxu0 %v4609
    %6775 = vmatprep.subr.bf16.mxu0 %v4623
    %6776 = vmatpush1.bf16.msra.mxu0 %v4622
    %6777 = vmatprep.subr.bf16.mxu0 %v4636
    %6778 = vmatpush1.bf16.msra.mxu0 %v4635
    %6779 = vmatprep.mubr.bf16.mxu0 %v761
    %6780 = vmatmul.mubr.bf16.gmra.mrb[0].mxu0 %v760
    %v6781 = vpop.f32.mrb[0].mxu0
    %v6782 = vadd.f32 %v6741, %v6781
    %v6783 = vpop.f32.mrb[0].mxu0
    %v6784 = vadd.f32 %v6743, %v6783
    %v6785 = vpop.f32.mrb[0].mxu0
    %v6786 = vpop.f32.mrb[0].mxu0
    %6787 = vdwg.mxu0
    %6788 = vmatprep.subr.bf16.mxu0 %v4649
    %6789 = vmatpush1.bf16.msra.mxu0 %v4648
    %6790 = vmatprep.subr.bf16.mxu0 %v4662
    %6791 = vmatpush1.bf16.msra.mxu0 %v4661
    %6792 = vmatprep.subr.bf16.mxu0 %v4675
    %6793 = vmatpush1.bf16.msra.mxu0 %v4674
    %6794 = vmatprep.subr.bf16.mxu0 %v4688
    %6795 = vmatpush1.bf16.msra.mxu0 %v4687
    %6796 = vmatprep.subr.bf16.mxu0 %v4701
    %6797 = vmatpush1.bf16.msra.mxu0 %v4700
    %6798 = vmatprep.subr.bf16.mxu0 %v4714
    %6799 = vmatpush1.bf16.msra.mxu0 %v4713
    %6800 = vmatprep.subr.bf16.mxu0 %v4727
    %6801 = vmatpush1.bf16.msra.mxu0 %v4726
    %6802 = vmatprep.subr.bf16.mxu0 %v4740
    %6803 = vmatpush1.bf16.msra.mxu0 %v4739
    %6804 = vmatprep.subr.bf16.mxu0 %v4753
    %6805 = vmatpush1.bf16.msra.mxu0 %v4752
    %6806 = vmatprep.subr.bf16.mxu0 %v4766
    %6807 = vmatpush1.bf16.msra.mxu0 %v4765
    %6808 = vmatprep.subr.bf16.mxu0 %v4779
    %6809 = vmatpush1.bf16.msra.mxu0 %v4778
    %6810 = vmatprep.subr.bf16.mxu0 %v4792
    %6811 = vmatpush1.bf16.msra.mxu0 %v4791
    %6812 = vmatprep.subr.bf16.mxu0 %v4805
    %6813 = vmatpush1.bf16.msra.mxu0 %v4804
    %6814 = vmatprep.subr.bf16.mxu0 %v4818
    %6815 = vmatpush1.bf16.msra.mxu0 %v4817
    %6816 = vmatprep.subr.bf16.mxu0 %v4831
    %6817 = vmatpush1.bf16.msra.mxu0 %v4830
    %6818 = vmatprep.subr.bf16.mxu0 %v4844
    %6819 = vmatpush1.bf16.msra.mxu0 %v4843
    %6820 = vmatprep.mubr.bf16.mxu0 %v763
    %6821 = vmatmul.mubr.bf16.gmra.mrb[0].mxu0 %v762
    %v6822 = vpop.f32.mrb[0].mxu0
    %v6823 = vadd.f32 %v6782, %v6822
    %v6824 = vpop.f32.mrb[0].mxu0
    %v6825 = vadd.f32 %v6784, %v6824
    %v6826 = vpop.f32.mrb[0].mxu0
    %v6827 = vpop.f32.mrb[0].mxu0
    %6828 = vdwg.mxu0
    %6829 = vmatprep.subr.bf16.mxu0 %v4857
    %6830 = vmatpush1.bf16.msra.mxu0 %v4856
    %6831 = vmatprep.subr.bf16.mxu0 %v4870
    %6832 = vmatpush1.bf16.msra.mxu0 %v4869
    %6833 = vmatprep.subr.bf16.mxu0 %v4883
    %6834 = vmatpush1.bf16.msra.mxu0 %v4882
    %6835 = vmatprep.subr.bf16.mxu0 %v4896
    %6836 = vmatpush1.bf16.msra.mxu0 %v4895
    %6837 = vmatprep.subr.bf16.mxu0 %v4909
    %6838 = vmatpush1.bf16.msra.mxu0 %v4908
    %6839 = vmatprep.subr.bf16.mxu0 %v4922
    %6840 = vmatpush1.bf16.msra.mxu0 %v4921
    %6841 = vmatprep.subr.bf16.mxu0 %v4935
    %6842 = vmatpush1.bf16.msra.mxu0 %v4934
    %6843 = vmatprep.subr.bf16.mxu0 %v4948
    %6844 = vmatpush1.bf16.msra.mxu0 %v4947
    %6845 = vmatprep.subr.bf16.mxu0 %v4961
    %6846 = vmatpush1.bf16.msra.mxu0 %v4960
    %6847 = vmatprep.subr.bf16.mxu0 %v4974
    %6848 = vmatpush1.bf16.msra.mxu0 %v4973
    %6849 = vmatprep.subr.bf16.mxu0 %v4987
    %6850 = vmatpush1.bf16.msra.mxu0 %v4986
    %6851 = vmatprep.subr.bf16.mxu0 %v5000
    %6852 = vmatpush1.bf16.msra.mxu0 %v4999
    %6853 = vmatprep.subr.bf16.mxu0 %v5013
    %6854 = vmatpush1.bf16.msra.mxu0 %v5012
    %6855 = vmatprep.subr.bf16.mxu0 %v5026
    %6856 = vmatpush1.bf16.msra.mxu0 %v5025
    %6857 = vmatprep.subr.bf16.mxu0 %v5039
    %6858 = vmatpush1.bf16.msra.mxu0 %v5038
    %6859 = vmatprep.subr.bf16.mxu0 %v5052
    %6860 = vmatpush1.bf16.msra.mxu0 %v5051
    %6861 = vmatprep.mubr.bf16.mxu0 %v765
    %6862 = vmatmul.mubr.bf16.gmra.mrb[0].mxu0 %v764
    %v6863 = vpop.f32.mrb[0].mxu0
    %v6864 = vadd.f32 %v6823, %v6863
    %v6865 = vpop.f32.mrb[0].mxu0
    %v6866 = vadd.f32 %v6825, %v6865
    %v6867 = vpop.f32.mrb[0].mxu0
    %v6868 = vpop.f32.mrb[0].mxu0
    %6869 = vdwg.mxu0
    %6870 = vmatprep.subr.bf16.mxu0 0
    %6871 = vmatpush1.bf16.msra.mxu0 %v4234
    %6872 = vmatprep.subr.bf16.mxu0 0
    %6873 = vmatpush1.bf16.msra.mxu0 %v4247
    %6874 = vmatprep.subr.bf16.mxu0 0
    %6875 = vmatpush1.bf16.msra.mxu0 %v4260
    %6876 = vmatprep.subr.bf16.mxu0 0
    %6877 = vmatpush1.bf16.msra.mxu0 %v4273
    %6878 = vmatprep.subr.bf16.mxu0 0
    %6879 = vmatpush1.bf16.msra.mxu0 %v4286
    %6880 = vmatprep.subr.bf16.mxu0 0
    %6881 = vmatpush1.bf16.msra.mxu0 %v4299
    %6882 = vmatprep.subr.bf16.mxu0 0
    %6883 = vmatpush1.bf16.msra.mxu0 %v4312
    %6884 = vmatprep.subr.bf16.mxu0 0
    %6885 = vmatpush1.bf16.msra.mxu0 %v4325
    %6886 = vmatprep.subr.bf16.mxu0 0
    %6887 = vmatpush1.bf16.msra.mxu0 %v4338
    %6888 = vmatprep.subr.bf16.mxu0 0
    %6889 = vmatpush1.bf16.msra.mxu0 %v4351
    %6890 = vmatprep.subr.bf16.mxu0 0
    %6891 = vmatpush1.bf16.msra.mxu0 %v4364
    %6892 = vmatprep.subr.bf16.mxu0 0
    %6893 = vmatpush1.bf16.msra.mxu0 %v4377
    %6894 = vmatprep.subr.bf16.mxu0 0
    %6895 = vmatpush1.bf16.msra.mxu0 %v4390
    %6896 = vmatprep.subr.bf16.mxu0 0
    %6897 = vmatpush1.bf16.msra.mxu0 %v4403
    %6898 = vmatprep.subr.bf16.mxu0 0
    %6899 = vmatpush1.bf16.msra.mxu0 %v4416
    %6900 = vmatprep.subr.bf16.mxu0 0
    %6901 = vmatpush1.bf16.msra.mxu0 %v4429
    %6902 = vmatprep.mubr.bf16.mxu0 %v759
    %6903 = vmatmul.mubr.bf16.gmra.mrb[0].mxu0 %v758
    %v6904 = vpop.f32.mrb[0].mxu0
    %v6905 = vadd.f32 0.0, %v6904
    %v6906 = vpop.f32.mrb[0].mxu0
    %v6907 = vpop.f32.mrb[0].mxu0
    %v6908 = vpop.f32.mrb[0].mxu0
    %6909 = vdwg.mxu0
    %6910 = vmatprep.subr.bf16.mxu0 0
    %6911 = vmatpush1.bf16.msra.mxu0 %v4442
    %6912 = vmatprep.subr.bf16.mxu0 0
    %6913 = vmatpush1.bf16.msra.mxu0 %v4455
    %6914 = vmatprep.subr.bf16.mxu0 0
    %6915 = vmatpush1.bf16.msra.mxu0 %v4468
    %6916 = vmatprep.subr.bf16.mxu0 0
    %6917 = vmatpush1.bf16.msra.mxu0 %v4481
    %6918 = vmatprep.subr.bf16.mxu0 0
    %6919 = vmatpush1.bf16.msra.mxu0 %v4494
    %6920 = vmatprep.subr.bf16.mxu0 0
    %6921 = vmatpush1.bf16.msra.mxu0 %v4507
    %6922 = vmatprep.subr.bf16.mxu0 0
    %6923 = vmatpush1.bf16.msra.mxu0 %v4520
    %6924 = vmatprep.subr.bf16.mxu0 0
    %6925 = vmatpush1.bf16.msra.mxu0 %v4533
    %6926 = vmatprep.subr.bf16.mxu0 0
    %6927 = vmatpush1.bf16.msra.mxu0 %v4546
    %6928 = vmatprep.subr.bf16.mxu0 0
    %6929 = vmatpush1.bf16.msra.mxu0 %v4559
    %6930 = vmatprep.subr.bf16.mxu0 0
    %6931 = vmatpush1.bf16.msra.mxu0 %v4572
    %6932 = vmatprep.subr.bf16.mxu0 0
    %6933 = vmatpush1.bf16.msra.mxu0 %v4585
    %6934 = vmatprep.subr.bf16.mxu0 0
    %6935 = vmatpush1.bf16.msra.mxu0 %v4598
    %6936 = vmatprep.subr.bf16.mxu0 0
    %6937 = vmatpush1.bf16.msra.mxu0 %v4611
    %6938 = vmatprep.subr.bf16.mxu0 0
    %6939 = vmatpush1.bf16.msra.mxu0 %v4624
    %6940 = vmatprep.subr.bf16.mxu0 0
    %6941 = vmatpush1.bf16.msra.mxu0 %v4637
    %6942 = vmatprep.mubr.bf16.mxu0 %v761
    %6943 = vmatmul.mubr.bf16.gmra.mrb[0].mxu0 %v760
    %v6944 = vpop.f32.mrb[0].mxu0
    %v6945 = vadd.f32 %v6905, %v6944
    %v6946 = vpop.f32.mrb[0].mxu0
    %v6947 = vpop.f32.mrb[0].mxu0
    %v6948 = vpop.f32.mrb[0].mxu0
    %6949 = vdwg.mxu0
    %6950 = vmatprep.subr.bf16.mxu0 0
    %6951 = vmatpush1.bf16.msra.mxu0 %v4650
    %6952 = vmatprep.subr.bf16.mxu0 0
    %6953 = vmatpush1.bf16.msra.mxu0 %v4663
    %6954 = vmatprep.subr.bf16.mxu0 0
    %6955 = vmatpush1.bf16.msra.mxu0 %v4676
    %6956 = vmatprep.subr.bf16.mxu0 0
    %6957 = vmatpush1.bf16.msra.mxu0 %v4689
    %6958 = vmatprep.subr.bf16.mxu0 0
    %6959 = vmatpush1.bf16.msra.mxu0 %v4702
    %6960 = vmatprep.subr.bf16.mxu0 0
    %6961 = vmatpush1.bf16.msra.mxu0 %v4715
    %6962 = vmatprep.subr.bf16.mxu0 0
    %6963 = vmatpush1.bf16.msra.mxu0 %v4728
    %6964 = vmatprep.subr.bf16.mxu0 0
    %6965 = vmatpush1.bf16.msra.mxu0 %v4741
    %6966 = vmatprep.subr.bf16.mxu0 0
    %6967 = vmatpush1.bf16.msra.mxu0 %v4754
    %6968 = vmatprep.subr.bf16.mxu0 0
    %6969 = vmatpush1.bf16.msra.mxu0 %v4767
    %6970 = vmatprep.subr.bf16.mxu0 0
    %6971 = vmatpush1.bf16.msra.mxu0 %v4780
    %6972 = vmatprep.subr.bf16.mxu0 0
    %6973 = vmatpush1.bf16.msra.mxu0 %v4793
    %6974 = vmatprep.subr.bf16.mxu0 0
    %6975 = vmatpush1.bf16.msra.mxu0 %v4806
    %6976 = vmatprep.subr.bf16.mxu0 0
    %6977 = vmatpush1.bf16.msra.mxu0 %v4819
    %6978 = vmatprep.subr.bf16.mxu0 0
    %6979 = vmatpush1.bf16.msra.mxu0 %v4832
    %6980 = vmatprep.subr.bf16.mxu0 0
    %6981 = vmatpush1.bf16.msra.mxu0 %v4845
    %6982 = vmatprep.mubr.bf16.mxu0 %v763
    %6983 = vmatmul.mubr.bf16.gmra.mrb[0].mxu0 %v762
    %v6984 = vpop.f32.mrb[0].mxu0
    %v6985 = vadd.f32 %v6945, %v6984
    %v6986 = vpop.f32.mrb[0].mxu0
    %v6987 = vpop.f32.mrb[0].mxu0
    %v6988 = vpop.f32.mrb[0].mxu0
    %6989 = vdwg.mxu0
    %6990 = vmatprep.subr.bf16.mxu0 0
    %6991 = vmatpush1.bf16.msra.mxu0 %v4858
    %6992 = vmatprep.subr.bf16.mxu0 0
    %6993 = vmatpush1.bf16.msra.mxu0 %v4871
    %6994 = vmatprep.subr.bf16.mxu0 0
    %6995 = vmatpush1.bf16.msra.mxu0 %v4884
    %6996 = vmatprep.subr.bf16.mxu0 0
    %6997 = vmatpush1.bf16.msra.mxu0 %v4897
    %6998 = vmatprep.subr.bf16.mxu0 0
    %6999 = vmatpush1.bf16.msra.mxu0 %v4910
    %7000 = vmatprep.subr.bf16.mxu0 0
    %7001 = vmatpush1.bf16.msra.mxu0 %v4923
    %7002 = vmatprep.subr.bf16.mxu0 0
    %7003 = vmatpush1.bf16.msra.mxu0 %v4936
    %7004 = vmatprep.subr.bf16.mxu0 0
    %7005 = vmatpush1.bf16.msra.mxu0 %v4949
    %7006 = vmatprep.subr.bf16.mxu0 0
    %7007 = vmatpush1.bf16.msra.mxu0 %v4962
    %7008 = vmatprep.subr.bf16.mxu0 0
    %7009 = vmatpush1.bf16.msra.mxu0 %v4975
    %7010 = vmatprep.subr.bf16.mxu0 0
    %7011 = vmatpush1.bf16.msra.mxu0 %v4988
    %7012 = vmatprep.subr.bf16.mxu0 0
    %7013 = vmatpush1.bf16.msra.mxu0 %v5001
    %7014 = vmatprep.subr.bf16.mxu0 0
    %7015 = vmatpush1.bf16.msra.mxu0 %v5014
    %7016 = vmatprep.subr.bf16.mxu0 0
    %7017 = vmatpush1.bf16.msra.mxu0 %v5027
    %7018 = vmatprep.subr.bf16.mxu0 0
    %7019 = vmatpush1.bf16.msra.mxu0 %v5040
    %7020 = vmatprep.subr.bf16.mxu0 0
    %7021 = vmatpush1.bf16.msra.mxu0 %v5053
    %7022 = vmatprep.mubr.bf16.mxu0 %v765
    %7023 = vmatmul.mubr.bf16.gmra.mrb[0].mxu0 %v764
    %v7024 = vpop.f32.mrb[0].mxu0
    %v7025 = vadd.f32 %v6985, %v7024
    %v7026 = vpop.f32.mrb[0].mxu0
    %v7027 = vpop.f32.mrb[0].mxu0
    %v7028 = vpop.f32.mrb[0].mxu0
    %7029 = vdwg.mxu0
    %v7030 = vld [vmem:[#allocation9] sm:$0xff]
    %v7031 = vld [vmem:[#allocation9 + $0x8] sm:$0x1f]
    %v7034 = vlaneseq
    %v7035 = vshrl.u32 %v7034, 7
    %v7036 = vsub.s32 0, %v7035
    %v7037 = vrot.slane %v7030, %v7036
    %v7038 = vlaneseq
    %v7039 = vshrl.u32 %v7038, 7
    %v7040 = vsub.s32 1, %v7039
    %v7041 = vrot.slane %v7030, %v7040
    %v7042 = vlaneseq
    %v7043 = vshrl.u32 %v7042, 7
    %v7044 = vsub.s32 2, %v7043
    %v7045 = vrot.slane %v7030, %v7044
    %v7046 = vlaneseq
    %v7047 = vshrl.u32 %v7046, 7
    %v7048 = vsub.s32 3, %v7047
    %v7049 = vrot.slane %v7030, %v7048
    %v7050 = vlaneseq
    %v7051 = vshrl.u32 %v7050, 7
    %v7052 = vsub.s32 4, %v7051
    %v7053 = vrot.slane %v7030, %v7052
    %v7054 = vlaneseq
    %v7055 = vshrl.u32 %v7054, 7
    %v7056 = vsub.s32 5, %v7055
    %v7057 = vrot.slane %v7030, %v7056
    %v7058 = vlaneseq
    %v7059 = vshrl.u32 %v7058, 7
    %v7060 = vsub.s32 6, %v7059
    %v7061 = vrot.slane %v7030, %v7060
    %v7062 = vlaneseq
    %v7063 = vshrl.u32 %v7062, 7
    %v7064 = vsub.s32 7, %v7063
    %v7065 = vrot.slane %v7030, %v7064
    %v7066 = vlaneseq
    %v7067 = vshrl.u32 %v7066, 7
    %v7068 = vsub.s32 0, %v7067
    %v7069 = vrot.slane %v7031, %v7068
    %v7070 = vlaneseq
    %v7071 = vshrl.u32 %v7070, 7
    %v7072 = vsub.s32 1, %v7071
    %v7073 = vrot.slane %v7031, %v7072
    %v7074 = vlaneseq
    %v7075 = vshrl.u32 %v7074, 7
    %v7076 = vsub.s32 2, %v7075
    %v7077 = vrot.slane %v7031, %v7076
    %v7078 = vlaneseq
    %v7079 = vshrl.u32 %v7078, 7
    %v7080 = vsub.s32 3, %v7079
    %v7081 = vrot.slane %v7031, %v7080
    %v7082 = vlaneseq
    %v7083 = vshrl.u32 %v7082, 7
    %v7084 = vsub.s32 4, %v7083
    %v7085 = vrot.slane %v7031, %v7084
    %v7099 = vmul.f32 %v6044, %v7037
    %v7100 = vmul.f32 %v6046, %v7041
    %v7101 = vmul.f32 %v6208, %v7045
    %v7102 = vmul.f32 %v6210, %v7049
    %v7103 = vmul.f32 %v6372, %v7053
    %v7104 = vmul.f32 %v6374, %v7057
    %v7105 = vmul.f32 %v6536, %v7061
    %v7106 = vmul.f32 %v6538, %v7065
    %v7107 = vmul.f32 %v6700, %v7069
    %v7108 = vmul.f32 %v6702, %v7073
    %v7109 = vmul.f32 %v6864, %v7077
    %v7110 = vmul.f32 %v6866, %v7081
    %v7111 = vmul.f32 %v7025, %v7085
    %v7112 = vld [vmem:[#allocation10] sm:$0xff]
    %v7113 = vld [vmem:[#allocation10 + $0x8] sm:$0x1f]
    %v7116 = vlaneseq
    %v7117 = vshrl.u32 %v7116, 7
    %v7118 = vsub.s32 0, %v7117
    %v7119 = vrot.slane %v7112, %v7118
    %v7120 = vlaneseq
    %v7121 = vshrl.u32 %v7120, 7
    %v7122 = vsub.s32 1, %v7121
    %v7123 = vrot.slane %v7112, %v7122
    %v7124 = vlaneseq
    %v7125 = vshrl.u32 %v7124, 7
    %v7126 = vsub.s32 2, %v7125
    %v7127 = vrot.slane %v7112, %v7126
    %v7128 = vlaneseq
    %v7129 = vshrl.u32 %v7128, 7
    %v7130 = vsub.s32 3, %v7129
    %v7131 = vrot.slane %v7112, %v7130
    %v7132 = vlaneseq
    %v7133 = vshrl.u32 %v7132, 7
    %v7134 = vsub.s32 4, %v7133
    %v7135 = vrot.slane %v7112, %v7134
    %v7136 = vlaneseq
    %v7137 = vshrl.u32 %v7136, 7
    %v7138 = vsub.s32 5, %v7137
    %v7139 = vrot.slane %v7112, %v7138
    %v7140 = vlaneseq
    %v7141 = vshrl.u32 %v7140, 7
    %v7142 = vsub.s32 6, %v7141
    %v7143 = vrot.slane %v7112, %v7142
    %v7144 = vlaneseq
    %v7145 = vshrl.u32 %v7144, 7
    %v7146 = vsub.s32 7, %v7145
    %v7147 = vrot.slane %v7112, %v7146
    %v7148 = vlaneseq
    %v7149 = vshrl.u32 %v7148, 7
    %v7150 = vsub.s32 0, %v7149
    %v7151 = vrot.slane %v7113, %v7150
    %v7152 = vlaneseq
    %v7153 = vshrl.u32 %v7152, 7
    %v7154 = vsub.s32 1, %v7153
    %v7155 = vrot.slane %v7113, %v7154
    %v7156 = vlaneseq
    %v7157 = vshrl.u32 %v7156, 7
    %v7158 = vsub.s32 2, %v7157
    %v7159 = vrot.slane %v7113, %v7158
    %v7160 = vlaneseq
    %v7161 = vshrl.u32 %v7160, 7
    %v7162 = vsub.s32 3, %v7161
    %v7163 = vrot.slane %v7113, %v7162
    %v7164 = vlaneseq
    %v7165 = vshrl.u32 %v7164, 7
    %v7166 = vsub.s32 4, %v7165
    %v7167 = vrot.slane %v7113, %v7166
    %v7181 = vadd.f32 %v7099, %v7119
    %v7182 = vadd.f32 %v7100, %v7123
    %v7183 = vadd.f32 %v7101, %v7127
    %v7184 = vadd.f32 %v7102, %v7131
    %v7185 = vadd.f32 %v7103, %v7135
    %v7186 = vadd.f32 %v7104, %v7139
    %v7187 = vadd.f32 %v7105, %v7143
    %v7188 = vadd.f32 %v7106, %v7147
    %v7189 = vadd.f32 %v7107, %v7151
    %v7190 = vadd.f32 %v7108, %v7155
    %v7191 = vadd.f32 %v7109, %v7159
    %v7192 = vadd.f32 %v7110, %v7163
    %v7193 = vadd.f32 %v7111, %v7167
    %v7194 = vmax.f32 %v7181, 0.0
    %v7195 = vmax.f32 %v7182, 0.0
    %v7196 = vmax.f32 %v7183, 0.0
    %v7197 = vmax.f32 %v7184, 0.0
    %v7198 = vmax.f32 %v7185, 0.0
    %v7199 = vmax.f32 %v7186, 0.0
    %v7200 = vmax.f32 %v7187, 0.0
    %v7201 = vmax.f32 %v7188, 0.0
    %v7202 = vmax.f32 %v7189, 0.0
    %v7203 = vmax.f32 %v7190, 0.0
    %v7204 = vmax.f32 %v7191, 0.0
    %v7205 = vmax.f32 %v7192, 0.0
    %v7206 = vmax.f32 %v7193, 0.0
    %v7207 = vpack.c.bf16 %v7194, %v7194
    %v7208 = vpack.c.bf16 %v7195, %v7195
    %v7209 = vpack.c.bf16 %v7196, %v7196
    %v7210 = vpack.c.bf16 %v7197, %v7197
    %v7211 = vpack.c.bf16 %v7198, %v7198
    %v7212 = vpack.c.bf16 %v7199, %v7199
    %v7213 = vpack.c.bf16 %v7200, %v7200
    %v7214 = vpack.c.bf16 %v7201, %v7201
    %v7215 = vpack.c.bf16 %v7202, %v7202
    %v7216 = vpack.c.bf16 %v7203, %v7203
    %v7217 = vpack.c.bf16 %v7204, %v7204
    %v7218 = vpack.c.bf16 %v7205, %v7205
    %v7219 = vpack.c.bf16 %v7206, %v7206
    %v7233 = vunpack.c.l.b16 %v7207
    %v7234 = vunpack.c.l.b16 %v7208
    %v7235 = vunpack.c.l.b16 %v7209
    %v7236 = vunpack.c.l.b16 %v7210
    %v7237 = vunpack.c.l.b16 %v7211
    %v7238 = vunpack.c.l.b16 %v7212
    %v7239 = vunpack.c.l.b16 %v7213
    %v7240 = vunpack.c.l.b16 %v7214
    %v7241 = vunpack.c.l.b16 %v7215
    %v7242 = vunpack.c.l.b16 %v7216
    %v7243 = vunpack.c.l.b16 %v7217
    %v7244 = vunpack.c.l.b16 %v7218
    %v7245 = vunpack.c.l.b16 %v7219
    %v7246 = vpack.c.b16 %v7234, %v7233
    %v7247 = vpack.c.b16 %v7236, %v7235
    %v7248 = vpack.c.b16 %v7238, %v7237
    %v7249 = vpack.c.b16 %v7240, %v7239
    %v7250 = vpack.c.b16 %v7242, %v7241
    %v7251 = vpack.c.b16 %v7244, %v7243
    %v7252 = vpack.c.b16 %v7245, %v7245
    %7260 = vst [vmem:[%s7] sm:$0xff] %v7246
    %7261 = vst [vmem:[%s7 + $0x8] sm:$0xff] %v7247
    %7262 = vst [vmem:[%s7 + $0x10] sm:$0xff] %v7248
    %7263 = vst [vmem:[%s7 + $0x18] sm:$0xff] %v7249
    %7264 = vst [vmem:[%s7 + $0x20] sm:$0xff] %v7250
    %7265 = vst [vmem:[%s7 + $0x28] sm:$0xff] %v7251
    %7266 = vst [vmem:[%s7 + $0x30] sm:$0xf] %v7252
    // Predicated region
    $region54: #{pallas_forward.2} parent=1 // pred_check
      _
    $region55: #{pallas_forward.2} parent=1 // pred_check_branch
      %7268 = sbr.rel (0) target = $region57
    $region56: #{pallas_forward.2} parent=1 // pred_region
      _
    $region57: #{pallas_forward.2} parent=1 // pred_fallthru
      _
    // Predicated region
    $region58: #{pallas_forward.2} parent=1 // pred_check
      _
    $region59: #{pallas_forward.2} parent=1 // pred_check_branch
      %7270 = sbr.rel (0) target = $region61
    $region60: #{pallas_forward.2} parent=1 // pred_region
      _
    $region61: #{pallas_forward.2} parent=1 // pred_fallthru
      _
    %7271 = vsyncpa [#allocation3], 1
    %7272 = vsyncpa [#allocation5], 1
    %7273 = vsyncpa [#allocation8], 1
    %7274 = vsyncpa [#allocation11], 1

</llo_original>
